<compile_context>
chip_gen: v5e
topology: v5e:2x2
jax: 0.10.0
libtpu: 0.0.40
codegen_flags: <defaults>
</compile_context>

<pallas_src>
import functools

import jax
import jax.numpy as jnp
from jax import lax
from jax.experimental import pallas as pl
from jax.experimental.pallas import tpu as pltpu


# ----------------------------------------------------------------------------
# Pallas kernel: fused 2-layer GCN encoder over a tile of T skeletons.
# All operands are 2-D, lane-dense, VMEM-resident.
#   x_ref   : [T, N*Cin]   streaming input tile (f32)
#   m*_ref  : kron(A_hat.T, W*) fused aggregation+transform operators
#             (m1 f32 [N*Cin, N*HID], m2 bf16 [N*HID, N*OUT])
#   pm*_ref : [N*H, N]  group-mean factor (entries 1/H on the node block)
#   pb*_ref : [N, N*H]  group broadcast indicator
#   b*/ga*/be* : bias / LN gamma / LN beta, tiled to [1, N*H]
#   o_ref   : [T, N*OUT]   streaming output tile (lane-dense, 512 lanes)
# ----------------------------------------------------------------------------
def _gcn_encoder_kernel(x_ref,
                        m1_ref, pm1_ref, pb1_ref, b1_ref, ga1_ref, be1_ref,
                        m2_ref, pm2_ref, pb2_ref, b2_ref, ga2_ref, be2_ref,
                        o_ref):
    eps = 1e-5  # nn.LayerNorm default

    def gcn_ln_relu(h_in, m_ref, pm_ref, pb_ref, b_ref, ga_ref, be_ref):
        # Fused GCN aggregation + linear transform: h_flat @ kron(A_hat.T, W) + b
        z = jnp.dot(h_in, m_ref[...], preferred_element_type=jnp.float32) + b_ref[...]
        # Per-node LayerNorm stats via factored narrow matmuls (f32 for accuracy):
        #   mean/var over each node's feature group, then broadcast back.
        mu = jnp.dot(z, pm_ref[...], preferred_element_type=jnp.float32)        # [T, N]
        c = z - jnp.dot(mu, pb_ref[...], preferred_element_type=jnp.float32)    # [T, N*H]
        var = jnp.dot(c * c, pm_ref[...], preferred_element_type=jnp.float32)   # [T, N]
        inv = lax.rsqrt(var + eps)                       # rsqrt on narrow stats only
        inv_b = jnp.dot(inv, pb_ref[...], preferred_element_type=jnp.float32)   # [T, N*H]
        h = c * inv_b * ga_ref[...] + be_ref[...]
        return jnp.maximum(h, 0.0)

    x = x_ref[...]                                                       # [T, N*Cin]

    # ---- layer 1: GCNConv + LayerNorm + ReLU (f32 matmul; tiny K) -----------
    h1 = gcn_ln_relu(x, m1_ref, pm1_ref, pb1_ref, b1_ref, ga1_ref, be1_ref)
    # dropout between layers: identity at inference (no RNG)

    # ---- layer 2: GCNConv + LayerNorm + ReLU (bf16 MXU feed, f32 accumulate) -
    h2 = gcn_ln_relu(h1.astype(m2_ref.dtype),
                     m2_ref, pm2_ref, pb2_ref, b2_ref, ga2_ref, be2_ref)

    o_ref[...] = h2.astype(o_ref.dtype)


# ----------------------------------------------------------------------------
# One-time (hoisted) setup: dense normalized adjacency + fused operators
# ----------------------------------------------------------------------------
def build_gcn_adjacency(edge_index: jnp.ndarray, num_nodes: int) -> jnp.ndarray:
    """A_hat = D^-1/2 (A + I) D^-1/2 with A[dst, src] = 1 for each edge src->dst.

    NOTE: duplicate edges are deduplicated and explicit self-loops would get
    weight 2.0 (differs from torch_geometric gcn_norm in those corner cases);
    exact for simple skeleton topologies like the chain used here.
    """
    src = edge_index[0]
    dst = edge_index[1]
    a = jnp.zeros((num_nodes, num_nodes), jnp.float32)
    a = a.at[dst, src].set(1.0)                       # messages flow src -> dst
    a = a + jnp.eye(num_nodes, dtype=jnp.float32)     # add self loops
    deg = jnp.sum(a, axis=1)
    dinv = jnp.where(deg > 0, lax.rsqrt(deg), 0.0)
    return dinv[:, None] * a * dinv[None, :]


def precompute_fused_operators(params, edge_index, num_nodes):
    """Runs ONCE (outside the jitted hot path).

    Fuses the shared adjacency with the layer weights:
       (A_hat @ X @ W) flattened node-major  ==  x_flat @ kron(A_hat.T, W)
    and builds *factored* group-stat matrices so per-node LayerNorm mean/var
    become two narrow matmuls (no in-kernel reshapes, no dense [N*H, N*H])."""
    n = num_nodes
    a = build_gcn_adjacency(edge_index, n)
    hid = params["w1"].shape[1]
    out = params["w2"].shape[1]
    eye = jnp.eye(n, dtype=jnp.float32)

    def p_mean(width):   # [n*width, n] : column i averages node i's feature group
        return jnp.kron(eye, jnp.full((width, 1), 1.0 / width, jnp.float32))

    def p_bcast(width):  # [n, n*width] : row i broadcasts into node i's group
        return jnp.kron(eye, jnp.ones((1, width), jnp.float32))

    return {
        # layer 1 operator kept f32 (tiny; preserves LN numerics)
        "m1": jnp.kron(a.T, params["w1"]).astype(jnp.float32),    # [N*Cin, N*HID]
        "pm1": p_mean(hid), "pb1": p_bcast(hid),
        "b1": jnp.tile(params["b1"], (1, n)),                     # [1, N*HID]
        "ga1": jnp.tile(params["g1"], (1, n)),
        "be1": jnp.tile(params["be1"], (1, n)),
        # layer 2 operator in bf16: the dominant MXU op and the largest weight
        "m2": jnp.kron(a.T, params["w2"]).astype(jnp.bfloat16),   # [N*HID, N*OUT]
        "pm2": p_mean(out), "pb2": p_bcast(out),
        "b2": jnp.tile(params["b2"], (1, n)),
        "ga2": jnp.tile(params["g2"], (1, n)),
        "be2": jnp.tile(params["be2"], (1, n)),
    }


# ----------------------------------------------------------------------------
# Jitted hot path: batched forward
# ----------------------------------------------------------------------------
@functools.partial(jax.jit, static_argnames=("tile",))
def skeleton_gnn_encoder(x, fused, *, tile=256):
    """x: [B, N, Cin] (or [N, Cin]) -> [B, N, OUT] (or [N, OUT])."""
    squeeze = x.ndim == 2
    if squeeze:
        x = x[None]
    b, n, cin = x.shape

    n_cin = fused["m1"].shape[0]
    n_hid = fused["m1"].shape[1]
    n_out = fused["m2"].shape[1]
    out_c = n_out // n
    assert n_cin == n * cin

    # Flatten node/feature dims (node-major, feature-minor) and pad batch to tile.
    x_flat = x.reshape(b, n_cin).astype(jnp.float32)
    bp = ((b + tile - 1) // tile) * tile
    if bp != b:
        x_flat = jnp.pad(x_flat, ((0, bp - b), (0, 0)))

    grid = (bp // tile,)

    def resident(shape):  # same block every grid step -> stays in VMEM, no re-DMA
        return pl.BlockSpec(shape, lambda i: (0, 0))

    # main matmuls + 4 narrow LN-stat matmuls per layer
    flops = 2 * bp * (n_cin * n_hid + 4 * n * n_hid
                      + n_hid * n_out + 4 * n * n_out)
    weight_bytes = sum(int(v.size) * v.dtype.itemsize for v in fused.values())
    bytes_accessed = 4 * bp * n_cin + 4 * bp * n_out + weight_bytes

    out_flat = pl.pallas_call(
        _gcn_encoder_kernel,
        out_shape=jax.ShapeDtypeStruct((bp, n_out), jnp.float32),
        grid=grid,
        in_specs=[
            pl.BlockSpec((tile, n_cin), lambda i: (i, 0)),          # x streams in
            resident(fused["m1"].shape),                            # m1  (f32)
            resident(fused["pm1"].shape), resident(fused["pb1"].shape),
            resident((1, n_hid)), resident((1, n_hid)), resident((1, n_hid)),
            resident(fused["m2"].shape),                            # m2  (bf16)
            resident(fused["pm2"].shape), resident(fused["pb2"].shape),
            resident((1, n_out)), resident((1, n_out)), resident((1, n_out)),
        ],
        out_specs=pl.BlockSpec((tile, n_out), lambda i: (i, 0)),    # lane-dense out
        compiler_params=pltpu.CompilerParams(
            dimension_semantics=("parallel",),                      # megacore on v7x
            vmem_limit_bytes=32 * 1024 * 1024),
        cost_estimate=pl.CostEstimate(
            flops=flops,
            transcendentals=2 * bp * n,          # rsqrt on narrow [T, N] per layer
            bytes_accessed=bytes_accessed),
    )(
        x_flat,
        fused["m1"], fused["pm1"], fused["pb1"], fused["b1"], fused["ga1"], fused["be1"],
        fused["m2"], fused["pm2"], fused["pb2"], fused["b2"], fused["ga2"], fused["be2"],
    )

    out = out_flat[:b].reshape(b, n, out_c)
    if squeeze:
        out = out[0]
    return out


# ----------------------------------------------------------------------------
# Pure-JAX reference (per-skeleton f32 math, vmapped over the batch)
# ----------------------------------------------------------------------------
def reference(x_batch, edge_index, params, num_nodes):
    a = build_gcn_adjacency(edge_index, num_nodes)

    def layer(h, w, bias, g, be):
        h = a @ (h @ w) + bias
        mu = jnp.mean(h, axis=-1, keepdims=True)
        var = jnp.mean((h - mu) ** 2, axis=-1, keepdims=True)
        h = (h - mu) / jnp.sqrt(var + 1e-5) * g + be
        return jnp.maximum(h, 0.0)

    def single(x):
        h = layer(x, params["w1"], params["b1"], params["g1"], params["be1"])
        return layer(h, params["w2"], params["b2"], params["g2"], params["be2"])

    return jax.vmap(single)(x_batch)


# ----------------------------------------------------------------------------
# Main
# ----------------------------------------------------------------------------
if __name__ == "__main__":
    # SkeletonGNNEncoder(in_channels=2, hidden_channels=32, out_channels=32,
    #                    gnn_type='gcn', num_gnn_layers=2, dropout=0.1)
    N = 16          # joints (nodes) per skeleton
    IN_C = 2        # (x, y) coordinates
    HID = 32
    OUT = 32
    B = 500         # skeletons batched behind a single pallas_call (pads to 512)

    key = jax.random.PRNGKey(0)
    k = jax.random.split(key, 6)

    # Batched node features [B, N, in_channels]
    x = jax.random.normal(k[0], (B, N, IN_C), jnp.float32)

    # Skeleton connectivity: simple chain, both directions, [2, E] (shared topology)
    src = jnp.concatenate([jnp.arange(N - 1), jnp.arange(1, N)])
    dst = jnp.concatenate([jnp.arange(1, N), jnp.arange(N - 1)])
    edge_index = jnp.stack([src, dst]).astype(jnp.int32)

    # Deterministic parameter init (synthetic, not a checkpoint load).
    params = {
        "w1": 0.1 * jax.random.normal(k[1], (IN_C, HID), jnp.float32),
        "b1": 0.01 * jax.random.normal(k[2], (1, HID), jnp.float32),
        "g1": jnp.ones((1, HID), jnp.float32),
        "be1": jnp.zeros((1, HID), jnp.float32),
        "w2": 0.1 * jax.random.normal(k[3], (HID, OUT), jnp.float32),
        "b2": 0.01 * jax.random.normal(k[4], (1, OUT), jnp.float32),
        "g2": jnp.ones((1, OUT), jnp.float32),
        "be2": jnp.zeros((1, OUT), jnp.float32),
    }

    # Hoisted one-time setup (adjacency scatter + operator fusion): NOT in hot path.
    fused = precompute_fused_operators(params, edge_index, N)
    fused = jax.tree_util.tree_map(jax.block_until_ready, fused)

    # tile=256: fills the 256-wide MXU (v6e/v7x) and gives grid=(2,) -> one step
    # per v7x TensorCore.  On v5e a single-step tile (512) would also be fine.
    out = skeleton_gnn_encoder(x, fused, tile=256)
    out = jax.block_until_ready(out)

    with jax.default_matmul_precision("float32"):
        ref = jax.block_until_ready(reference(x, edge_index, params, N))

    assert out.shape == (B, N, OUT)
    diff = jnp.abs(out - ref)
    # Tolerance loosened for the bf16 layer-2 MXU feed (f32 accumulate, f32 LN stats).
    assert float(jnp.mean(diff)) < 1e-2, f"mean |diff| too large: {float(jnp.mean(diff))}"
    assert jnp.allclose(out, ref, atol=1e-1, rtol=1e-1), (
        "mismatch vs reference: max |diff| = "
        f"{float(jnp.max(diff))}")

    print("KERNEL_OK")
</pallas_src>

<mosaic_0001>
module attributes {stable_mosaic.version = 11 : i64} {
  func.func @_gcn_encoder_kernel(%arg0: i32, %arg1: memref<256x32xf32, #tpu.memory_space<vmem>>, %arg2: memref<32x512xf32, #tpu.memory_space<vmem>>, %arg3: memref<512x16xf32, #tpu.memory_space<vmem>>, %arg4: memref<16x512xf32, #tpu.memory_space<vmem>>, %arg5: memref<1x512xf32, #tpu.memory_space<vmem>>, %arg6: memref<1x512xf32, #tpu.memory_space<vmem>>, %arg7: memref<1x512xf32, #tpu.memory_space<vmem>>, %arg8: memref<512x512xbf16, #tpu.memory_space<vmem>>, %arg9: memref<512x16xf32, #tpu.memory_space<vmem>>, %arg10: memref<16x512xf32, #tpu.memory_space<vmem>>, %arg11: memref<1x512xf32, #tpu.memory_space<vmem>>, %arg12: memref<1x512xf32, #tpu.memory_space<vmem>>, %arg13: memref<1x512xf32, #tpu.memory_space<vmem>>, %arg14: memref<256x512xf32, #tpu.memory_space<vmem>>) attributes {dimension_semantics = [#tpu.dimension_semantics<parallel>], iteration_bounds = array<i64: 2>, scalar_prefetch = 0 : i64, scratch_operands = 0 : i64, tpu.core_type = #tpu.core_type<tc>, window_params = [{transform_indices = @transform_0, window_bounds = array<i64: 256, 32>}, {pipeline_mode = #tpu.pipeline_mode<synchronous>, transform_indices = @transform_1, window_bounds = array<i64: 32, 512>}, {pipeline_mode = #tpu.pipeline_mode<synchronous>, transform_indices = @transform_2, window_bounds = array<i64: 512, 16>}, {pipeline_mode = #tpu.pipeline_mode<synchronous>, transform_indices = @transform_3, window_bounds = array<i64: 16, 512>}, {pipeline_mode = #tpu.pipeline_mode<synchronous>, transform_indices = @transform_4, window_bounds = array<i64: 1, 512>}, {pipeline_mode = #tpu.pipeline_mode<synchronous>, transform_indices = @transform_5, window_bounds = array<i64: 1, 512>}, {pipeline_mode = #tpu.pipeline_mode<synchronous>, transform_indices = @transform_6, window_bounds = array<i64: 1, 512>}, {pipeline_mode = #tpu.pipeline_mode<synchronous>, transform_indices = @transform_7, window_bounds = array<i64: 512, 512>}, {pipeline_mode = #tpu.pipeline_mode<synchronous>, transform_indices = @transform_8, window_bounds = array<i64: 512, 16>}, {pipeline_mode = #tpu.pipeline_mode<synchronous>, transform_indices = @transform_9, window_bounds = array<i64: 16, 512>}, {pipeline_mode = #tpu.pipeline_mode<synchronous>, transform_indices = @transform_10, window_bounds = array<i64: 1, 512>}, {pipeline_mode = #tpu.pipeline_mode<synchronous>, transform_indices = @transform_11, window_bounds = array<i64: 1, 512>}, {pipeline_mode = #tpu.pipeline_mode<synchronous>, transform_indices = @transform_12, window_bounds = array<i64: 1, 512>}, {transform_indices = @transform_13, window_bounds = array<i64: 256, 512>}]} {
    %c0 = arith.constant 0 : index
    %c0_0 = arith.constant 0 : index
    %0 = vector.load %arg1[%c0, %c0_0] : memref<256x32xf32, #tpu.memory_space<vmem>>, vector<256x32xf32>
    %c0_1 = arith.constant 0 : index
    %c0_2 = arith.constant 0 : index
    %1 = vector.load %arg2[%c0_1, %c0_2] : memref<32x512xf32, #tpu.memory_space<vmem>>, vector<32x512xf32>
    %cst = arith.constant dense<0.000000e+00> : vector<256x512xf32>
    %2 = tpu.matmul %0, %1, %cst {dimension_numbers = #tpu.dot_dimension_numbers<[1], [0], [0], [1], [0, 0, 1, 1], [], []>} : vector<256x32xf32>, vector<32x512xf32>, vector<256x512xf32> -> vector<256x512xf32>
    %c0_3 = arith.constant 0 : index
    %c0_4 = arith.constant 0 : index
    %3 = vector.load %arg5[%c0_3, %c0_4] : memref<1x512xf32, #tpu.memory_space<vmem>>, vector<1x512xf32>
    %4 = vector.broadcast %3 : vector<1x512xf32> to vector<256x512xf32>
    %5 = arith.addf %2, %4 : vector<256x512xf32>
    %c0_5 = arith.constant 0 : index
    %c0_6 = arith.constant 0 : index
    %6 = vector.load %arg3[%c0_5, %c0_6] : memref<512x16xf32, #tpu.memory_space<vmem>>, vector<512x16xf32>
    %cst_7 = arith.constant dense<0.000000e+00> : vector<256x16xf32>
    %7 = tpu.matmul %5, %6, %cst_7 {dimension_numbers = #tpu.dot_dimension_numbers<[1], [0], [0], [1], [0, 0, 1, 1], [], []>} : vector<256x512xf32>, vector<512x16xf32>, vector<256x16xf32> -> vector<256x16xf32>
    %c0_8 = arith.constant 0 : index
    %c0_9 = arith.constant 0 : index
    %8 = vector.load %arg4[%c0_8, %c0_9] : memref<16x512xf32, #tpu.memory_space<vmem>>, vector<16x512xf32>
    %cst_10 = arith.constant dense<0.000000e+00> : vector<256x512xf32>
    %9 = tpu.matmul %7, %8, %cst_10 {dimension_numbers = #tpu.dot_dimension_numbers<[1], [0], [0], [1], [0, 0, 1, 1], [], []>} : vector<256x16xf32>, vector<16x512xf32>, vector<256x512xf32> -> vector<256x512xf32>
    %10 = arith.subf %5, %9 : vector<256x512xf32>
    %11 = arith.mulf %10, %10 : vector<256x512xf32>
    %c0_11 = arith.constant 0 : index
    %c0_12 = arith.constant 0 : index
    %12 = vector.load %arg3[%c0_11, %c0_12] : memref<512x16xf32, #tpu.memory_space<vmem>>, vector<512x16xf32>
    %cst_13 = arith.constant dense<0.000000e+00> : vector<256x16xf32>
    %13 = tpu.matmul %11, %12, %cst_13 {dimension_numbers = #tpu.dot_dimension_numbers<[1], [0], [0], [1], [0, 0, 1, 1], [], []>} : vector<256x512xf32>, vector<512x16xf32>, vector<256x16xf32> -> vector<256x16xf32>
    %cst_14 = arith.constant 9.99999974E-6 : f32
    %14 = vector.broadcast %cst_14 : f32 to vector<256x16xf32>
    %15 = arith.addf %13, %14 : vector<256x16xf32>
    %16 = math.rsqrt %15 : vector<256x16xf32>
    %c0_15 = arith.constant 0 : index
    %c0_16 = arith.constant 0 : index
    %17 = vector.load %arg4[%c0_15, %c0_16] : memref<16x512xf32, #tpu.memory_space<vmem>>, vector<16x512xf32>
    %cst_17 = arith.constant dense<0.000000e+00> : vector<256x512xf32>
    %18 = tpu.matmul %16, %17, %cst_17 {dimension_numbers = #tpu.dot_dimension_numbers<[1], [0], [0], [1], [0, 0, 1, 1], [], []>} : vector<256x16xf32>, vector<16x512xf32>, vector<256x512xf32> -> vector<256x512xf32>
    %19 = arith.mulf %10, %18 : vector<256x512xf32>
    %c0_18 = arith.constant 0 : index
    %c0_19 = arith.constant 0 : index
    %20 = vector.load %arg6[%c0_18, %c0_19] : memref<1x512xf32, #tpu.memory_space<vmem>>, vector<1x512xf32>
    %21 = vector.broadcast %20 : vector<1x512xf32> to vector<256x512xf32>
    %22 = arith.mulf %19, %21 : vector<256x512xf32>
    %c0_20 = arith.constant 0 : index
    %c0_21 = arith.constant 0 : index
    %23 = vector.load %arg7[%c0_20, %c0_21] : memref<1x512xf32, #tpu.memory_space<vmem>>, vector<1x512xf32>
    %24 = vector.broadcast %23 : vector<1x512xf32> to vector<256x512xf32>
    %25 = arith.addf %22, %24 : vector<256x512xf32>
    %cst_22 = arith.constant 0.000000e+00 : f32
    %26 = vector.broadcast %cst_22 : f32 to vector<256x512xf32>
    %27 = arith.maximumf %25, %26 : vector<256x512xf32>
    %28 = arith.truncf %27 : vector<256x512xf32> to vector<256x512xbf16>
    %c0_23 = arith.constant 0 : index
    %c0_24 = arith.constant 0 : index
    %29 = vector.load %arg8[%c0_23, %c0_24] : memref<512x512xbf16, #tpu.memory_space<vmem>>, vector<512x512xbf16>
    %cst_25 = arith.constant dense<0.000000e+00> : vector<256x512xf32>
    %30 = tpu.matmul %28, %29, %cst_25 {dimension_numbers = #tpu.dot_dimension_numbers<[1], [0], [0], [1], [0, 0, 1, 1], [], []>} : vector<256x512xbf16>, vector<512x512xbf16>, vector<256x512xf32> -> vector<256x512xf32>
    %c0_26 = arith.constant 0 : index
    %c0_27 = arith.constant 0 : index
    %31 = vector.load %arg11[%c0_26, %c0_27] : memref<1x512xf32, #tpu.memory_space<vmem>>, vector<1x512xf32>
    %32 = vector.broadcast %31 : vector<1x512xf32> to vector<256x512xf32>
    %33 = arith.addf %30, %32 : vector<256x512xf32>
    %c0_28 = arith.constant 0 : index
    %c0_29 = arith.constant 0 : index
    %34 = vector.load %arg9[%c0_28, %c0_29] : memref<512x16xf32, #tpu.memory_space<vmem>>, vector<512x16xf32>
    %cst_30 = arith.constant dense<0.000000e+00> : vector<256x16xf32>
    %35 = tpu.matmul %33, %34, %cst_30 {dimension_numbers = #tpu.dot_dimension_numbers<[1], [0], [0], [1], [0, 0, 1, 1], [], []>} : vector<256x512xf32>, vector<512x16xf32>, vector<256x16xf32> -> vector<256x16xf32>
    %c0_31 = arith.constant 0 : index
    %c0_32 = arith.constant 0 : index
    %36 = vector.load %arg10[%c0_31, %c0_32] : memref<16x512xf32, #tpu.memory_space<vmem>>, vector<16x512xf32>
    %cst_33 = arith.constant dense<0.000000e+00> : vector<256x512xf32>
    %37 = tpu.matmul %35, %36, %cst_33 {dimension_numbers = #tpu.dot_dimension_numbers<[1], [0], [0], [1], [0, 0, 1, 1], [], []>} : vector<256x16xf32>, vector<16x512xf32>, vector<256x512xf32> -> vector<256x512xf32>
    %38 = arith.subf %33, %37 : vector<256x512xf32>
    %39 = arith.mulf %38, %38 : vector<256x512xf32>
    %c0_34 = arith.constant 0 : index
    %c0_35 = arith.constant 0 : index
    %40 = vector.load %arg9[%c0_34, %c0_35] : memref<512x16xf32, #tpu.memory_space<vmem>>, vector<512x16xf32>
    %cst_36 = arith.constant dense<0.000000e+00> : vector<256x16xf32>
    %41 = tpu.matmul %39, %40, %cst_36 {dimension_numbers = #tpu.dot_dimension_numbers<[1], [0], [0], [1], [0, 0, 1, 1], [], []>} : vector<256x512xf32>, vector<512x16xf32>, vector<256x16xf32> -> vector<256x16xf32>
    %cst_37 = arith.constant 9.99999974E-6 : f32
    %42 = vector.broadcast %cst_37 : f32 to vector<256x16xf32>
    %43 = arith.addf %41, %42 : vector<256x16xf32>
    %44 = math.rsqrt %43 : vector<256x16xf32>
    %c0_38 = arith.constant 0 : index
    %c0_39 = arith.constant 0 : index
    %45 = vector.load %arg10[%c0_38, %c0_39] : memref<16x512xf32, #tpu.memory_space<vmem>>, vector<16x512xf32>
    %cst_40 = arith.constant dense<0.000000e+00> : vector<256x512xf32>
    %46 = tpu.matmul %44, %45, %cst_40 {dimension_numbers = #tpu.dot_dimension_numbers<[1], [0], [0], [1], [0, 0, 1, 1], [], []>} : vector<256x16xf32>, vector<16x512xf32>, vector<256x512xf32> -> vector<256x512xf32>
    %47 = arith.mulf %38, %46 : vector<256x512xf32>
    %c0_41 = arith.constant 0 : index
    %c0_42 = arith.constant 0 : index
    %48 = vector.load %arg12[%c0_41, %c0_42] : memref<1x512xf32, #tpu.memory_space<vmem>>, vector<1x512xf32>
    %49 = vector.broadcast %48 : vector<1x512xf32> to vector<256x512xf32>
    %50 = arith.mulf %47, %49 : vector<256x512xf32>
    %c0_43 = arith.constant 0 : index
    %c0_44 = arith.constant 0 : index
    %51 = vector.load %arg13[%c0_43, %c0_44] : memref<1x512xf32, #tpu.memory_space<vmem>>, vector<1x512xf32>
    %52 = vector.broadcast %51 : vector<1x512xf32> to vector<256x512xf32>
    %53 = arith.addf %50, %52 : vector<256x512xf32>
    %cst_45 = arith.constant 0.000000e+00 : f32
    %54 = vector.broadcast %cst_45 : f32 to vector<256x512xf32>
    %55 = arith.maximumf %53, %54 : vector<256x512xf32>
    %c0_46 = arith.constant 0 : index
    %c0_47 = arith.constant 0 : index
    %56 = vector.load %arg14[%c0_46, %c0_47] : memref<256x512xf32, #tpu.memory_space<vmem>>, vector<256x512xf32>
    tpu.vector_store %arg14[%c0_46, %c0_47], %55 {strides = array<i32>} : memref<256x512xf32, #tpu.memory_space<vmem>>, vector<256x512xf32>,
    return
  }
  func.func @transform_0(%arg0: i32) -> (i32, i32) {
    %c0_i32 = arith.constant 0 : i32
    %c0_i32_0 = arith.constant 0 : i32
    return %arg0, %c0_i32 : i32, i32
  }
  func.func @transform_1(%arg0: i32) -> (i32, i32) {
    %c0_i32 = arith.constant 0 : i32
    %c0_i32_0 = arith.constant 0 : i32
    %c0_i32_1 = arith.constant 0 : i32
    return %c0_i32, %c0_i32_0 : i32, i32
  }
  func.func @transform_2(%arg0: i32) -> (i32, i32) {
    %c0_i32 = arith.constant 0 : i32
    %c0_i32_0 = arith.constant 0 : i32
    %c0_i32_1 = arith.constant 0 : i32
    return %c0_i32, %c0_i32_0 : i32, i32
  }
  func.func @transform_3(%arg0: i32) -> (i32, i32) {
    %c0_i32 = arith.constant 0 : i32
    %c0_i32_0 = arith.constant 0 : i32
    %c0_i32_1 = arith.constant 0 : i32
    return %c0_i32, %c0_i32_0 : i32, i32
  }
  func.func @transform_4(%arg0: i32) -> (i32, i32) {
    %c0_i32 = arith.constant 0 : i32
    %c0_i32_0 = arith.constant 0 : i32
    %c0_i32_1 = arith.constant 0 : i32
    return %c0_i32, %c0_i32_0 : i32, i32
  }
  func.func @transform_5(%arg0: i32) -> (i32, i32) {
    %c0_i32 = arith.constant 0 : i32
    %c0_i32_0 = arith.constant 0 : i32
    %c0_i32_1 = arith.constant 0 : i32
    return %c0_i32, %c0_i32_0 : i32, i32
  }
  func.func @transform_6(%arg0: i32) -> (i32, i32) {
    %c0_i32 = arith.constant 0 : i32
    %c0_i32_0 = arith.constant 0 : i32
    %c0_i32_1 = arith.constant 0 : i32
    return %c0_i32, %c0_i32_0 : i32, i32
  }
  func.func @transform_7(%arg0: i32) -> (i32, i32) {
    %c0_i32 = arith.constant 0 : i32
    %c0_i32_0 = arith.constant 0 : i32
    %c0_i32_1 = arith.constant 0 : i32
    return %c0_i32, %c0_i32_0 : i32, i32
  }
  func.func @transform_8(%arg0: i32) -> (i32, i32) {
    %c0_i32 = arith.constant 0 : i32
    %c0_i32_0 = arith.constant 0 : i32
    %c0_i32_1 = arith.constant 0 : i32
    return %c0_i32, %c0_i32_0 : i32, i32
  }
  func.func @transform_9(%arg0: i32) -> (i32, i32) {
    %c0_i32 = arith.constant 0 : i32
    %c0_i32_0 = arith.constant 0 : i32
    %c0_i32_1 = arith.constant 0 : i32
    return %c0_i32, %c0_i32_0 : i32, i32
  }
  func.func @transform_10(%arg0: i32) -> (i32, i32) {
    %c0_i32 = arith.constant 0 : i32
    %c0_i32_0 = arith.constant 0 : i32
    %c0_i32_1 = arith.constant 0 : i32
    return %c0_i32, %c0_i32_0 : i32, i32
  }
  func.func @transform_11(%arg0: i32) -> (i32, i32) {
    %c0_i32 = arith.constant 0 : i32
    %c0_i32_0 = arith.constant 0 : i32
    %c0_i32_1 = arith.constant 0 : i32
    return %c0_i32, %c0_i32_0 : i32, i32
  }
  func.func @transform_12(%arg0: i32) -> (i32, i32) {
    %c0_i32 = arith.constant 0 : i32
    %c0_i32_0 = arith.constant 0 : i32
    %c0_i32_1 = arith.constant 0 : i32
    return %c0_i32, %c0_i32_0 : i32, i32
  }
  func.func @transform_13(%arg0: i32) -> (i32, i32) {
    %c0_i32 = arith.constant 0 : i32
    %c0_i32_0 = arith.constant 0 : i32
    return %arg0, %c0_i32 : i32, i32
  }
}

</mosaic_0001>

<llo_original>
// kernel: skeleton_gnn_encoder.1
$region0: #{skeleton_gnn_encoder.1}
  #allocation0 [shape = 'u32[]', space=smem, size = 0x4, offset = 0x4, fixed_abs, tag = 'smem constant byte address 0x4 - core index']
  #allocation1 [shape = 'u32[72,128]{1,0:T(1,128)}', space=vmem, size = 0x9000, scoped, tag = 'internal scratch']
  %s0 = inlined_call_operand.vmem [shape: f32[512,32], index: 0, kind: input, shape index: {}]
  %s1 = inlined_call_operand.vmem [shape: f32[32,512], index: 1, kind: input, shape index: {}]
  %s2 = inlined_call_operand.vmem [shape: f32[512,16], index: 2, kind: input, shape index: {}]
  %s3 = inlined_call_operand.vmem [shape: f32[16,512], index: 3, kind: input, shape index: {}]
  %s4 = inlined_call_operand.vmem [shape: f32[1,512], index: 4, kind: input, shape index: {}]
  %s5 = inlined_call_operand.vmem [shape: f32[1,512], index: 5, kind: input, shape index: {}]
  %s6 = inlined_call_operand.vmem [shape: f32[1,512], index: 6, kind: input, shape index: {}]
  %s7 = inlined_call_operand.vmem [shape: bf16[512,512], index: 7, kind: input, shape index: {}]
  %s8 = inlined_call_operand.vmem [shape: f32[512,16], index: 8, kind: input, shape index: {}]
  %s9 = inlined_call_operand.vmem [shape: f32[16,512], index: 9, kind: input, shape index: {}]
  %s10 = inlined_call_operand.vmem [shape: f32[1,512], index: 10, kind: input, shape index: {}]
  %s11 = inlined_call_operand.vmem [shape: f32[1,512], index: 11, kind: input, shape index: {}]
  %s12 = inlined_call_operand.vmem [shape: f32[1,512], index: 12, kind: input, shape index: {}]
  %s13 = inlined_call_operand.vmem [shape: f32[512,512], index: 13, kind: output, shape index: {}]
  %s14 = sld [smem:[#allocation0]]
  $region85: #{skeleton_gnn_encoder.1} parent=0
    _
  %s16 = ssub.s32 1, %s14
  %s17 = scalar_select 0, %s16, %s14
  loop: start=0, step=1, limit=4
  $region2: #{skeleton_gnn_encoder.1} parent=0 // loop_pre_header
    _
  $region3: #{skeleton_gnn_encoder.1} parent=0 // loop_header
    %s19 = sphi 0, %s23
    %p20 = scmp.ge.s32.totalorder %s19, 4
    %s29 = sphi 0, %s31
    %s32 = sphi 0, %s29
    %s33 = sphi 0, %s32
    %s49 = sphi 0, %s33
    %s53 = sphi 0, %s53
    %s55 = sphi 0, %s53
    %s56 = sphi 0, %s55
    %s70 = sphi 0, %s56
    %s74 = sphi 0, %s74
    %s76 = sphi 0, %s74
    %s77 = sphi 0, %s76
    %s91 = sphi 0, %s77
    %s95 = sphi 0, %s95
    %s97 = sphi 0, %s95
    %s98 = sphi 0, %s97
    %s112 = sphi 0, %s98
    %s116 = sphi 0, %s116
    %s118 = sphi 0, %s116
    %s119 = sphi 0, %s118
    %s133 = sphi 0, %s119
    %s137 = sphi 0, %s137
    %s139 = sphi 0, %s137
    %s140 = sphi 0, %s139
    %s154 = sphi 0, %s140
    %s158 = sphi 0, %s158
    %s160 = sphi 0, %s158
    %s161 = sphi 0, %s160
    %s175 = sphi 0, %s161
    %s179 = sphi 0, %s179
    %s181 = sphi 0, %s179
    %s182 = sphi 0, %s181
    %s196 = sphi 0, %s182
    %s200 = sphi 0, %s200
    %s202 = sphi 0, %s200
    %s203 = sphi 0, %s202
    %s217 = sphi 0, %s203
    %s221 = sphi 0, %s221
    %s223 = sphi 0, %s221
    %s224 = sphi 0, %s223
    %s238 = sphi 0, %s224
    %s242 = sphi 0, %s242
    %s244 = sphi 0, %s242
    %s245 = sphi 0, %s244
    %s259 = sphi 0, %s245
    %s263 = sphi 0, %s263
    %s265 = sphi 0, %s263
    %s266 = sphi 0, %s265
    %s280 = sphi 0, %s266
    %s284 = sphi 0, %s284
    %s286 = sphi 0, %s284
    %s287 = sphi 0, %s286
    %s301 = sphi 0, %s287
    %s307 = sphi 0, %s309
    %s310 = sphi 0, %s307
    %s311 = sphi 0, %s310
    %s327 = sphi 0, %s311
  $region4: #{skeleton_gnn_encoder.1} parent=0 // loop_header_branch
    %22 = sbr.rel (%p20) target = $region8
  $region5: #{skeleton_gnn_encoder.1} parent=0 // loop_body
    %s24 = ssub.s32 %s19, 1
    %s25 = ssub.s32 %s19, 2
    %s26 = sadd.s32 %s19, 1
    %s27 = ssub.s32 %s19, %s26
    %p28 = scmp.eq.s32.totalorder %s27, 0
    %s30 = sadd.s32 %s29, 1
    %s31 = scalar_select %p28, %s29, %s30
    %p34 = pneg %p28
    %p35 = scmp.eq.s32.totalorder %s19, 1
    %p36 = por %p34, %p35
    %p37 = scmp.ne.s32.totalorder %s29, %s32
    %p38 = scmp.eq.s32.totalorder %s19, 0
    %p39 = por %p37, %p38
    %p40 = scmp.ne.s32.totalorder %s29, %s32
    %p41 = scmp.eq.s32.totalorder %s24, 1
    %p42 = por %p40, %p41
    %p43 = scmp.ne.s32.totalorder %s32, %s33
    %p44 = scmp.eq.s32.totalorder %s24, 0
    %p45 = por %p43, %p44
    %p46 = scmp.ne.s32.totalorder %s32, %s33
    %p47 = scmp.eq.s32.totalorder %s25, 1
    %p48 = por %p46, %p47
    %p50 = scmp.ne.s32.totalorder %s33, %s49
    %p51 = scmp.eq.s32.totalorder %s25, 0
    %p52 = por %p50, %p51
    %s54 = sadd.s32 %s53, 1
    %p57 = scmp.eq.s32.totalorder %s19, 1
    %p58 = scmp.ne.s32.totalorder %s53, %s55
    %p59 = scmp.eq.s32.totalorder %s19, 0
    %p60 = por %p58, %p59
    %p61 = scmp.ne.s32.totalorder %s53, %s55
    %p62 = scmp.eq.s32.totalorder %s24, 1
    %p63 = por %p61, %p62
    %p64 = scmp.ne.s32.totalorder %s55, %s56
    %p65 = scmp.eq.s32.totalorder %s24, 0
    %p66 = por %p64, %p65
    %p67 = scmp.ne.s32.totalorder %s55, %s56
    %p68 = scmp.eq.s32.totalorder %s25, 1
    %p69 = por %p67, %p68
    %p71 = scmp.ne.s32.totalorder %s56, %s70
    %p72 = scmp.eq.s32.totalorder %s25, 0
    %p73 = por %p71, %p72
    %s75 = sadd.s32 %s74, 1
    %p78 = scmp.eq.s32.totalorder %s19, 1
    %p79 = scmp.ne.s32.totalorder %s74, %s76
    %p80 = scmp.eq.s32.totalorder %s19, 0
    %p81 = por %p79, %p80
    %p82 = scmp.ne.s32.totalorder %s74, %s76
    %p83 = scmp.eq.s32.totalorder %s24, 1
    %p84 = por %p82, %p83
    %p85 = scmp.ne.s32.totalorder %s76, %s77
    %p86 = scmp.eq.s32.totalorder %s24, 0
    %p87 = por %p85, %p86
    %p88 = scmp.ne.s32.totalorder %s76, %s77
    %p89 = scmp.eq.s32.totalorder %s25, 1
    %p90 = por %p88, %p89
    %p92 = scmp.ne.s32.totalorder %s77, %s91
    %p93 = scmp.eq.s32.totalorder %s25, 0
    %p94 = por %p92, %p93
    %s96 = sadd.s32 %s95, 1
    %p99 = scmp.eq.s32.totalorder %s19, 1
    %p100 = scmp.ne.s32.totalorder %s95, %s97
    %p101 = scmp.eq.s32.totalorder %s19, 0
    %p102 = por %p100, %p101
    %p103 = scmp.ne.s32.totalorder %s95, %s97
    %p104 = scmp.eq.s32.totalorder %s24, 1
    %p105 = por %p103, %p104
    %p106 = scmp.ne.s32.totalorder %s97, %s98
    %p107 = scmp.eq.s32.totalorder %s24, 0
    %p108 = por %p106, %p107
    %p109 = scmp.ne.s32.totalorder %s97, %s98
    %p110 = scmp.eq.s32.totalorder %s25, 1
    %p111 = por %p109, %p110
    %p113 = scmp.ne.s32.totalorder %s98, %s112
    %p114 = scmp.eq.s32.totalorder %s25, 0
    %p115 = por %p113, %p114
    %s117 = sadd.s32 %s116, 1
    %p120 = scmp.eq.s32.totalorder %s19, 1
    %p121 = scmp.ne.s32.totalorder %s116, %s118
    %p122 = scmp.eq.s32.totalorder %s19, 0
    %p123 = por %p121, %p122
    %p124 = scmp.ne.s32.totalorder %s116, %s118
    %p125 = scmp.eq.s32.totalorder %s24, 1
    %p126 = por %p124, %p125
    %p127 = scmp.ne.s32.totalorder %s118, %s119
    %p128 = scmp.eq.s32.totalorder %s24, 0
    %p129 = por %p127, %p128
    %p130 = scmp.ne.s32.totalorder %s118, %s119
    %p131 = scmp.eq.s32.totalorder %s25, 1
    %p132 = por %p130, %p131
    %p134 = scmp.ne.s32.totalorder %s119, %s133
    %p135 = scmp.eq.s32.totalorder %s25, 0
    %p136 = por %p134, %p135
    %s138 = sadd.s32 %s137, 1
    %p141 = scmp.eq.s32.totalorder %s19, 1
    %p142 = scmp.ne.s32.totalorder %s137, %s139
    %p143 = scmp.eq.s32.totalorder %s19, 0
    %p144 = por %p142, %p143
    %p145 = scmp.ne.s32.totalorder %s137, %s139
    %p146 = scmp.eq.s32.totalorder %s24, 1
    %p147 = por %p145, %p146
    %p148 = scmp.ne.s32.totalorder %s139, %s140
    %p149 = scmp.eq.s32.totalorder %s24, 0
    %p150 = por %p148, %p149
    %p151 = scmp.ne.s32.totalorder %s139, %s140
    %p152 = scmp.eq.s32.totalorder %s25, 1
    %p153 = por %p151, %p152
    %p155 = scmp.ne.s32.totalorder %s140, %s154
    %p156 = scmp.eq.s32.totalorder %s25, 0
    %p157 = por %p155, %p156
    %s159 = sadd.s32 %s158, 1
    %p162 = scmp.eq.s32.totalorder %s19, 1
    %p163 = scmp.ne.s32.totalorder %s158, %s160
    %p164 = scmp.eq.s32.totalorder %s19, 0
    %p165 = por %p163, %p164
    %p166 = scmp.ne.s32.totalorder %s158, %s160
    %p167 = scmp.eq.s32.totalorder %s24, 1
    %p168 = por %p166, %p167
    %p169 = scmp.ne.s32.totalorder %s160, %s161
    %p170 = scmp.eq.s32.totalorder %s24, 0
    %p171 = por %p169, %p170
    %p172 = scmp.ne.s32.totalorder %s160, %s161
    %p173 = scmp.eq.s32.totalorder %s25, 1
    %p174 = por %p172, %p173
    %p176 = scmp.ne.s32.totalorder %s161, %s175
    %p177 = scmp.eq.s32.totalorder %s25, 0
    %p178 = por %p176, %p177
    %s180 = sadd.s32 %s179, 1
    %p183 = scmp.eq.s32.totalorder %s19, 1
    %p184 = scmp.ne.s32.totalorder %s179, %s181
    %p185 = scmp.eq.s32.totalorder %s19, 0
    %p186 = por %p184, %p185
    %p187 = scmp.ne.s32.totalorder %s179, %s181
    %p188 = scmp.eq.s32.totalorder %s24, 1
    %p189 = por %p187, %p188
    %p190 = scmp.ne.s32.totalorder %s181, %s182
    %p191 = scmp.eq.s32.totalorder %s24, 0
    %p192 = por %p190, %p191
    %p193 = scmp.ne.s32.totalorder %s181, %s182
    %p194 = scmp.eq.s32.totalorder %s25, 1
    %p195 = por %p193, %p194
    %p197 = scmp.ne.s32.totalorder %s182, %s196
    %p198 = scmp.eq.s32.totalorder %s25, 0
    %p199 = por %p197, %p198
    %s201 = sadd.s32 %s200, 1
    %p204 = scmp.eq.s32.totalorder %s19, 1
    %p205 = scmp.ne.s32.totalorder %s200, %s202
    %p206 = scmp.eq.s32.totalorder %s19, 0
    %p207 = por %p205, %p206
    %p208 = scmp.ne.s32.totalorder %s200, %s202
    %p209 = scmp.eq.s32.totalorder %s24, 1
    %p210 = por %p208, %p209
    %p211 = scmp.ne.s32.totalorder %s202, %s203
    %p212 = scmp.eq.s32.totalorder %s24, 0
    %p213 = por %p211, %p212
    %p214 = scmp.ne.s32.totalorder %s202, %s203
    %p215 = scmp.eq.s32.totalorder %s25, 1
    %p216 = por %p214, %p215
    %p218 = scmp.ne.s32.totalorder %s203, %s217
    %p219 = scmp.eq.s32.totalorder %s25, 0
    %p220 = por %p218, %p219
    %s222 = sadd.s32 %s221, 1
    %p225 = scmp.eq.s32.totalorder %s19, 1
    %p226 = scmp.ne.s32.totalorder %s221, %s223
    %p227 = scmp.eq.s32.totalorder %s19, 0
    %p228 = por %p226, %p227
    %p229 = scmp.ne.s32.totalorder %s221, %s223
    %p230 = scmp.eq.s32.totalorder %s24, 1
    %p231 = por %p229, %p230
    %p232 = scmp.ne.s32.totalorder %s223, %s224
    %p233 = scmp.eq.s32.totalorder %s24, 0
    %p234 = por %p232, %p233
    %p235 = scmp.ne.s32.totalorder %s223, %s224
    %p236 = scmp.eq.s32.totalorder %s25, 1
    %p237 = por %p235, %p236
    %p239 = scmp.ne.s32.totalorder %s224, %s238
    %p240 = scmp.eq.s32.totalorder %s25, 0
    %p241 = por %p239, %p240
    %s243 = sadd.s32 %s242, 1
    %p246 = scmp.eq.s32.totalorder %s19, 1
    %p247 = scmp.ne.s32.totalorder %s242, %s244
    %p248 = scmp.eq.s32.totalorder %s19, 0
    %p249 = por %p247, %p248
    %p250 = scmp.ne.s32.totalorder %s242, %s244
    %p251 = scmp.eq.s32.totalorder %s24, 1
    %p252 = por %p250, %p251
    %p253 = scmp.ne.s32.totalorder %s244, %s245
    %p254 = scmp.eq.s32.totalorder %s24, 0
    %p255 = por %p253, %p254
    %p256 = scmp.ne.s32.totalorder %s244, %s245
    %p257 = scmp.eq.s32.totalorder %s25, 1
    %p258 = por %p256, %p257
    %p260 = scmp.ne.s32.totalorder %s245, %s259
    %p261 = scmp.eq.s32.totalorder %s25, 0
    %p262 = por %p260, %p261
    %s264 = sadd.s32 %s263, 1
    %p267 = scmp.eq.s32.totalorder %s19, 1
    %p268 = scmp.ne.s32.totalorder %s263, %s265
    %p269 = scmp.eq.s32.totalorder %s19, 0
    %p270 = por %p268, %p269
    %p271 = scmp.ne.s32.totalorder %s263, %s265
    %p272 = scmp.eq.s32.totalorder %s24, 1
    %p273 = por %p271, %p272
    %p274 = scmp.ne.s32.totalorder %s265, %s266
    %p275 = scmp.eq.s32.totalorder %s24, 0
    %p276 = por %p274, %p275
    %p277 = scmp.ne.s32.totalorder %s265, %s266
    %p278 = scmp.eq.s32.totalorder %s25, 1
    %p279 = por %p277, %p278
    %p281 = scmp.ne.s32.totalorder %s266, %s280
    %p282 = scmp.eq.s32.totalorder %s25, 0
    %p283 = por %p281, %p282
    %s285 = sadd.s32 %s284, 1
    %p288 = scmp.eq.s32.totalorder %s19, 1
    %p289 = scmp.ne.s32.totalorder %s284, %s286
    %p290 = scmp.eq.s32.totalorder %s19, 0
    %p291 = por %p289, %p290
    %p292 = scmp.ne.s32.totalorder %s284, %s286
    %p293 = scmp.eq.s32.totalorder %s24, 1
    %p294 = por %p292, %p293
    %p295 = scmp.ne.s32.totalorder %s286, %s287
    %p296 = scmp.eq.s32.totalorder %s24, 0
    %p297 = por %p295, %p296
    %p298 = scmp.ne.s32.totalorder %s286, %s287
    %p299 = scmp.eq.s32.totalorder %s25, 1
    %p300 = por %p298, %p299
    %p302 = scmp.ne.s32.totalorder %s287, %s301
    %p303 = scmp.eq.s32.totalorder %s25, 0
    %p304 = por %p302, %p303
    %s305 = ssub.s32 %s19, %s26
    %p306 = scmp.eq.s32.totalorder %s305, 0
    %s308 = sadd.s32 %s307, 1
    %s309 = scalar_select %p306, %s307, %s308
    %p312 = pneg %p306
    %p313 = scmp.eq.s32.totalorder %s19, 1
    %p314 = por %p312, %p313
    %p315 = scmp.ne.s32.totalorder %s307, %s310
    %p316 = scmp.eq.s32.totalorder %s19, 0
    %p317 = por %p315, %p316
    %p318 = scmp.ne.s32.totalorder %s307, %s310
    %p319 = scmp.eq.s32.totalorder %s24, 1
    %p320 = por %p318, %p319
    %p321 = scmp.ne.s32.totalorder %s310, %s311
    %p322 = scmp.eq.s32.totalorder %s24, 0
    %p323 = por %p321, %p322
    %p324 = scmp.ne.s32.totalorder %s310, %s311
    %p325 = scmp.eq.s32.totalorder %s25, 1
    %p326 = por %p324, %p325
    %p328 = scmp.ne.s32.totalorder %s311, %s327
    %p329 = scmp.eq.s32.totalorder %s25, 0
    %p330 = por %p328, %p329
    %p331 = scmp.le.s32.totalorder 1, %s19
    %p332 = scmp.lt.s32.totalorder %s19, 3
    %p333 = pnand %p331, %p332
    %p334 = pneg %p333
    // Predicated region
    $region9: #{skeleton_gnn_encoder.1} parent=5 // pred_check
      _
    $region10: #{skeleton_gnn_encoder.1} parent=5 // pred_check_branch
      %336 = sbr.rel (%p333) target = $region12
    $region11: #{skeleton_gnn_encoder.1} parent=5 // pred_region
      %s337 = ssub.s32 %s19, 1
      // Predicated region
      $region13: #{skeleton_gnn_encoder.1} parent=11 // pred_check
        %p338 = pneg %p66
      $region14: #{skeleton_gnn_encoder.1} parent=11 // pred_check_branch
        %340 = sbr.rel (%p338) target = $region16
      $region15: #{skeleton_gnn_encoder.1} parent=11 // pred_region
        _
      $region16: #{skeleton_gnn_encoder.1} parent=11 // pred_fallthru
        _
      // Predicated region
      $region17: #{skeleton_gnn_encoder.1} parent=11 // pred_check
        %p341 = pneg %p87
      $region18: #{skeleton_gnn_encoder.1} parent=11 // pred_check_branch
        %343 = sbr.rel (%p341) target = $region20
      $region19: #{skeleton_gnn_encoder.1} parent=11 // pred_region
        _
      $region20: #{skeleton_gnn_encoder.1} parent=11 // pred_fallthru
        _
      // Predicated region
      $region21: #{skeleton_gnn_encoder.1} parent=11 // pred_check
        %p344 = pneg %p108
      $region22: #{skeleton_gnn_encoder.1} parent=11 // pred_check_branch
        %346 = sbr.rel (%p344) target = $region24
      $region23: #{skeleton_gnn_encoder.1} parent=11 // pred_region
        _
      $region24: #{skeleton_gnn_encoder.1} parent=11 // pred_fallthru
        _
      // Predicated region
      $region25: #{skeleton_gnn_encoder.1} parent=11 // pred_check
        %p347 = pneg %p129
      $region26: #{skeleton_gnn_encoder.1} parent=11 // pred_check_branch
        %349 = sbr.rel (%p347) target = $region28
      $region27: #{skeleton_gnn_encoder.1} parent=11 // pred_region
        _
      $region28: #{skeleton_gnn_encoder.1} parent=11 // pred_fallthru
        _
      // Predicated region
      $region29: #{skeleton_gnn_encoder.1} parent=11 // pred_check
        %p350 = pneg %p150
      $region30: #{skeleton_gnn_encoder.1} parent=11 // pred_check_branch
        %352 = sbr.rel (%p350) target = $region32
      $region31: #{skeleton_gnn_encoder.1} parent=11 // pred_region
        _
      $region32: #{skeleton_gnn_encoder.1} parent=11 // pred_fallthru
        _
      // Predicated region
      $region33: #{skeleton_gnn_encoder.1} parent=11 // pred_check
        %p353 = pneg %p171
      $region34: #{skeleton_gnn_encoder.1} parent=11 // pred_check_branch
        %355 = sbr.rel (%p353) target = $region36
      $region35: #{skeleton_gnn_encoder.1} parent=11 // pred_region
        _
      $region36: #{skeleton_gnn_encoder.1} parent=11 // pred_fallthru
        _
      // Predicated region
      $region37: #{skeleton_gnn_encoder.1} parent=11 // pred_check
        %p356 = pneg %p192
      $region38: #{skeleton_gnn_encoder.1} parent=11 // pred_check_branch
        %358 = sbr.rel (%p356) target = $region40
      $region39: #{skeleton_gnn_encoder.1} parent=11 // pred_region
        _
      $region40: #{skeleton_gnn_encoder.1} parent=11 // pred_fallthru
        _
      // Predicated region
      $region41: #{skeleton_gnn_encoder.1} parent=11 // pred_check
        %p359 = pneg %p213
      $region42: #{skeleton_gnn_encoder.1} parent=11 // pred_check_branch
        %361 = sbr.rel (%p359) target = $region44
      $region43: #{skeleton_gnn_encoder.1} parent=11 // pred_region
        _
      $region44: #{skeleton_gnn_encoder.1} parent=11 // pred_fallthru
        _
      // Predicated region
      $region45: #{skeleton_gnn_encoder.1} parent=11 // pred_check
        %p362 = pneg %p234
      $region46: #{skeleton_gnn_encoder.1} parent=11 // pred_check_branch
        %364 = sbr.rel (%p362) target = $region48
      $region47: #{skeleton_gnn_encoder.1} parent=11 // pred_region
        _
      $region48: #{skeleton_gnn_encoder.1} parent=11 // pred_fallthru
        _
      // Predicated region
      $region49: #{skeleton_gnn_encoder.1} parent=11 // pred_check
        %p365 = pneg %p255
      $region50: #{skeleton_gnn_encoder.1} parent=11 // pred_check_branch
        %367 = sbr.rel (%p365) target = $region52
      $region51: #{skeleton_gnn_encoder.1} parent=11 // pred_region
        _
      $region52: #{skeleton_gnn_encoder.1} parent=11 // pred_fallthru
        _
      // Predicated region
      $region53: #{skeleton_gnn_encoder.1} parent=11 // pred_check
        %p368 = pneg %p276
      $region54: #{skeleton_gnn_encoder.1} parent=11 // pred_check_branch
        %370 = sbr.rel (%p368) target = $region56
      $region55: #{skeleton_gnn_encoder.1} parent=11 // pred_region
        _
      $region56: #{skeleton_gnn_encoder.1} parent=11 // pred_fallthru
        _
      // Predicated region
      $region57: #{skeleton_gnn_encoder.1} parent=11 // pred_check
        %p371 = pneg %p297
      $region58: #{skeleton_gnn_encoder.1} parent=11 // pred_check_branch
        %373 = sbr.rel (%p371) target = $region60
      $region59: #{skeleton_gnn_encoder.1} parent=11 // pred_region
        _
      $region60: #{skeleton_gnn_encoder.1} parent=11 // pred_fallthru
        _
    $region12: #{skeleton_gnn_encoder.1} parent=5 // pred_fallthru
      _
    %p374 = scmp.lt.s32.totalorder %s19, 2
    // Predicated region
    $region61: #{skeleton_gnn_encoder.1} parent=5 // pred_check
      %p375 = pneg %p374
    $region62: #{skeleton_gnn_encoder.1} parent=5 // pred_check_branch
      %377 = sbr.rel (%p375) target = $region64
    $region63: #{skeleton_gnn_encoder.1} parent=5 // pred_region
      // Predicated region
      $region65: #{skeleton_gnn_encoder.1} parent=63 // pred_check
        %p378 = pneg %p39
      $region66: #{skeleton_gnn_encoder.1} parent=63 // pred_check_branch
        %380 = sbr.rel (%p378) target = $region68
      $region67: #{skeleton_gnn_encoder.1} parent=63 // pred_region
        %s381 = smul.u32 32, %s19
        %p382 = scmp.lt.s32.totalorder %s381, 63
        %s383 = scalar_select %p382, %s381, 63
        %s384 = smul.addr %s383, 8
        %s385 = scalar_lea.vmem %s0, %s384
        %s386 = smul.u32 32, %s19
      $region68: #{skeleton_gnn_encoder.1} parent=63 // pred_fallthru
        _
    $region64: #{skeleton_gnn_encoder.1} parent=5 // pred_fallthru
      _
    %p387 = scmp.le.s32.totalorder 1, %s19
    %p388 = scmp.lt.s32.totalorder %s19, 3
    %p389 = pnand %p387, %p388
    %p390 = pneg %p389
    // Predicated region
    $region69: #{skeleton_gnn_encoder.1} parent=5 // pred_check
      _
    $region70: #{skeleton_gnn_encoder.1} parent=5 // pred_check_branch
      %392 = sbr.rel (%p389) target = $region72
    $region71: #{skeleton_gnn_encoder.1} parent=5 // pred_region
      %s393 = ssub.s32 %s19, 1
      %s394 = smul.u32 32, %s24
      %p395 = scmp.lt.s32.totalorder %s394, 63
      %s396 = scalar_select %p395, %s394, 63
      %s397 = smul.addr %s396, 8
      %s398 = scalar_lea.vmem %s0, %s397
      %p399 = pneg %p45
      %p400 = pneg %p42
      %p401 = pneg %p66
      %p402 = pneg %p63
      %p403 = pneg %p87
      %p404 = pneg %p84
      %p405 = pneg %p108
      %p406 = pneg %p105
      %p407 = pneg %p129
      %p408 = pneg %p126
      %p409 = pneg %p150
      %p410 = pneg %p147
      %p411 = pneg %p171
      %p412 = pneg %p168
      %p413 = pneg %p192
      %p414 = pneg %p189
      %p415 = pneg %p213
      %p416 = pneg %p210
      %p417 = pneg %p234
      %p418 = pneg %p231
      %p419 = pneg %p255
      %p420 = pneg %p252
      %p421 = pneg %p276
      %p422 = pneg %p273
      %p423 = pneg %p297
      %p424 = pneg %p294
      %p425 = pneg %p323
      %p426 = pneg %p320
      %s427 = smul.u32 32, %s24
      %p428 = scmp.lt.s32.totalorder %s427, 63
      %s429 = scalar_select %p428, %s427, 63
      %s430 = smul.addr %s429, 4
      %s431 = smul.addr %s430, 8
      %s432 = scalar_lea.vmem %s13, %s431
      %s433 = smul.u32 32, %s24
      %p434 = scmp.lt.s32.totalorder %s433, 63
      %s435 = scalar_select %p434, %s433, 63
      %s436 = smul.addr %s435, 8
      %s437 = scalar_lea.vmem %s0, %s436
      %s438 = smul.u32 32, %s24
      %s439 = smul.u32 32, %s24
      %p440 = scmp.lt.s32.totalorder %s439, 63
      %s441 = scalar_select %p440, %s439, 63
      %s442 = smul.addr %s441, 4
      %s443 = smul.addr %s442, 8
      %s444 = scalar_lea.vmem %s13, %s443
      %s445 = smul.u32 32, %s24
      %v446 = vld [vmem:[%s437] sm:$0xff]
      %v447 = vld [vmem:[%s437 + $0x8] sm:$0xff]
      %v448 = vld [vmem:[%s437 + $0x10] sm:$0xff]
      %v449 = vld [vmem:[%s437 + $0x18] sm:$0xff]
      %v450 = vld [vmem:[%s437 + $0x20] sm:$0xff]
      %v451 = vld [vmem:[%s437 + $0x28] sm:$0xff]
      %v452 = vld [vmem:[%s437 + $0x30] sm:$0xff]
      %v453 = vld [vmem:[%s437 + $0x38] sm:$0xff]
      %v454 = vld [vmem:[%s437 + $0x40] sm:$0xff]
      %v455 = vld [vmem:[%s437 + $0x48] sm:$0xff]
      %v456 = vld [vmem:[%s437 + $0x50] sm:$0xff]
      %v457 = vld [vmem:[%s437 + $0x58] sm:$0xff]
      %v458 = vld [vmem:[%s437 + $0x60] sm:$0xff]
      %v459 = vld [vmem:[%s437 + $0x68] sm:$0xff]
      %v460 = vld [vmem:[%s437 + $0x70] sm:$0xff]
      %v461 = vld [vmem:[%s437 + $0x78] sm:$0xff]
      %v462 = vld [vmem:[%s437 + $0x80] sm:$0xff]
      %v463 = vld [vmem:[%s437 + $0x88] sm:$0xff]
      %v464 = vld [vmem:[%s437 + $0x90] sm:$0xff]
      %v465 = vld [vmem:[%s437 + $0x98] sm:$0xff]
      %v466 = vld [vmem:[%s437 + $0xa0] sm:$0xff]
      %v467 = vld [vmem:[%s437 + $0xa8] sm:$0xff]
      %v468 = vld [vmem:[%s437 + $0xb0] sm:$0xff]
      %v469 = vld [vmem:[%s437 + $0xb8] sm:$0xff]
      %v470 = vld [vmem:[%s437 + $0xc0] sm:$0xff]
      %v471 = vld [vmem:[%s437 + $0xc8] sm:$0xff]
      %v472 = vld [vmem:[%s437 + $0xd0] sm:$0xff]
      %v473 = vld [vmem:[%s437 + $0xd8] sm:$0xff]
      %v474 = vld [vmem:[%s437 + $0xe0] sm:$0xff]
      %v475 = vld [vmem:[%s437 + $0xe8] sm:$0xff]
      %v476 = vld [vmem:[%s437 + $0xf0] sm:$0xff]
      %v477 = vld [vmem:[%s437 + $0xf8] sm:$0xff]
      %v478 = vld [vmem:[%s1] sm:$0xff]
      %v479 = vld [vmem:[%s1 + $0x8] sm:$0xff]
      %v480 = vld [vmem:[%s1 + $0x10] sm:$0xff]
      %v481 = vld [vmem:[%s1 + $0x18] sm:$0xff]
      %v482 = vld [vmem:[%s1 + $0x20] sm:$0xff]
      %v483 = vld [vmem:[%s1 + $0x28] sm:$0xff]
      %v484 = vld [vmem:[%s1 + $0x30] sm:$0xff]
      %v485 = vld [vmem:[%s1 + $0x38] sm:$0xff]
      %v486 = vld [vmem:[%s1 + $0x40] sm:$0xff]
      %v487 = vld [vmem:[%s1 + $0x48] sm:$0xff]
      %v488 = vld [vmem:[%s1 + $0x50] sm:$0xff]
      %v489 = vld [vmem:[%s1 + $0x58] sm:$0xff]
      %v490 = vld [vmem:[%s1 + $0x60] sm:$0xff]
      %v491 = vld [vmem:[%s1 + $0x68] sm:$0xff]
      %v492 = vld [vmem:[%s1 + $0x70] sm:$0xff]
      %v493 = vld [vmem:[%s1 + $0x78] sm:$0xff]
      %v494 = vld [vmem:[%s4] sm:$0xf]
      %v496 = vperm.slane %v494, 0
      %v497 = vperm.slane %v494, 1
      %v498 = vperm.slane %v494, 2
      %v499 = vperm.slane %v494, 3
      %vm504 = vcmask 261120
      %v506 = vsel %vm504, %v446, 0
      %v509 = vsel %vm504, %v447, 0
      %v512 = vsel %vm504, %v448, 0
      %v515 = vsel %vm504, %v449, 0
      %v518 = vsel %vm504, %v450, 0
      %v521 = vsel %vm504, %v451, 0
      %v524 = vsel %vm504, %v452, 0
      %v527 = vsel %vm504, %v453, 0
      %v530 = vsel %vm504, %v454, 0
      %v533 = vsel %vm504, %v455, 0
      %v536 = vsel %vm504, %v456, 0
      %v539 = vsel %vm504, %v457, 0
      %v542 = vsel %vm504, %v458, 0
      %v545 = vsel %vm504, %v459, 0
      %v548 = vsel %vm504, %v460, 0
      %v551 = vsel %vm504, %v461, 0
      %v554 = vsel %vm504, %v462, 0
      %v557 = vsel %vm504, %v463, 0
      %v560 = vsel %vm504, %v464, 0
      %v563 = vsel %vm504, %v465, 0
      %v566 = vsel %vm504, %v466, 0
      %v569 = vsel %vm504, %v467, 0
      %v572 = vsel %vm504, %v468, 0
      %v575 = vsel %vm504, %v469, 0
      %v578 = vsel %vm504, %v470, 0
      %v581 = vsel %vm504, %v471, 0
      %v584 = vsel %vm504, %v472, 0
      %v587 = vsel %vm504, %v473, 0
      %v590 = vsel %vm504, %v474, 0
      %v593 = vsel %vm504, %v475, 0
      %v596 = vsel %vm504, %v476, 0
      %v599 = vsel %vm504, %v477, 0
      %601 = vmatpush.msra.mxu0 0.0
      %602 = vmatpush.msra.mxu0 0.0
      %603 = vmatpush.msra.mxu0 0.0
      %604 = vmatpush.msra.mxu0 0.0
      %605 = vmatpush.msra.mxu0 0.0
      %606 = vmatpush.msra.mxu0 0.0
      %607 = vmatpush.msra.mxu0 0.0
      %608 = vmatpush.msra.mxu0 0.0
      %609 = vmatpush.msra.mxu0 0.0
      %610 = vmatpush.msra.mxu0 0.0
      %611 = vmatpush.msra.mxu0 0.0
      %612 = vmatpush.msra.mxu0 0.0
      %613 = vmatpush.msra.mxu0 %v490
      %614 = vmatpush.msra.mxu0 %v486
      %615 = vmatpush.msra.mxu0 %v482
      %616 = vmatpush.msra.mxu0 %v478
      %617 = vmatmul.f32.gmra.mxu0 %v506
      %v618 = vpop.f32.mrf.mxu0
      %v619 = vadd.f32 %v496, %v618
      %620 = vmatmul.f32.gmra.mxu0 %v509
      %v621 = vpop.f32.mrf.mxu0
      %v622 = vadd.f32 %v496, %v621
      %623 = vmatmul.f32.gmra.mxu0 %v512
      %v624 = vpop.f32.mrf.mxu0
      %v625 = vadd.f32 %v496, %v624
      %626 = vmatmul.f32.gmra.mxu0 %v515
      %v627 = vpop.f32.mrf.mxu0
      %v628 = vadd.f32 %v496, %v627
      %629 = vmatmul.f32.gmra.mxu0 %v518
      %v630 = vpop.f32.mrf.mxu0
      %v631 = vadd.f32 %v496, %v630
      %632 = vmatmul.f32.gmra.mxu0 %v521
      %v633 = vpop.f32.mrf.mxu0
      %v634 = vadd.f32 %v496, %v633
      %635 = vmatmul.f32.gmra.mxu0 %v524
      %v636 = vpop.f32.mrf.mxu0
      %v637 = vadd.f32 %v496, %v636
      %638 = vmatmul.f32.gmra.mxu0 %v527
      %v639 = vpop.f32.mrf.mxu0
      %v640 = vadd.f32 %v496, %v639
      %641 = vmatmul.f32.gmra.mxu0 %v530
      %v642 = vpop.f32.mrf.mxu0
      %v643 = vadd.f32 %v496, %v642
      %644 = vmatmul.f32.gmra.mxu0 %v533
      %v645 = vpop.f32.mrf.mxu0
      %v646 = vadd.f32 %v496, %v645
      %647 = vmatmul.f32.gmra.mxu0 %v536
      %v648 = vpop.f32.mrf.mxu0
      %v649 = vadd.f32 %v496, %v648
      %650 = vmatmul.f32.gmra.mxu0 %v539
      %v651 = vpop.f32.mrf.mxu0
      %v652 = vadd.f32 %v496, %v651
      %653 = vmatmul.f32.gmra.mxu0 %v542
      %v654 = vpop.f32.mrf.mxu0
      %v655 = vadd.f32 %v496, %v654
      %656 = vmatmul.f32.gmra.mxu0 %v545
      %v657 = vpop.f32.mrf.mxu0
      %v658 = vadd.f32 %v496, %v657
      %659 = vmatmul.f32.gmra.mxu0 %v548
      %v660 = vpop.f32.mrf.mxu0
      %v661 = vadd.f32 %v496, %v660
      %662 = vmatmul.f32.gmra.mxu0 %v551
      %v663 = vpop.f32.mrf.mxu0
      %v664 = vadd.f32 %v496, %v663
      %665 = vmatmul.f32.gmra.mxu0 %v554
      %v666 = vpop.f32.mrf.mxu0
      %v667 = vadd.f32 %v496, %v666
      %668 = vmatmul.f32.gmra.mxu0 %v557
      %v669 = vpop.f32.mrf.mxu0
      %v670 = vadd.f32 %v496, %v669
      %671 = vmatmul.f32.gmra.mxu0 %v560
      %v672 = vpop.f32.mrf.mxu0
      %v673 = vadd.f32 %v496, %v672
      %674 = vmatmul.f32.gmra.mxu0 %v563
      %v675 = vpop.f32.mrf.mxu0
      %v676 = vadd.f32 %v496, %v675
      %677 = vmatmul.f32.gmra.mxu0 %v566
      %v678 = vpop.f32.mrf.mxu0
      %v679 = vadd.f32 %v496, %v678
      %680 = vmatmul.f32.gmra.mxu0 %v569
      %v681 = vpop.f32.mrf.mxu0
      %v682 = vadd.f32 %v496, %v681
      %683 = vmatmul.f32.gmra.mxu0 %v572
      %v684 = vpop.f32.mrf.mxu0
      %v685 = vadd.f32 %v496, %v684
      %686 = vmatmul.f32.gmra.mxu0 %v575
      %v687 = vpop.f32.mrf.mxu0
      %v688 = vadd.f32 %v496, %v687
      %689 = vmatmul.f32.gmra.mxu0 %v578
      %v690 = vpop.f32.mrf.mxu0
      %v691 = vadd.f32 %v496, %v690
      %692 = vmatmul.f32.gmra.mxu0 %v581
      %v693 = vpop.f32.mrf.mxu0
      %v694 = vadd.f32 %v496, %v693
      %695 = vmatmul.f32.gmra.mxu0 %v584
      %v696 = vpop.f32.mrf.mxu0
      %v697 = vadd.f32 %v496, %v696
      %698 = vmatmul.f32.gmra.mxu0 %v587
      %v699 = vpop.f32.mrf.mxu0
      %v700 = vadd.f32 %v496, %v699
      %701 = vmatmul.f32.gmra.mxu0 %v590
      %v702 = vpop.f32.mrf.mxu0
      %v703 = vadd.f32 %v496, %v702
      %704 = vmatmul.f32.gmra.mxu0 %v593
      %v705 = vpop.f32.mrf.mxu0
      %v706 = vadd.f32 %v496, %v705
      %707 = vmatmul.f32.gmra.mxu0 %v596
      %v708 = vpop.f32.mrf.mxu0
      %v709 = vadd.f32 %v496, %v708
      %710 = vmatmul.f32.gmra.mxu0 %v599
      %v711 = vpop.f32.mrf.mxu0
      %v712 = vadd.f32 %v496, %v711
      %713 = vdwg.mxu0
      %714 = vmatpush.msra.mxu0 0.0
      %715 = vmatpush.msra.mxu0 0.0
      %716 = vmatpush.msra.mxu0 0.0
      %717 = vmatpush.msra.mxu0 0.0
      %718 = vmatpush.msra.mxu0 0.0
      %719 = vmatpush.msra.mxu0 0.0
      %720 = vmatpush.msra.mxu0 0.0
      %721 = vmatpush.msra.mxu0 0.0
      %722 = vmatpush.msra.mxu0 0.0
      %723 = vmatpush.msra.mxu0 0.0
      %724 = vmatpush.msra.mxu0 0.0
      %725 = vmatpush.msra.mxu0 0.0
      %726 = vmatpush.msra.mxu0 %v491
      %727 = vmatpush.msra.mxu0 %v487
      %728 = vmatpush.msra.mxu0 %v483
      %729 = vmatpush.msra.mxu0 %v479
      %730 = vmatmul.f32.gmra.mxu0 %v506
      %v731 = vpop.f32.mrf.mxu0
      %v732 = vadd.f32 %v497, %v731
      %733 = vmatmul.f32.gmra.mxu0 %v509
      %v734 = vpop.f32.mrf.mxu0
      %v735 = vadd.f32 %v497, %v734
      %736 = vmatmul.f32.gmra.mxu0 %v512
      %v737 = vpop.f32.mrf.mxu0
      %v738 = vadd.f32 %v497, %v737
      %739 = vmatmul.f32.gmra.mxu0 %v515
      %v740 = vpop.f32.mrf.mxu0
      %v741 = vadd.f32 %v497, %v740
      %742 = vmatmul.f32.gmra.mxu0 %v518
      %v743 = vpop.f32.mrf.mxu0
      %v744 = vadd.f32 %v497, %v743
      %745 = vmatmul.f32.gmra.mxu0 %v521
      %v746 = vpop.f32.mrf.mxu0
      %v747 = vadd.f32 %v497, %v746
      %748 = vmatmul.f32.gmra.mxu0 %v524
      %v749 = vpop.f32.mrf.mxu0
      %v750 = vadd.f32 %v497, %v749
      %751 = vmatmul.f32.gmra.mxu0 %v527
      %v752 = vpop.f32.mrf.mxu0
      %v753 = vadd.f32 %v497, %v752
      %754 = vmatmul.f32.gmra.mxu0 %v530
      %v755 = vpop.f32.mrf.mxu0
      %v756 = vadd.f32 %v497, %v755
      %757 = vmatmul.f32.gmra.mxu0 %v533
      %v758 = vpop.f32.mrf.mxu0
      %v759 = vadd.f32 %v497, %v758
      %760 = vmatmul.f32.gmra.mxu0 %v536
      %v761 = vpop.f32.mrf.mxu0
      %v762 = vadd.f32 %v497, %v761
      %763 = vmatmul.f32.gmra.mxu0 %v539
      %v764 = vpop.f32.mrf.mxu0
      %v765 = vadd.f32 %v497, %v764
      %766 = vmatmul.f32.gmra.mxu0 %v542
      %v767 = vpop.f32.mrf.mxu0
      %v768 = vadd.f32 %v497, %v767
      %769 = vmatmul.f32.gmra.mxu0 %v545
      %v770 = vpop.f32.mrf.mxu0
      %v771 = vadd.f32 %v497, %v770
      %772 = vmatmul.f32.gmra.mxu0 %v548
      %v773 = vpop.f32.mrf.mxu0
      %v774 = vadd.f32 %v497, %v773
      %775 = vmatmul.f32.gmra.mxu0 %v551
      %v776 = vpop.f32.mrf.mxu0
      %v777 = vadd.f32 %v497, %v776
      %778 = vmatmul.f32.gmra.mxu0 %v554
      %v779 = vpop.f32.mrf.mxu0
      %v780 = vadd.f32 %v497, %v779
      %781 = vmatmul.f32.gmra.mxu0 %v557
      %v782 = vpop.f32.mrf.mxu0
      %v783 = vadd.f32 %v497, %v782
      %784 = vmatmul.f32.gmra.mxu0 %v560
      %v785 = vpop.f32.mrf.mxu0
      %v786 = vadd.f32 %v497, %v785
      %787 = vmatmul.f32.gmra.mxu0 %v563
      %v788 = vpop.f32.mrf.mxu0
      %v789 = vadd.f32 %v497, %v788
      %790 = vmatmul.f32.gmra.mxu0 %v566
      %v791 = vpop.f32.mrf.mxu0
      %v792 = vadd.f32 %v497, %v791
      %793 = vmatmul.f32.gmra.mxu0 %v569
      %v794 = vpop.f32.mrf.mxu0
      %v795 = vadd.f32 %v497, %v794
      %796 = vmatmul.f32.gmra.mxu0 %v572
      %v797 = vpop.f32.mrf.mxu0
      %v798 = vadd.f32 %v497, %v797
      %799 = vmatmul.f32.gmra.mxu0 %v575
      %v800 = vpop.f32.mrf.mxu0
      %v801 = vadd.f32 %v497, %v800
      %802 = vmatmul.f32.gmra.mxu0 %v578
      %v803 = vpop.f32.mrf.mxu0
      %v804 = vadd.f32 %v497, %v803
      %805 = vmatmul.f32.gmra.mxu0 %v581
      %v806 = vpop.f32.mrf.mxu0
      %v807 = vadd.f32 %v497, %v806
      %808 = vmatmul.f32.gmra.mxu0 %v584
      %v809 = vpop.f32.mrf.mxu0
      %v810 = vadd.f32 %v497, %v809
      %811 = vmatmul.f32.gmra.mxu0 %v587
      %v812 = vpop.f32.mrf.mxu0
      %v813 = vadd.f32 %v497, %v812
      %814 = vmatmul.f32.gmra.mxu0 %v590
      %v815 = vpop.f32.mrf.mxu0
      %v816 = vadd.f32 %v497, %v815
      %817 = vmatmul.f32.gmra.mxu0 %v593
      %v818 = vpop.f32.mrf.mxu0
      %v819 = vadd.f32 %v497, %v818
      %820 = vmatmul.f32.gmra.mxu0 %v596
      %v821 = vpop.f32.mrf.mxu0
      %v822 = vadd.f32 %v497, %v821
      %823 = vmatmul.f32.gmra.mxu0 %v599
      %v824 = vpop.f32.mrf.mxu0
      %v825 = vadd.f32 %v497, %v824
      %826 = vdwg.mxu0
      %827 = vmatpush.msra.mxu0 0.0
      %828 = vmatpush.msra.mxu0 0.0
      %829 = vmatpush.msra.mxu0 0.0
      %830 = vmatpush.msra.mxu0 0.0
      %831 = vmatpush.msra.mxu0 0.0
      %832 = vmatpush.msra.mxu0 0.0
      %833 = vmatpush.msra.mxu0 0.0
      %834 = vmatpush.msra.mxu0 0.0
      %835 = vmatpush.msra.mxu0 0.0
      %836 = vmatpush.msra.mxu0 0.0
      %837 = vmatpush.msra.mxu0 0.0
      %838 = vmatpush.msra.mxu0 0.0
      %839 = vmatpush.msra.mxu0 %v492
      %840 = vmatpush.msra.mxu0 %v488
      %841 = vmatpush.msra.mxu0 %v484
      %842 = vmatpush.msra.mxu0 %v480
      %843 = vmatmul.f32.gmra.mxu0 %v506
      %v844 = vpop.f32.mrf.mxu0
      %v845 = vadd.f32 %v498, %v844
      %846 = vmatmul.f32.gmra.mxu0 %v509
      %v847 = vpop.f32.mrf.mxu0
      %v848 = vadd.f32 %v498, %v847
      %849 = vmatmul.f32.gmra.mxu0 %v512
      %v850 = vpop.f32.mrf.mxu0
      %v851 = vadd.f32 %v498, %v850
      %852 = vmatmul.f32.gmra.mxu0 %v515
      %v853 = vpop.f32.mrf.mxu0
      %v854 = vadd.f32 %v498, %v853
      %855 = vmatmul.f32.gmra.mxu0 %v518
      %v856 = vpop.f32.mrf.mxu0
      %v857 = vadd.f32 %v498, %v856
      %858 = vmatmul.f32.gmra.mxu0 %v521
      %v859 = vpop.f32.mrf.mxu0
      %v860 = vadd.f32 %v498, %v859
      %861 = vmatmul.f32.gmra.mxu0 %v524
      %v862 = vpop.f32.mrf.mxu0
      %v863 = vadd.f32 %v498, %v862
      %864 = vmatmul.f32.gmra.mxu0 %v527
      %v865 = vpop.f32.mrf.mxu0
      %v866 = vadd.f32 %v498, %v865
      %867 = vmatmul.f32.gmra.mxu0 %v530
      %v868 = vpop.f32.mrf.mxu0
      %v869 = vadd.f32 %v498, %v868
      %870 = vmatmul.f32.gmra.mxu0 %v533
      %v871 = vpop.f32.mrf.mxu0
      %v872 = vadd.f32 %v498, %v871
      %873 = vmatmul.f32.gmra.mxu0 %v536
      %v874 = vpop.f32.mrf.mxu0
      %v875 = vadd.f32 %v498, %v874
      %876 = vmatmul.f32.gmra.mxu0 %v539
      %v877 = vpop.f32.mrf.mxu0
      %v878 = vadd.f32 %v498, %v877
      %879 = vmatmul.f32.gmra.mxu0 %v542
      %v880 = vpop.f32.mrf.mxu0
      %v881 = vadd.f32 %v498, %v880
      %882 = vmatmul.f32.gmra.mxu0 %v545
      %v883 = vpop.f32.mrf.mxu0
      %v884 = vadd.f32 %v498, %v883
      %885 = vmatmul.f32.gmra.mxu0 %v548
      %v886 = vpop.f32.mrf.mxu0
      %v887 = vadd.f32 %v498, %v886
      %888 = vmatmul.f32.gmra.mxu0 %v551
      %v889 = vpop.f32.mrf.mxu0
      %v890 = vadd.f32 %v498, %v889
      %891 = vmatmul.f32.gmra.mxu0 %v554
      %v892 = vpop.f32.mrf.mxu0
      %v893 = vadd.f32 %v498, %v892
      %894 = vmatmul.f32.gmra.mxu0 %v557
      %v895 = vpop.f32.mrf.mxu0
      %v896 = vadd.f32 %v498, %v895
      %897 = vmatmul.f32.gmra.mxu0 %v560
      %v898 = vpop.f32.mrf.mxu0
      %v899 = vadd.f32 %v498, %v898
      %900 = vmatmul.f32.gmra.mxu0 %v563
      %v901 = vpop.f32.mrf.mxu0
      %v902 = vadd.f32 %v498, %v901
      %903 = vmatmul.f32.gmra.mxu0 %v566
      %v904 = vpop.f32.mrf.mxu0
      %v905 = vadd.f32 %v498, %v904
      %906 = vmatmul.f32.gmra.mxu0 %v569
      %v907 = vpop.f32.mrf.mxu0
      %v908 = vadd.f32 %v498, %v907
      %909 = vmatmul.f32.gmra.mxu0 %v572
      %v910 = vpop.f32.mrf.mxu0
      %v911 = vadd.f32 %v498, %v910
      %912 = vmatmul.f32.gmra.mxu0 %v575
      %v913 = vpop.f32.mrf.mxu0
      %v914 = vadd.f32 %v498, %v913
      %915 = vmatmul.f32.gmra.mxu0 %v578
      %v916 = vpop.f32.mrf.mxu0
      %v917 = vadd.f32 %v498, %v916
      %918 = vmatmul.f32.gmra.mxu0 %v581
      %v919 = vpop.f32.mrf.mxu0
      %v920 = vadd.f32 %v498, %v919
      %921 = vmatmul.f32.gmra.mxu0 %v584
      %v922 = vpop.f32.mrf.mxu0
      %v923 = vadd.f32 %v498, %v922
      %924 = vmatmul.f32.gmra.mxu0 %v587
      %v925 = vpop.f32.mrf.mxu0
      %v926 = vadd.f32 %v498, %v925
      %927 = vmatmul.f32.gmra.mxu0 %v590
      %v928 = vpop.f32.mrf.mxu0
      %v929 = vadd.f32 %v498, %v928
      %930 = vmatmul.f32.gmra.mxu0 %v593
      %v931 = vpop.f32.mrf.mxu0
      %v932 = vadd.f32 %v498, %v931
      %933 = vmatmul.f32.gmra.mxu0 %v596
      %v934 = vpop.f32.mrf.mxu0
      %v935 = vadd.f32 %v498, %v934
      %936 = vmatmul.f32.gmra.mxu0 %v599
      %v937 = vpop.f32.mrf.mxu0
      %v938 = vadd.f32 %v498, %v937
      %939 = vdwg.mxu0
      %940 = vmatpush.msra.mxu0 0.0
      %941 = vmatpush.msra.mxu0 0.0
      %942 = vmatpush.msra.mxu0 0.0
      %943 = vmatpush.msra.mxu0 0.0
      %944 = vmatpush.msra.mxu0 0.0
      %945 = vmatpush.msra.mxu0 0.0
      %946 = vmatpush.msra.mxu0 0.0
      %947 = vmatpush.msra.mxu0 0.0
      %948 = vmatpush.msra.mxu0 0.0
      %949 = vmatpush.msra.mxu0 0.0
      %950 = vmatpush.msra.mxu0 0.0
      %951 = vmatpush.msra.mxu0 0.0
      %952 = vmatpush.msra.mxu0 %v493
      %953 = vmatpush.msra.mxu0 %v489
      %954 = vmatpush.msra.mxu0 %v485
      %955 = vmatpush.msra.mxu0 %v481
      %956 = vmatmul.f32.gmra.mxu0 %v506
      %v957 = vpop.f32.mrf.mxu0
      %v958 = vadd.f32 %v499, %v957
      %959 = vmatmul.f32.gmra.mxu0 %v509
      %v960 = vpop.f32.mrf.mxu0
      %v961 = vadd.f32 %v499, %v960
      %962 = vmatmul.f32.gmra.mxu0 %v512
      %v963 = vpop.f32.mrf.mxu0
      %v964 = vadd.f32 %v499, %v963
      %965 = vmatmul.f32.gmra.mxu0 %v515
      %v966 = vpop.f32.mrf.mxu0
      %v967 = vadd.f32 %v499, %v966
      %968 = vmatmul.f32.gmra.mxu0 %v518
      %v969 = vpop.f32.mrf.mxu0
      %v970 = vadd.f32 %v499, %v969
      %971 = vmatmul.f32.gmra.mxu0 %v521
      %v972 = vpop.f32.mrf.mxu0
      %v973 = vadd.f32 %v499, %v972
      %974 = vmatmul.f32.gmra.mxu0 %v524
      %v975 = vpop.f32.mrf.mxu0
      %v976 = vadd.f32 %v499, %v975
      %977 = vmatmul.f32.gmra.mxu0 %v527
      %v978 = vpop.f32.mrf.mxu0
      %v979 = vadd.f32 %v499, %v978
      %980 = vmatmul.f32.gmra.mxu0 %v530
      %v981 = vpop.f32.mrf.mxu0
      %v982 = vadd.f32 %v499, %v981
      %983 = vmatmul.f32.gmra.mxu0 %v533
      %v984 = vpop.f32.mrf.mxu0
      %v985 = vadd.f32 %v499, %v984
      %986 = vmatmul.f32.gmra.mxu0 %v536
      %v987 = vpop.f32.mrf.mxu0
      %v988 = vadd.f32 %v499, %v987
      %989 = vmatmul.f32.gmra.mxu0 %v539
      %v990 = vpop.f32.mrf.mxu0
      %v991 = vadd.f32 %v499, %v990
      %992 = vmatmul.f32.gmra.mxu0 %v542
      %v993 = vpop.f32.mrf.mxu0
      %v994 = vadd.f32 %v499, %v993
      %995 = vmatmul.f32.gmra.mxu0 %v545
      %v996 = vpop.f32.mrf.mxu0
      %v997 = vadd.f32 %v499, %v996
      %998 = vmatmul.f32.gmra.mxu0 %v548
      %v999 = vpop.f32.mrf.mxu0
      %v1000 = vadd.f32 %v499, %v999
      %1001 = vmatmul.f32.gmra.mxu0 %v551
      %v1002 = vpop.f32.mrf.mxu0
      %v1003 = vadd.f32 %v499, %v1002
      %1004 = vmatmul.f32.gmra.mxu0 %v554
      %v1005 = vpop.f32.mrf.mxu0
      %v1006 = vadd.f32 %v499, %v1005
      %1007 = vmatmul.f32.gmra.mxu0 %v557
      %v1008 = vpop.f32.mrf.mxu0
      %v1009 = vadd.f32 %v499, %v1008
      %1010 = vmatmul.f32.gmra.mxu0 %v560
      %v1011 = vpop.f32.mrf.mxu0
      %v1012 = vadd.f32 %v499, %v1011
      %1013 = vmatmul.f32.gmra.mxu0 %v563
      %v1014 = vpop.f32.mrf.mxu0
      %v1015 = vadd.f32 %v499, %v1014
      %1016 = vmatmul.f32.gmra.mxu0 %v566
      %v1017 = vpop.f32.mrf.mxu0
      %v1018 = vadd.f32 %v499, %v1017
      %1019 = vmatmul.f32.gmra.mxu0 %v569
      %v1020 = vpop.f32.mrf.mxu0
      %v1021 = vadd.f32 %v499, %v1020
      %1022 = vmatmul.f32.gmra.mxu0 %v572
      %v1023 = vpop.f32.mrf.mxu0
      %v1024 = vadd.f32 %v499, %v1023
      %1025 = vmatmul.f32.gmra.mxu0 %v575
      %v1026 = vpop.f32.mrf.mxu0
      %v1027 = vadd.f32 %v499, %v1026
      %1028 = vmatmul.f32.gmra.mxu0 %v578
      %v1029 = vpop.f32.mrf.mxu0
      %v1030 = vadd.f32 %v499, %v1029
      %1031 = vmatmul.f32.gmra.mxu0 %v581
      %v1032 = vpop.f32.mrf.mxu0
      %v1033 = vadd.f32 %v499, %v1032
      %1034 = vmatmul.f32.gmra.mxu0 %v584
      %v1035 = vpop.f32.mrf.mxu0
      %v1036 = vadd.f32 %v499, %v1035
      %1037 = vmatmul.f32.gmra.mxu0 %v587
      %v1038 = vpop.f32.mrf.mxu0
      %v1039 = vadd.f32 %v499, %v1038
      %1040 = vmatmul.f32.gmra.mxu0 %v590
      %v1041 = vpop.f32.mrf.mxu0
      %v1042 = vadd.f32 %v499, %v1041
      %1043 = vmatmul.f32.gmra.mxu0 %v593
      %v1044 = vpop.f32.mrf.mxu0
      %v1045 = vadd.f32 %v499, %v1044
      %1046 = vmatmul.f32.gmra.mxu0 %v596
      %v1047 = vpop.f32.mrf.mxu0
      %v1048 = vadd.f32 %v499, %v1047
      %1049 = vmatmul.f32.gmra.mxu0 %v599
      %v1050 = vpop.f32.mrf.mxu0
      %v1051 = vadd.f32 %v499, %v1050
      %1052 = vdwg.mxu0
      %v1053 = vld [vmem:[%s2] sm:$0xff]
      %v1054 = vld [vmem:[%s2 + $0x8] sm:$0xff]
      %v1055 = vld [vmem:[%s2 + $0x10] sm:$0xff]
      %v1056 = vld [vmem:[%s2 + $0x18] sm:$0xff]
      %v1057 = vld [vmem:[%s2 + $0x20] sm:$0xff]
      %v1058 = vld [vmem:[%s2 + $0x28] sm:$0xff]
      %v1059 = vld [vmem:[%s2 + $0x30] sm:$0xff]
      %v1060 = vld [vmem:[%s2 + $0x38] sm:$0xff]
      %v1061 = vld [vmem:[%s2 + $0x40] sm:$0xff]
      %v1062 = vld [vmem:[%s2 + $0x48] sm:$0xff]
      %v1063 = vld [vmem:[%s2 + $0x50] sm:$0xff]
      %v1064 = vld [vmem:[%s2 + $0x58] sm:$0xff]
      %v1065 = vld [vmem:[%s2 + $0x60] sm:$0xff]
      %v1066 = vld [vmem:[%s2 + $0x68] sm:$0xff]
      %v1067 = vld [vmem:[%s2 + $0x70] sm:$0xff]
      %v1068 = vld [vmem:[%s2 + $0x78] sm:$0xff]
      %v1069 = vld [vmem:[%s2 + $0x80] sm:$0xff]
      %v1070 = vld [vmem:[%s2 + $0x88] sm:$0xff]
      %v1071 = vld [vmem:[%s2 + $0x90] sm:$0xff]
      %v1072 = vld [vmem:[%s2 + $0x98] sm:$0xff]
      %v1073 = vld [vmem:[%s2 + $0xa0] sm:$0xff]
      %v1074 = vld [vmem:[%s2 + $0xa8] sm:$0xff]
      %v1075 = vld [vmem:[%s2 + $0xb0] sm:$0xff]
      %v1076 = vld [vmem:[%s2 + $0xb8] sm:$0xff]
      %v1077 = vld [vmem:[%s2 + $0xc0] sm:$0xff]
      %v1078 = vld [vmem:[%s2 + $0xc8] sm:$0xff]
      %v1079 = vld [vmem:[%s2 + $0xd0] sm:$0xff]
      %v1080 = vld [vmem:[%s2 + $0xd8] sm:$0xff]
      %v1081 = vld [vmem:[%s2 + $0xe0] sm:$0xff]
      %v1082 = vld [vmem:[%s2 + $0xe8] sm:$0xff]
      %v1083 = vld [vmem:[%s2 + $0xf0] sm:$0xff]
      %v1084 = vld [vmem:[%s2 + $0xf8] sm:$0xff]
      %v1085 = vld [vmem:[%s2 + $0x100] sm:$0xff]
      %v1086 = vld [vmem:[%s2 + $0x108] sm:$0xff]
      %v1087 = vld [vmem:[%s2 + $0x110] sm:$0xff]
      %v1088 = vld [vmem:[%s2 + $0x118] sm:$0xff]
      %v1089 = vld [vmem:[%s2 + $0x120] sm:$0xff]
      %v1090 = vld [vmem:[%s2 + $0x128] sm:$0xff]
      %v1091 = vld [vmem:[%s2 + $0x130] sm:$0xff]
      %v1092 = vld [vmem:[%s2 + $0x138] sm:$0xff]
      %v1093 = vld [vmem:[%s2 + $0x140] sm:$0xff]
      %v1094 = vld [vmem:[%s2 + $0x148] sm:$0xff]
      %v1095 = vld [vmem:[%s2 + $0x150] sm:$0xff]
      %v1096 = vld [vmem:[%s2 + $0x158] sm:$0xff]
      %v1097 = vld [vmem:[%s2 + $0x160] sm:$0xff]
      %v1098 = vld [vmem:[%s2 + $0x168] sm:$0xff]
      %v1099 = vld [vmem:[%s2 + $0x170] sm:$0xff]
      %v1100 = vld [vmem:[%s2 + $0x178] sm:$0xff]
      %v1101 = vld [vmem:[%s2 + $0x180] sm:$0xff]
      %v1102 = vld [vmem:[%s2 + $0x188] sm:$0xff]
      %v1103 = vld [vmem:[%s2 + $0x190] sm:$0xff]
      %v1104 = vld [vmem:[%s2 + $0x198] sm:$0xff]
      %v1105 = vld [vmem:[%s2 + $0x1a0] sm:$0xff]
      %v1106 = vld [vmem:[%s2 + $0x1a8] sm:$0xff]
      %v1107 = vld [vmem:[%s2 + $0x1b0] sm:$0xff]
      %v1108 = vld [vmem:[%s2 + $0x1b8] sm:$0xff]
      %v1109 = vld [vmem:[%s2 + $0x1c0] sm:$0xff]
      %v1110 = vld [vmem:[%s2 + $0x1c8] sm:$0xff]
      %v1111 = vld [vmem:[%s2 + $0x1d0] sm:$0xff]
      %v1112 = vld [vmem:[%s2 + $0x1d8] sm:$0xff]
      %v1113 = vld [vmem:[%s2 + $0x1e0] sm:$0xff]
      %v1114 = vld [vmem:[%s2 + $0x1e8] sm:$0xff]
      %v1115 = vld [vmem:[%s2 + $0x1f0] sm:$0xff]
      %v1116 = vld [vmem:[%s2 + $0x1f8] sm:$0xff]
      %1117 = vmatpush.msra.mxu0 %v1068
      %1118 = vmatpush.msra.mxu0 %v1067
      %1119 = vmatpush.msra.mxu0 %v1066
      %1120 = vmatpush.msra.mxu0 %v1065
      %1121 = vmatpush.msra.mxu0 %v1064
      %1122 = vmatpush.msra.mxu0 %v1063
      %1123 = vmatpush.msra.mxu0 %v1062
      %1124 = vmatpush.msra.mxu0 %v1061
      %1125 = vmatpush.msra.mxu0 %v1060
      %1126 = vmatpush.msra.mxu0 %v1059
      %1127 = vmatpush.msra.mxu0 %v1058
      %1128 = vmatpush.msra.mxu0 %v1057
      %1129 = vmatpush.msra.mxu0 %v1056
      %1130 = vmatpush.msra.mxu0 %v1055
      %1131 = vmatpush.msra.mxu0 %v1054
      %1132 = vmatpush.msra.mxu0 %v1053
      %1133 = vmatmul.f32.gmra.mxu0 %v619
      %v1134 = vpop.f32.mrf.mxu0
      %v1135 = vadd.f32 0.0, %v1134
      %1136 = vmatmul.f32.gmra.mxu0 %v622
      %v1137 = vpop.f32.mrf.mxu0
      %v1138 = vadd.f32 0.0, %v1137
      %1139 = vmatmul.f32.gmra.mxu0 %v625
      %v1140 = vpop.f32.mrf.mxu0
      %v1141 = vadd.f32 0.0, %v1140
      %1142 = vmatmul.f32.gmra.mxu0 %v628
      %v1143 = vpop.f32.mrf.mxu0
      %v1144 = vadd.f32 0.0, %v1143
      %1145 = vmatmul.f32.gmra.mxu0 %v631
      %v1146 = vpop.f32.mrf.mxu0
      %v1147 = vadd.f32 0.0, %v1146
      %1148 = vmatmul.f32.gmra.mxu0 %v634
      %v1149 = vpop.f32.mrf.mxu0
      %v1150 = vadd.f32 0.0, %v1149
      %1151 = vmatmul.f32.gmra.mxu0 %v637
      %v1152 = vpop.f32.mrf.mxu0
      %v1153 = vadd.f32 0.0, %v1152
      %1154 = vmatmul.f32.gmra.mxu0 %v640
      %v1155 = vpop.f32.mrf.mxu0
      %v1156 = vadd.f32 0.0, %v1155
      %1157 = vmatmul.f32.gmra.mxu0 %v643
      %v1158 = vpop.f32.mrf.mxu0
      %v1159 = vadd.f32 0.0, %v1158
      %1160 = vmatmul.f32.gmra.mxu0 %v646
      %v1161 = vpop.f32.mrf.mxu0
      %v1162 = vadd.f32 0.0, %v1161
      %1163 = vmatmul.f32.gmra.mxu0 %v649
      %v1164 = vpop.f32.mrf.mxu0
      %v1165 = vadd.f32 0.0, %v1164
      %1166 = vmatmul.f32.gmra.mxu0 %v652
      %v1167 = vpop.f32.mrf.mxu0
      %v1168 = vadd.f32 0.0, %v1167
      %1169 = vmatmul.f32.gmra.mxu0 %v655
      %v1170 = vpop.f32.mrf.mxu0
      %v1171 = vadd.f32 0.0, %v1170
      %1172 = vmatmul.f32.gmra.mxu0 %v658
      %v1173 = vpop.f32.mrf.mxu0
      %v1174 = vadd.f32 0.0, %v1173
      %1175 = vmatmul.f32.gmra.mxu0 %v661
      %v1176 = vpop.f32.mrf.mxu0
      %v1177 = vadd.f32 0.0, %v1176
      %1178 = vmatmul.f32.gmra.mxu0 %v664
      %v1179 = vpop.f32.mrf.mxu0
      %v1180 = vadd.f32 0.0, %v1179
      %1181 = vmatmul.f32.gmra.mxu0 %v667
      %v1182 = vpop.f32.mrf.mxu0
      %v1183 = vadd.f32 0.0, %v1182
      %1184 = vmatmul.f32.gmra.mxu0 %v670
      %v1185 = vpop.f32.mrf.mxu0
      %v1186 = vadd.f32 0.0, %v1185
      %1187 = vmatmul.f32.gmra.mxu0 %v673
      %v1188 = vpop.f32.mrf.mxu0
      %v1189 = vadd.f32 0.0, %v1188
      %1190 = vmatmul.f32.gmra.mxu0 %v676
      %v1191 = vpop.f32.mrf.mxu0
      %v1192 = vadd.f32 0.0, %v1191
      %1193 = vmatmul.f32.gmra.mxu0 %v679
      %v1194 = vpop.f32.mrf.mxu0
      %v1195 = vadd.f32 0.0, %v1194
      %1196 = vmatmul.f32.gmra.mxu0 %v682
      %v1197 = vpop.f32.mrf.mxu0
      %v1198 = vadd.f32 0.0, %v1197
      %1199 = vmatmul.f32.gmra.mxu0 %v685
      %v1200 = vpop.f32.mrf.mxu0
      %v1201 = vadd.f32 0.0, %v1200
      %1202 = vmatmul.f32.gmra.mxu0 %v688
      %v1203 = vpop.f32.mrf.mxu0
      %v1204 = vadd.f32 0.0, %v1203
      %1205 = vmatmul.f32.gmra.mxu0 %v691
      %v1206 = vpop.f32.mrf.mxu0
      %v1207 = vadd.f32 0.0, %v1206
      %1208 = vmatmul.f32.gmra.mxu0 %v694
      %v1209 = vpop.f32.mrf.mxu0
      %v1210 = vadd.f32 0.0, %v1209
      %1211 = vmatmul.f32.gmra.mxu0 %v697
      %v1212 = vpop.f32.mrf.mxu0
      %v1213 = vadd.f32 0.0, %v1212
      %1214 = vmatmul.f32.gmra.mxu0 %v700
      %v1215 = vpop.f32.mrf.mxu0
      %v1216 = vadd.f32 0.0, %v1215
      %1217 = vmatmul.f32.gmra.mxu0 %v703
      %v1218 = vpop.f32.mrf.mxu0
      %v1219 = vadd.f32 0.0, %v1218
      %1220 = vmatmul.f32.gmra.mxu0 %v706
      %v1221 = vpop.f32.mrf.mxu0
      %v1222 = vadd.f32 0.0, %v1221
      %1223 = vmatmul.f32.gmra.mxu0 %v709
      %v1224 = vpop.f32.mrf.mxu0
      %v1225 = vadd.f32 0.0, %v1224
      %1226 = vmatmul.f32.gmra.mxu0 %v712
      %v1227 = vpop.f32.mrf.mxu0
      %v1228 = vadd.f32 0.0, %v1227
      %1229 = vdwg.mxu0
      %1230 = vmatpush.msra.mxu0 %v1084
      %1231 = vmatpush.msra.mxu0 %v1083
      %1232 = vmatpush.msra.mxu0 %v1082
      %1233 = vmatpush.msra.mxu0 %v1081
      %1234 = vmatpush.msra.mxu0 %v1080
      %1235 = vmatpush.msra.mxu0 %v1079
      %1236 = vmatpush.msra.mxu0 %v1078
      %1237 = vmatpush.msra.mxu0 %v1077
      %1238 = vmatpush.msra.mxu0 %v1076
      %1239 = vmatpush.msra.mxu0 %v1075
      %1240 = vmatpush.msra.mxu0 %v1074
      %1241 = vmatpush.msra.mxu0 %v1073
      %1242 = vmatpush.msra.mxu0 %v1072
      %1243 = vmatpush.msra.mxu0 %v1071
      %1244 = vmatpush.msra.mxu0 %v1070
      %1245 = vmatpush.msra.mxu0 %v1069
      %1246 = vmatmul.f32.gmra.mxu0 %v732
      %v1247 = vpop.f32.mrf.mxu0
      %v1248 = vadd.f32 %v1135, %v1247
      %1249 = vmatmul.f32.gmra.mxu0 %v735
      %v1250 = vpop.f32.mrf.mxu0
      %v1251 = vadd.f32 %v1138, %v1250
      %1252 = vmatmul.f32.gmra.mxu0 %v738
      %v1253 = vpop.f32.mrf.mxu0
      %v1254 = vadd.f32 %v1141, %v1253
      %1255 = vmatmul.f32.gmra.mxu0 %v741
      %v1256 = vpop.f32.mrf.mxu0
      %v1257 = vadd.f32 %v1144, %v1256
      %1258 = vmatmul.f32.gmra.mxu0 %v744
      %v1259 = vpop.f32.mrf.mxu0
      %v1260 = vadd.f32 %v1147, %v1259
      %1261 = vmatmul.f32.gmra.mxu0 %v747
      %v1262 = vpop.f32.mrf.mxu0
      %v1263 = vadd.f32 %v1150, %v1262
      %1264 = vmatmul.f32.gmra.mxu0 %v750
      %v1265 = vpop.f32.mrf.mxu0
      %v1266 = vadd.f32 %v1153, %v1265
      %1267 = vmatmul.f32.gmra.mxu0 %v753
      %v1268 = vpop.f32.mrf.mxu0
      %v1269 = vadd.f32 %v1156, %v1268
      %1270 = vmatmul.f32.gmra.mxu0 %v756
      %v1271 = vpop.f32.mrf.mxu0
      %v1272 = vadd.f32 %v1159, %v1271
      %1273 = vmatmul.f32.gmra.mxu0 %v759
      %v1274 = vpop.f32.mrf.mxu0
      %v1275 = vadd.f32 %v1162, %v1274
      %1276 = vmatmul.f32.gmra.mxu0 %v762
      %v1277 = vpop.f32.mrf.mxu0
      %v1278 = vadd.f32 %v1165, %v1277
      %1279 = vmatmul.f32.gmra.mxu0 %v765
      %v1280 = vpop.f32.mrf.mxu0
      %v1281 = vadd.f32 %v1168, %v1280
      %1282 = vmatmul.f32.gmra.mxu0 %v768
      %v1283 = vpop.f32.mrf.mxu0
      %v1284 = vadd.f32 %v1171, %v1283
      %1285 = vmatmul.f32.gmra.mxu0 %v771
      %v1286 = vpop.f32.mrf.mxu0
      %v1287 = vadd.f32 %v1174, %v1286
      %1288 = vmatmul.f32.gmra.mxu0 %v774
      %v1289 = vpop.f32.mrf.mxu0
      %v1290 = vadd.f32 %v1177, %v1289
      %1291 = vmatmul.f32.gmra.mxu0 %v777
      %v1292 = vpop.f32.mrf.mxu0
      %v1293 = vadd.f32 %v1180, %v1292
      %1294 = vmatmul.f32.gmra.mxu0 %v780
      %v1295 = vpop.f32.mrf.mxu0
      %v1296 = vadd.f32 %v1183, %v1295
      %1297 = vmatmul.f32.gmra.mxu0 %v783
      %v1298 = vpop.f32.mrf.mxu0
      %v1299 = vadd.f32 %v1186, %v1298
      %1300 = vmatmul.f32.gmra.mxu0 %v786
      %v1301 = vpop.f32.mrf.mxu0
      %v1302 = vadd.f32 %v1189, %v1301
      %1303 = vmatmul.f32.gmra.mxu0 %v789
      %v1304 = vpop.f32.mrf.mxu0
      %v1305 = vadd.f32 %v1192, %v1304
      %1306 = vmatmul.f32.gmra.mxu0 %v792
      %v1307 = vpop.f32.mrf.mxu0
      %v1308 = vadd.f32 %v1195, %v1307
      %1309 = vmatmul.f32.gmra.mxu0 %v795
      %v1310 = vpop.f32.mrf.mxu0
      %v1311 = vadd.f32 %v1198, %v1310
      %1312 = vmatmul.f32.gmra.mxu0 %v798
      %v1313 = vpop.f32.mrf.mxu0
      %v1314 = vadd.f32 %v1201, %v1313
      %1315 = vmatmul.f32.gmra.mxu0 %v801
      %v1316 = vpop.f32.mrf.mxu0
      %v1317 = vadd.f32 %v1204, %v1316
      %1318 = vmatmul.f32.gmra.mxu0 %v804
      %v1319 = vpop.f32.mrf.mxu0
      %v1320 = vadd.f32 %v1207, %v1319
      %1321 = vmatmul.f32.gmra.mxu0 %v807
      %v1322 = vpop.f32.mrf.mxu0
      %v1323 = vadd.f32 %v1210, %v1322
      %1324 = vmatmul.f32.gmra.mxu0 %v810
      %v1325 = vpop.f32.mrf.mxu0
      %v1326 = vadd.f32 %v1213, %v1325
      %1327 = vmatmul.f32.gmra.mxu0 %v813
      %v1328 = vpop.f32.mrf.mxu0
      %v1329 = vadd.f32 %v1216, %v1328
      %1330 = vmatmul.f32.gmra.mxu0 %v816
      %v1331 = vpop.f32.mrf.mxu0
      %v1332 = vadd.f32 %v1219, %v1331
      %1333 = vmatmul.f32.gmra.mxu0 %v819
      %v1334 = vpop.f32.mrf.mxu0
      %v1335 = vadd.f32 %v1222, %v1334
      %1336 = vmatmul.f32.gmra.mxu0 %v822
      %v1337 = vpop.f32.mrf.mxu0
      %v1338 = vadd.f32 %v1225, %v1337
      %1339 = vmatmul.f32.gmra.mxu0 %v825
      %v1340 = vpop.f32.mrf.mxu0
      %v1341 = vadd.f32 %v1228, %v1340
      %1342 = vdwg.mxu0
      %1343 = vmatpush.msra.mxu0 %v1100
      %1344 = vmatpush.msra.mxu0 %v1099
      %1345 = vmatpush.msra.mxu0 %v1098
      %1346 = vmatpush.msra.mxu0 %v1097
      %1347 = vmatpush.msra.mxu0 %v1096
      %1348 = vmatpush.msra.mxu0 %v1095
      %1349 = vmatpush.msra.mxu0 %v1094
      %1350 = vmatpush.msra.mxu0 %v1093
      %1351 = vmatpush.msra.mxu0 %v1092
      %1352 = vmatpush.msra.mxu0 %v1091
      %1353 = vmatpush.msra.mxu0 %v1090
      %1354 = vmatpush.msra.mxu0 %v1089
      %1355 = vmatpush.msra.mxu0 %v1088
      %1356 = vmatpush.msra.mxu0 %v1087
      %1357 = vmatpush.msra.mxu0 %v1086
      %1358 = vmatpush.msra.mxu0 %v1085
      %1359 = vmatmul.f32.gmra.mxu0 %v845
      %v1360 = vpop.f32.mrf.mxu0
      %v1361 = vadd.f32 %v1248, %v1360
      %1362 = vmatmul.f32.gmra.mxu0 %v848
      %v1363 = vpop.f32.mrf.mxu0
      %v1364 = vadd.f32 %v1251, %v1363
      %1365 = vmatmul.f32.gmra.mxu0 %v851
      %v1366 = vpop.f32.mrf.mxu0
      %v1367 = vadd.f32 %v1254, %v1366
      %1368 = vmatmul.f32.gmra.mxu0 %v854
      %v1369 = vpop.f32.mrf.mxu0
      %v1370 = vadd.f32 %v1257, %v1369
      %1371 = vmatmul.f32.gmra.mxu0 %v857
      %v1372 = vpop.f32.mrf.mxu0
      %v1373 = vadd.f32 %v1260, %v1372
      %1374 = vmatmul.f32.gmra.mxu0 %v860
      %v1375 = vpop.f32.mrf.mxu0
      %v1376 = vadd.f32 %v1263, %v1375
      %1377 = vmatmul.f32.gmra.mxu0 %v863
      %v1378 = vpop.f32.mrf.mxu0
      %v1379 = vadd.f32 %v1266, %v1378
      %1380 = vmatmul.f32.gmra.mxu0 %v866
      %v1381 = vpop.f32.mrf.mxu0
      %v1382 = vadd.f32 %v1269, %v1381
      %1383 = vmatmul.f32.gmra.mxu0 %v869
      %v1384 = vpop.f32.mrf.mxu0
      %v1385 = vadd.f32 %v1272, %v1384
      %1386 = vmatmul.f32.gmra.mxu0 %v872
      %v1387 = vpop.f32.mrf.mxu0
      %v1388 = vadd.f32 %v1275, %v1387
      %1389 = vmatmul.f32.gmra.mxu0 %v875
      %v1390 = vpop.f32.mrf.mxu0
      %v1391 = vadd.f32 %v1278, %v1390
      %1392 = vmatmul.f32.gmra.mxu0 %v878
      %v1393 = vpop.f32.mrf.mxu0
      %v1394 = vadd.f32 %v1281, %v1393
      %1395 = vmatmul.f32.gmra.mxu0 %v881
      %v1396 = vpop.f32.mrf.mxu0
      %v1397 = vadd.f32 %v1284, %v1396
      %1398 = vmatmul.f32.gmra.mxu0 %v884
      %v1399 = vpop.f32.mrf.mxu0
      %v1400 = vadd.f32 %v1287, %v1399
      %1401 = vmatmul.f32.gmra.mxu0 %v887
      %v1402 = vpop.f32.mrf.mxu0
      %v1403 = vadd.f32 %v1290, %v1402
      %1404 = vmatmul.f32.gmra.mxu0 %v890
      %v1405 = vpop.f32.mrf.mxu0
      %v1406 = vadd.f32 %v1293, %v1405
      %1407 = vmatmul.f32.gmra.mxu0 %v893
      %v1408 = vpop.f32.mrf.mxu0
      %v1409 = vadd.f32 %v1296, %v1408
      %1410 = vmatmul.f32.gmra.mxu0 %v896
      %v1411 = vpop.f32.mrf.mxu0
      %v1412 = vadd.f32 %v1299, %v1411
      %1413 = vmatmul.f32.gmra.mxu0 %v899
      %v1414 = vpop.f32.mrf.mxu0
      %v1415 = vadd.f32 %v1302, %v1414
      %1416 = vmatmul.f32.gmra.mxu0 %v902
      %v1417 = vpop.f32.mrf.mxu0
      %v1418 = vadd.f32 %v1305, %v1417
      %1419 = vmatmul.f32.gmra.mxu0 %v905
      %v1420 = vpop.f32.mrf.mxu0
      %v1421 = vadd.f32 %v1308, %v1420
      %1422 = vmatmul.f32.gmra.mxu0 %v908
      %v1423 = vpop.f32.mrf.mxu0
      %v1424 = vadd.f32 %v1311, %v1423
      %1425 = vmatmul.f32.gmra.mxu0 %v911
      %v1426 = vpop.f32.mrf.mxu0
      %v1427 = vadd.f32 %v1314, %v1426
      %1428 = vmatmul.f32.gmra.mxu0 %v914
      %v1429 = vpop.f32.mrf.mxu0
      %v1430 = vadd.f32 %v1317, %v1429
      %1431 = vmatmul.f32.gmra.mxu0 %v917
      %v1432 = vpop.f32.mrf.mxu0
      %v1433 = vadd.f32 %v1320, %v1432
      %1434 = vmatmul.f32.gmra.mxu0 %v920
      %v1435 = vpop.f32.mrf.mxu0
      %v1436 = vadd.f32 %v1323, %v1435
      %1437 = vmatmul.f32.gmra.mxu0 %v923
      %v1438 = vpop.f32.mrf.mxu0
      %v1439 = vadd.f32 %v1326, %v1438
      %1440 = vmatmul.f32.gmra.mxu0 %v926
      %v1441 = vpop.f32.mrf.mxu0
      %v1442 = vadd.f32 %v1329, %v1441
      %1443 = vmatmul.f32.gmra.mxu0 %v929
      %v1444 = vpop.f32.mrf.mxu0
      %v1445 = vadd.f32 %v1332, %v1444
      %1446 = vmatmul.f32.gmra.mxu0 %v932
      %v1447 = vpop.f32.mrf.mxu0
      %v1448 = vadd.f32 %v1335, %v1447
      %1449 = vmatmul.f32.gmra.mxu0 %v935
      %v1450 = vpop.f32.mrf.mxu0
      %v1451 = vadd.f32 %v1338, %v1450
      %1452 = vmatmul.f32.gmra.mxu0 %v938
      %v1453 = vpop.f32.mrf.mxu0
      %v1454 = vadd.f32 %v1341, %v1453
      %1455 = vdwg.mxu0
      %1456 = vmatpush.msra.mxu0 %v1116
      %1457 = vmatpush.msra.mxu0 %v1115
      %1458 = vmatpush.msra.mxu0 %v1114
      %1459 = vmatpush.msra.mxu0 %v1113
      %1460 = vmatpush.msra.mxu0 %v1112
      %1461 = vmatpush.msra.mxu0 %v1111
      %1462 = vmatpush.msra.mxu0 %v1110
      %1463 = vmatpush.msra.mxu0 %v1109
      %1464 = vmatpush.msra.mxu0 %v1108
      %1465 = vmatpush.msra.mxu0 %v1107
      %1466 = vmatpush.msra.mxu0 %v1106
      %1467 = vmatpush.msra.mxu0 %v1105
      %1468 = vmatpush.msra.mxu0 %v1104
      %1469 = vmatpush.msra.mxu0 %v1103
      %1470 = vmatpush.msra.mxu0 %v1102
      %1471 = vmatpush.msra.mxu0 %v1101
      %1472 = vmatmul.f32.gmra.mxu0 %v958
      %v1473 = vpop.f32.mrf.mxu0
      %v1474 = vadd.f32 %v1361, %v1473
      %1475 = vmatmul.f32.gmra.mxu0 %v961
      %v1476 = vpop.f32.mrf.mxu0
      %v1477 = vadd.f32 %v1364, %v1476
      %1478 = vmatmul.f32.gmra.mxu0 %v964
      %v1479 = vpop.f32.mrf.mxu0
      %v1480 = vadd.f32 %v1367, %v1479
      %1481 = vmatmul.f32.gmra.mxu0 %v967
      %v1482 = vpop.f32.mrf.mxu0
      %v1483 = vadd.f32 %v1370, %v1482
      %1484 = vmatmul.f32.gmra.mxu0 %v970
      %v1485 = vpop.f32.mrf.mxu0
      %v1486 = vadd.f32 %v1373, %v1485
      %1487 = vmatmul.f32.gmra.mxu0 %v973
      %v1488 = vpop.f32.mrf.mxu0
      %v1489 = vadd.f32 %v1376, %v1488
      %1490 = vmatmul.f32.gmra.mxu0 %v976
      %v1491 = vpop.f32.mrf.mxu0
      %v1492 = vadd.f32 %v1379, %v1491
      %1493 = vmatmul.f32.gmra.mxu0 %v979
      %v1494 = vpop.f32.mrf.mxu0
      %v1495 = vadd.f32 %v1382, %v1494
      %1496 = vmatmul.f32.gmra.mxu0 %v982
      %v1497 = vpop.f32.mrf.mxu0
      %v1498 = vadd.f32 %v1385, %v1497
      %1499 = vmatmul.f32.gmra.mxu0 %v985
      %v1500 = vpop.f32.mrf.mxu0
      %v1501 = vadd.f32 %v1388, %v1500
      %1502 = vmatmul.f32.gmra.mxu0 %v988
      %v1503 = vpop.f32.mrf.mxu0
      %v1504 = vadd.f32 %v1391, %v1503
      %1505 = vmatmul.f32.gmra.mxu0 %v991
      %v1506 = vpop.f32.mrf.mxu0
      %v1507 = vadd.f32 %v1394, %v1506
      %1508 = vmatmul.f32.gmra.mxu0 %v994
      %v1509 = vpop.f32.mrf.mxu0
      %v1510 = vadd.f32 %v1397, %v1509
      %1511 = vmatmul.f32.gmra.mxu0 %v997
      %v1512 = vpop.f32.mrf.mxu0
      %v1513 = vadd.f32 %v1400, %v1512
      %1514 = vmatmul.f32.gmra.mxu0 %v1000
      %v1515 = vpop.f32.mrf.mxu0
      %v1516 = vadd.f32 %v1403, %v1515
      %1517 = vmatmul.f32.gmra.mxu0 %v1003
      %v1518 = vpop.f32.mrf.mxu0
      %v1519 = vadd.f32 %v1406, %v1518
      %1520 = vmatmul.f32.gmra.mxu0 %v1006
      %v1521 = vpop.f32.mrf.mxu0
      %v1522 = vadd.f32 %v1409, %v1521
      %1523 = vmatmul.f32.gmra.mxu0 %v1009
      %v1524 = vpop.f32.mrf.mxu0
      %v1525 = vadd.f32 %v1412, %v1524
      %1526 = vmatmul.f32.gmra.mxu0 %v1012
      %v1527 = vpop.f32.mrf.mxu0
      %v1528 = vadd.f32 %v1415, %v1527
      %1529 = vmatmul.f32.gmra.mxu0 %v1015
      %v1530 = vpop.f32.mrf.mxu0
      %v1531 = vadd.f32 %v1418, %v1530
      %1532 = vmatmul.f32.gmra.mxu0 %v1018
      %v1533 = vpop.f32.mrf.mxu0
      %v1534 = vadd.f32 %v1421, %v1533
      %1535 = vmatmul.f32.gmra.mxu0 %v1021
      %v1536 = vpop.f32.mrf.mxu0
      %v1537 = vadd.f32 %v1424, %v1536
      %1538 = vmatmul.f32.gmra.mxu0 %v1024
      %v1539 = vpop.f32.mrf.mxu0
      %v1540 = vadd.f32 %v1427, %v1539
      %1541 = vmatmul.f32.gmra.mxu0 %v1027
      %v1542 = vpop.f32.mrf.mxu0
      %v1543 = vadd.f32 %v1430, %v1542
      %1544 = vmatmul.f32.gmra.mxu0 %v1030
      %v1545 = vpop.f32.mrf.mxu0
      %v1546 = vadd.f32 %v1433, %v1545
      %1547 = vmatmul.f32.gmra.mxu0 %v1033
      %v1548 = vpop.f32.mrf.mxu0
      %v1549 = vadd.f32 %v1436, %v1548
      %1550 = vmatmul.f32.gmra.mxu0 %v1036
      %v1551 = vpop.f32.mrf.mxu0
      %v1552 = vadd.f32 %v1439, %v1551
      %1553 = vmatmul.f32.gmra.mxu0 %v1039
      %v1554 = vpop.f32.mrf.mxu0
      %v1555 = vadd.f32 %v1442, %v1554
      %1556 = vmatmul.f32.gmra.mxu0 %v1042
      %v1557 = vpop.f32.mrf.mxu0
      %v1558 = vadd.f32 %v1445, %v1557
      %1559 = vmatmul.f32.gmra.mxu0 %v1045
      %v1560 = vpop.f32.mrf.mxu0
      %v1561 = vadd.f32 %v1448, %v1560
      %1562 = vmatmul.f32.gmra.mxu0 %v1048
      %v1563 = vpop.f32.mrf.mxu0
      %v1564 = vadd.f32 %v1451, %v1563
      %1565 = vmatmul.f32.gmra.mxu0 %v1051
      %v1566 = vpop.f32.mrf.mxu0
      %v1567 = vadd.f32 %v1454, %v1566
      %1568 = vdwg.mxu0
      %v1569 = vld [vmem:[%s3] sm:$0xff]
      %v1570 = vld [vmem:[%s3 + $0x8] sm:$0xff]
      %v1571 = vld [vmem:[%s3 + $0x10] sm:$0xff]
      %v1572 = vld [vmem:[%s3 + $0x18] sm:$0xff]
      %v1573 = vld [vmem:[%s3 + $0x20] sm:$0xff]
      %v1574 = vld [vmem:[%s3 + $0x28] sm:$0xff]
      %v1575 = vld [vmem:[%s3 + $0x30] sm:$0xff]
      %v1576 = vld [vmem:[%s3 + $0x38] sm:$0xff]
      %vm1577 = vcmask 130048
      %v1579 = vsel %vm1577, %v1474, 0
      %v1582 = vsel %vm1577, %v1477, 0
      %v1585 = vsel %vm1577, %v1480, 0
      %v1588 = vsel %vm1577, %v1483, 0
      %v1591 = vsel %vm1577, %v1486, 0
      %v1594 = vsel %vm1577, %v1489, 0
      %v1597 = vsel %vm1577, %v1492, 0
      %v1600 = vsel %vm1577, %v1495, 0
      %v1603 = vsel %vm1577, %v1498, 0
      %v1606 = vsel %vm1577, %v1501, 0
      %v1609 = vsel %vm1577, %v1504, 0
      %v1612 = vsel %vm1577, %v1507, 0
      %v1615 = vsel %vm1577, %v1510, 0
      %v1618 = vsel %vm1577, %v1513, 0
      %v1621 = vsel %vm1577, %v1516, 0
      %v1624 = vsel %vm1577, %v1519, 0
      %v1627 = vsel %vm1577, %v1522, 0
      %v1630 = vsel %vm1577, %v1525, 0
      %v1633 = vsel %vm1577, %v1528, 0
      %v1636 = vsel %vm1577, %v1531, 0
      %v1639 = vsel %vm1577, %v1534, 0
      %v1642 = vsel %vm1577, %v1537, 0
      %v1645 = vsel %vm1577, %v1540, 0
      %v1648 = vsel %vm1577, %v1543, 0
      %v1651 = vsel %vm1577, %v1546, 0
      %v1654 = vsel %vm1577, %v1549, 0
      %v1657 = vsel %vm1577, %v1552, 0
      %v1660 = vsel %vm1577, %v1555, 0
      %v1663 = vsel %vm1577, %v1558, 0
      %v1666 = vsel %vm1577, %v1561, 0
      %v1669 = vsel %vm1577, %v1564, 0
      %v1672 = vsel %vm1577, %v1567, 0
      %1674 = vmatpush.msra.mxu0 0.0
      %1675 = vmatpush.msra.mxu0 0.0
      %1676 = vmatpush.msra.mxu0 0.0
      %1677 = vmatpush.msra.mxu0 0.0
      %1678 = vmatpush.msra.mxu0 0.0
      %1679 = vmatpush.msra.mxu0 0.0
      %1680 = vmatpush.msra.mxu0 0.0
      %1681 = vmatpush.msra.mxu0 0.0
      %1682 = vmatpush.msra.mxu0 0.0
      %1683 = vmatpush.msra.mxu0 0.0
      %1684 = vmatpush.msra.mxu0 0.0
      %1685 = vmatpush.msra.mxu0 0.0
      %1686 = vmatpush.msra.mxu0 0.0
      %1687 = vmatpush.msra.mxu0 0.0
      %1688 = vmatpush.msra.mxu0 %v1573
      %1689 = vmatpush.msra.mxu0 %v1569
      %1690 = vmatmul.f32.gmra.mxu0 %v1579
      %v1691 = vpop.f32.mrf.mxu0
      %v1692 = vadd.f32 0.0, %v1691
      %1693 = vmatmul.f32.gmra.mxu0 %v1582
      %v1694 = vpop.f32.mrf.mxu0
      %v1695 = vadd.f32 0.0, %v1694
      %1696 = vmatmul.f32.gmra.mxu0 %v1585
      %v1697 = vpop.f32.mrf.mxu0
      %v1698 = vadd.f32 0.0, %v1697
      %1699 = vmatmul.f32.gmra.mxu0 %v1588
      %v1700 = vpop.f32.mrf.mxu0
      %v1701 = vadd.f32 0.0, %v1700
      %1702 = vmatmul.f32.gmra.mxu0 %v1591
      %v1703 = vpop.f32.mrf.mxu0
      %v1704 = vadd.f32 0.0, %v1703
      %1705 = vmatmul.f32.gmra.mxu0 %v1594
      %v1706 = vpop.f32.mrf.mxu0
      %v1707 = vadd.f32 0.0, %v1706
      %1708 = vmatmul.f32.gmra.mxu0 %v1597
      %v1709 = vpop.f32.mrf.mxu0
      %v1710 = vadd.f32 0.0, %v1709
      %1711 = vmatmul.f32.gmra.mxu0 %v1600
      %v1712 = vpop.f32.mrf.mxu0
      %v1713 = vadd.f32 0.0, %v1712
      %1714 = vmatmul.f32.gmra.mxu0 %v1603
      %v1715 = vpop.f32.mrf.mxu0
      %v1716 = vadd.f32 0.0, %v1715
      %1717 = vmatmul.f32.gmra.mxu0 %v1606
      %v1718 = vpop.f32.mrf.mxu0
      %v1719 = vadd.f32 0.0, %v1718
      %1720 = vmatmul.f32.gmra.mxu0 %v1609
      %v1721 = vpop.f32.mrf.mxu0
      %v1722 = vadd.f32 0.0, %v1721
      %1723 = vmatmul.f32.gmra.mxu0 %v1612
      %v1724 = vpop.f32.mrf.mxu0
      %v1725 = vadd.f32 0.0, %v1724
      %1726 = vmatmul.f32.gmra.mxu0 %v1615
      %v1727 = vpop.f32.mrf.mxu0
      %v1728 = vadd.f32 0.0, %v1727
      %1729 = vmatmul.f32.gmra.mxu0 %v1618
      %v1730 = vpop.f32.mrf.mxu0
      %v1731 = vadd.f32 0.0, %v1730
      %1732 = vmatmul.f32.gmra.mxu0 %v1621
      %v1733 = vpop.f32.mrf.mxu0
      %v1734 = vadd.f32 0.0, %v1733
      %1735 = vmatmul.f32.gmra.mxu0 %v1624
      %v1736 = vpop.f32.mrf.mxu0
      %v1737 = vadd.f32 0.0, %v1736
      %1738 = vmatmul.f32.gmra.mxu0 %v1627
      %v1739 = vpop.f32.mrf.mxu0
      %v1740 = vadd.f32 0.0, %v1739
      %1741 = vmatmul.f32.gmra.mxu0 %v1630
      %v1742 = vpop.f32.mrf.mxu0
      %v1743 = vadd.f32 0.0, %v1742
      %1744 = vmatmul.f32.gmra.mxu0 %v1633
      %v1745 = vpop.f32.mrf.mxu0
      %v1746 = vadd.f32 0.0, %v1745
      %1747 = vmatmul.f32.gmra.mxu0 %v1636
      %v1748 = vpop.f32.mrf.mxu0
      %v1749 = vadd.f32 0.0, %v1748
      %1750 = vmatmul.f32.gmra.mxu0 %v1639
      %v1751 = vpop.f32.mrf.mxu0
      %v1752 = vadd.f32 0.0, %v1751
      %1753 = vmatmul.f32.gmra.mxu0 %v1642
      %v1754 = vpop.f32.mrf.mxu0
      %v1755 = vadd.f32 0.0, %v1754
      %1756 = vmatmul.f32.gmra.mxu0 %v1645
      %v1757 = vpop.f32.mrf.mxu0
      %v1758 = vadd.f32 0.0, %v1757
      %1759 = vmatmul.f32.gmra.mxu0 %v1648
      %v1760 = vpop.f32.mrf.mxu0
      %v1761 = vadd.f32 0.0, %v1760
      %1762 = vmatmul.f32.gmra.mxu0 %v1651
      %v1763 = vpop.f32.mrf.mxu0
      %v1764 = vadd.f32 0.0, %v1763
      %1765 = vmatmul.f32.gmra.mxu0 %v1654
      %v1766 = vpop.f32.mrf.mxu0
      %v1767 = vadd.f32 0.0, %v1766
      %1768 = vmatmul.f32.gmra.mxu0 %v1657
      %v1769 = vpop.f32.mrf.mxu0
      %v1770 = vadd.f32 0.0, %v1769
      %1771 = vmatmul.f32.gmra.mxu0 %v1660
      %v1772 = vpop.f32.mrf.mxu0
      %v1773 = vadd.f32 0.0, %v1772
      %1774 = vmatmul.f32.gmra.mxu0 %v1663
      %v1775 = vpop.f32.mrf.mxu0
      %v1776 = vadd.f32 0.0, %v1775
      %1777 = vmatmul.f32.gmra.mxu0 %v1666
      %v1778 = vpop.f32.mrf.mxu0
      %v1779 = vadd.f32 0.0, %v1778
      %1780 = vmatmul.f32.gmra.mxu0 %v1669
      %v1781 = vpop.f32.mrf.mxu0
      %v1782 = vadd.f32 0.0, %v1781
      %1783 = vmatmul.f32.gmra.mxu0 %v1672
      %v1784 = vpop.f32.mrf.mxu0
      %v1785 = vadd.f32 0.0, %v1784
      %1786 = vdwg.mxu0
      %1787 = vmatpush.msra.mxu0 0.0
      %1788 = vmatpush.msra.mxu0 0.0
      %1789 = vmatpush.msra.mxu0 0.0
      %1790 = vmatpush.msra.mxu0 0.0
      %1791 = vmatpush.msra.mxu0 0.0
      %1792 = vmatpush.msra.mxu0 0.0
      %1793 = vmatpush.msra.mxu0 0.0
      %1794 = vmatpush.msra.mxu0 0.0
      %1795 = vmatpush.msra.mxu0 0.0
      %1796 = vmatpush.msra.mxu0 0.0
      %1797 = vmatpush.msra.mxu0 0.0
      %1798 = vmatpush.msra.mxu0 0.0
      %1799 = vmatpush.msra.mxu0 0.0
      %1800 = vmatpush.msra.mxu0 0.0
      %1801 = vmatpush.msra.mxu0 %v1574
      %1802 = vmatpush.msra.mxu0 %v1570
      %1803 = vmatmul.f32.gmra.mxu0 %v1579
      %v1804 = vpop.f32.mrf.mxu0
      %v1805 = vadd.f32 0.0, %v1804
      %1806 = vmatmul.f32.gmra.mxu0 %v1582
      %v1807 = vpop.f32.mrf.mxu0
      %v1808 = vadd.f32 0.0, %v1807
      %1809 = vmatmul.f32.gmra.mxu0 %v1585
      %v1810 = vpop.f32.mrf.mxu0
      %v1811 = vadd.f32 0.0, %v1810
      %1812 = vmatmul.f32.gmra.mxu0 %v1588
      %v1813 = vpop.f32.mrf.mxu0
      %v1814 = vadd.f32 0.0, %v1813
      %1815 = vmatmul.f32.gmra.mxu0 %v1591
      %v1816 = vpop.f32.mrf.mxu0
      %v1817 = vadd.f32 0.0, %v1816
      %1818 = vmatmul.f32.gmra.mxu0 %v1594
      %v1819 = vpop.f32.mrf.mxu0
      %v1820 = vadd.f32 0.0, %v1819
      %1821 = vmatmul.f32.gmra.mxu0 %v1597
      %v1822 = vpop.f32.mrf.mxu0
      %v1823 = vadd.f32 0.0, %v1822
      %1824 = vmatmul.f32.gmra.mxu0 %v1600
      %v1825 = vpop.f32.mrf.mxu0
      %v1826 = vadd.f32 0.0, %v1825
      %1827 = vmatmul.f32.gmra.mxu0 %v1603
      %v1828 = vpop.f32.mrf.mxu0
      %v1829 = vadd.f32 0.0, %v1828
      %1830 = vmatmul.f32.gmra.mxu0 %v1606
      %v1831 = vpop.f32.mrf.mxu0
      %v1832 = vadd.f32 0.0, %v1831
      %1833 = vmatmul.f32.gmra.mxu0 %v1609
      %v1834 = vpop.f32.mrf.mxu0
      %v1835 = vadd.f32 0.0, %v1834
      %1836 = vmatmul.f32.gmra.mxu0 %v1612
      %v1837 = vpop.f32.mrf.mxu0
      %v1838 = vadd.f32 0.0, %v1837
      %1839 = vmatmul.f32.gmra.mxu0 %v1615
      %v1840 = vpop.f32.mrf.mxu0
      %v1841 = vadd.f32 0.0, %v1840
      %1842 = vmatmul.f32.gmra.mxu0 %v1618
      %v1843 = vpop.f32.mrf.mxu0
      %v1844 = vadd.f32 0.0, %v1843
      %1845 = vmatmul.f32.gmra.mxu0 %v1621
      %v1846 = vpop.f32.mrf.mxu0
      %v1847 = vadd.f32 0.0, %v1846
      %1848 = vmatmul.f32.gmra.mxu0 %v1624
      %v1849 = vpop.f32.mrf.mxu0
      %v1850 = vadd.f32 0.0, %v1849
      %1851 = vmatmul.f32.gmra.mxu0 %v1627
      %v1852 = vpop.f32.mrf.mxu0
      %v1853 = vadd.f32 0.0, %v1852
      %1854 = vmatmul.f32.gmra.mxu0 %v1630
      %v1855 = vpop.f32.mrf.mxu0
      %v1856 = vadd.f32 0.0, %v1855
      %1857 = vmatmul.f32.gmra.mxu0 %v1633
      %v1858 = vpop.f32.mrf.mxu0
      %v1859 = vadd.f32 0.0, %v1858
      %1860 = vmatmul.f32.gmra.mxu0 %v1636
      %v1861 = vpop.f32.mrf.mxu0
      %v1862 = vadd.f32 0.0, %v1861
      %1863 = vmatmul.f32.gmra.mxu0 %v1639
      %v1864 = vpop.f32.mrf.mxu0
      %v1865 = vadd.f32 0.0, %v1864
      %1866 = vmatmul.f32.gmra.mxu0 %v1642
      %v1867 = vpop.f32.mrf.mxu0
      %v1868 = vadd.f32 0.0, %v1867
      %1869 = vmatmul.f32.gmra.mxu0 %v1645
      %v1870 = vpop.f32.mrf.mxu0
      %v1871 = vadd.f32 0.0, %v1870
      %1872 = vmatmul.f32.gmra.mxu0 %v1648
      %v1873 = vpop.f32.mrf.mxu0
      %v1874 = vadd.f32 0.0, %v1873
      %1875 = vmatmul.f32.gmra.mxu0 %v1651
      %v1876 = vpop.f32.mrf.mxu0
      %v1877 = vadd.f32 0.0, %v1876
      %1878 = vmatmul.f32.gmra.mxu0 %v1654
      %v1879 = vpop.f32.mrf.mxu0
      %v1880 = vadd.f32 0.0, %v1879
      %1881 = vmatmul.f32.gmra.mxu0 %v1657
      %v1882 = vpop.f32.mrf.mxu0
      %v1883 = vadd.f32 0.0, %v1882
      %1884 = vmatmul.f32.gmra.mxu0 %v1660
      %v1885 = vpop.f32.mrf.mxu0
      %v1886 = vadd.f32 0.0, %v1885
      %1887 = vmatmul.f32.gmra.mxu0 %v1663
      %v1888 = vpop.f32.mrf.mxu0
      %v1889 = vadd.f32 0.0, %v1888
      %1890 = vmatmul.f32.gmra.mxu0 %v1666
      %v1891 = vpop.f32.mrf.mxu0
      %v1892 = vadd.f32 0.0, %v1891
      %1893 = vmatmul.f32.gmra.mxu0 %v1669
      %v1894 = vpop.f32.mrf.mxu0
      %v1895 = vadd.f32 0.0, %v1894
      %1896 = vmatmul.f32.gmra.mxu0 %v1672
      %v1897 = vpop.f32.mrf.mxu0
      %v1898 = vadd.f32 0.0, %v1897
      %1899 = vdwg.mxu0
      %1900 = vmatpush.msra.mxu0 0.0
      %1901 = vmatpush.msra.mxu0 0.0
      %1902 = vmatpush.msra.mxu0 0.0
      %1903 = vmatpush.msra.mxu0 0.0
      %1904 = vmatpush.msra.mxu0 0.0
      %1905 = vmatpush.msra.mxu0 0.0
      %1906 = vmatpush.msra.mxu0 0.0
      %1907 = vmatpush.msra.mxu0 0.0
      %1908 = vmatpush.msra.mxu0 0.0
      %1909 = vmatpush.msra.mxu0 0.0
      %1910 = vmatpush.msra.mxu0 0.0
      %1911 = vmatpush.msra.mxu0 0.0
      %1912 = vmatpush.msra.mxu0 0.0
      %1913 = vmatpush.msra.mxu0 0.0
      %1914 = vmatpush.msra.mxu0 %v1575
      %1915 = vmatpush.msra.mxu0 %v1571
      %1916 = vmatmul.f32.gmra.mxu0 %v1579
      %v1917 = vpop.f32.mrf.mxu0
      %v1918 = vadd.f32 0.0, %v1917
      %1919 = vmatmul.f32.gmra.mxu0 %v1582
      %v1920 = vpop.f32.mrf.mxu0
      %v1921 = vadd.f32 0.0, %v1920
      %1922 = vmatmul.f32.gmra.mxu0 %v1585
      %v1923 = vpop.f32.mrf.mxu0
      %v1924 = vadd.f32 0.0, %v1923
      %1925 = vmatmul.f32.gmra.mxu0 %v1588
      %v1926 = vpop.f32.mrf.mxu0
      %v1927 = vadd.f32 0.0, %v1926
      %1928 = vmatmul.f32.gmra.mxu0 %v1591
      %v1929 = vpop.f32.mrf.mxu0
      %v1930 = vadd.f32 0.0, %v1929
      %1931 = vmatmul.f32.gmra.mxu0 %v1594
      %v1932 = vpop.f32.mrf.mxu0
      %v1933 = vadd.f32 0.0, %v1932
      %1934 = vmatmul.f32.gmra.mxu0 %v1597
      %v1935 = vpop.f32.mrf.mxu0
      %v1936 = vadd.f32 0.0, %v1935
      %1937 = vmatmul.f32.gmra.mxu0 %v1600
      %v1938 = vpop.f32.mrf.mxu0
      %v1939 = vadd.f32 0.0, %v1938
      %1940 = vmatmul.f32.gmra.mxu0 %v1603
      %v1941 = vpop.f32.mrf.mxu0
      %v1942 = vadd.f32 0.0, %v1941
      %1943 = vmatmul.f32.gmra.mxu0 %v1606
      %v1944 = vpop.f32.mrf.mxu0
      %v1945 = vadd.f32 0.0, %v1944
      %1946 = vmatmul.f32.gmra.mxu0 %v1609
      %v1947 = vpop.f32.mrf.mxu0
      %v1948 = vadd.f32 0.0, %v1947
      %1949 = vmatmul.f32.gmra.mxu0 %v1612
      %v1950 = vpop.f32.mrf.mxu0
      %v1951 = vadd.f32 0.0, %v1950
      %1952 = vmatmul.f32.gmra.mxu0 %v1615
      %v1953 = vpop.f32.mrf.mxu0
      %v1954 = vadd.f32 0.0, %v1953
      %1955 = vmatmul.f32.gmra.mxu0 %v1618
      %v1956 = vpop.f32.mrf.mxu0
      %v1957 = vadd.f32 0.0, %v1956
      %1958 = vmatmul.f32.gmra.mxu0 %v1621
      %v1959 = vpop.f32.mrf.mxu0
      %v1960 = vadd.f32 0.0, %v1959
      %1961 = vmatmul.f32.gmra.mxu0 %v1624
      %v1962 = vpop.f32.mrf.mxu0
      %v1963 = vadd.f32 0.0, %v1962
      %1964 = vmatmul.f32.gmra.mxu0 %v1627
      %v1965 = vpop.f32.mrf.mxu0
      %v1966 = vadd.f32 0.0, %v1965
      %1967 = vmatmul.f32.gmra.mxu0 %v1630
      %v1968 = vpop.f32.mrf.mxu0
      %v1969 = vadd.f32 0.0, %v1968
      %1970 = vmatmul.f32.gmra.mxu0 %v1633
      %v1971 = vpop.f32.mrf.mxu0
      %v1972 = vadd.f32 0.0, %v1971
      %1973 = vmatmul.f32.gmra.mxu0 %v1636
      %v1974 = vpop.f32.mrf.mxu0
      %v1975 = vadd.f32 0.0, %v1974
      %1976 = vmatmul.f32.gmra.mxu0 %v1639
      %v1977 = vpop.f32.mrf.mxu0
      %v1978 = vadd.f32 0.0, %v1977
      %1979 = vmatmul.f32.gmra.mxu0 %v1642
      %v1980 = vpop.f32.mrf.mxu0
      %v1981 = vadd.f32 0.0, %v1980
      %1982 = vmatmul.f32.gmra.mxu0 %v1645
      %v1983 = vpop.f32.mrf.mxu0
      %v1984 = vadd.f32 0.0, %v1983
      %1985 = vmatmul.f32.gmra.mxu0 %v1648
      %v1986 = vpop.f32.mrf.mxu0
      %v1987 = vadd.f32 0.0, %v1986
      %1988 = vmatmul.f32.gmra.mxu0 %v1651
      %v1989 = vpop.f32.mrf.mxu0
      %v1990 = vadd.f32 0.0, %v1989
      %1991 = vmatmul.f32.gmra.mxu0 %v1654
      %v1992 = vpop.f32.mrf.mxu0
      %v1993 = vadd.f32 0.0, %v1992
      %1994 = vmatmul.f32.gmra.mxu0 %v1657
      %v1995 = vpop.f32.mrf.mxu0
      %v1996 = vadd.f32 0.0, %v1995
      %1997 = vmatmul.f32.gmra.mxu0 %v1660
      %v1998 = vpop.f32.mrf.mxu0
      %v1999 = vadd.f32 0.0, %v1998
      %2000 = vmatmul.f32.gmra.mxu0 %v1663
      %v2001 = vpop.f32.mrf.mxu0
      %v2002 = vadd.f32 0.0, %v2001
      %2003 = vmatmul.f32.gmra.mxu0 %v1666
      %v2004 = vpop.f32.mrf.mxu0
      %v2005 = vadd.f32 0.0, %v2004
      %2006 = vmatmul.f32.gmra.mxu0 %v1669
      %v2007 = vpop.f32.mrf.mxu0
      %v2008 = vadd.f32 0.0, %v2007
      %2009 = vmatmul.f32.gmra.mxu0 %v1672
      %v2010 = vpop.f32.mrf.mxu0
      %v2011 = vadd.f32 0.0, %v2010
      %2012 = vdwg.mxu0
      %2013 = vmatpush.msra.mxu0 0.0
      %2014 = vmatpush.msra.mxu0 0.0
      %2015 = vmatpush.msra.mxu0 0.0
      %2016 = vmatpush.msra.mxu0 0.0
      %2017 = vmatpush.msra.mxu0 0.0
      %2018 = vmatpush.msra.mxu0 0.0
      %2019 = vmatpush.msra.mxu0 0.0
      %2020 = vmatpush.msra.mxu0 0.0
      %2021 = vmatpush.msra.mxu0 0.0
      %2022 = vmatpush.msra.mxu0 0.0
      %2023 = vmatpush.msra.mxu0 0.0
      %2024 = vmatpush.msra.mxu0 0.0
      %2025 = vmatpush.msra.mxu0 0.0
      %2026 = vmatpush.msra.mxu0 0.0
      %2027 = vmatpush.msra.mxu0 %v1576
      %2028 = vmatpush.msra.mxu0 %v1572
      %2029 = vmatmul.f32.gmra.mxu0 %v1579
      %v2030 = vpop.f32.mrf.mxu0
      %v2031 = vadd.f32 0.0, %v2030
      %2032 = vmatmul.f32.gmra.mxu0 %v1582
      %v2033 = vpop.f32.mrf.mxu0
      %v2034 = vadd.f32 0.0, %v2033
      %2035 = vmatmul.f32.gmra.mxu0 %v1585
      %v2036 = vpop.f32.mrf.mxu0
      %v2037 = vadd.f32 0.0, %v2036
      %2038 = vmatmul.f32.gmra.mxu0 %v1588
      %v2039 = vpop.f32.mrf.mxu0
      %v2040 = vadd.f32 0.0, %v2039
      %2041 = vmatmul.f32.gmra.mxu0 %v1591
      %v2042 = vpop.f32.mrf.mxu0
      %v2043 = vadd.f32 0.0, %v2042
      %2044 = vmatmul.f32.gmra.mxu0 %v1594
      %v2045 = vpop.f32.mrf.mxu0
      %v2046 = vadd.f32 0.0, %v2045
      %2047 = vmatmul.f32.gmra.mxu0 %v1597
      %v2048 = vpop.f32.mrf.mxu0
      %v2049 = vadd.f32 0.0, %v2048
      %2050 = vmatmul.f32.gmra.mxu0 %v1600
      %v2051 = vpop.f32.mrf.mxu0
      %v2052 = vadd.f32 0.0, %v2051
      %2053 = vmatmul.f32.gmra.mxu0 %v1603
      %v2054 = vpop.f32.mrf.mxu0
      %v2055 = vadd.f32 0.0, %v2054
      %2056 = vmatmul.f32.gmra.mxu0 %v1606
      %v2057 = vpop.f32.mrf.mxu0
      %v2058 = vadd.f32 0.0, %v2057
      %2059 = vmatmul.f32.gmra.mxu0 %v1609
      %v2060 = vpop.f32.mrf.mxu0
      %v2061 = vadd.f32 0.0, %v2060
      %2062 = vmatmul.f32.gmra.mxu0 %v1612
      %v2063 = vpop.f32.mrf.mxu0
      %v2064 = vadd.f32 0.0, %v2063
      %2065 = vmatmul.f32.gmra.mxu0 %v1615
      %v2066 = vpop.f32.mrf.mxu0
      %v2067 = vadd.f32 0.0, %v2066
      %2068 = vmatmul.f32.gmra.mxu0 %v1618
      %v2069 = vpop.f32.mrf.mxu0
      %v2070 = vadd.f32 0.0, %v2069
      %2071 = vmatmul.f32.gmra.mxu0 %v1621
      %v2072 = vpop.f32.mrf.mxu0
      %v2073 = vadd.f32 0.0, %v2072
      %2074 = vmatmul.f32.gmra.mxu0 %v1624
      %v2075 = vpop.f32.mrf.mxu0
      %v2076 = vadd.f32 0.0, %v2075
      %2077 = vmatmul.f32.gmra.mxu0 %v1627
      %v2078 = vpop.f32.mrf.mxu0
      %v2079 = vadd.f32 0.0, %v2078
      %2080 = vmatmul.f32.gmra.mxu0 %v1630
      %v2081 = vpop.f32.mrf.mxu0
      %v2082 = vadd.f32 0.0, %v2081
      %2083 = vmatmul.f32.gmra.mxu0 %v1633
      %v2084 = vpop.f32.mrf.mxu0
      %v2085 = vadd.f32 0.0, %v2084
      %2086 = vmatmul.f32.gmra.mxu0 %v1636
      %v2087 = vpop.f32.mrf.mxu0
      %v2088 = vadd.f32 0.0, %v2087
      %2089 = vmatmul.f32.gmra.mxu0 %v1639
      %v2090 = vpop.f32.mrf.mxu0
      %v2091 = vadd.f32 0.0, %v2090
      %2092 = vmatmul.f32.gmra.mxu0 %v1642
      %v2093 = vpop.f32.mrf.mxu0
      %v2094 = vadd.f32 0.0, %v2093
      %2095 = vmatmul.f32.gmra.mxu0 %v1645
      %v2096 = vpop.f32.mrf.mxu0
      %v2097 = vadd.f32 0.0, %v2096
      %2098 = vmatmul.f32.gmra.mxu0 %v1648
      %v2099 = vpop.f32.mrf.mxu0
      %v2100 = vadd.f32 0.0, %v2099
      %2101 = vmatmul.f32.gmra.mxu0 %v1651
      %v2102 = vpop.f32.mrf.mxu0
      %v2103 = vadd.f32 0.0, %v2102
      %2104 = vmatmul.f32.gmra.mxu0 %v1654
      %v2105 = vpop.f32.mrf.mxu0
      %v2106 = vadd.f32 0.0, %v2105
      %2107 = vmatmul.f32.gmra.mxu0 %v1657
      %v2108 = vpop.f32.mrf.mxu0
      %v2109 = vadd.f32 0.0, %v2108
      %2110 = vmatmul.f32.gmra.mxu0 %v1660
      %v2111 = vpop.f32.mrf.mxu0
      %v2112 = vadd.f32 0.0, %v2111
      %2113 = vmatmul.f32.gmra.mxu0 %v1663
      %v2114 = vpop.f32.mrf.mxu0
      %v2115 = vadd.f32 0.0, %v2114
      %2116 = vmatmul.f32.gmra.mxu0 %v1666
      %v2117 = vpop.f32.mrf.mxu0
      %v2118 = vadd.f32 0.0, %v2117
      %2119 = vmatmul.f32.gmra.mxu0 %v1669
      %v2120 = vpop.f32.mrf.mxu0
      %v2121 = vadd.f32 0.0, %v2120
      %2122 = vmatmul.f32.gmra.mxu0 %v1672
      %v2123 = vpop.f32.mrf.mxu0
      %v2124 = vadd.f32 0.0, %v2123
      %2125 = vdwg.mxu0
      %v2126 = vsub.f32 %v619, %v1692
      %v2127 = vsub.f32 %v732, %v1805
      %v2128 = vsub.f32 %v845, %v1918
      %v2129 = vsub.f32 %v958, %v2031
      %v2130 = vsub.f32 %v622, %v1695
      %v2131 = vsub.f32 %v735, %v1808
      %v2132 = vsub.f32 %v848, %v1921
      %v2133 = vsub.f32 %v961, %v2034
      %v2134 = vsub.f32 %v625, %v1698
      %v2135 = vsub.f32 %v738, %v1811
      %v2136 = vsub.f32 %v851, %v1924
      %v2137 = vsub.f32 %v964, %v2037
      %v2138 = vsub.f32 %v628, %v1701
      %v2139 = vsub.f32 %v741, %v1814
      %v2140 = vsub.f32 %v854, %v1927
      %v2141 = vsub.f32 %v967, %v2040
      %v2142 = vsub.f32 %v631, %v1704
      %v2143 = vsub.f32 %v744, %v1817
      %v2144 = vsub.f32 %v857, %v1930
      %v2145 = vsub.f32 %v970, %v2043
      %v2146 = vsub.f32 %v634, %v1707
      %v2147 = vsub.f32 %v747, %v1820
      %v2148 = vsub.f32 %v860, %v1933
      %v2149 = vsub.f32 %v973, %v2046
      %v2150 = vsub.f32 %v637, %v1710
      %v2151 = vsub.f32 %v750, %v1823
      %v2152 = vsub.f32 %v863, %v1936
      %v2153 = vsub.f32 %v976, %v2049
      %v2154 = vsub.f32 %v640, %v1713
      %v2155 = vsub.f32 %v753, %v1826
      %v2156 = vsub.f32 %v866, %v1939
      %v2157 = vsub.f32 %v979, %v2052
      %v2158 = vsub.f32 %v643, %v1716
      %v2159 = vsub.f32 %v756, %v1829
      %v2160 = vsub.f32 %v869, %v1942
      %v2161 = vsub.f32 %v982, %v2055
      %v2162 = vsub.f32 %v646, %v1719
      %v2163 = vsub.f32 %v759, %v1832
      %v2164 = vsub.f32 %v872, %v1945
      %v2165 = vsub.f32 %v985, %v2058
      %v2166 = vsub.f32 %v649, %v1722
      %v2167 = vsub.f32 %v762, %v1835
      %v2168 = vsub.f32 %v875, %v1948
      %v2169 = vsub.f32 %v988, %v2061
      %v2170 = vsub.f32 %v652, %v1725
      %v2171 = vsub.f32 %v765, %v1838
      %v2172 = vsub.f32 %v878, %v1951
      %v2173 = vsub.f32 %v991, %v2064
      %v2174 = vsub.f32 %v655, %v1728
      %v2175 = vsub.f32 %v768, %v1841
      %v2176 = vsub.f32 %v881, %v1954
      %v2177 = vsub.f32 %v994, %v2067
      %v2178 = vsub.f32 %v658, %v1731
      %v2179 = vsub.f32 %v771, %v1844
      %v2180 = vsub.f32 %v884, %v1957
      %v2181 = vsub.f32 %v997, %v2070
      %v2182 = vsub.f32 %v661, %v1734
      %v2183 = vsub.f32 %v774, %v1847
      %v2184 = vsub.f32 %v887, %v1960
      %v2185 = vsub.f32 %v1000, %v2073
      %v2186 = vsub.f32 %v664, %v1737
      %v2187 = vsub.f32 %v777, %v1850
      %v2188 = vsub.f32 %v890, %v1963
      %v2189 = vsub.f32 %v1003, %v2076
      %v2190 = vsub.f32 %v667, %v1740
      %v2191 = vsub.f32 %v780, %v1853
      %v2192 = vsub.f32 %v893, %v1966
      %v2193 = vsub.f32 %v1006, %v2079
      %v2194 = vsub.f32 %v670, %v1743
      %v2195 = vsub.f32 %v783, %v1856
      %v2196 = vsub.f32 %v896, %v1969
      %v2197 = vsub.f32 %v1009, %v2082
      %v2198 = vsub.f32 %v673, %v1746
      %v2199 = vsub.f32 %v786, %v1859
      %v2200 = vsub.f32 %v899, %v1972
      %v2201 = vsub.f32 %v1012, %v2085
      %v2202 = vsub.f32 %v676, %v1749
      %v2203 = vsub.f32 %v789, %v1862
      %v2204 = vsub.f32 %v902, %v1975
      %v2205 = vsub.f32 %v1015, %v2088
      %v2206 = vsub.f32 %v679, %v1752
      %v2207 = vsub.f32 %v792, %v1865
      %v2208 = vsub.f32 %v905, %v1978
      %v2209 = vsub.f32 %v1018, %v2091
      %v2210 = vsub.f32 %v682, %v1755
      %v2211 = vsub.f32 %v795, %v1868
      %v2212 = vsub.f32 %v908, %v1981
      %v2213 = vsub.f32 %v1021, %v2094
      %v2214 = vsub.f32 %v685, %v1758
      %v2215 = vsub.f32 %v798, %v1871
      %v2216 = vsub.f32 %v911, %v1984
      %v2217 = vsub.f32 %v1024, %v2097
      %v2218 = vsub.f32 %v688, %v1761
      %v2219 = vsub.f32 %v801, %v1874
      %v2220 = vsub.f32 %v914, %v1987
      %v2221 = vsub.f32 %v1027, %v2100
      %v2222 = vsub.f32 %v691, %v1764
      %v2223 = vsub.f32 %v804, %v1877
      %v2224 = vsub.f32 %v917, %v1990
      %v2225 = vsub.f32 %v1030, %v2103
      %v2226 = vsub.f32 %v694, %v1767
      %v2227 = vsub.f32 %v807, %v1880
      %v2228 = vsub.f32 %v920, %v1993
      %v2229 = vsub.f32 %v1033, %v2106
      %v2230 = vsub.f32 %v697, %v1770
      %v2231 = vsub.f32 %v810, %v1883
      %v2232 = vsub.f32 %v923, %v1996
      %v2233 = vsub.f32 %v1036, %v2109
      %v2234 = vsub.f32 %v700, %v1773
      %v2235 = vsub.f32 %v813, %v1886
      %v2236 = vsub.f32 %v926, %v1999
      %v2237 = vsub.f32 %v1039, %v2112
      %v2238 = vsub.f32 %v703, %v1776
      %v2239 = vsub.f32 %v816, %v1889
      %v2240 = vsub.f32 %v929, %v2002
      %v2241 = vsub.f32 %v1042, %v2115
      %v2242 = vsub.f32 %v706, %v1779
      %v2243 = vsub.f32 %v819, %v1892
      %v2244 = vsub.f32 %v932, %v2005
      %v2245 = vsub.f32 %v1045, %v2118
      %v2246 = vsub.f32 %v709, %v1782
      %v2247 = vsub.f32 %v822, %v1895
      %v2248 = vsub.f32 %v935, %v2008
      %v2249 = vsub.f32 %v1048, %v2121
      %v2250 = vsub.f32 %v712, %v1785
      %v2251 = vsub.f32 %v825, %v1898
      %v2252 = vsub.f32 %v938, %v2011
      %v2253 = vsub.f32 %v1051, %v2124
      %v2254 = vmul.f32 %v2126, %v2126
      %v2255 = vmul.f32 %v2127, %v2127
      %v2256 = vmul.f32 %v2128, %v2128
      %v2257 = vmul.f32 %v2129, %v2129
      %v2258 = vmul.f32 %v2130, %v2130
      %v2259 = vmul.f32 %v2131, %v2131
      %v2260 = vmul.f32 %v2132, %v2132
      %v2261 = vmul.f32 %v2133, %v2133
      %v2262 = vmul.f32 %v2134, %v2134
      %v2263 = vmul.f32 %v2135, %v2135
      %v2264 = vmul.f32 %v2136, %v2136
      %v2265 = vmul.f32 %v2137, %v2137
      %v2266 = vmul.f32 %v2138, %v2138
      %v2267 = vmul.f32 %v2139, %v2139
      %v2268 = vmul.f32 %v2140, %v2140
      %v2269 = vmul.f32 %v2141, %v2141
      %v2270 = vmul.f32 %v2142, %v2142
      %v2271 = vmul.f32 %v2143, %v2143
      %v2272 = vmul.f32 %v2144, %v2144
      %v2273 = vmul.f32 %v2145, %v2145
      %v2274 = vmul.f32 %v2146, %v2146
      %v2275 = vmul.f32 %v2147, %v2147
      %v2276 = vmul.f32 %v2148, %v2148
      %v2277 = vmul.f32 %v2149, %v2149
      %v2278 = vmul.f32 %v2150, %v2150
      %v2279 = vmul.f32 %v2151, %v2151
      %v2280 = vmul.f32 %v2152, %v2152
      %v2281 = vmul.f32 %v2153, %v2153
      %v2282 = vmul.f32 %v2154, %v2154
      %v2283 = vmul.f32 %v2155, %v2155
      %v2284 = vmul.f32 %v2156, %v2156
      %v2285 = vmul.f32 %v2157, %v2157
      %v2286 = vmul.f32 %v2158, %v2158
      %v2287 = vmul.f32 %v2159, %v2159
      %v2288 = vmul.f32 %v2160, %v2160
      %v2289 = vmul.f32 %v2161, %v2161
      %v2290 = vmul.f32 %v2162, %v2162
      %v2291 = vmul.f32 %v2163, %v2163
      %v2292 = vmul.f32 %v2164, %v2164
      %v2293 = vmul.f32 %v2165, %v2165
      %v2294 = vmul.f32 %v2166, %v2166
      %v2295 = vmul.f32 %v2167, %v2167
      %v2296 = vmul.f32 %v2168, %v2168
      %v2297 = vmul.f32 %v2169, %v2169
      %v2298 = vmul.f32 %v2170, %v2170
      %v2299 = vmul.f32 %v2171, %v2171
      %v2300 = vmul.f32 %v2172, %v2172
      %v2301 = vmul.f32 %v2173, %v2173
      %v2302 = vmul.f32 %v2174, %v2174
      %v2303 = vmul.f32 %v2175, %v2175
      %v2304 = vmul.f32 %v2176, %v2176
      %v2305 = vmul.f32 %v2177, %v2177
      %v2306 = vmul.f32 %v2178, %v2178
      %v2307 = vmul.f32 %v2179, %v2179
      %v2308 = vmul.f32 %v2180, %v2180
      %v2309 = vmul.f32 %v2181, %v2181
      %v2310 = vmul.f32 %v2182, %v2182
      %v2311 = vmul.f32 %v2183, %v2183
      %v2312 = vmul.f32 %v2184, %v2184
      %v2313 = vmul.f32 %v2185, %v2185
      %v2314 = vmul.f32 %v2186, %v2186
      %v2315 = vmul.f32 %v2187, %v2187
      %v2316 = vmul.f32 %v2188, %v2188
      %v2317 = vmul.f32 %v2189, %v2189
      %v2318 = vmul.f32 %v2190, %v2190
      %v2319 = vmul.f32 %v2191, %v2191
      %v2320 = vmul.f32 %v2192, %v2192
      %v2321 = vmul.f32 %v2193, %v2193
      %v2322 = vmul.f32 %v2194, %v2194
      %v2323 = vmul.f32 %v2195, %v2195
      %v2324 = vmul.f32 %v2196, %v2196
      %v2325 = vmul.f32 %v2197, %v2197
      %v2326 = vmul.f32 %v2198, %v2198
      %v2327 = vmul.f32 %v2199, %v2199
      %v2328 = vmul.f32 %v2200, %v2200
      %v2329 = vmul.f32 %v2201, %v2201
      %v2330 = vmul.f32 %v2202, %v2202
      %v2331 = vmul.f32 %v2203, %v2203
      %v2332 = vmul.f32 %v2204, %v2204
      %v2333 = vmul.f32 %v2205, %v2205
      %v2334 = vmul.f32 %v2206, %v2206
      %v2335 = vmul.f32 %v2207, %v2207
      %v2336 = vmul.f32 %v2208, %v2208
      %v2337 = vmul.f32 %v2209, %v2209
      %v2338 = vmul.f32 %v2210, %v2210
      %v2339 = vmul.f32 %v2211, %v2211
      %v2340 = vmul.f32 %v2212, %v2212
      %v2341 = vmul.f32 %v2213, %v2213
      %v2342 = vmul.f32 %v2214, %v2214
      %v2343 = vmul.f32 %v2215, %v2215
      %v2344 = vmul.f32 %v2216, %v2216
      %v2345 = vmul.f32 %v2217, %v2217
      %v2346 = vmul.f32 %v2218, %v2218
      %v2347 = vmul.f32 %v2219, %v2219
      %v2348 = vmul.f32 %v2220, %v2220
      %v2349 = vmul.f32 %v2221, %v2221
      %v2350 = vmul.f32 %v2222, %v2222
      %v2351 = vmul.f32 %v2223, %v2223
      %v2352 = vmul.f32 %v2224, %v2224
      %v2353 = vmul.f32 %v2225, %v2225
      %v2354 = vmul.f32 %v2226, %v2226
      %v2355 = vmul.f32 %v2227, %v2227
      %v2356 = vmul.f32 %v2228, %v2228
      %v2357 = vmul.f32 %v2229, %v2229
      %v2358 = vmul.f32 %v2230, %v2230
      %v2359 = vmul.f32 %v2231, %v2231
      %v2360 = vmul.f32 %v2232, %v2232
      %v2361 = vmul.f32 %v2233, %v2233
      %v2362 = vmul.f32 %v2234, %v2234
      %v2363 = vmul.f32 %v2235, %v2235
      %v2364 = vmul.f32 %v2236, %v2236
      %v2365 = vmul.f32 %v2237, %v2237
      %v2366 = vmul.f32 %v2238, %v2238
      %v2367 = vmul.f32 %v2239, %v2239
      %v2368 = vmul.f32 %v2240, %v2240
      %v2369 = vmul.f32 %v2241, %v2241
      %v2370 = vmul.f32 %v2242, %v2242
      %v2371 = vmul.f32 %v2243, %v2243
      %v2372 = vmul.f32 %v2244, %v2244
      %v2373 = vmul.f32 %v2245, %v2245
      %v2374 = vmul.f32 %v2246, %v2246
      %v2375 = vmul.f32 %v2247, %v2247
      %v2376 = vmul.f32 %v2248, %v2248
      %v2377 = vmul.f32 %v2249, %v2249
      %v2378 = vmul.f32 %v2250, %v2250
      %v2379 = vmul.f32 %v2251, %v2251
      %v2380 = vmul.f32 %v2252, %v2252
      %v2381 = vmul.f32 %v2253, %v2253
      %2382 = vmatpush.msra.mxu0 %v1068
      %2383 = vmatpush.msra.mxu0 %v1067
      %2384 = vmatpush.msra.mxu0 %v1066
      %2385 = vmatpush.msra.mxu0 %v1065
      %2386 = vmatpush.msra.mxu0 %v1064
      %2387 = vmatpush.msra.mxu0 %v1063
      %2388 = vmatpush.msra.mxu0 %v1062
      %2389 = vmatpush.msra.mxu0 %v1061
      %2390 = vmatpush.msra.mxu0 %v1060
      %2391 = vmatpush.msra.mxu0 %v1059
      %2392 = vmatpush.msra.mxu0 %v1058
      %2393 = vmatpush.msra.mxu0 %v1057
      %2394 = vmatpush.msra.mxu0 %v1056
      %2395 = vmatpush.msra.mxu0 %v1055
      %2396 = vmatpush.msra.mxu0 %v1054
      %2397 = vmatpush.msra.mxu0 %v1053
      %2398 = vmatmul.f32.gmra.mxu0 %v2254
      %v2399 = vpop.f32.mrf.mxu0
      %v2400 = vadd.f32 1e-05, %v2399
      %2401 = vmatmul.f32.gmra.mxu0 %v2258
      %v2402 = vpop.f32.mrf.mxu0
      %v2403 = vadd.f32 1e-05, %v2402
      %2404 = vmatmul.f32.gmra.mxu0 %v2262
      %v2405 = vpop.f32.mrf.mxu0
      %v2406 = vadd.f32 1e-05, %v2405
      %2407 = vmatmul.f32.gmra.mxu0 %v2266
      %v2408 = vpop.f32.mrf.mxu0
      %v2409 = vadd.f32 1e-05, %v2408
      %2410 = vmatmul.f32.gmra.mxu0 %v2270
      %v2411 = vpop.f32.mrf.mxu0
      %v2412 = vadd.f32 1e-05, %v2411
      %2413 = vmatmul.f32.gmra.mxu0 %v2274
      %v2414 = vpop.f32.mrf.mxu0
      %v2415 = vadd.f32 1e-05, %v2414
      %2416 = vmatmul.f32.gmra.mxu0 %v2278
      %v2417 = vpop.f32.mrf.mxu0
      %v2418 = vadd.f32 1e-05, %v2417
      %2419 = vmatmul.f32.gmra.mxu0 %v2282
      %v2420 = vpop.f32.mrf.mxu0
      %v2421 = vadd.f32 1e-05, %v2420
      %2422 = vmatmul.f32.gmra.mxu0 %v2286
      %v2423 = vpop.f32.mrf.mxu0
      %v2424 = vadd.f32 1e-05, %v2423
      %2425 = vmatmul.f32.gmra.mxu0 %v2290
      %v2426 = vpop.f32.mrf.mxu0
      %v2427 = vadd.f32 1e-05, %v2426
      %2428 = vmatmul.f32.gmra.mxu0 %v2294
      %v2429 = vpop.f32.mrf.mxu0
      %v2430 = vadd.f32 1e-05, %v2429
      %2431 = vmatmul.f32.gmra.mxu0 %v2298
      %v2432 = vpop.f32.mrf.mxu0
      %v2433 = vadd.f32 1e-05, %v2432
      %2434 = vmatmul.f32.gmra.mxu0 %v2302
      %v2435 = vpop.f32.mrf.mxu0
      %v2436 = vadd.f32 1e-05, %v2435
      %2437 = vmatmul.f32.gmra.mxu0 %v2306
      %v2438 = vpop.f32.mrf.mxu0
      %v2439 = vadd.f32 1e-05, %v2438
      %2440 = vmatmul.f32.gmra.mxu0 %v2310
      %v2441 = vpop.f32.mrf.mxu0
      %v2442 = vadd.f32 1e-05, %v2441
      %2443 = vmatmul.f32.gmra.mxu0 %v2314
      %v2444 = vpop.f32.mrf.mxu0
      %v2445 = vadd.f32 1e-05, %v2444
      %2446 = vmatmul.f32.gmra.mxu0 %v2318
      %v2447 = vpop.f32.mrf.mxu0
      %v2448 = vadd.f32 1e-05, %v2447
      %2449 = vmatmul.f32.gmra.mxu0 %v2322
      %v2450 = vpop.f32.mrf.mxu0
      %v2451 = vadd.f32 1e-05, %v2450
      %2452 = vmatmul.f32.gmra.mxu0 %v2326
      %v2453 = vpop.f32.mrf.mxu0
      %v2454 = vadd.f32 1e-05, %v2453
      %2455 = vmatmul.f32.gmra.mxu0 %v2330
      %v2456 = vpop.f32.mrf.mxu0
      %v2457 = vadd.f32 1e-05, %v2456
      %2458 = vmatmul.f32.gmra.mxu0 %v2334
      %v2459 = vpop.f32.mrf.mxu0
      %v2460 = vadd.f32 1e-05, %v2459
      %2461 = vmatmul.f32.gmra.mxu0 %v2338
      %v2462 = vpop.f32.mrf.mxu0
      %v2463 = vadd.f32 1e-05, %v2462
      %2464 = vmatmul.f32.gmra.mxu0 %v2342
      %v2465 = vpop.f32.mrf.mxu0
      %v2466 = vadd.f32 1e-05, %v2465
      %2467 = vmatmul.f32.gmra.mxu0 %v2346
      %v2468 = vpop.f32.mrf.mxu0
      %v2469 = vadd.f32 1e-05, %v2468
      %2470 = vmatmul.f32.gmra.mxu0 %v2350
      %v2471 = vpop.f32.mrf.mxu0
      %v2472 = vadd.f32 1e-05, %v2471
      %2473 = vmatmul.f32.gmra.mxu0 %v2354
      %v2474 = vpop.f32.mrf.mxu0
      %v2475 = vadd.f32 1e-05, %v2474
      %2476 = vmatmul.f32.gmra.mxu0 %v2358
      %v2477 = vpop.f32.mrf.mxu0
      %v2478 = vadd.f32 1e-05, %v2477
      %2479 = vmatmul.f32.gmra.mxu0 %v2362
      %v2480 = vpop.f32.mrf.mxu0
      %v2481 = vadd.f32 1e-05, %v2480
      %2482 = vmatmul.f32.gmra.mxu0 %v2366
      %v2483 = vpop.f32.mrf.mxu0
      %v2484 = vadd.f32 1e-05, %v2483
      %2485 = vmatmul.f32.gmra.mxu0 %v2370
      %v2486 = vpop.f32.mrf.mxu0
      %v2487 = vadd.f32 1e-05, %v2486
      %2488 = vmatmul.f32.gmra.mxu0 %v2374
      %v2489 = vpop.f32.mrf.mxu0
      %v2490 = vadd.f32 1e-05, %v2489
      %2491 = vmatmul.f32.gmra.mxu0 %v2378
      %v2492 = vpop.f32.mrf.mxu0
      %v2493 = vadd.f32 1e-05, %v2492
      %2494 = vdwg.mxu0
      %2495 = vmatpush.msra.mxu0 %v1084
      %2496 = vmatpush.msra.mxu0 %v1083
      %2497 = vmatpush.msra.mxu0 %v1082
      %2498 = vmatpush.msra.mxu0 %v1081
      %2499 = vmatpush.msra.mxu0 %v1080
      %2500 = vmatpush.msra.mxu0 %v1079
      %2501 = vmatpush.msra.mxu0 %v1078
      %2502 = vmatpush.msra.mxu0 %v1077
      %2503 = vmatpush.msra.mxu0 %v1076
      %2504 = vmatpush.msra.mxu0 %v1075
      %2505 = vmatpush.msra.mxu0 %v1074
      %2506 = vmatpush.msra.mxu0 %v1073
      %2507 = vmatpush.msra.mxu0 %v1072
      %2508 = vmatpush.msra.mxu0 %v1071
      %2509 = vmatpush.msra.mxu0 %v1070
      %2510 = vmatpush.msra.mxu0 %v1069
      %2511 = vmatmul.f32.gmra.mxu0 %v2255
      %v2512 = vpop.f32.mrf.mxu0
      %v2513 = vadd.f32 %v2400, %v2512
      %2514 = vmatmul.f32.gmra.mxu0 %v2259
      %v2515 = vpop.f32.mrf.mxu0
      %v2516 = vadd.f32 %v2403, %v2515
      %2517 = vmatmul.f32.gmra.mxu0 %v2263
      %v2518 = vpop.f32.mrf.mxu0
      %v2519 = vadd.f32 %v2406, %v2518
      %2520 = vmatmul.f32.gmra.mxu0 %v2267
      %v2521 = vpop.f32.mrf.mxu0
      %v2522 = vadd.f32 %v2409, %v2521
      %2523 = vmatmul.f32.gmra.mxu0 %v2271
      %v2524 = vpop.f32.mrf.mxu0
      %v2525 = vadd.f32 %v2412, %v2524
      %2526 = vmatmul.f32.gmra.mxu0 %v2275
      %v2527 = vpop.f32.mrf.mxu0
      %v2528 = vadd.f32 %v2415, %v2527
      %2529 = vmatmul.f32.gmra.mxu0 %v2279
      %v2530 = vpop.f32.mrf.mxu0
      %v2531 = vadd.f32 %v2418, %v2530
      %2532 = vmatmul.f32.gmra.mxu0 %v2283
      %v2533 = vpop.f32.mrf.mxu0
      %v2534 = vadd.f32 %v2421, %v2533
      %2535 = vmatmul.f32.gmra.mxu0 %v2287
      %v2536 = vpop.f32.mrf.mxu0
      %v2537 = vadd.f32 %v2424, %v2536
      %2538 = vmatmul.f32.gmra.mxu0 %v2291
      %v2539 = vpop.f32.mrf.mxu0
      %v2540 = vadd.f32 %v2427, %v2539
      %2541 = vmatmul.f32.gmra.mxu0 %v2295
      %v2542 = vpop.f32.mrf.mxu0
      %v2543 = vadd.f32 %v2430, %v2542
      %2544 = vmatmul.f32.gmra.mxu0 %v2299
      %v2545 = vpop.f32.mrf.mxu0
      %v2546 = vadd.f32 %v2433, %v2545
      %2547 = vmatmul.f32.gmra.mxu0 %v2303
      %v2548 = vpop.f32.mrf.mxu0
      %v2549 = vadd.f32 %v2436, %v2548
      %2550 = vmatmul.f32.gmra.mxu0 %v2307
      %v2551 = vpop.f32.mrf.mxu0
      %v2552 = vadd.f32 %v2439, %v2551
      %2553 = vmatmul.f32.gmra.mxu0 %v2311
      %v2554 = vpop.f32.mrf.mxu0
      %v2555 = vadd.f32 %v2442, %v2554
      %2556 = vmatmul.f32.gmra.mxu0 %v2315
      %v2557 = vpop.f32.mrf.mxu0
      %v2558 = vadd.f32 %v2445, %v2557
      %2559 = vmatmul.f32.gmra.mxu0 %v2319
      %v2560 = vpop.f32.mrf.mxu0
      %v2561 = vadd.f32 %v2448, %v2560
      %2562 = vmatmul.f32.gmra.mxu0 %v2323
      %v2563 = vpop.f32.mrf.mxu0
      %v2564 = vadd.f32 %v2451, %v2563
      %2565 = vmatmul.f32.gmra.mxu0 %v2327
      %v2566 = vpop.f32.mrf.mxu0
      %v2567 = vadd.f32 %v2454, %v2566
      %2568 = vmatmul.f32.gmra.mxu0 %v2331
      %v2569 = vpop.f32.mrf.mxu0
      %v2570 = vadd.f32 %v2457, %v2569
      %2571 = vmatmul.f32.gmra.mxu0 %v2335
      %v2572 = vpop.f32.mrf.mxu0
      %v2573 = vadd.f32 %v2460, %v2572
      %2574 = vmatmul.f32.gmra.mxu0 %v2339
      %v2575 = vpop.f32.mrf.mxu0
      %v2576 = vadd.f32 %v2463, %v2575
      %2577 = vmatmul.f32.gmra.mxu0 %v2343
      %v2578 = vpop.f32.mrf.mxu0
      %v2579 = vadd.f32 %v2466, %v2578
      %2580 = vmatmul.f32.gmra.mxu0 %v2347
      %v2581 = vpop.f32.mrf.mxu0
      %v2582 = vadd.f32 %v2469, %v2581
      %2583 = vmatmul.f32.gmra.mxu0 %v2351
      %v2584 = vpop.f32.mrf.mxu0
      %v2585 = vadd.f32 %v2472, %v2584
      %2586 = vmatmul.f32.gmra.mxu0 %v2355
      %v2587 = vpop.f32.mrf.mxu0
      %v2588 = vadd.f32 %v2475, %v2587
      %2589 = vmatmul.f32.gmra.mxu0 %v2359
      %v2590 = vpop.f32.mrf.mxu0
      %v2591 = vadd.f32 %v2478, %v2590
      %2592 = vmatmul.f32.gmra.mxu0 %v2363
      %v2593 = vpop.f32.mrf.mxu0
      %v2594 = vadd.f32 %v2481, %v2593
      %2595 = vmatmul.f32.gmra.mxu0 %v2367
      %v2596 = vpop.f32.mrf.mxu0
      %v2597 = vadd.f32 %v2484, %v2596
      %2598 = vmatmul.f32.gmra.mxu0 %v2371
      %v2599 = vpop.f32.mrf.mxu0
      %v2600 = vadd.f32 %v2487, %v2599
      %2601 = vmatmul.f32.gmra.mxu0 %v2375
      %v2602 = vpop.f32.mrf.mxu0
      %v2603 = vadd.f32 %v2490, %v2602
      %2604 = vmatmul.f32.gmra.mxu0 %v2379
      %v2605 = vpop.f32.mrf.mxu0
      %v2606 = vadd.f32 %v2493, %v2605
      %2607 = vdwg.mxu0
      %2608 = vmatpush.msra.mxu0 %v1100
      %2609 = vmatpush.msra.mxu0 %v1099
      %2610 = vmatpush.msra.mxu0 %v1098
      %2611 = vmatpush.msra.mxu0 %v1097
      %2612 = vmatpush.msra.mxu0 %v1096
      %2613 = vmatpush.msra.mxu0 %v1095
      %2614 = vmatpush.msra.mxu0 %v1094
      %2615 = vmatpush.msra.mxu0 %v1093
      %2616 = vmatpush.msra.mxu0 %v1092
      %2617 = vmatpush.msra.mxu0 %v1091
      %2618 = vmatpush.msra.mxu0 %v1090
      %2619 = vmatpush.msra.mxu0 %v1089
      %2620 = vmatpush.msra.mxu0 %v1088
      %2621 = vmatpush.msra.mxu0 %v1087
      %2622 = vmatpush.msra.mxu0 %v1086
      %2623 = vmatpush.msra.mxu0 %v1085
      %2624 = vmatmul.f32.gmra.mxu0 %v2256
      %v2625 = vpop.f32.mrf.mxu0
      %v2626 = vadd.f32 %v2513, %v2625
      %2627 = vmatmul.f32.gmra.mxu0 %v2260
      %v2628 = vpop.f32.mrf.mxu0
      %v2629 = vadd.f32 %v2516, %v2628
      %2630 = vmatmul.f32.gmra.mxu0 %v2264
      %v2631 = vpop.f32.mrf.mxu0
      %v2632 = vadd.f32 %v2519, %v2631
      %2633 = vmatmul.f32.gmra.mxu0 %v2268
      %v2634 = vpop.f32.mrf.mxu0
      %v2635 = vadd.f32 %v2522, %v2634
      %2636 = vmatmul.f32.gmra.mxu0 %v2272
      %v2637 = vpop.f32.mrf.mxu0
      %v2638 = vadd.f32 %v2525, %v2637
      %2639 = vmatmul.f32.gmra.mxu0 %v2276
      %v2640 = vpop.f32.mrf.mxu0
      %v2641 = vadd.f32 %v2528, %v2640
      %2642 = vmatmul.f32.gmra.mxu0 %v2280
      %v2643 = vpop.f32.mrf.mxu0
      %v2644 = vadd.f32 %v2531, %v2643
      %2645 = vmatmul.f32.gmra.mxu0 %v2284
      %v2646 = vpop.f32.mrf.mxu0
      %v2647 = vadd.f32 %v2534, %v2646
      %2648 = vmatmul.f32.gmra.mxu0 %v2288
      %v2649 = vpop.f32.mrf.mxu0
      %v2650 = vadd.f32 %v2537, %v2649
      %2651 = vmatmul.f32.gmra.mxu0 %v2292
      %v2652 = vpop.f32.mrf.mxu0
      %v2653 = vadd.f32 %v2540, %v2652
      %2654 = vmatmul.f32.gmra.mxu0 %v2296
      %v2655 = vpop.f32.mrf.mxu0
      %v2656 = vadd.f32 %v2543, %v2655
      %2657 = vmatmul.f32.gmra.mxu0 %v2300
      %v2658 = vpop.f32.mrf.mxu0
      %v2659 = vadd.f32 %v2546, %v2658
      %2660 = vmatmul.f32.gmra.mxu0 %v2304
      %v2661 = vpop.f32.mrf.mxu0
      %v2662 = vadd.f32 %v2549, %v2661
      %2663 = vmatmul.f32.gmra.mxu0 %v2308
      %v2664 = vpop.f32.mrf.mxu0
      %v2665 = vadd.f32 %v2552, %v2664
      %2666 = vmatmul.f32.gmra.mxu0 %v2312
      %v2667 = vpop.f32.mrf.mxu0
      %v2668 = vadd.f32 %v2555, %v2667
      %2669 = vmatmul.f32.gmra.mxu0 %v2316
      %v2670 = vpop.f32.mrf.mxu0
      %v2671 = vadd.f32 %v2558, %v2670
      %2672 = vmatmul.f32.gmra.mxu0 %v2320
      %v2673 = vpop.f32.mrf.mxu0
      %v2674 = vadd.f32 %v2561, %v2673
      %2675 = vmatmul.f32.gmra.mxu0 %v2324
      %v2676 = vpop.f32.mrf.mxu0
      %v2677 = vadd.f32 %v2564, %v2676
      %2678 = vmatmul.f32.gmra.mxu0 %v2328
      %v2679 = vpop.f32.mrf.mxu0
      %v2680 = vadd.f32 %v2567, %v2679
      %2681 = vmatmul.f32.gmra.mxu0 %v2332
      %v2682 = vpop.f32.mrf.mxu0
      %v2683 = vadd.f32 %v2570, %v2682
      %2684 = vmatmul.f32.gmra.mxu0 %v2336
      %v2685 = vpop.f32.mrf.mxu0
      %v2686 = vadd.f32 %v2573, %v2685
      %2687 = vmatmul.f32.gmra.mxu0 %v2340
      %v2688 = vpop.f32.mrf.mxu0
      %v2689 = vadd.f32 %v2576, %v2688
      %2690 = vmatmul.f32.gmra.mxu0 %v2344
      %v2691 = vpop.f32.mrf.mxu0
      %v2692 = vadd.f32 %v2579, %v2691
      %2693 = vmatmul.f32.gmra.mxu0 %v2348
      %v2694 = vpop.f32.mrf.mxu0
      %v2695 = vadd.f32 %v2582, %v2694
      %2696 = vmatmul.f32.gmra.mxu0 %v2352
      %v2697 = vpop.f32.mrf.mxu0
      %v2698 = vadd.f32 %v2585, %v2697
      %2699 = vmatmul.f32.gmra.mxu0 %v2356
      %v2700 = vpop.f32.mrf.mxu0
      %v2701 = vadd.f32 %v2588, %v2700
      %2702 = vmatmul.f32.gmra.mxu0 %v2360
      %v2703 = vpop.f32.mrf.mxu0
      %v2704 = vadd.f32 %v2591, %v2703
      %2705 = vmatmul.f32.gmra.mxu0 %v2364
      %v2706 = vpop.f32.mrf.mxu0
      %v2707 = vadd.f32 %v2594, %v2706
      %2708 = vmatmul.f32.gmra.mxu0 %v2368
      %v2709 = vpop.f32.mrf.mxu0
      %v2710 = vadd.f32 %v2597, %v2709
      %2711 = vmatmul.f32.gmra.mxu0 %v2372
      %v2712 = vpop.f32.mrf.mxu0
      %v2713 = vadd.f32 %v2600, %v2712
      %2714 = vmatmul.f32.gmra.mxu0 %v2376
      %v2715 = vpop.f32.mrf.mxu0
      %v2716 = vadd.f32 %v2603, %v2715
      %2717 = vmatmul.f32.gmra.mxu0 %v2380
      %v2718 = vpop.f32.mrf.mxu0
      %v2719 = vadd.f32 %v2606, %v2718
      %2720 = vdwg.mxu0
      %2721 = vmatpush.msra.mxu0 %v1116
      %2722 = vmatpush.msra.mxu0 %v1115
      %2723 = vmatpush.msra.mxu0 %v1114
      %2724 = vmatpush.msra.mxu0 %v1113
      %2725 = vmatpush.msra.mxu0 %v1112
      %2726 = vmatpush.msra.mxu0 %v1111
      %2727 = vmatpush.msra.mxu0 %v1110
      %2728 = vmatpush.msra.mxu0 %v1109
      %2729 = vmatpush.msra.mxu0 %v1108
      %2730 = vmatpush.msra.mxu0 %v1107
      %2731 = vmatpush.msra.mxu0 %v1106
      %2732 = vmatpush.msra.mxu0 %v1105
      %2733 = vmatpush.msra.mxu0 %v1104
      %2734 = vmatpush.msra.mxu0 %v1103
      %2735 = vmatpush.msra.mxu0 %v1102
      %2736 = vmatpush.msra.mxu0 %v1101
      %2737 = vmatmul.f32.gmra.mxu0 %v2257
      %v2738 = vpop.f32.mrf.mxu0
      %v2739 = vadd.f32 %v2626, %v2738
      %2740 = vmatmul.f32.gmra.mxu0 %v2261
      %v2741 = vpop.f32.mrf.mxu0
      %v2742 = vadd.f32 %v2629, %v2741
      %2743 = vmatmul.f32.gmra.mxu0 %v2265
      %v2744 = vpop.f32.mrf.mxu0
      %v2745 = vadd.f32 %v2632, %v2744
      %2746 = vmatmul.f32.gmra.mxu0 %v2269
      %v2747 = vpop.f32.mrf.mxu0
      %v2748 = vadd.f32 %v2635, %v2747
      %2749 = vmatmul.f32.gmra.mxu0 %v2273
      %v2750 = vpop.f32.mrf.mxu0
      %v2751 = vadd.f32 %v2638, %v2750
      %2752 = vmatmul.f32.gmra.mxu0 %v2277
      %v2753 = vpop.f32.mrf.mxu0
      %v2754 = vadd.f32 %v2641, %v2753
      %2755 = vmatmul.f32.gmra.mxu0 %v2281
      %v2756 = vpop.f32.mrf.mxu0
      %v2757 = vadd.f32 %v2644, %v2756
      %2758 = vmatmul.f32.gmra.mxu0 %v2285
      %v2759 = vpop.f32.mrf.mxu0
      %v2760 = vadd.f32 %v2647, %v2759
      %2761 = vmatmul.f32.gmra.mxu0 %v2289
      %v2762 = vpop.f32.mrf.mxu0
      %v2763 = vadd.f32 %v2650, %v2762
      %2764 = vmatmul.f32.gmra.mxu0 %v2293
      %v2765 = vpop.f32.mrf.mxu0
      %v2766 = vadd.f32 %v2653, %v2765
      %2767 = vmatmul.f32.gmra.mxu0 %v2297
      %v2768 = vpop.f32.mrf.mxu0
      %v2769 = vadd.f32 %v2656, %v2768
      %2770 = vmatmul.f32.gmra.mxu0 %v2301
      %v2771 = vpop.f32.mrf.mxu0
      %v2772 = vadd.f32 %v2659, %v2771
      %2773 = vmatmul.f32.gmra.mxu0 %v2305
      %v2774 = vpop.f32.mrf.mxu0
      %v2775 = vadd.f32 %v2662, %v2774
      %2776 = vmatmul.f32.gmra.mxu0 %v2309
      %v2777 = vpop.f32.mrf.mxu0
      %v2778 = vadd.f32 %v2665, %v2777
      %2779 = vmatmul.f32.gmra.mxu0 %v2313
      %v2780 = vpop.f32.mrf.mxu0
      %v2781 = vadd.f32 %v2668, %v2780
      %2782 = vmatmul.f32.gmra.mxu0 %v2317
      %v2783 = vpop.f32.mrf.mxu0
      %v2784 = vadd.f32 %v2671, %v2783
      %2785 = vmatmul.f32.gmra.mxu0 %v2321
      %v2786 = vpop.f32.mrf.mxu0
      %v2787 = vadd.f32 %v2674, %v2786
      %2788 = vmatmul.f32.gmra.mxu0 %v2325
      %v2789 = vpop.f32.mrf.mxu0
      %v2790 = vadd.f32 %v2677, %v2789
      %2791 = vmatmul.f32.gmra.mxu0 %v2329
      %v2792 = vpop.f32.mrf.mxu0
      %v2793 = vadd.f32 %v2680, %v2792
      %2794 = vmatmul.f32.gmra.mxu0 %v2333
      %v2795 = vpop.f32.mrf.mxu0
      %v2796 = vadd.f32 %v2683, %v2795
      %2797 = vmatmul.f32.gmra.mxu0 %v2337
      %v2798 = vpop.f32.mrf.mxu0
      %v2799 = vadd.f32 %v2686, %v2798
      %2800 = vmatmul.f32.gmra.mxu0 %v2341
      %v2801 = vpop.f32.mrf.mxu0
      %v2802 = vadd.f32 %v2689, %v2801
      %2803 = vmatmul.f32.gmra.mxu0 %v2345
      %v2804 = vpop.f32.mrf.mxu0
      %v2805 = vadd.f32 %v2692, %v2804
      %2806 = vmatmul.f32.gmra.mxu0 %v2349
      %v2807 = vpop.f32.mrf.mxu0
      %v2808 = vadd.f32 %v2695, %v2807
      %2809 = vmatmul.f32.gmra.mxu0 %v2353
      %v2810 = vpop.f32.mrf.mxu0
      %v2811 = vadd.f32 %v2698, %v2810
      %2812 = vmatmul.f32.gmra.mxu0 %v2357
      %v2813 = vpop.f32.mrf.mxu0
      %v2814 = vadd.f32 %v2701, %v2813
      %2815 = vmatmul.f32.gmra.mxu0 %v2361
      %v2816 = vpop.f32.mrf.mxu0
      %v2817 = vadd.f32 %v2704, %v2816
      %2818 = vmatmul.f32.gmra.mxu0 %v2365
      %v2819 = vpop.f32.mrf.mxu0
      %v2820 = vadd.f32 %v2707, %v2819
      %2821 = vmatmul.f32.gmra.mxu0 %v2369
      %v2822 = vpop.f32.mrf.mxu0
      %v2823 = vadd.f32 %v2710, %v2822
      %2824 = vmatmul.f32.gmra.mxu0 %v2373
      %v2825 = vpop.f32.mrf.mxu0
      %v2826 = vadd.f32 %v2713, %v2825
      %2827 = vmatmul.f32.gmra.mxu0 %v2377
      %v2828 = vpop.f32.mrf.mxu0
      %v2829 = vadd.f32 %v2716, %v2828
      %2830 = vmatmul.f32.gmra.mxu0 %v2381
      %v2831 = vpop.f32.mrf.mxu0
      %v2832 = vadd.f32 %v2719, %v2831
      %2833 = vdwg.mxu0
      %v2834 = vrsqrt.pop %v2739
      %v2835 = vmul.f32 %v2834, %v2739
      %v2836 = vmul.f32 %v2835, %v2834
      %v2837 = vmul.f32 0.5, %v2836
      %v2838 = vsub.f32 1.5, %v2837
      %v2839 = vmul.f32 %v2834, %v2838
      %vm2840 = vweird.f32 %v2739
      %vm2841 = vweird.f32 %v2834
      %vm2842 = vmor %vm2840, %vm2841
      %v2843 = vsel %vm2842, %v2834, %v2839
      %v2844 = vrsqrt.pop %v2742
      %v2845 = vmul.f32 %v2844, %v2742
      %v2846 = vmul.f32 %v2845, %v2844
      %v2847 = vmul.f32 0.5, %v2846
      %v2848 = vsub.f32 1.5, %v2847
      %v2849 = vmul.f32 %v2844, %v2848
      %vm2850 = vweird.f32 %v2742
      %vm2851 = vweird.f32 %v2844
      %vm2852 = vmor %vm2850, %vm2851
      %v2853 = vsel %vm2852, %v2844, %v2849
      %v2854 = vrsqrt.pop %v2745
      %v2855 = vmul.f32 %v2854, %v2745
      %v2856 = vmul.f32 %v2855, %v2854
      %v2857 = vmul.f32 0.5, %v2856
      %v2858 = vsub.f32 1.5, %v2857
      %v2859 = vmul.f32 %v2854, %v2858
      %vm2860 = vweird.f32 %v2745
      %vm2861 = vweird.f32 %v2854
      %vm2862 = vmor %vm2860, %vm2861
      %v2863 = vsel %vm2862, %v2854, %v2859
      %v2864 = vrsqrt.pop %v2748
      %v2865 = vmul.f32 %v2864, %v2748
      %v2866 = vmul.f32 %v2865, %v2864
      %v2867 = vmul.f32 0.5, %v2866
      %v2868 = vsub.f32 1.5, %v2867
      %v2869 = vmul.f32 %v2864, %v2868
      %vm2870 = vweird.f32 %v2748
      %vm2871 = vweird.f32 %v2864
      %vm2872 = vmor %vm2870, %vm2871
      %v2873 = vsel %vm2872, %v2864, %v2869
      %v2874 = vrsqrt.pop %v2751
      %v2875 = vmul.f32 %v2874, %v2751
      %v2876 = vmul.f32 %v2875, %v2874
      %v2877 = vmul.f32 0.5, %v2876
      %v2878 = vsub.f32 1.5, %v2877
      %v2879 = vmul.f32 %v2874, %v2878
      %vm2880 = vweird.f32 %v2751
      %vm2881 = vweird.f32 %v2874
      %vm2882 = vmor %vm2880, %vm2881
      %v2883 = vsel %vm2882, %v2874, %v2879
      %v2884 = vrsqrt.pop %v2754
      %v2885 = vmul.f32 %v2884, %v2754
      %v2886 = vmul.f32 %v2885, %v2884
      %v2887 = vmul.f32 0.5, %v2886
      %v2888 = vsub.f32 1.5, %v2887
      %v2889 = vmul.f32 %v2884, %v2888
      %vm2890 = vweird.f32 %v2754
      %vm2891 = vweird.f32 %v2884
      %vm2892 = vmor %vm2890, %vm2891
      %v2893 = vsel %vm2892, %v2884, %v2889
      %v2894 = vrsqrt.pop %v2757
      %v2895 = vmul.f32 %v2894, %v2757
      %v2896 = vmul.f32 %v2895, %v2894
      %v2897 = vmul.f32 0.5, %v2896
      %v2898 = vsub.f32 1.5, %v2897
      %v2899 = vmul.f32 %v2894, %v2898
      %vm2900 = vweird.f32 %v2757
      %vm2901 = vweird.f32 %v2894
      %vm2902 = vmor %vm2900, %vm2901
      %v2903 = vsel %vm2902, %v2894, %v2899
      %v2904 = vrsqrt.pop %v2760
      %v2905 = vmul.f32 %v2904, %v2760
      %v2906 = vmul.f32 %v2905, %v2904
      %v2907 = vmul.f32 0.5, %v2906
      %v2908 = vsub.f32 1.5, %v2907
      %v2909 = vmul.f32 %v2904, %v2908
      %vm2910 = vweird.f32 %v2760
      %vm2911 = vweird.f32 %v2904
      %vm2912 = vmor %vm2910, %vm2911
      %v2913 = vsel %vm2912, %v2904, %v2909
      %v2914 = vrsqrt.pop %v2763
      %v2915 = vmul.f32 %v2914, %v2763
      %v2916 = vmul.f32 %v2915, %v2914
      %v2917 = vmul.f32 0.5, %v2916
      %v2918 = vsub.f32 1.5, %v2917
      %v2919 = vmul.f32 %v2914, %v2918
      %vm2920 = vweird.f32 %v2763
      %vm2921 = vweird.f32 %v2914
      %vm2922 = vmor %vm2920, %vm2921
      %v2923 = vsel %vm2922, %v2914, %v2919
      %v2924 = vrsqrt.pop %v2766
      %v2925 = vmul.f32 %v2924, %v2766
      %v2926 = vmul.f32 %v2925, %v2924
      %v2927 = vmul.f32 0.5, %v2926
      %v2928 = vsub.f32 1.5, %v2927
      %v2929 = vmul.f32 %v2924, %v2928
      %vm2930 = vweird.f32 %v2766
      %vm2931 = vweird.f32 %v2924
      %vm2932 = vmor %vm2930, %vm2931
      %v2933 = vsel %vm2932, %v2924, %v2929
      %v2934 = vrsqrt.pop %v2769
      %v2935 = vmul.f32 %v2934, %v2769
      %v2936 = vmul.f32 %v2935, %v2934
      %v2937 = vmul.f32 0.5, %v2936
      %v2938 = vsub.f32 1.5, %v2937
      %v2939 = vmul.f32 %v2934, %v2938
      %vm2940 = vweird.f32 %v2769
      %vm2941 = vweird.f32 %v2934
      %vm2942 = vmor %vm2940, %vm2941
      %v2943 = vsel %vm2942, %v2934, %v2939
      %v2944 = vrsqrt.pop %v2772
      %v2945 = vmul.f32 %v2944, %v2772
      %v2946 = vmul.f32 %v2945, %v2944
      %v2947 = vmul.f32 0.5, %v2946
      %v2948 = vsub.f32 1.5, %v2947
      %v2949 = vmul.f32 %v2944, %v2948
      %vm2950 = vweird.f32 %v2772
      %vm2951 = vweird.f32 %v2944
      %vm2952 = vmor %vm2950, %vm2951
      %v2953 = vsel %vm2952, %v2944, %v2949
      %v2954 = vrsqrt.pop %v2775
      %v2955 = vmul.f32 %v2954, %v2775
      %v2956 = vmul.f32 %v2955, %v2954
      %v2957 = vmul.f32 0.5, %v2956
      %v2958 = vsub.f32 1.5, %v2957
      %v2959 = vmul.f32 %v2954, %v2958
      %vm2960 = vweird.f32 %v2775
      %vm2961 = vweird.f32 %v2954
      %vm2962 = vmor %vm2960, %vm2961
      %v2963 = vsel %vm2962, %v2954, %v2959
      %v2964 = vrsqrt.pop %v2778
      %v2965 = vmul.f32 %v2964, %v2778
      %v2966 = vmul.f32 %v2965, %v2964
      %v2967 = vmul.f32 0.5, %v2966
      %v2968 = vsub.f32 1.5, %v2967
      %v2969 = vmul.f32 %v2964, %v2968
      %vm2970 = vweird.f32 %v2778
      %vm2971 = vweird.f32 %v2964
      %vm2972 = vmor %vm2970, %vm2971
      %v2973 = vsel %vm2972, %v2964, %v2969
      %v2974 = vrsqrt.pop %v2781
      %v2975 = vmul.f32 %v2974, %v2781
      %v2976 = vmul.f32 %v2975, %v2974
      %v2977 = vmul.f32 0.5, %v2976
      %v2978 = vsub.f32 1.5, %v2977
      %v2979 = vmul.f32 %v2974, %v2978
      %vm2980 = vweird.f32 %v2781
      %vm2981 = vweird.f32 %v2974
      %vm2982 = vmor %vm2980, %vm2981
      %v2983 = vsel %vm2982, %v2974, %v2979
      %v2984 = vrsqrt.pop %v2784
      %v2985 = vmul.f32 %v2984, %v2784
      %v2986 = vmul.f32 %v2985, %v2984
      %v2987 = vmul.f32 0.5, %v2986
      %v2988 = vsub.f32 1.5, %v2987
      %v2989 = vmul.f32 %v2984, %v2988
      %vm2990 = vweird.f32 %v2784
      %vm2991 = vweird.f32 %v2984
      %vm2992 = vmor %vm2990, %vm2991
      %v2993 = vsel %vm2992, %v2984, %v2989
      %v2994 = vrsqrt.pop %v2787
      %v2995 = vmul.f32 %v2994, %v2787
      %v2996 = vmul.f32 %v2995, %v2994
      %v2997 = vmul.f32 0.5, %v2996
      %v2998 = vsub.f32 1.5, %v2997
      %v2999 = vmul.f32 %v2994, %v2998
      %vm3000 = vweird.f32 %v2787
      %vm3001 = vweird.f32 %v2994
      %vm3002 = vmor %vm3000, %vm3001
      %v3003 = vsel %vm3002, %v2994, %v2999
      %v3004 = vrsqrt.pop %v2790
      %v3005 = vmul.f32 %v3004, %v2790
      %v3006 = vmul.f32 %v3005, %v3004
      %v3007 = vmul.f32 0.5, %v3006
      %v3008 = vsub.f32 1.5, %v3007
      %v3009 = vmul.f32 %v3004, %v3008
      %vm3010 = vweird.f32 %v2790
      %vm3011 = vweird.f32 %v3004
      %vm3012 = vmor %vm3010, %vm3011
      %v3013 = vsel %vm3012, %v3004, %v3009
      %v3014 = vrsqrt.pop %v2793
      %v3015 = vmul.f32 %v3014, %v2793
      %v3016 = vmul.f32 %v3015, %v3014
      %v3017 = vmul.f32 0.5, %v3016
      %v3018 = vsub.f32 1.5, %v3017
      %v3019 = vmul.f32 %v3014, %v3018
      %vm3020 = vweird.f32 %v2793
      %vm3021 = vweird.f32 %v3014
      %vm3022 = vmor %vm3020, %vm3021
      %v3023 = vsel %vm3022, %v3014, %v3019
      %v3024 = vrsqrt.pop %v2796
      %v3025 = vmul.f32 %v3024, %v2796
      %v3026 = vmul.f32 %v3025, %v3024
      %v3027 = vmul.f32 0.5, %v3026
      %v3028 = vsub.f32 1.5, %v3027
      %v3029 = vmul.f32 %v3024, %v3028
      %vm3030 = vweird.f32 %v2796
      %vm3031 = vweird.f32 %v3024
      %vm3032 = vmor %vm3030, %vm3031
      %v3033 = vsel %vm3032, %v3024, %v3029
      %v3034 = vrsqrt.pop %v2799
      %v3035 = vmul.f32 %v3034, %v2799
      %v3036 = vmul.f32 %v3035, %v3034
      %v3037 = vmul.f32 0.5, %v3036
      %v3038 = vsub.f32 1.5, %v3037
      %v3039 = vmul.f32 %v3034, %v3038
      %vm3040 = vweird.f32 %v2799
      %vm3041 = vweird.f32 %v3034
      %vm3042 = vmor %vm3040, %vm3041
      %v3043 = vsel %vm3042, %v3034, %v3039
      %v3044 = vrsqrt.pop %v2802
      %v3045 = vmul.f32 %v3044, %v2802
      %v3046 = vmul.f32 %v3045, %v3044
      %v3047 = vmul.f32 0.5, %v3046
      %v3048 = vsub.f32 1.5, %v3047
      %v3049 = vmul.f32 %v3044, %v3048
      %vm3050 = vweird.f32 %v2802
      %vm3051 = vweird.f32 %v3044
      %vm3052 = vmor %vm3050, %vm3051
      %v3053 = vsel %vm3052, %v3044, %v3049
      %v3054 = vrsqrt.pop %v2805
      %v3055 = vmul.f32 %v3054, %v2805
      %v3056 = vmul.f32 %v3055, %v3054
      %v3057 = vmul.f32 0.5, %v3056
      %v3058 = vsub.f32 1.5, %v3057
      %v3059 = vmul.f32 %v3054, %v3058
      %vm3060 = vweird.f32 %v2805
      %vm3061 = vweird.f32 %v3054
      %vm3062 = vmor %vm3060, %vm3061
      %v3063 = vsel %vm3062, %v3054, %v3059
      %v3064 = vrsqrt.pop %v2808
      %v3065 = vmul.f32 %v3064, %v2808
      %v3066 = vmul.f32 %v3065, %v3064
      %v3067 = vmul.f32 0.5, %v3066
      %v3068 = vsub.f32 1.5, %v3067
      %v3069 = vmul.f32 %v3064, %v3068
      %vm3070 = vweird.f32 %v2808
      %vm3071 = vweird.f32 %v3064
      %vm3072 = vmor %vm3070, %vm3071
      %v3073 = vsel %vm3072, %v3064, %v3069
      %v3074 = vrsqrt.pop %v2811
      %v3075 = vmul.f32 %v3074, %v2811
      %v3076 = vmul.f32 %v3075, %v3074
      %v3077 = vmul.f32 0.5, %v3076
      %v3078 = vsub.f32 1.5, %v3077
      %v3079 = vmul.f32 %v3074, %v3078
      %vm3080 = vweird.f32 %v2811
      %vm3081 = vweird.f32 %v3074
      %vm3082 = vmor %vm3080, %vm3081
      %v3083 = vsel %vm3082, %v3074, %v3079
      %v3084 = vrsqrt.pop %v2814
      %v3085 = vmul.f32 %v3084, %v2814
      %v3086 = vmul.f32 %v3085, %v3084
      %v3087 = vmul.f32 0.5, %v3086
      %v3088 = vsub.f32 1.5, %v3087
      %v3089 = vmul.f32 %v3084, %v3088
      %vm3090 = vweird.f32 %v2814
      %vm3091 = vweird.f32 %v3084
      %vm3092 = vmor %vm3090, %vm3091
      %v3093 = vsel %vm3092, %v3084, %v3089
      %v3094 = vrsqrt.pop %v2817
      %v3095 = vmul.f32 %v3094, %v2817
      %v3096 = vmul.f32 %v3095, %v3094
      %v3097 = vmul.f32 0.5, %v3096
      %v3098 = vsub.f32 1.5, %v3097
      %v3099 = vmul.f32 %v3094, %v3098
      %vm3100 = vweird.f32 %v2817
      %vm3101 = vweird.f32 %v3094
      %vm3102 = vmor %vm3100, %vm3101
      %v3103 = vsel %vm3102, %v3094, %v3099
      %v3104 = vrsqrt.pop %v2820
      %v3105 = vmul.f32 %v3104, %v2820
      %v3106 = vmul.f32 %v3105, %v3104
      %v3107 = vmul.f32 0.5, %v3106
      %v3108 = vsub.f32 1.5, %v3107
      %v3109 = vmul.f32 %v3104, %v3108
      %vm3110 = vweird.f32 %v2820
      %vm3111 = vweird.f32 %v3104
      %vm3112 = vmor %vm3110, %vm3111
      %v3113 = vsel %vm3112, %v3104, %v3109
      %v3114 = vrsqrt.pop %v2823
      %v3115 = vmul.f32 %v3114, %v2823
      %v3116 = vmul.f32 %v3115, %v3114
      %v3117 = vmul.f32 0.5, %v3116
      %v3118 = vsub.f32 1.5, %v3117
      %v3119 = vmul.f32 %v3114, %v3118
      %vm3120 = vweird.f32 %v2823
      %vm3121 = vweird.f32 %v3114
      %vm3122 = vmor %vm3120, %vm3121
      %v3123 = vsel %vm3122, %v3114, %v3119
      %v3124 = vrsqrt.pop %v2826
      %v3125 = vmul.f32 %v3124, %v2826
      %v3126 = vmul.f32 %v3125, %v3124
      %v3127 = vmul.f32 0.5, %v3126
      %v3128 = vsub.f32 1.5, %v3127
      %v3129 = vmul.f32 %v3124, %v3128
      %vm3130 = vweird.f32 %v2826
      %vm3131 = vweird.f32 %v3124
      %vm3132 = vmor %vm3130, %vm3131
      %v3133 = vsel %vm3132, %v3124, %v3129
      %v3134 = vrsqrt.pop %v2829
      %v3135 = vmul.f32 %v3134, %v2829
      %v3136 = vmul.f32 %v3135, %v3134
      %v3137 = vmul.f32 0.5, %v3136
      %v3138 = vsub.f32 1.5, %v3137
      %v3139 = vmul.f32 %v3134, %v3138
      %vm3140 = vweird.f32 %v2829
      %vm3141 = vweird.f32 %v3134
      %vm3142 = vmor %vm3140, %vm3141
      %v3143 = vsel %vm3142, %v3134, %v3139
      %v3144 = vrsqrt.pop %v2832
      %v3145 = vmul.f32 %v3144, %v2832
      %v3146 = vmul.f32 %v3145, %v3144
      %v3147 = vmul.f32 0.5, %v3146
      %v3148 = vsub.f32 1.5, %v3147
      %v3149 = vmul.f32 %v3144, %v3148
      %vm3150 = vweird.f32 %v2832
      %vm3151 = vweird.f32 %v3144
      %vm3152 = vmor %vm3150, %vm3151
      %v3153 = vsel %vm3152, %v3144, %v3149
      %v3155 = vsel %vm1577, %v2843, 0
      %v3158 = vsel %vm1577, %v2853, 0
      %v3161 = vsel %vm1577, %v2863, 0
      %v3164 = vsel %vm1577, %v2873, 0
      %v3167 = vsel %vm1577, %v2883, 0
      %v3170 = vsel %vm1577, %v2893, 0
      %v3173 = vsel %vm1577, %v2903, 0
      %v3176 = vsel %vm1577, %v2913, 0
      %v3179 = vsel %vm1577, %v2923, 0
      %v3182 = vsel %vm1577, %v2933, 0
      %v3185 = vsel %vm1577, %v2943, 0
      %v3188 = vsel %vm1577, %v2953, 0
      %v3191 = vsel %vm1577, %v2963, 0
      %v3194 = vsel %vm1577, %v2973, 0
      %v3197 = vsel %vm1577, %v2983, 0
      %v3200 = vsel %vm1577, %v2993, 0
      %v3203 = vsel %vm1577, %v3003, 0
      %v3206 = vsel %vm1577, %v3013, 0
      %v3209 = vsel %vm1577, %v3023, 0
      %v3212 = vsel %vm1577, %v3033, 0
      %v3215 = vsel %vm1577, %v3043, 0
      %v3218 = vsel %vm1577, %v3053, 0
      %v3221 = vsel %vm1577, %v3063, 0
      %v3224 = vsel %vm1577, %v3073, 0
      %v3227 = vsel %vm1577, %v3083, 0
      %v3230 = vsel %vm1577, %v3093, 0
      %v3233 = vsel %vm1577, %v3103, 0
      %v3236 = vsel %vm1577, %v3113, 0
      %v3239 = vsel %vm1577, %v3123, 0
      %v3242 = vsel %vm1577, %v3133, 0
      %v3245 = vsel %vm1577, %v3143, 0
      %v3248 = vsel %vm1577, %v3153, 0
      %3250 = vmatpush.msra.mxu0 0.0
      %3251 = vmatpush.msra.mxu0 0.0
      %3252 = vmatpush.msra.mxu0 0.0
      %3253 = vmatpush.msra.mxu0 0.0
      %3254 = vmatpush.msra.mxu0 0.0
      %3255 = vmatpush.msra.mxu0 0.0
      %3256 = vmatpush.msra.mxu0 0.0
      %3257 = vmatpush.msra.mxu0 0.0
      %3258 = vmatpush.msra.mxu0 0.0
      %3259 = vmatpush.msra.mxu0 0.0
      %3260 = vmatpush.msra.mxu0 0.0
      %3261 = vmatpush.msra.mxu0 0.0
      %3262 = vmatpush.msra.mxu0 0.0
      %3263 = vmatpush.msra.mxu0 0.0
      %3264 = vmatpush.msra.mxu0 %v1573
      %3265 = vmatpush.msra.mxu0 %v1569
      %3266 = vmatmul.f32.gmra.mxu0 %v3155
      %v3267 = vpop.f32.mrf.mxu0
      %v3268 = vadd.f32 0.0, %v3267
      %3269 = vmatmul.f32.gmra.mxu0 %v3158
      %v3270 = vpop.f32.mrf.mxu0
      %v3271 = vadd.f32 0.0, %v3270
      %3272 = vmatmul.f32.gmra.mxu0 %v3161
      %v3273 = vpop.f32.mrf.mxu0
      %v3274 = vadd.f32 0.0, %v3273
      %3275 = vmatmul.f32.gmra.mxu0 %v3164
      %v3276 = vpop.f32.mrf.mxu0
      %v3277 = vadd.f32 0.0, %v3276
      %3278 = vmatmul.f32.gmra.mxu0 %v3167
      %v3279 = vpop.f32.mrf.mxu0
      %v3280 = vadd.f32 0.0, %v3279
      %3281 = vmatmul.f32.gmra.mxu0 %v3170
      %v3282 = vpop.f32.mrf.mxu0
      %v3283 = vadd.f32 0.0, %v3282
      %3284 = vmatmul.f32.gmra.mxu0 %v3173
      %v3285 = vpop.f32.mrf.mxu0
      %v3286 = vadd.f32 0.0, %v3285
      %3287 = vmatmul.f32.gmra.mxu0 %v3176
      %v3288 = vpop.f32.mrf.mxu0
      %v3289 = vadd.f32 0.0, %v3288
      %3290 = vmatmul.f32.gmra.mxu0 %v3179
      %v3291 = vpop.f32.mrf.mxu0
      %v3292 = vadd.f32 0.0, %v3291
      %3293 = vmatmul.f32.gmra.mxu0 %v3182
      %v3294 = vpop.f32.mrf.mxu0
      %v3295 = vadd.f32 0.0, %v3294
      %3296 = vmatmul.f32.gmra.mxu0 %v3185
      %v3297 = vpop.f32.mrf.mxu0
      %v3298 = vadd.f32 0.0, %v3297
      %3299 = vmatmul.f32.gmra.mxu0 %v3188
      %v3300 = vpop.f32.mrf.mxu0
      %v3301 = vadd.f32 0.0, %v3300
      %3302 = vmatmul.f32.gmra.mxu0 %v3191
      %v3303 = vpop.f32.mrf.mxu0
      %v3304 = vadd.f32 0.0, %v3303
      %3305 = vmatmul.f32.gmra.mxu0 %v3194
      %v3306 = vpop.f32.mrf.mxu0
      %v3307 = vadd.f32 0.0, %v3306
      %3308 = vmatmul.f32.gmra.mxu0 %v3197
      %v3309 = vpop.f32.mrf.mxu0
      %v3310 = vadd.f32 0.0, %v3309
      %3311 = vmatmul.f32.gmra.mxu0 %v3200
      %v3312 = vpop.f32.mrf.mxu0
      %v3313 = vadd.f32 0.0, %v3312
      %3314 = vmatmul.f32.gmra.mxu0 %v3203
      %v3315 = vpop.f32.mrf.mxu0
      %v3316 = vadd.f32 0.0, %v3315
      %3317 = vmatmul.f32.gmra.mxu0 %v3206
      %v3318 = vpop.f32.mrf.mxu0
      %v3319 = vadd.f32 0.0, %v3318
      %3320 = vmatmul.f32.gmra.mxu0 %v3209
      %v3321 = vpop.f32.mrf.mxu0
      %v3322 = vadd.f32 0.0, %v3321
      %3323 = vmatmul.f32.gmra.mxu0 %v3212
      %v3324 = vpop.f32.mrf.mxu0
      %v3325 = vadd.f32 0.0, %v3324
      %3326 = vmatmul.f32.gmra.mxu0 %v3215
      %v3327 = vpop.f32.mrf.mxu0
      %v3328 = vadd.f32 0.0, %v3327
      %3329 = vmatmul.f32.gmra.mxu0 %v3218
      %v3330 = vpop.f32.mrf.mxu0
      %v3331 = vadd.f32 0.0, %v3330
      %3332 = vmatmul.f32.gmra.mxu0 %v3221
      %v3333 = vpop.f32.mrf.mxu0
      %v3334 = vadd.f32 0.0, %v3333
      %3335 = vmatmul.f32.gmra.mxu0 %v3224
      %v3336 = vpop.f32.mrf.mxu0
      %v3337 = vadd.f32 0.0, %v3336
      %3338 = vmatmul.f32.gmra.mxu0 %v3227
      %v3339 = vpop.f32.mrf.mxu0
      %v3340 = vadd.f32 0.0, %v3339
      %3341 = vmatmul.f32.gmra.mxu0 %v3230
      %v3342 = vpop.f32.mrf.mxu0
      %v3343 = vadd.f32 0.0, %v3342
      %3344 = vmatmul.f32.gmra.mxu0 %v3233
      %v3345 = vpop.f32.mrf.mxu0
      %v3346 = vadd.f32 0.0, %v3345
      %3347 = vmatmul.f32.gmra.mxu0 %v3236
      %v3348 = vpop.f32.mrf.mxu0
      %v3349 = vadd.f32 0.0, %v3348
      %3350 = vmatmul.f32.gmra.mxu0 %v3239
      %v3351 = vpop.f32.mrf.mxu0
      %v3352 = vadd.f32 0.0, %v3351
      %3353 = vmatmul.f32.gmra.mxu0 %v3242
      %v3354 = vpop.f32.mrf.mxu0
      %v3355 = vadd.f32 0.0, %v3354
      %3356 = vmatmul.f32.gmra.mxu0 %v3245
      %v3357 = vpop.f32.mrf.mxu0
      %v3358 = vadd.f32 0.0, %v3357
      %3359 = vmatmul.f32.gmra.mxu0 %v3248
      %v3360 = vpop.f32.mrf.mxu0
      %v3361 = vadd.f32 0.0, %v3360
      %3362 = vdwg.mxu0
      %3363 = vmatpush.msra.mxu0 0.0
      %3364 = vmatpush.msra.mxu0 0.0
      %3365 = vmatpush.msra.mxu0 0.0
      %3366 = vmatpush.msra.mxu0 0.0
      %3367 = vmatpush.msra.mxu0 0.0
      %3368 = vmatpush.msra.mxu0 0.0
      %3369 = vmatpush.msra.mxu0 0.0
      %3370 = vmatpush.msra.mxu0 0.0
      %3371 = vmatpush.msra.mxu0 0.0
      %3372 = vmatpush.msra.mxu0 0.0
      %3373 = vmatpush.msra.mxu0 0.0
      %3374 = vmatpush.msra.mxu0 0.0
      %3375 = vmatpush.msra.mxu0 0.0
      %3376 = vmatpush.msra.mxu0 0.0
      %3377 = vmatpush.msra.mxu0 %v1574
      %3378 = vmatpush.msra.mxu0 %v1570
      %3379 = vmatmul.f32.gmra.mxu0 %v3155
      %v3380 = vpop.f32.mrf.mxu0
      %v3381 = vadd.f32 0.0, %v3380
      %3382 = vmatmul.f32.gmra.mxu0 %v3158
      %v3383 = vpop.f32.mrf.mxu0
      %v3384 = vadd.f32 0.0, %v3383
      %3385 = vmatmul.f32.gmra.mxu0 %v3161
      %v3386 = vpop.f32.mrf.mxu0
      %v3387 = vadd.f32 0.0, %v3386
      %3388 = vmatmul.f32.gmra.mxu0 %v3164
      %v3389 = vpop.f32.mrf.mxu0
      %v3390 = vadd.f32 0.0, %v3389
      %3391 = vmatmul.f32.gmra.mxu0 %v3167
      %v3392 = vpop.f32.mrf.mxu0
      %v3393 = vadd.f32 0.0, %v3392
      %3394 = vmatmul.f32.gmra.mxu0 %v3170
      %v3395 = vpop.f32.mrf.mxu0
      %v3396 = vadd.f32 0.0, %v3395
      %3397 = vmatmul.f32.gmra.mxu0 %v3173
      %v3398 = vpop.f32.mrf.mxu0
      %v3399 = vadd.f32 0.0, %v3398
      %3400 = vmatmul.f32.gmra.mxu0 %v3176
      %v3401 = vpop.f32.mrf.mxu0
      %v3402 = vadd.f32 0.0, %v3401
      %3403 = vmatmul.f32.gmra.mxu0 %v3179
      %v3404 = vpop.f32.mrf.mxu0
      %v3405 = vadd.f32 0.0, %v3404
      %3406 = vmatmul.f32.gmra.mxu0 %v3182
      %v3407 = vpop.f32.mrf.mxu0
      %v3408 = vadd.f32 0.0, %v3407
      %3409 = vmatmul.f32.gmra.mxu0 %v3185
      %v3410 = vpop.f32.mrf.mxu0
      %v3411 = vadd.f32 0.0, %v3410
      %3412 = vmatmul.f32.gmra.mxu0 %v3188
      %v3413 = vpop.f32.mrf.mxu0
      %v3414 = vadd.f32 0.0, %v3413
      %3415 = vmatmul.f32.gmra.mxu0 %v3191
      %v3416 = vpop.f32.mrf.mxu0
      %v3417 = vadd.f32 0.0, %v3416
      %3418 = vmatmul.f32.gmra.mxu0 %v3194
      %v3419 = vpop.f32.mrf.mxu0
      %v3420 = vadd.f32 0.0, %v3419
      %3421 = vmatmul.f32.gmra.mxu0 %v3197
      %v3422 = vpop.f32.mrf.mxu0
      %v3423 = vadd.f32 0.0, %v3422
      %3424 = vmatmul.f32.gmra.mxu0 %v3200
      %v3425 = vpop.f32.mrf.mxu0
      %v3426 = vadd.f32 0.0, %v3425
      %3427 = vmatmul.f32.gmra.mxu0 %v3203
      %v3428 = vpop.f32.mrf.mxu0
      %v3429 = vadd.f32 0.0, %v3428
      %3430 = vmatmul.f32.gmra.mxu0 %v3206
      %v3431 = vpop.f32.mrf.mxu0
      %v3432 = vadd.f32 0.0, %v3431
      %3433 = vmatmul.f32.gmra.mxu0 %v3209
      %v3434 = vpop.f32.mrf.mxu0
      %v3435 = vadd.f32 0.0, %v3434
      %3436 = vmatmul.f32.gmra.mxu0 %v3212
      %v3437 = vpop.f32.mrf.mxu0
      %v3438 = vadd.f32 0.0, %v3437
      %3439 = vmatmul.f32.gmra.mxu0 %v3215
      %v3440 = vpop.f32.mrf.mxu0
      %v3441 = vadd.f32 0.0, %v3440
      %3442 = vmatmul.f32.gmra.mxu0 %v3218
      %v3443 = vpop.f32.mrf.mxu0
      %v3444 = vadd.f32 0.0, %v3443
      %3445 = vmatmul.f32.gmra.mxu0 %v3221
      %v3446 = vpop.f32.mrf.mxu0
      %v3447 = vadd.f32 0.0, %v3446
      %3448 = vmatmul.f32.gmra.mxu0 %v3224
      %v3449 = vpop.f32.mrf.mxu0
      %v3450 = vadd.f32 0.0, %v3449
      %3451 = vmatmul.f32.gmra.mxu0 %v3227
      %v3452 = vpop.f32.mrf.mxu0
      %v3453 = vadd.f32 0.0, %v3452
      %3454 = vmatmul.f32.gmra.mxu0 %v3230
      %v3455 = vpop.f32.mrf.mxu0
      %v3456 = vadd.f32 0.0, %v3455
      %3457 = vmatmul.f32.gmra.mxu0 %v3233
      %v3458 = vpop.f32.mrf.mxu0
      %v3459 = vadd.f32 0.0, %v3458
      %3460 = vmatmul.f32.gmra.mxu0 %v3236
      %v3461 = vpop.f32.mrf.mxu0
      %v3462 = vadd.f32 0.0, %v3461
      %3463 = vmatmul.f32.gmra.mxu0 %v3239
      %v3464 = vpop.f32.mrf.mxu0
      %v3465 = vadd.f32 0.0, %v3464
      %3466 = vmatmul.f32.gmra.mxu0 %v3242
      %v3467 = vpop.f32.mrf.mxu0
      %v3468 = vadd.f32 0.0, %v3467
      %3469 = vmatmul.f32.gmra.mxu0 %v3245
      %v3470 = vpop.f32.mrf.mxu0
      %v3471 = vadd.f32 0.0, %v3470
      %3472 = vmatmul.f32.gmra.mxu0 %v3248
      %v3473 = vpop.f32.mrf.mxu0
      %v3474 = vadd.f32 0.0, %v3473
      %3475 = vdwg.mxu0
      %3476 = vmatpush.msra.mxu0 0.0
      %3477 = vmatpush.msra.mxu0 0.0
      %3478 = vmatpush.msra.mxu0 0.0
      %3479 = vmatpush.msra.mxu0 0.0
      %3480 = vmatpush.msra.mxu0 0.0
      %3481 = vmatpush.msra.mxu0 0.0
      %3482 = vmatpush.msra.mxu0 0.0
      %3483 = vmatpush.msra.mxu0 0.0
      %3484 = vmatpush.msra.mxu0 0.0
      %3485 = vmatpush.msra.mxu0 0.0
      %3486 = vmatpush.msra.mxu0 0.0
      %3487 = vmatpush.msra.mxu0 0.0
      %3488 = vmatpush.msra.mxu0 0.0
      %3489 = vmatpush.msra.mxu0 0.0
      %3490 = vmatpush.msra.mxu0 %v1575
      %3491 = vmatpush.msra.mxu0 %v1571
      %3492 = vmatmul.f32.gmra.mxu0 %v3155
      %v3493 = vpop.f32.mrf.mxu0
      %v3494 = vadd.f32 0.0, %v3493
      %3495 = vmatmul.f32.gmra.mxu0 %v3158
      %v3496 = vpop.f32.mrf.mxu0
      %v3497 = vadd.f32 0.0, %v3496
      %3498 = vmatmul.f32.gmra.mxu0 %v3161
      %v3499 = vpop.f32.mrf.mxu0
      %v3500 = vadd.f32 0.0, %v3499
      %3501 = vmatmul.f32.gmra.mxu0 %v3164
      %v3502 = vpop.f32.mrf.mxu0
      %v3503 = vadd.f32 0.0, %v3502
      %3504 = vmatmul.f32.gmra.mxu0 %v3167
      %v3505 = vpop.f32.mrf.mxu0
      %v3506 = vadd.f32 0.0, %v3505
      %3507 = vmatmul.f32.gmra.mxu0 %v3170
      %v3508 = vpop.f32.mrf.mxu0
      %v3509 = vadd.f32 0.0, %v3508
      %3510 = vmatmul.f32.gmra.mxu0 %v3173
      %v3511 = vpop.f32.mrf.mxu0
      %v3512 = vadd.f32 0.0, %v3511
      %3513 = vmatmul.f32.gmra.mxu0 %v3176
      %v3514 = vpop.f32.mrf.mxu0
      %v3515 = vadd.f32 0.0, %v3514
      %3516 = vmatmul.f32.gmra.mxu0 %v3179
      %v3517 = vpop.f32.mrf.mxu0
      %v3518 = vadd.f32 0.0, %v3517
      %3519 = vmatmul.f32.gmra.mxu0 %v3182
      %v3520 = vpop.f32.mrf.mxu0
      %v3521 = vadd.f32 0.0, %v3520
      %3522 = vmatmul.f32.gmra.mxu0 %v3185
      %v3523 = vpop.f32.mrf.mxu0
      %v3524 = vadd.f32 0.0, %v3523
      %3525 = vmatmul.f32.gmra.mxu0 %v3188
      %v3526 = vpop.f32.mrf.mxu0
      %v3527 = vadd.f32 0.0, %v3526
      %3528 = vmatmul.f32.gmra.mxu0 %v3191
      %v3529 = vpop.f32.mrf.mxu0
      %v3530 = vadd.f32 0.0, %v3529
      %3531 = vmatmul.f32.gmra.mxu0 %v3194
      %v3532 = vpop.f32.mrf.mxu0
      %v3533 = vadd.f32 0.0, %v3532
      %3534 = vmatmul.f32.gmra.mxu0 %v3197
      %v3535 = vpop.f32.mrf.mxu0
      %v3536 = vadd.f32 0.0, %v3535
      %3537 = vmatmul.f32.gmra.mxu0 %v3200
      %v3538 = vpop.f32.mrf.mxu0
      %v3539 = vadd.f32 0.0, %v3538
      %3540 = vmatmul.f32.gmra.mxu0 %v3203
      %v3541 = vpop.f32.mrf.mxu0
      %v3542 = vadd.f32 0.0, %v3541
      %3543 = vmatmul.f32.gmra.mxu0 %v3206
      %v3544 = vpop.f32.mrf.mxu0
      %v3545 = vadd.f32 0.0, %v3544
      %3546 = vmatmul.f32.gmra.mxu0 %v3209
      %v3547 = vpop.f32.mrf.mxu0
      %v3548 = vadd.f32 0.0, %v3547
      %3549 = vmatmul.f32.gmra.mxu0 %v3212
      %v3550 = vpop.f32.mrf.mxu0
      %v3551 = vadd.f32 0.0, %v3550
      %3552 = vmatmul.f32.gmra.mxu0 %v3215
      %v3553 = vpop.f32.mrf.mxu0
      %v3554 = vadd.f32 0.0, %v3553
      %3555 = vmatmul.f32.gmra.mxu0 %v3218
      %v3556 = vpop.f32.mrf.mxu0
      %v3557 = vadd.f32 0.0, %v3556
      %3558 = vmatmul.f32.gmra.mxu0 %v3221
      %v3559 = vpop.f32.mrf.mxu0
      %v3560 = vadd.f32 0.0, %v3559
      %3561 = vmatmul.f32.gmra.mxu0 %v3224
      %v3562 = vpop.f32.mrf.mxu0
      %v3563 = vadd.f32 0.0, %v3562
      %3564 = vmatmul.f32.gmra.mxu0 %v3227
      %v3565 = vpop.f32.mrf.mxu0
      %v3566 = vadd.f32 0.0, %v3565
      %3567 = vmatmul.f32.gmra.mxu0 %v3230
      %v3568 = vpop.f32.mrf.mxu0
      %v3569 = vadd.f32 0.0, %v3568
      %3570 = vmatmul.f32.gmra.mxu0 %v3233
      %v3571 = vpop.f32.mrf.mxu0
      %v3572 = vadd.f32 0.0, %v3571
      %3573 = vmatmul.f32.gmra.mxu0 %v3236
      %v3574 = vpop.f32.mrf.mxu0
      %v3575 = vadd.f32 0.0, %v3574
      %3576 = vmatmul.f32.gmra.mxu0 %v3239
      %v3577 = vpop.f32.mrf.mxu0
      %v3578 = vadd.f32 0.0, %v3577
      %3579 = vmatmul.f32.gmra.mxu0 %v3242
      %v3580 = vpop.f32.mrf.mxu0
      %v3581 = vadd.f32 0.0, %v3580
      %3582 = vmatmul.f32.gmra.mxu0 %v3245
      %v3583 = vpop.f32.mrf.mxu0
      %v3584 = vadd.f32 0.0, %v3583
      %3585 = vmatmul.f32.gmra.mxu0 %v3248
      %v3586 = vpop.f32.mrf.mxu0
      %v3587 = vadd.f32 0.0, %v3586
      %3588 = vdwg.mxu0
      %3589 = vmatpush.msra.mxu0 0.0
      %3590 = vmatpush.msra.mxu0 0.0
      %3591 = vmatpush.msra.mxu0 0.0
      %3592 = vmatpush.msra.mxu0 0.0
      %3593 = vmatpush.msra.mxu0 0.0
      %3594 = vmatpush.msra.mxu0 0.0
      %3595 = vmatpush.msra.mxu0 0.0
      %3596 = vmatpush.msra.mxu0 0.0
      %3597 = vmatpush.msra.mxu0 0.0
      %3598 = vmatpush.msra.mxu0 0.0
      %3599 = vmatpush.msra.mxu0 0.0
      %3600 = vmatpush.msra.mxu0 0.0
      %3601 = vmatpush.msra.mxu0 0.0
      %3602 = vmatpush.msra.mxu0 0.0
      %3603 = vmatpush.msra.mxu0 %v1576
      %3604 = vmatpush.msra.mxu0 %v1572
      %3605 = vmatmul.f32.gmra.mxu0 %v3155
      %v3606 = vpop.f32.mrf.mxu0
      %v3607 = vadd.f32 0.0, %v3606
      %3608 = vmatmul.f32.gmra.mxu0 %v3158
      %v3609 = vpop.f32.mrf.mxu0
      %v3610 = vadd.f32 0.0, %v3609
      %3611 = vmatmul.f32.gmra.mxu0 %v3161
      %v3612 = vpop.f32.mrf.mxu0
      %v3613 = vadd.f32 0.0, %v3612
      %3614 = vmatmul.f32.gmra.mxu0 %v3164
      %v3615 = vpop.f32.mrf.mxu0
      %v3616 = vadd.f32 0.0, %v3615
      %3617 = vmatmul.f32.gmra.mxu0 %v3167
      %v3618 = vpop.f32.mrf.mxu0
      %v3619 = vadd.f32 0.0, %v3618
      %3620 = vmatmul.f32.gmra.mxu0 %v3170
      %v3621 = vpop.f32.mrf.mxu0
      %v3622 = vadd.f32 0.0, %v3621
      %3623 = vmatmul.f32.gmra.mxu0 %v3173
      %v3624 = vpop.f32.mrf.mxu0
      %v3625 = vadd.f32 0.0, %v3624
      %3626 = vmatmul.f32.gmra.mxu0 %v3176
      %v3627 = vpop.f32.mrf.mxu0
      %v3628 = vadd.f32 0.0, %v3627
      %3629 = vmatmul.f32.gmra.mxu0 %v3179
      %v3630 = vpop.f32.mrf.mxu0
      %v3631 = vadd.f32 0.0, %v3630
      %3632 = vmatmul.f32.gmra.mxu0 %v3182
      %v3633 = vpop.f32.mrf.mxu0
      %v3634 = vadd.f32 0.0, %v3633
      %3635 = vmatmul.f32.gmra.mxu0 %v3185
      %v3636 = vpop.f32.mrf.mxu0
      %v3637 = vadd.f32 0.0, %v3636
      %3638 = vmatmul.f32.gmra.mxu0 %v3188
      %v3639 = vpop.f32.mrf.mxu0
      %v3640 = vadd.f32 0.0, %v3639
      %3641 = vmatmul.f32.gmra.mxu0 %v3191
      %v3642 = vpop.f32.mrf.mxu0
      %v3643 = vadd.f32 0.0, %v3642
      %3644 = vmatmul.f32.gmra.mxu0 %v3194
      %v3645 = vpop.f32.mrf.mxu0
      %v3646 = vadd.f32 0.0, %v3645
      %3647 = vmatmul.f32.gmra.mxu0 %v3197
      %v3648 = vpop.f32.mrf.mxu0
      %v3649 = vadd.f32 0.0, %v3648
      %3650 = vmatmul.f32.gmra.mxu0 %v3200
      %v3651 = vpop.f32.mrf.mxu0
      %v3652 = vadd.f32 0.0, %v3651
      %3653 = vmatmul.f32.gmra.mxu0 %v3203
      %v3654 = vpop.f32.mrf.mxu0
      %v3655 = vadd.f32 0.0, %v3654
      %3656 = vmatmul.f32.gmra.mxu0 %v3206
      %v3657 = vpop.f32.mrf.mxu0
      %v3658 = vadd.f32 0.0, %v3657
      %3659 = vmatmul.f32.gmra.mxu0 %v3209
      %v3660 = vpop.f32.mrf.mxu0
      %v3661 = vadd.f32 0.0, %v3660
      %3662 = vmatmul.f32.gmra.mxu0 %v3212
      %v3663 = vpop.f32.mrf.mxu0
      %v3664 = vadd.f32 0.0, %v3663
      %3665 = vmatmul.f32.gmra.mxu0 %v3215
      %v3666 = vpop.f32.mrf.mxu0
      %v3667 = vadd.f32 0.0, %v3666
      %3668 = vmatmul.f32.gmra.mxu0 %v3218
      %v3669 = vpop.f32.mrf.mxu0
      %v3670 = vadd.f32 0.0, %v3669
      %3671 = vmatmul.f32.gmra.mxu0 %v3221
      %v3672 = vpop.f32.mrf.mxu0
      %v3673 = vadd.f32 0.0, %v3672
      %3674 = vmatmul.f32.gmra.mxu0 %v3224
      %v3675 = vpop.f32.mrf.mxu0
      %v3676 = vadd.f32 0.0, %v3675
      %3677 = vmatmul.f32.gmra.mxu0 %v3227
      %v3678 = vpop.f32.mrf.mxu0
      %v3679 = vadd.f32 0.0, %v3678
      %3680 = vmatmul.f32.gmra.mxu0 %v3230
      %v3681 = vpop.f32.mrf.mxu0
      %v3682 = vadd.f32 0.0, %v3681
      %3683 = vmatmul.f32.gmra.mxu0 %v3233
      %v3684 = vpop.f32.mrf.mxu0
      %v3685 = vadd.f32 0.0, %v3684
      %3686 = vmatmul.f32.gmra.mxu0 %v3236
      %v3687 = vpop.f32.mrf.mxu0
      %v3688 = vadd.f32 0.0, %v3687
      %3689 = vmatmul.f32.gmra.mxu0 %v3239
      %v3690 = vpop.f32.mrf.mxu0
      %v3691 = vadd.f32 0.0, %v3690
      %3692 = vmatmul.f32.gmra.mxu0 %v3242
      %v3693 = vpop.f32.mrf.mxu0
      %v3694 = vadd.f32 0.0, %v3693
      %3695 = vmatmul.f32.gmra.mxu0 %v3245
      %v3696 = vpop.f32.mrf.mxu0
      %v3697 = vadd.f32 0.0, %v3696
      %3698 = vmatmul.f32.gmra.mxu0 %v3248
      %v3699 = vpop.f32.mrf.mxu0
      %v3700 = vadd.f32 0.0, %v3699
      %3701 = vdwg.mxu0
      %v3702 = vmul.f32 %v2126, %v3268
      %v3703 = vmul.f32 %v2127, %v3381
      %v3704 = vmul.f32 %v2128, %v3494
      %v3705 = vmul.f32 %v2129, %v3607
      %v3706 = vmul.f32 %v2130, %v3271
      %v3707 = vmul.f32 %v2131, %v3384
      %v3708 = vmul.f32 %v2132, %v3497
      %v3709 = vmul.f32 %v2133, %v3610
      %v3710 = vmul.f32 %v2134, %v3274
      %v3711 = vmul.f32 %v2135, %v3387
      %v3712 = vmul.f32 %v2136, %v3500
      %v3713 = vmul.f32 %v2137, %v3613
      %v3714 = vmul.f32 %v2138, %v3277
      %v3715 = vmul.f32 %v2139, %v3390
      %v3716 = vmul.f32 %v2140, %v3503
      %v3717 = vmul.f32 %v2141, %v3616
      %v3718 = vmul.f32 %v2142, %v3280
      %v3719 = vmul.f32 %v2143, %v3393
      %v3720 = vmul.f32 %v2144, %v3506
      %v3721 = vmul.f32 %v2145, %v3619
      %v3722 = vmul.f32 %v2146, %v3283
      %v3723 = vmul.f32 %v2147, %v3396
      %v3724 = vmul.f32 %v2148, %v3509
      %v3725 = vmul.f32 %v2149, %v3622
      %v3726 = vmul.f32 %v2150, %v3286
      %v3727 = vmul.f32 %v2151, %v3399
      %v3728 = vmul.f32 %v2152, %v3512
      %v3729 = vmul.f32 %v2153, %v3625
      %v3730 = vmul.f32 %v2154, %v3289
      %v3731 = vmul.f32 %v2155, %v3402
      %v3732 = vmul.f32 %v2156, %v3515
      %v3733 = vmul.f32 %v2157, %v3628
      %v3734 = vmul.f32 %v2158, %v3292
      %v3735 = vmul.f32 %v2159, %v3405
      %v3736 = vmul.f32 %v2160, %v3518
      %v3737 = vmul.f32 %v2161, %v3631
      %v3738 = vmul.f32 %v2162, %v3295
      %v3739 = vmul.f32 %v2163, %v3408
      %v3740 = vmul.f32 %v2164, %v3521
      %v3741 = vmul.f32 %v2165, %v3634
      %v3742 = vmul.f32 %v2166, %v3298
      %v3743 = vmul.f32 %v2167, %v3411
      %v3744 = vmul.f32 %v2168, %v3524
      %v3745 = vmul.f32 %v2169, %v3637
      %v3746 = vmul.f32 %v2170, %v3301
      %v3747 = vmul.f32 %v2171, %v3414
      %v3748 = vmul.f32 %v2172, %v3527
      %v3749 = vmul.f32 %v2173, %v3640
      %v3750 = vmul.f32 %v2174, %v3304
      %v3751 = vmul.f32 %v2175, %v3417
      %v3752 = vmul.f32 %v2176, %v3530
      %v3753 = vmul.f32 %v2177, %v3643
      %v3754 = vmul.f32 %v2178, %v3307
      %v3755 = vmul.f32 %v2179, %v3420
      %v3756 = vmul.f32 %v2180, %v3533
      %v3757 = vmul.f32 %v2181, %v3646
      %v3758 = vmul.f32 %v2182, %v3310
      %v3759 = vmul.f32 %v2183, %v3423
      %v3760 = vmul.f32 %v2184, %v3536
      %v3761 = vmul.f32 %v2185, %v3649
      %v3762 = vmul.f32 %v2186, %v3313
      %v3763 = vmul.f32 %v2187, %v3426
      %v3764 = vmul.f32 %v2188, %v3539
      %v3765 = vmul.f32 %v2189, %v3652
      %v3766 = vmul.f32 %v2190, %v3316
      %v3767 = vmul.f32 %v2191, %v3429
      %v3768 = vmul.f32 %v2192, %v3542
      %v3769 = vmul.f32 %v2193, %v3655
      %v3770 = vmul.f32 %v2194, %v3319
      %v3771 = vmul.f32 %v2195, %v3432
      %v3772 = vmul.f32 %v2196, %v3545
      %v3773 = vmul.f32 %v2197, %v3658
      %v3774 = vmul.f32 %v2198, %v3322
      %v3775 = vmul.f32 %v2199, %v3435
      %v3776 = vmul.f32 %v2200, %v3548
      %v3777 = vmul.f32 %v2201, %v3661
      %v3778 = vmul.f32 %v2202, %v3325
      %v3779 = vmul.f32 %v2203, %v3438
      %v3780 = vmul.f32 %v2204, %v3551
      %v3781 = vmul.f32 %v2205, %v3664
      %v3782 = vmul.f32 %v2206, %v3328
      %v3783 = vmul.f32 %v2207, %v3441
      %v3784 = vmul.f32 %v2208, %v3554
      %v3785 = vmul.f32 %v2209, %v3667
      %v3786 = vmul.f32 %v2210, %v3331
      %v3787 = vmul.f32 %v2211, %v3444
      %v3788 = vmul.f32 %v2212, %v3557
      %v3789 = vmul.f32 %v2213, %v3670
      %v3790 = vmul.f32 %v2214, %v3334
      %v3791 = vmul.f32 %v2215, %v3447
      %v3792 = vmul.f32 %v2216, %v3560
      %v3793 = vmul.f32 %v2217, %v3673
      %v3794 = vmul.f32 %v2218, %v3337
      %v3795 = vmul.f32 %v2219, %v3450
      %v3796 = vmul.f32 %v2220, %v3563
      %v3797 = vmul.f32 %v2221, %v3676
      %v3798 = vmul.f32 %v2222, %v3340
      %v3799 = vmul.f32 %v2223, %v3453
      %v3800 = vmul.f32 %v2224, %v3566
      %v3801 = vmul.f32 %v2225, %v3679
      %v3802 = vmul.f32 %v2226, %v3343
      %v3803 = vmul.f32 %v2227, %v3456
      %v3804 = vmul.f32 %v2228, %v3569
      %v3805 = vmul.f32 %v2229, %v3682
      %v3806 = vmul.f32 %v2230, %v3346
      %v3807 = vmul.f32 %v2231, %v3459
      %v3808 = vmul.f32 %v2232, %v3572
      %v3809 = vmul.f32 %v2233, %v3685
      %v3810 = vmul.f32 %v2234, %v3349
      %v3811 = vmul.f32 %v2235, %v3462
      %v3812 = vmul.f32 %v2236, %v3575
      %v3813 = vmul.f32 %v2237, %v3688
      %v3814 = vmul.f32 %v2238, %v3352
      %v3815 = vmul.f32 %v2239, %v3465
      %v3816 = vmul.f32 %v2240, %v3578
      %v3817 = vmul.f32 %v2241, %v3691
      %v3818 = vmul.f32 %v2242, %v3355
      %v3819 = vmul.f32 %v2243, %v3468
      %v3820 = vmul.f32 %v2244, %v3581
      %v3821 = vmul.f32 %v2245, %v3694
      %v3822 = vmul.f32 %v2246, %v3358
      %v3823 = vmul.f32 %v2247, %v3471
      %v3824 = vmul.f32 %v2248, %v3584
      %v3825 = vmul.f32 %v2249, %v3697
      %v3826 = vmul.f32 %v2250, %v3361
      %v3827 = vmul.f32 %v2251, %v3474
      %v3828 = vmul.f32 %v2252, %v3587
      %v3829 = vmul.f32 %v2253, %v3700
      %v3830 = vld [vmem:[%s5] sm:$0xf]
      %v3832 = vperm.slane %v3830, 0
      %v3833 = vperm.slane %v3830, 1
      %v3834 = vperm.slane %v3830, 2
      %v3835 = vperm.slane %v3830, 3
      %v3840 = vmul.f32 %v3702, %v3832
      %v3841 = vmul.f32 %v3703, %v3833
      %v3842 = vmul.f32 %v3704, %v3834
      %v3843 = vmul.f32 %v3705, %v3835
      %v3844 = vmul.f32 %v3706, %v3832
      %v3845 = vmul.f32 %v3707, %v3833
      %v3846 = vmul.f32 %v3708, %v3834
      %v3847 = vmul.f32 %v3709, %v3835
      %v3848 = vmul.f32 %v3710, %v3832
      %v3849 = vmul.f32 %v3711, %v3833
      %v3850 = vmul.f32 %v3712, %v3834
      %v3851 = vmul.f32 %v3713, %v3835
      %v3852 = vmul.f32 %v3714, %v3832
      %v3853 = vmul.f32 %v3715, %v3833
      %v3854 = vmul.f32 %v3716, %v3834
      %v3855 = vmul.f32 %v3717, %v3835
      %v3856 = vmul.f32 %v3718, %v3832
      %v3857 = vmul.f32 %v3719, %v3833
      %v3858 = vmul.f32 %v3720, %v3834
      %v3859 = vmul.f32 %v3721, %v3835
      %v3860 = vmul.f32 %v3722, %v3832
      %v3861 = vmul.f32 %v3723, %v3833
      %v3862 = vmul.f32 %v3724, %v3834
      %v3863 = vmul.f32 %v3725, %v3835
      %v3864 = vmul.f32 %v3726, %v3832
      %v3865 = vmul.f32 %v3727, %v3833
      %v3866 = vmul.f32 %v3728, %v3834
      %v3867 = vmul.f32 %v3729, %v3835
      %v3868 = vmul.f32 %v3730, %v3832
      %v3869 = vmul.f32 %v3731, %v3833
      %v3870 = vmul.f32 %v3732, %v3834
      %v3871 = vmul.f32 %v3733, %v3835
      %v3872 = vmul.f32 %v3734, %v3832
      %v3873 = vmul.f32 %v3735, %v3833
      %v3874 = vmul.f32 %v3736, %v3834
      %v3875 = vmul.f32 %v3737, %v3835
      %v3876 = vmul.f32 %v3738, %v3832
      %v3877 = vmul.f32 %v3739, %v3833
      %v3878 = vmul.f32 %v3740, %v3834
      %v3879 = vmul.f32 %v3741, %v3835
      %v3880 = vmul.f32 %v3742, %v3832
      %v3881 = vmul.f32 %v3743, %v3833
      %v3882 = vmul.f32 %v3744, %v3834
      %v3883 = vmul.f32 %v3745, %v3835
      %v3884 = vmul.f32 %v3746, %v3832
      %v3885 = vmul.f32 %v3747, %v3833
      %v3886 = vmul.f32 %v3748, %v3834
      %v3887 = vmul.f32 %v3749, %v3835
      %v3888 = vmul.f32 %v3750, %v3832
      %v3889 = vmul.f32 %v3751, %v3833
      %v3890 = vmul.f32 %v3752, %v3834
      %v3891 = vmul.f32 %v3753, %v3835
      %v3892 = vmul.f32 %v3754, %v3832
      %v3893 = vmul.f32 %v3755, %v3833
      %v3894 = vmul.f32 %v3756, %v3834
      %v3895 = vmul.f32 %v3757, %v3835
      %v3896 = vmul.f32 %v3758, %v3832
      %v3897 = vmul.f32 %v3759, %v3833
      %v3898 = vmul.f32 %v3760, %v3834
      %v3899 = vmul.f32 %v3761, %v3835
      %v3900 = vmul.f32 %v3762, %v3832
      %v3901 = vmul.f32 %v3763, %v3833
      %v3902 = vmul.f32 %v3764, %v3834
      %v3903 = vmul.f32 %v3765, %v3835
      %v3904 = vmul.f32 %v3766, %v3832
      %v3905 = vmul.f32 %v3767, %v3833
      %v3906 = vmul.f32 %v3768, %v3834
      %v3907 = vmul.f32 %v3769, %v3835
      %v3908 = vmul.f32 %v3770, %v3832
      %v3909 = vmul.f32 %v3771, %v3833
      %v3910 = vmul.f32 %v3772, %v3834
      %v3911 = vmul.f32 %v3773, %v3835
      %v3912 = vmul.f32 %v3774, %v3832
      %v3913 = vmul.f32 %v3775, %v3833
      %v3914 = vmul.f32 %v3776, %v3834
      %v3915 = vmul.f32 %v3777, %v3835
      %v3916 = vmul.f32 %v3778, %v3832
      %v3917 = vmul.f32 %v3779, %v3833
      %v3918 = vmul.f32 %v3780, %v3834
      %v3919 = vmul.f32 %v3781, %v3835
      %v3920 = vmul.f32 %v3782, %v3832
      %v3921 = vmul.f32 %v3783, %v3833
      %v3922 = vmul.f32 %v3784, %v3834
      %v3923 = vmul.f32 %v3785, %v3835
      %v3924 = vmul.f32 %v3786, %v3832
      %v3925 = vmul.f32 %v3787, %v3833
      %v3926 = vmul.f32 %v3788, %v3834
      %v3927 = vmul.f32 %v3789, %v3835
      %v3928 = vmul.f32 %v3790, %v3832
      %v3929 = vmul.f32 %v3791, %v3833
      %v3930 = vmul.f32 %v3792, %v3834
      %v3931 = vmul.f32 %v3793, %v3835
      %v3932 = vmul.f32 %v3794, %v3832
      %v3933 = vmul.f32 %v3795, %v3833
      %v3934 = vmul.f32 %v3796, %v3834
      %v3935 = vmul.f32 %v3797, %v3835
      %v3936 = vmul.f32 %v3798, %v3832
      %v3937 = vmul.f32 %v3799, %v3833
      %v3938 = vmul.f32 %v3800, %v3834
      %v3939 = vmul.f32 %v3801, %v3835
      %v3940 = vmul.f32 %v3802, %v3832
      %v3941 = vmul.f32 %v3803, %v3833
      %v3942 = vmul.f32 %v3804, %v3834
      %v3943 = vmul.f32 %v3805, %v3835
      %v3944 = vmul.f32 %v3806, %v3832
      %v3945 = vmul.f32 %v3807, %v3833
      %v3946 = vmul.f32 %v3808, %v3834
      %v3947 = vmul.f32 %v3809, %v3835
      %v3948 = vmul.f32 %v3810, %v3832
      %v3949 = vmul.f32 %v3811, %v3833
      %v3950 = vmul.f32 %v3812, %v3834
      %v3951 = vmul.f32 %v3813, %v3835
      %v3952 = vmul.f32 %v3814, %v3832
      %v3953 = vmul.f32 %v3815, %v3833
      %v3954 = vmul.f32 %v3816, %v3834
      %v3955 = vmul.f32 %v3817, %v3835
      %v3956 = vmul.f32 %v3818, %v3832
      %v3957 = vmul.f32 %v3819, %v3833
      %v3958 = vmul.f32 %v3820, %v3834
      %v3959 = vmul.f32 %v3821, %v3835
      %v3960 = vmul.f32 %v3822, %v3832
      %v3961 = vmul.f32 %v3823, %v3833
      %v3962 = vmul.f32 %v3824, %v3834
      %v3963 = vmul.f32 %v3825, %v3835
      %v3964 = vmul.f32 %v3826, %v3832
      %v3965 = vmul.f32 %v3827, %v3833
      %v3966 = vmul.f32 %v3828, %v3834
      %v3967 = vmul.f32 %v3829, %v3835
      %v3968 = vld [vmem:[%s6] sm:$0xf]
      %v3970 = vperm.slane %v3968, 0
      %v3971 = vperm.slane %v3968, 1
      %v3972 = vperm.slane %v3968, 2
      %v3973 = vperm.slane %v3968, 3
      %v3978 = vadd.f32 %v3840, %v3970
      %v3979 = vadd.f32 %v3841, %v3971
      %v3980 = vadd.f32 %v3842, %v3972
      %v3981 = vadd.f32 %v3843, %v3973
      %v3982 = vadd.f32 %v3844, %v3970
      %v3983 = vadd.f32 %v3845, %v3971
      %v3984 = vadd.f32 %v3846, %v3972
      %v3985 = vadd.f32 %v3847, %v3973
      %v3986 = vadd.f32 %v3848, %v3970
      %v3987 = vadd.f32 %v3849, %v3971
      %v3988 = vadd.f32 %v3850, %v3972
      %v3989 = vadd.f32 %v3851, %v3973
      %v3990 = vadd.f32 %v3852, %v3970
      %v3991 = vadd.f32 %v3853, %v3971
      %v3992 = vadd.f32 %v3854, %v3972
      %v3993 = vadd.f32 %v3855, %v3973
      %v3994 = vadd.f32 %v3856, %v3970
      %v3995 = vadd.f32 %v3857, %v3971
      %v3996 = vadd.f32 %v3858, %v3972
      %v3997 = vadd.f32 %v3859, %v3973
      %v3998 = vadd.f32 %v3860, %v3970
      %v3999 = vadd.f32 %v3861, %v3971
      %v4000 = vadd.f32 %v3862, %v3972
      %v4001 = vadd.f32 %v3863, %v3973
      %v4002 = vadd.f32 %v3864, %v3970
      %v4003 = vadd.f32 %v3865, %v3971
      %v4004 = vadd.f32 %v3866, %v3972
      %v4005 = vadd.f32 %v3867, %v3973
      %v4006 = vadd.f32 %v3868, %v3970
      %v4007 = vadd.f32 %v3869, %v3971
      %v4008 = vadd.f32 %v3870, %v3972
      %v4009 = vadd.f32 %v3871, %v3973
      %v4010 = vadd.f32 %v3872, %v3970
      %v4011 = vadd.f32 %v3873, %v3971
      %v4012 = vadd.f32 %v3874, %v3972
      %v4013 = vadd.f32 %v3875, %v3973
      %v4014 = vadd.f32 %v3876, %v3970
      %v4015 = vadd.f32 %v3877, %v3971
      %v4016 = vadd.f32 %v3878, %v3972
      %v4017 = vadd.f32 %v3879, %v3973
      %v4018 = vadd.f32 %v3880, %v3970
      %v4019 = vadd.f32 %v3881, %v3971
      %v4020 = vadd.f32 %v3882, %v3972
      %v4021 = vadd.f32 %v3883, %v3973
      %v4022 = vadd.f32 %v3884, %v3970
      %v4023 = vadd.f32 %v3885, %v3971
      %v4024 = vadd.f32 %v3886, %v3972
      %v4025 = vadd.f32 %v3887, %v3973
      %v4026 = vadd.f32 %v3888, %v3970
      %v4027 = vadd.f32 %v3889, %v3971
      %v4028 = vadd.f32 %v3890, %v3972
      %v4029 = vadd.f32 %v3891, %v3973
      %v4030 = vadd.f32 %v3892, %v3970
      %v4031 = vadd.f32 %v3893, %v3971
      %v4032 = vadd.f32 %v3894, %v3972
      %v4033 = vadd.f32 %v3895, %v3973
      %v4034 = vadd.f32 %v3896, %v3970
      %v4035 = vadd.f32 %v3897, %v3971
      %v4036 = vadd.f32 %v3898, %v3972
      %v4037 = vadd.f32 %v3899, %v3973
      %v4038 = vadd.f32 %v3900, %v3970
      %v4039 = vadd.f32 %v3901, %v3971
      %v4040 = vadd.f32 %v3902, %v3972
      %v4041 = vadd.f32 %v3903, %v3973
      %v4042 = vadd.f32 %v3904, %v3970
      %v4043 = vadd.f32 %v3905, %v3971
      %v4044 = vadd.f32 %v3906, %v3972
      %v4045 = vadd.f32 %v3907, %v3973
      %v4046 = vadd.f32 %v3908, %v3970
      %v4047 = vadd.f32 %v3909, %v3971
      %v4048 = vadd.f32 %v3910, %v3972
      %v4049 = vadd.f32 %v3911, %v3973
      %v4050 = vadd.f32 %v3912, %v3970
      %v4051 = vadd.f32 %v3913, %v3971
      %v4052 = vadd.f32 %v3914, %v3972
      %v4053 = vadd.f32 %v3915, %v3973
      %v4054 = vadd.f32 %v3916, %v3970
      %v4055 = vadd.f32 %v3917, %v3971
      %v4056 = vadd.f32 %v3918, %v3972
      %v4057 = vadd.f32 %v3919, %v3973
      %v4058 = vadd.f32 %v3920, %v3970
      %v4059 = vadd.f32 %v3921, %v3971
      %v4060 = vadd.f32 %v3922, %v3972
      %v4061 = vadd.f32 %v3923, %v3973
      %v4062 = vadd.f32 %v3924, %v3970
      %v4063 = vadd.f32 %v3925, %v3971
      %v4064 = vadd.f32 %v3926, %v3972
      %v4065 = vadd.f32 %v3927, %v3973
      %v4066 = vadd.f32 %v3928, %v3970
      %v4067 = vadd.f32 %v3929, %v3971
      %v4068 = vadd.f32 %v3930, %v3972
      %v4069 = vadd.f32 %v3931, %v3973
      %v4070 = vadd.f32 %v3932, %v3970
      %v4071 = vadd.f32 %v3933, %v3971
      %v4072 = vadd.f32 %v3934, %v3972
      %v4073 = vadd.f32 %v3935, %v3973
      %v4074 = vadd.f32 %v3936, %v3970
      %v4075 = vadd.f32 %v3937, %v3971
      %v4076 = vadd.f32 %v3938, %v3972
      %v4077 = vadd.f32 %v3939, %v3973
      %v4078 = vadd.f32 %v3940, %v3970
      %v4079 = vadd.f32 %v3941, %v3971
      %v4080 = vadd.f32 %v3942, %v3972
      %v4081 = vadd.f32 %v3943, %v3973
      %v4082 = vadd.f32 %v3944, %v3970
      %v4083 = vadd.f32 %v3945, %v3971
      %v4084 = vadd.f32 %v3946, %v3972
      %v4085 = vadd.f32 %v3947, %v3973
      %v4086 = vadd.f32 %v3948, %v3970
      %v4087 = vadd.f32 %v3949, %v3971
      %v4088 = vadd.f32 %v3950, %v3972
      %v4089 = vadd.f32 %v3951, %v3973
      %v4090 = vadd.f32 %v3952, %v3970
      %v4091 = vadd.f32 %v3953, %v3971
      %v4092 = vadd.f32 %v3954, %v3972
      %v4093 = vadd.f32 %v3955, %v3973
      %v4094 = vadd.f32 %v3956, %v3970
      %v4095 = vadd.f32 %v3957, %v3971
      %v4096 = vadd.f32 %v3958, %v3972
      %v4097 = vadd.f32 %v3959, %v3973
      %v4098 = vadd.f32 %v3960, %v3970
      %v4099 = vadd.f32 %v3961, %v3971
      %v4100 = vadd.f32 %v3962, %v3972
      %v4101 = vadd.f32 %v3963, %v3973
      %v4102 = vadd.f32 %v3964, %v3970
      %v4103 = vadd.f32 %v3965, %v3971
      %v4104 = vadd.f32 %v3966, %v3972
      %v4105 = vadd.f32 %v3967, %v3973
      %v4106 = vmax.f32 %v3978, 0.0
      %v4107 = vmax.f32 %v3979, 0.0
      %v4108 = vmax.f32 %v3980, 0.0
      %v4109 = vmax.f32 %v3981, 0.0
      %v4110 = vmax.f32 %v3982, 0.0
      %v4111 = vmax.f32 %v3983, 0.0
      %v4112 = vmax.f32 %v3984, 0.0
      %v4113 = vmax.f32 %v3985, 0.0
      %v4114 = vmax.f32 %v3986, 0.0
      %v4115 = vmax.f32 %v3987, 0.0
      %v4116 = vmax.f32 %v3988, 0.0
      %v4117 = vmax.f32 %v3989, 0.0
      %v4118 = vmax.f32 %v3990, 0.0
      %v4119 = vmax.f32 %v3991, 0.0
      %v4120 = vmax.f32 %v3992, 0.0
      %v4121 = vmax.f32 %v3993, 0.0
      %v4122 = vmax.f32 %v3994, 0.0
      %v4123 = vmax.f32 %v3995, 0.0
      %v4124 = vmax.f32 %v3996, 0.0
      %v4125 = vmax.f32 %v3997, 0.0
      %v4126 = vmax.f32 %v3998, 0.0
      %v4127 = vmax.f32 %v3999, 0.0
      %v4128 = vmax.f32 %v4000, 0.0
      %v4129 = vmax.f32 %v4001, 0.0
      %v4130 = vmax.f32 %v4002, 0.0
      %v4131 = vmax.f32 %v4003, 0.0
      %v4132 = vmax.f32 %v4004, 0.0
      %v4133 = vmax.f32 %v4005, 0.0
      %v4134 = vmax.f32 %v4006, 0.0
      %v4135 = vmax.f32 %v4007, 0.0
      %v4136 = vmax.f32 %v4008, 0.0
      %v4137 = vmax.f32 %v4009, 0.0
      %v4138 = vmax.f32 %v4010, 0.0
      %v4139 = vmax.f32 %v4011, 0.0
      %v4140 = vmax.f32 %v4012, 0.0
      %v4141 = vmax.f32 %v4013, 0.0
      %v4142 = vmax.f32 %v4014, 0.0
      %v4143 = vmax.f32 %v4015, 0.0
      %v4144 = vmax.f32 %v4016, 0.0
      %v4145 = vmax.f32 %v4017, 0.0
      %v4146 = vmax.f32 %v4018, 0.0
      %v4147 = vmax.f32 %v4019, 0.0
      %v4148 = vmax.f32 %v4020, 0.0
      %v4149 = vmax.f32 %v4021, 0.0
      %v4150 = vmax.f32 %v4022, 0.0
      %v4151 = vmax.f32 %v4023, 0.0
      %v4152 = vmax.f32 %v4024, 0.0
      %v4153 = vmax.f32 %v4025, 0.0
      %v4154 = vmax.f32 %v4026, 0.0
      %v4155 = vmax.f32 %v4027, 0.0
      %v4156 = vmax.f32 %v4028, 0.0
      %v4157 = vmax.f32 %v4029, 0.0
      %v4158 = vmax.f32 %v4030, 0.0
      %v4159 = vmax.f32 %v4031, 0.0
      %v4160 = vmax.f32 %v4032, 0.0
      %v4161 = vmax.f32 %v4033, 0.0
      %v4162 = vmax.f32 %v4034, 0.0
      %v4163 = vmax.f32 %v4035, 0.0
      %v4164 = vmax.f32 %v4036, 0.0
      %v4165 = vmax.f32 %v4037, 0.0
      %v4166 = vmax.f32 %v4038, 0.0
      %v4167 = vmax.f32 %v4039, 0.0
      %v4168 = vmax.f32 %v4040, 0.0
      %v4169 = vmax.f32 %v4041, 0.0
      %v4170 = vmax.f32 %v4042, 0.0
      %v4171 = vmax.f32 %v4043, 0.0
      %v4172 = vmax.f32 %v4044, 0.0
      %v4173 = vmax.f32 %v4045, 0.0
      %v4174 = vmax.f32 %v4046, 0.0
      %v4175 = vmax.f32 %v4047, 0.0
      %v4176 = vmax.f32 %v4048, 0.0
      %v4177 = vmax.f32 %v4049, 0.0
      %v4178 = vmax.f32 %v4050, 0.0
      %v4179 = vmax.f32 %v4051, 0.0
      %v4180 = vmax.f32 %v4052, 0.0
      %v4181 = vmax.f32 %v4053, 0.0
      %v4182 = vmax.f32 %v4054, 0.0
      %v4183 = vmax.f32 %v4055, 0.0
      %v4184 = vmax.f32 %v4056, 0.0
      %v4185 = vmax.f32 %v4057, 0.0
      %v4186 = vmax.f32 %v4058, 0.0
      %v4187 = vmax.f32 %v4059, 0.0
      %v4188 = vmax.f32 %v4060, 0.0
      %v4189 = vmax.f32 %v4061, 0.0
      %v4190 = vmax.f32 %v4062, 0.0
      %v4191 = vmax.f32 %v4063, 0.0
      %v4192 = vmax.f32 %v4064, 0.0
      %v4193 = vmax.f32 %v4065, 0.0
      %v4194 = vmax.f32 %v4066, 0.0
      %v4195 = vmax.f32 %v4067, 0.0
      %v4196 = vmax.f32 %v4068, 0.0
      %v4197 = vmax.f32 %v4069, 0.0
      %v4198 = vmax.f32 %v4070, 0.0
      %v4199 = vmax.f32 %v4071, 0.0
      %v4200 = vmax.f32 %v4072, 0.0
      %v4201 = vmax.f32 %v4073, 0.0
      %v4202 = vmax.f32 %v4074, 0.0
      %v4203 = vmax.f32 %v4075, 0.0
      %v4204 = vmax.f32 %v4076, 0.0
      %v4205 = vmax.f32 %v4077, 0.0
      %v4206 = vmax.f32 %v4078, 0.0
      %v4207 = vmax.f32 %v4079, 0.0
      %v4208 = vmax.f32 %v4080, 0.0
      %v4209 = vmax.f32 %v4081, 0.0
      %v4210 = vmax.f32 %v4082, 0.0
      %v4211 = vmax.f32 %v4083, 0.0
      %v4212 = vmax.f32 %v4084, 0.0
      %v4213 = vmax.f32 %v4085, 0.0
      %v4214 = vmax.f32 %v4086, 0.0
      %v4215 = vmax.f32 %v4087, 0.0
      %v4216 = vmax.f32 %v4088, 0.0
      %v4217 = vmax.f32 %v4089, 0.0
      %v4218 = vmax.f32 %v4090, 0.0
      %v4219 = vmax.f32 %v4091, 0.0
      %v4220 = vmax.f32 %v4092, 0.0
      %v4221 = vmax.f32 %v4093, 0.0
      %v4222 = vmax.f32 %v4094, 0.0
      %v4223 = vmax.f32 %v4095, 0.0
      %v4224 = vmax.f32 %v4096, 0.0
      %v4225 = vmax.f32 %v4097, 0.0
      %v4226 = vmax.f32 %v4098, 0.0
      %v4227 = vmax.f32 %v4099, 0.0
      %v4228 = vmax.f32 %v4100, 0.0
      %v4229 = vmax.f32 %v4101, 0.0
      %v4230 = vmax.f32 %v4102, 0.0
      %v4231 = vmax.f32 %v4103, 0.0
      %v4232 = vmax.f32 %v4104, 0.0
      %v4233 = vmax.f32 %v4105, 0.0
      %v4234 = vpack.c.bf16 %v4110, %v4106
      %v4235 = vpack.c.bf16 %v4111, %v4107
      %v4236 = vpack.c.bf16 %v4112, %v4108
      %v4237 = vpack.c.bf16 %v4113, %v4109
      %v4238 = vpack.c.bf16 %v4118, %v4114
      %v4239 = vpack.c.bf16 %v4119, %v4115
      %v4240 = vpack.c.bf16 %v4120, %v4116
      %v4241 = vpack.c.bf16 %v4121, %v4117
      %v4242 = vpack.c.bf16 %v4126, %v4122
      %v4243 = vpack.c.bf16 %v4127, %v4123
      %v4244 = vpack.c.bf16 %v4128, %v4124
      %v4245 = vpack.c.bf16 %v4129, %v4125
      %v4246 = vpack.c.bf16 %v4134, %v4130
      %v4247 = vpack.c.bf16 %v4135, %v4131
      %v4248 = vpack.c.bf16 %v4136, %v4132
      %v4249 = vpack.c.bf16 %v4137, %v4133
      %v4250 = vpack.c.bf16 %v4142, %v4138
      %v4251 = vpack.c.bf16 %v4143, %v4139
      %v4252 = vpack.c.bf16 %v4144, %v4140
      %v4253 = vpack.c.bf16 %v4145, %v4141
      %v4254 = vpack.c.bf16 %v4150, %v4146
      %v4255 = vpack.c.bf16 %v4151, %v4147
      %v4256 = vpack.c.bf16 %v4152, %v4148
      %v4257 = vpack.c.bf16 %v4153, %v4149
      %v4258 = vpack.c.bf16 %v4158, %v4154
      %v4259 = vpack.c.bf16 %v4159, %v4155
      %v4260 = vpack.c.bf16 %v4160, %v4156
      %v4261 = vpack.c.bf16 %v4161, %v4157
      %v4262 = vpack.c.bf16 %v4166, %v4162
      %v4263 = vpack.c.bf16 %v4167, %v4163
      %v4264 = vpack.c.bf16 %v4168, %v4164
      %v4265 = vpack.c.bf16 %v4169, %v4165
      %v4266 = vpack.c.bf16 %v4174, %v4170
      %v4267 = vpack.c.bf16 %v4175, %v4171
      %v4268 = vpack.c.bf16 %v4176, %v4172
      %v4269 = vpack.c.bf16 %v4177, %v4173
      %v4270 = vpack.c.bf16 %v4182, %v4178
      %v4271 = vpack.c.bf16 %v4183, %v4179
      %v4272 = vpack.c.bf16 %v4184, %v4180
      %v4273 = vpack.c.bf16 %v4185, %v4181
      %v4274 = vpack.c.bf16 %v4190, %v4186
      %v4275 = vpack.c.bf16 %v4191, %v4187
      %v4276 = vpack.c.bf16 %v4192, %v4188
      %v4277 = vpack.c.bf16 %v4193, %v4189
      %v4278 = vpack.c.bf16 %v4198, %v4194
      %v4279 = vpack.c.bf16 %v4199, %v4195
      %v4280 = vpack.c.bf16 %v4200, %v4196
      %v4281 = vpack.c.bf16 %v4201, %v4197
      %v4282 = vpack.c.bf16 %v4206, %v4202
      %v4283 = vpack.c.bf16 %v4207, %v4203
      %v4284 = vpack.c.bf16 %v4208, %v4204
      %v4285 = vpack.c.bf16 %v4209, %v4205
      %v4286 = vpack.c.bf16 %v4214, %v4210
      %v4287 = vpack.c.bf16 %v4215, %v4211
      %v4288 = vpack.c.bf16 %v4216, %v4212
      %v4289 = vpack.c.bf16 %v4217, %v4213
      %v4290 = vpack.c.bf16 %v4222, %v4218
      %v4291 = vpack.c.bf16 %v4223, %v4219
      %v4292 = vpack.c.bf16 %v4224, %v4220
      %v4293 = vpack.c.bf16 %v4225, %v4221
      %v4294 = vpack.c.bf16 %v4230, %v4226
      %v4295 = vpack.c.bf16 %v4231, %v4227
      %v4296 = vpack.c.bf16 %v4232, %v4228
      %v4297 = vpack.c.bf16 %v4233, %v4229
      %v4298 = vld [vmem:[%s7] sm:$0xff]
      %v4299 = vld [vmem:[%s7 + $0x8] sm:$0xff]
      %v4300 = vld [vmem:[%s7 + $0x10] sm:$0xff]
      %v4301 = vld [vmem:[%s7 + $0x18] sm:$0xff]
      %v4302 = vld [vmem:[%s7 + $0x20] sm:$0xff]
      %v4303 = vld [vmem:[%s7 + $0x28] sm:$0xff]
      %v4304 = vld [vmem:[%s7 + $0x30] sm:$0xff]
      %v4305 = vld [vmem:[%s7 + $0x38] sm:$0xff]
      %v4306 = vld [vmem:[%s7 + $0x40] sm:$0xff]
      %v4307 = vld [vmem:[%s7 + $0x48] sm:$0xff]
      %v4308 = vld [vmem:[%s7 + $0x50] sm:$0xff]
      %v4309 = vld [vmem:[%s7 + $0x58] sm:$0xff]
      %v4310 = vld [vmem:[%s7 + $0x60] sm:$0xff]
      %v4311 = vld [vmem:[%s7 + $0x68] sm:$0xff]
      %v4312 = vld [vmem:[%s7 + $0x70] sm:$0xff]
      %v4313 = vld [vmem:[%s7 + $0x78] sm:$0xff]
      %v4314 = vld [vmem:[%s7 + $0x80] sm:$0xff]
      %v4315 = vld [vmem:[%s7 + $0x88] sm:$0xff]
      %v4316 = vld [vmem:[%s7 + $0x90] sm:$0xff]
      %v4317 = vld [vmem:[%s7 + $0x98] sm:$0xff]
      %v4318 = vld [vmem:[%s7 + $0xa0] sm:$0xff]
      %v4319 = vld [vmem:[%s7 + $0xa8] sm:$0xff]
      %v4320 = vld [vmem:[%s7 + $0xb0] sm:$0xff]
      %v4321 = vld [vmem:[%s7 + $0xb8] sm:$0xff]
      %v4322 = vld [vmem:[%s7 + $0xc0] sm:$0xff]
      %v4323 = vld [vmem:[%s7 + $0xc8] sm:$0xff]
      %v4324 = vld [vmem:[%s7 + $0xd0] sm:$0xff]
      %v4325 = vld [vmem:[%s7 + $0xd8] sm:$0xff]
      %v4326 = vld [vmem:[%s7 + $0xe0] sm:$0xff]
      %v4327 = vld [vmem:[%s7 + $0xe8] sm:$0xff]
      %v4328 = vld [vmem:[%s7 + $0xf0] sm:$0xff]
      %v4329 = vld [vmem:[%s7 + $0xf8] sm:$0xff]
      %v4330 = vld [vmem:[%s7 + $0x100] sm:$0xff]
      %v4331 = vld [vmem:[%s7 + $0x108] sm:$0xff]
      %v4332 = vld [vmem:[%s7 + $0x110] sm:$0xff]
      %v4333 = vld [vmem:[%s7 + $0x118] sm:$0xff]
      %v4334 = vld [vmem:[%s7 + $0x120] sm:$0xff]
      %v4335 = vld [vmem:[%s7 + $0x128] sm:$0xff]
      %v4336 = vld [vmem:[%s7 + $0x130] sm:$0xff]
      %v4337 = vld [vmem:[%s7 + $0x138] sm:$0xff]
      %v4338 = vld [vmem:[%s7 + $0x140] sm:$0xff]
      %v4339 = vld [vmem:[%s7 + $0x148] sm:$0xff]
      %v4340 = vld [vmem:[%s7 + $0x150] sm:$0xff]
      %v4341 = vld [vmem:[%s7 + $0x158] sm:$0xff]
      %v4342 = vld [vmem:[%s7 + $0x160] sm:$0xff]
      %v4343 = vld [vmem:[%s7 + $0x168] sm:$0xff]
      %v4344 = vld [vmem:[%s7 + $0x170] sm:$0xff]
      %v4345 = vld [vmem:[%s7 + $0x178] sm:$0xff]
      %v4346 = vld [vmem:[%s7 + $0x180] sm:$0xff]
      %v4347 = vld [vmem:[%s7 + $0x188] sm:$0xff]
      %v4348 = vld [vmem:[%s7 + $0x190] sm:$0xff]
      %v4349 = vld [vmem:[%s7 + $0x198] sm:$0xff]
      %v4350 = vld [vmem:[%s7 + $0x1a0] sm:$0xff]
      %v4351 = vld [vmem:[%s7 + $0x1a8] sm:$0xff]
      %v4352 = vld [vmem:[%s7 + $0x1b0] sm:$0xff]
      %v4353 = vld [vmem:[%s7 + $0x1b8] sm:$0xff]
      %v4354 = vld [vmem:[%s7 + $0x1c0] sm:$0xff]
      %v4355 = vld [vmem:[%s7 + $0x1c8] sm:$0xff]
      %v4356 = vld [vmem:[%s7 + $0x1d0] sm:$0xff]
      %v4357 = vld [vmem:[%s7 + $0x1d8] sm:$0xff]
      %v4358 = vld [vmem:[%s7 + $0x1e0] sm:$0xff]
      %v4359 = vld [vmem:[%s7 + $0x1e8] sm:$0xff]
      %v4360 = vld [vmem:[%s7 + $0x1f0] sm:$0xff]
      %v4361 = vld [vmem:[%s7 + $0x1f8] sm:$0xff]
      %v4362 = vld [vmem:[%s7 + $0x200] sm:$0xff]
      %v4363 = vld [vmem:[%s7 + $0x208] sm:$0xff]
      %v4364 = vld [vmem:[%s7 + $0x210] sm:$0xff]
      %v4365 = vld [vmem:[%s7 + $0x218] sm:$0xff]
      %v4366 = vld [vmem:[%s7 + $0x220] sm:$0xff]
      %v4367 = vld [vmem:[%s7 + $0x228] sm:$0xff]
      %v4368 = vld [vmem:[%s7 + $0x230] sm:$0xff]
      %v4369 = vld [vmem:[%s7 + $0x238] sm:$0xff]
      %v4370 = vld [vmem:[%s7 + $0x240] sm:$0xff]
      %v4371 = vld [vmem:[%s7 + $0x248] sm:$0xff]
      %v4372 = vld [vmem:[%s7 + $0x250] sm:$0xff]
      %v4373 = vld [vmem:[%s7 + $0x258] sm:$0xff]
      %v4374 = vld [vmem:[%s7 + $0x260] sm:$0xff]
      %v4375 = vld [vmem:[%s7 + $0x268] sm:$0xff]
      %v4376 = vld [vmem:[%s7 + $0x270] sm:$0xff]
      %v4377 = vld [vmem:[%s7 + $0x278] sm:$0xff]
      %v4378 = vld [vmem:[%s7 + $0x280] sm:$0xff]
      %v4379 = vld [vmem:[%s7 + $0x288] sm:$0xff]
      %v4380 = vld [vmem:[%s7 + $0x290] sm:$0xff]
      %v4381 = vld [vmem:[%s7 + $0x298] sm:$0xff]
      %v4382 = vld [vmem:[%s7 + $0x2a0] sm:$0xff]
      %v4383 = vld [vmem:[%s7 + $0x2a8] sm:$0xff]
      %v4384 = vld [vmem:[%s7 + $0x2b0] sm:$0xff]
      %v4385 = vld [vmem:[%s7 + $0x2b8] sm:$0xff]
      %v4386 = vld [vmem:[%s7 + $0x2c0] sm:$0xff]
      %v4387 = vld [vmem:[%s7 + $0x2c8] sm:$0xff]
      %v4388 = vld [vmem:[%s7 + $0x2d0] sm:$0xff]
      %v4389 = vld [vmem:[%s7 + $0x2d8] sm:$0xff]
      %v4390 = vld [vmem:[%s7 + $0x2e0] sm:$0xff]
      %v4391 = vld [vmem:[%s7 + $0x2e8] sm:$0xff]
      %v4392 = vld [vmem:[%s7 + $0x2f0] sm:$0xff]
      %v4393 = vld [vmem:[%s7 + $0x2f8] sm:$0xff]
      %v4394 = vld [vmem:[%s7 + $0x300] sm:$0xff]
      %v4395 = vld [vmem:[%s7 + $0x308] sm:$0xff]
      %v4396 = vld [vmem:[%s7 + $0x310] sm:$0xff]
      %v4397 = vld [vmem:[%s7 + $0x318] sm:$0xff]
      %v4398 = vld [vmem:[%s7 + $0x320] sm:$0xff]
      %v4399 = vld [vmem:[%s7 + $0x328] sm:$0xff]
      %v4400 = vld [vmem:[%s7 + $0x330] sm:$0xff]
      %v4401 = vld [vmem:[%s7 + $0x338] sm:$0xff]
      %v4402 = vld [vmem:[%s7 + $0x340] sm:$0xff]
      %v4403 = vld [vmem:[%s7 + $0x348] sm:$0xff]
      %v4404 = vld [vmem:[%s7 + $0x350] sm:$0xff]
      %v4405 = vld [vmem:[%s7 + $0x358] sm:$0xff]
      %v4406 = vld [vmem:[%s7 + $0x360] sm:$0xff]
      %v4407 = vld [vmem:[%s7 + $0x368] sm:$0xff]
      %v4408 = vld [vmem:[%s7 + $0x370] sm:$0xff]
      %v4409 = vld [vmem:[%s7 + $0x378] sm:$0xff]
      %v4410 = vld [vmem:[%s7 + $0x380] sm:$0xff]
      %v4411 = vld [vmem:[%s7 + $0x388] sm:$0xff]
      %v4412 = vld [vmem:[%s7 + $0x390] sm:$0xff]
      %v4413 = vld [vmem:[%s7 + $0x398] sm:$0xff]
      %v4414 = vld [vmem:[%s7 + $0x3a0] sm:$0xff]
      %v4415 = vld [vmem:[%s7 + $0x3a8] sm:$0xff]
      %v4416 = vld [vmem:[%s7 + $0x3b0] sm:$0xff]
      %v4417 = vld [vmem:[%s7 + $0x3b8] sm:$0xff]
      %v4418 = vld [vmem:[%s7 + $0x3c0] sm:$0xff]
      %v4419 = vld [vmem:[%s7 + $0x3c8] sm:$0xff]
      %v4420 = vld [vmem:[%s7 + $0x3d0] sm:$0xff]
      %v4421 = vld [vmem:[%s7 + $0x3d8] sm:$0xff]
      %v4422 = vld [vmem:[%s7 + $0x3e0] sm:$0xff]
      %v4423 = vld [vmem:[%s7 + $0x3e8] sm:$0xff]
      %v4424 = vld [vmem:[%s7 + $0x3f0] sm:$0xff]
      %v4425 = vld [vmem:[%s7 + $0x3f8] sm:$0xff]
      %v4426 = vld [vmem:[%s10] sm:$0xf]
      %v4428 = vperm.slane %v4426, 0
      %v4429 = vperm.slane %v4426, 1
      %v4430 = vperm.slane %v4426, 2
      %v4431 = vperm.slane %v4426, 3
      %v4564 = vunpack.c.l.b16 %v4298
      %v4565 = vunpack.c.h.b16 %v4298
      %v4566 = vunpack.c.l.b16 %v4299
      %v4567 = vunpack.c.h.b16 %v4299
      %v4568 = vunpack.c.l.b16 %v4300
      %v4569 = vunpack.c.h.b16 %v4300
      %v4570 = vunpack.c.l.b16 %v4301
      %v4571 = vunpack.c.h.b16 %v4301
      %v4572 = vunpack.c.l.b16 %v4302
      %v4573 = vunpack.c.h.b16 %v4302
      %v4574 = vunpack.c.l.b16 %v4303
      %v4575 = vunpack.c.h.b16 %v4303
      %v4576 = vunpack.c.l.b16 %v4304
      %v4577 = vunpack.c.h.b16 %v4304
      %v4578 = vunpack.c.l.b16 %v4305
      %v4579 = vunpack.c.h.b16 %v4305
      %v4580 = vunpack.c.l.b16 %v4306
      %v4581 = vunpack.c.h.b16 %v4306
      %v4582 = vunpack.c.l.b16 %v4307
      %v4583 = vunpack.c.h.b16 %v4307
      %v4584 = vunpack.c.l.b16 %v4308
      %v4585 = vunpack.c.h.b16 %v4308
      %v4586 = vunpack.c.l.b16 %v4309
      %v4587 = vunpack.c.h.b16 %v4309
      %v4588 = vunpack.c.l.b16 %v4310
      %v4589 = vunpack.c.h.b16 %v4310
      %v4590 = vunpack.c.l.b16 %v4311
      %v4591 = vunpack.c.h.b16 %v4311
      %v4592 = vunpack.c.l.b16 %v4312
      %v4593 = vunpack.c.h.b16 %v4312
      %v4594 = vunpack.c.l.b16 %v4313
      %v4595 = vunpack.c.h.b16 %v4313
      %v4596 = vunpack.c.l.b16 %v4314
      %v4597 = vunpack.c.h.b16 %v4314
      %v4598 = vunpack.c.l.b16 %v4315
      %v4599 = vunpack.c.h.b16 %v4315
      %v4600 = vunpack.c.l.b16 %v4316
      %v4601 = vunpack.c.h.b16 %v4316
      %v4602 = vunpack.c.l.b16 %v4317
      %v4603 = vunpack.c.h.b16 %v4317
      %v4604 = vunpack.c.l.b16 %v4318
      %v4605 = vunpack.c.h.b16 %v4318
      %v4606 = vunpack.c.l.b16 %v4319
      %v4607 = vunpack.c.h.b16 %v4319
      %v4608 = vunpack.c.l.b16 %v4320
      %v4609 = vunpack.c.h.b16 %v4320
      %v4610 = vunpack.c.l.b16 %v4321
      %v4611 = vunpack.c.h.b16 %v4321
      %v4612 = vunpack.c.l.b16 %v4322
      %v4613 = vunpack.c.h.b16 %v4322
      %v4614 = vunpack.c.l.b16 %v4323
      %v4615 = vunpack.c.h.b16 %v4323
      %v4616 = vunpack.c.l.b16 %v4324
      %v4617 = vunpack.c.h.b16 %v4324
      %v4618 = vunpack.c.l.b16 %v4325
      %v4619 = vunpack.c.h.b16 %v4325
      %v4620 = vunpack.c.l.b16 %v4326
      %v4621 = vunpack.c.h.b16 %v4326
      %v4622 = vunpack.c.l.b16 %v4327
      %v4623 = vunpack.c.h.b16 %v4327
      %v4624 = vunpack.c.l.b16 %v4328
      %v4625 = vunpack.c.h.b16 %v4328
      %v4626 = vunpack.c.l.b16 %v4329
      %v4627 = vunpack.c.h.b16 %v4329
      %v4628 = vunpack.c.l.b16 %v4330
      %v4629 = vunpack.c.h.b16 %v4330
      %v4630 = vunpack.c.l.b16 %v4331
      %v4631 = vunpack.c.h.b16 %v4331
      %v4632 = vunpack.c.l.b16 %v4332
      %v4633 = vunpack.c.h.b16 %v4332
      %v4634 = vunpack.c.l.b16 %v4333
      %v4635 = vunpack.c.h.b16 %v4333
      %v4636 = vunpack.c.l.b16 %v4334
      %v4637 = vunpack.c.h.b16 %v4334
      %v4638 = vunpack.c.l.b16 %v4335
      %v4639 = vunpack.c.h.b16 %v4335
      %v4640 = vunpack.c.l.b16 %v4336
      %v4641 = vunpack.c.h.b16 %v4336
      %v4642 = vunpack.c.l.b16 %v4337
      %v4643 = vunpack.c.h.b16 %v4337
      %v4644 = vunpack.c.l.b16 %v4338
      %v4645 = vunpack.c.h.b16 %v4338
      %v4646 = vunpack.c.l.b16 %v4339
      %v4647 = vunpack.c.h.b16 %v4339
      %v4648 = vunpack.c.l.b16 %v4340
      %v4649 = vunpack.c.h.b16 %v4340
      %v4650 = vunpack.c.l.b16 %v4341
      %v4651 = vunpack.c.h.b16 %v4341
      %v4652 = vunpack.c.l.b16 %v4342
      %v4653 = vunpack.c.h.b16 %v4342
      %v4654 = vunpack.c.l.b16 %v4343
      %v4655 = vunpack.c.h.b16 %v4343
      %v4656 = vunpack.c.l.b16 %v4344
      %v4657 = vunpack.c.h.b16 %v4344
      %v4658 = vunpack.c.l.b16 %v4345
      %v4659 = vunpack.c.h.b16 %v4345
      %v4660 = vunpack.c.l.b16 %v4346
      %v4661 = vunpack.c.h.b16 %v4346
      %v4662 = vunpack.c.l.b16 %v4347
      %v4663 = vunpack.c.h.b16 %v4347
      %v4664 = vunpack.c.l.b16 %v4348
      %v4665 = vunpack.c.h.b16 %v4348
      %v4666 = vunpack.c.l.b16 %v4349
      %v4667 = vunpack.c.h.b16 %v4349
      %v4668 = vunpack.c.l.b16 %v4350
      %v4669 = vunpack.c.h.b16 %v4350
      %v4670 = vunpack.c.l.b16 %v4351
      %v4671 = vunpack.c.h.b16 %v4351
      %v4672 = vunpack.c.l.b16 %v4352
      %v4673 = vunpack.c.h.b16 %v4352
      %v4674 = vunpack.c.l.b16 %v4353
      %v4675 = vunpack.c.h.b16 %v4353
      %v4676 = vunpack.c.l.b16 %v4354
      %v4677 = vunpack.c.h.b16 %v4354
      %v4678 = vunpack.c.l.b16 %v4355
      %v4679 = vunpack.c.h.b16 %v4355
      %v4680 = vunpack.c.l.b16 %v4356
      %v4681 = vunpack.c.h.b16 %v4356
      %v4682 = vunpack.c.l.b16 %v4357
      %v4683 = vunpack.c.h.b16 %v4357
      %v4684 = vunpack.c.l.b16 %v4358
      %v4685 = vunpack.c.h.b16 %v4358
      %v4686 = vunpack.c.l.b16 %v4359
      %v4687 = vunpack.c.h.b16 %v4359
      %v4688 = vunpack.c.l.b16 %v4360
      %v4689 = vunpack.c.h.b16 %v4360
      %v4690 = vunpack.c.l.b16 %v4361
      %v4691 = vunpack.c.h.b16 %v4361
      %v4692 = vunpack.c.l.b16 %v4362
      %v4693 = vunpack.c.h.b16 %v4362
      %v4694 = vunpack.c.l.b16 %v4363
      %v4695 = vunpack.c.h.b16 %v4363
      %v4696 = vunpack.c.l.b16 %v4364
      %v4697 = vunpack.c.h.b16 %v4364
      %v4698 = vunpack.c.l.b16 %v4365
      %v4699 = vunpack.c.h.b16 %v4365
      %v4700 = vunpack.c.l.b16 %v4366
      %v4701 = vunpack.c.h.b16 %v4366
      %v4702 = vunpack.c.l.b16 %v4367
      %v4703 = vunpack.c.h.b16 %v4367
      %v4704 = vunpack.c.l.b16 %v4368
      %v4705 = vunpack.c.h.b16 %v4368
      %v4706 = vunpack.c.l.b16 %v4369
      %v4707 = vunpack.c.h.b16 %v4369
      %v4708 = vunpack.c.l.b16 %v4370
      %v4709 = vunpack.c.h.b16 %v4370
      %v4710 = vunpack.c.l.b16 %v4371
      %v4711 = vunpack.c.h.b16 %v4371
      %v4712 = vunpack.c.l.b16 %v4372
      %v4713 = vunpack.c.h.b16 %v4372
      %v4714 = vunpack.c.l.b16 %v4373
      %v4715 = vunpack.c.h.b16 %v4373
      %v4716 = vunpack.c.l.b16 %v4374
      %v4717 = vunpack.c.h.b16 %v4374
      %v4718 = vunpack.c.l.b16 %v4375
      %v4719 = vunpack.c.h.b16 %v4375
      %v4720 = vunpack.c.l.b16 %v4376
      %v4721 = vunpack.c.h.b16 %v4376
      %v4722 = vunpack.c.l.b16 %v4377
      %v4723 = vunpack.c.h.b16 %v4377
      %v4724 = vunpack.c.l.b16 %v4378
      %v4725 = vunpack.c.h.b16 %v4378
      %v4726 = vunpack.c.l.b16 %v4379
      %v4727 = vunpack.c.h.b16 %v4379
      %v4728 = vunpack.c.l.b16 %v4380
      %v4729 = vunpack.c.h.b16 %v4380
      %v4730 = vunpack.c.l.b16 %v4381
      %v4731 = vunpack.c.h.b16 %v4381
      %v4732 = vunpack.c.l.b16 %v4382
      %v4733 = vunpack.c.h.b16 %v4382
      %v4734 = vunpack.c.l.b16 %v4383
      %v4735 = vunpack.c.h.b16 %v4383
      %v4736 = vunpack.c.l.b16 %v4384
      %v4737 = vunpack.c.h.b16 %v4384
      %v4738 = vunpack.c.l.b16 %v4385
      %v4739 = vunpack.c.h.b16 %v4385
      %v4740 = vunpack.c.l.b16 %v4386
      %v4741 = vunpack.c.h.b16 %v4386
      %v4742 = vunpack.c.l.b16 %v4387
      %v4743 = vunpack.c.h.b16 %v4387
      %v4744 = vunpack.c.l.b16 %v4388
      %v4745 = vunpack.c.h.b16 %v4388
      %v4746 = vunpack.c.l.b16 %v4389
      %v4747 = vunpack.c.h.b16 %v4389
      %v4748 = vunpack.c.l.b16 %v4390
      %v4749 = vunpack.c.h.b16 %v4390
      %v4750 = vunpack.c.l.b16 %v4391
      %v4751 = vunpack.c.h.b16 %v4391
      %v4752 = vunpack.c.l.b16 %v4392
      %v4753 = vunpack.c.h.b16 %v4392
      %v4754 = vunpack.c.l.b16 %v4393
      %v4755 = vunpack.c.h.b16 %v4393
      %v4756 = vunpack.c.l.b16 %v4394
      %v4757 = vunpack.c.h.b16 %v4394
      %v4758 = vunpack.c.l.b16 %v4395
      %v4759 = vunpack.c.h.b16 %v4395
      %v4760 = vunpack.c.l.b16 %v4396
      %v4761 = vunpack.c.h.b16 %v4396
      %v4762 = vunpack.c.l.b16 %v4397
      %v4763 = vunpack.c.h.b16 %v4397
      %v4764 = vunpack.c.l.b16 %v4398
      %v4765 = vunpack.c.h.b16 %v4398
      %v4766 = vunpack.c.l.b16 %v4399
      %v4767 = vunpack.c.h.b16 %v4399
      %v4768 = vunpack.c.l.b16 %v4400
      %v4769 = vunpack.c.h.b16 %v4400
      %v4770 = vunpack.c.l.b16 %v4401
      %v4771 = vunpack.c.h.b16 %v4401
      %v4772 = vunpack.c.l.b16 %v4402
      %v4773 = vunpack.c.h.b16 %v4402
      %v4774 = vunpack.c.l.b16 %v4403
      %v4775 = vunpack.c.h.b16 %v4403
      %v4776 = vunpack.c.l.b16 %v4404
      %v4777 = vunpack.c.h.b16 %v4404
      %v4778 = vunpack.c.l.b16 %v4405
      %v4779 = vunpack.c.h.b16 %v4405
      %v4780 = vunpack.c.l.b16 %v4406
      %v4781 = vunpack.c.h.b16 %v4406
      %v4782 = vunpack.c.l.b16 %v4407
      %v4783 = vunpack.c.h.b16 %v4407
      %v4784 = vunpack.c.l.b16 %v4408
      %v4785 = vunpack.c.h.b16 %v4408
      %v4786 = vunpack.c.l.b16 %v4409
      %v4787 = vunpack.c.h.b16 %v4409
      %v4788 = vunpack.c.l.b16 %v4410
      %v4789 = vunpack.c.h.b16 %v4410
      %v4790 = vunpack.c.l.b16 %v4411
      %v4791 = vunpack.c.h.b16 %v4411
      %v4792 = vunpack.c.l.b16 %v4412
      %v4793 = vunpack.c.h.b16 %v4412
      %v4794 = vunpack.c.l.b16 %v4413
      %v4795 = vunpack.c.h.b16 %v4413
      %v4796 = vunpack.c.l.b16 %v4414
      %v4797 = vunpack.c.h.b16 %v4414
      %v4798 = vunpack.c.l.b16 %v4415
      %v4799 = vunpack.c.h.b16 %v4415
      %v4800 = vunpack.c.l.b16 %v4416
      %v4801 = vunpack.c.h.b16 %v4416
      %v4802 = vunpack.c.l.b16 %v4417
      %v4803 = vunpack.c.h.b16 %v4417
      %v4804 = vunpack.c.l.b16 %v4418
      %v4805 = vunpack.c.h.b16 %v4418
      %v4806 = vunpack.c.l.b16 %v4419
      %v4807 = vunpack.c.h.b16 %v4419
      %v4808 = vunpack.c.l.b16 %v4420
      %v4809 = vunpack.c.h.b16 %v4420
      %v4810 = vunpack.c.l.b16 %v4421
      %v4811 = vunpack.c.h.b16 %v4421
      %v4812 = vunpack.c.l.b16 %v4422
      %v4813 = vunpack.c.h.b16 %v4422
      %v4814 = vunpack.c.l.b16 %v4423
      %v4815 = vunpack.c.h.b16 %v4423
      %v4816 = vunpack.c.l.b16 %v4424
      %v4817 = vunpack.c.h.b16 %v4424
      %v4818 = vunpack.c.l.b16 %v4425
      %v4819 = vunpack.c.h.b16 %v4425
      %v4820 = vpack.c.b16 %v4568, %v4564
      %v4821 = vpack.c.b16 %v4569, %v4565
      %v4822 = vpack.c.b16 %v4570, %v4566
      %v4823 = vpack.c.b16 %v4571, %v4567
      %v4824 = vpack.c.b16 %v4576, %v4572
      %v4825 = vpack.c.b16 %v4577, %v4573
      %v4826 = vpack.c.b16 %v4578, %v4574
      %v4827 = vpack.c.b16 %v4579, %v4575
      %v4828 = vpack.c.b16 %v4584, %v4580
      %v4829 = vpack.c.b16 %v4585, %v4581
      %v4830 = vpack.c.b16 %v4586, %v4582
      %v4831 = vpack.c.b16 %v4587, %v4583
      %v4832 = vpack.c.b16 %v4592, %v4588
      %v4833 = vpack.c.b16 %v4593, %v4589
      %v4834 = vpack.c.b16 %v4594, %v4590
      %v4835 = vpack.c.b16 %v4595, %v4591
      %v4836 = vpack.c.b16 %v4600, %v4596
      %v4837 = vpack.c.b16 %v4601, %v4597
      %v4838 = vpack.c.b16 %v4602, %v4598
      %v4839 = vpack.c.b16 %v4603, %v4599
      %v4840 = vpack.c.b16 %v4608, %v4604
      %v4841 = vpack.c.b16 %v4609, %v4605
      %v4842 = vpack.c.b16 %v4610, %v4606
      %v4843 = vpack.c.b16 %v4611, %v4607
      %v4844 = vpack.c.b16 %v4616, %v4612
      %v4845 = vpack.c.b16 %v4617, %v4613
      %v4846 = vpack.c.b16 %v4618, %v4614
      %v4847 = vpack.c.b16 %v4619, %v4615
      %v4848 = vpack.c.b16 %v4624, %v4620
      %v4849 = vpack.c.b16 %v4625, %v4621
      %v4850 = vpack.c.b16 %v4626, %v4622
      %v4851 = vpack.c.b16 %v4627, %v4623
      %v4852 = vpack.c.b16 %v4632, %v4628
      %v4853 = vpack.c.b16 %v4633, %v4629
      %v4854 = vpack.c.b16 %v4634, %v4630
      %v4855 = vpack.c.b16 %v4635, %v4631
      %v4856 = vpack.c.b16 %v4640, %v4636
      %v4857 = vpack.c.b16 %v4641, %v4637
      %v4858 = vpack.c.b16 %v4642, %v4638
      %v4859 = vpack.c.b16 %v4643, %v4639
      %v4860 = vpack.c.b16 %v4648, %v4644
      %v4861 = vpack.c.b16 %v4649, %v4645
      %v4862 = vpack.c.b16 %v4650, %v4646
      %v4863 = vpack.c.b16 %v4651, %v4647
      %v4864 = vpack.c.b16 %v4656, %v4652
      %v4865 = vpack.c.b16 %v4657, %v4653
      %v4866 = vpack.c.b16 %v4658, %v4654
      %v4867 = vpack.c.b16 %v4659, %v4655
      %v4868 = vpack.c.b16 %v4664, %v4660
      %v4869 = vpack.c.b16 %v4665, %v4661
      %v4870 = vpack.c.b16 %v4666, %v4662
      %v4871 = vpack.c.b16 %v4667, %v4663
      %v4872 = vpack.c.b16 %v4672, %v4668
      %v4873 = vpack.c.b16 %v4673, %v4669
      %v4874 = vpack.c.b16 %v4674, %v4670
      %v4875 = vpack.c.b16 %v4675, %v4671
      %v4876 = vpack.c.b16 %v4680, %v4676
      %v4877 = vpack.c.b16 %v4681, %v4677
      %v4878 = vpack.c.b16 %v4682, %v4678
      %v4879 = vpack.c.b16 %v4683, %v4679
      %v4880 = vpack.c.b16 %v4688, %v4684
      %v4881 = vpack.c.b16 %v4689, %v4685
      %v4882 = vpack.c.b16 %v4690, %v4686
      %v4883 = vpack.c.b16 %v4691, %v4687
      %v4884 = vpack.c.b16 %v4696, %v4692
      %v4885 = vpack.c.b16 %v4697, %v4693
      %v4886 = vpack.c.b16 %v4698, %v4694
      %v4887 = vpack.c.b16 %v4699, %v4695
      %v4888 = vpack.c.b16 %v4704, %v4700
      %v4889 = vpack.c.b16 %v4705, %v4701
      %v4890 = vpack.c.b16 %v4706, %v4702
      %v4891 = vpack.c.b16 %v4707, %v4703
      %v4892 = vpack.c.b16 %v4712, %v4708
      %v4893 = vpack.c.b16 %v4713, %v4709
      %v4894 = vpack.c.b16 %v4714, %v4710
      %v4895 = vpack.c.b16 %v4715, %v4711
      %v4896 = vpack.c.b16 %v4720, %v4716
      %v4897 = vpack.c.b16 %v4721, %v4717
      %v4898 = vpack.c.b16 %v4722, %v4718
      %v4899 = vpack.c.b16 %v4723, %v4719
      %v4900 = vpack.c.b16 %v4728, %v4724
      %v4901 = vpack.c.b16 %v4729, %v4725
      %v4902 = vpack.c.b16 %v4730, %v4726
      %v4903 = vpack.c.b16 %v4731, %v4727
      %v4904 = vpack.c.b16 %v4736, %v4732
      %v4905 = vpack.c.b16 %v4737, %v4733
      %v4906 = vpack.c.b16 %v4738, %v4734
      %v4907 = vpack.c.b16 %v4739, %v4735
      %v4908 = vpack.c.b16 %v4744, %v4740
      %v4909 = vpack.c.b16 %v4745, %v4741
      %v4910 = vpack.c.b16 %v4746, %v4742
      %v4911 = vpack.c.b16 %v4747, %v4743
      %v4912 = vpack.c.b16 %v4752, %v4748
      %v4913 = vpack.c.b16 %v4753, %v4749
      %v4914 = vpack.c.b16 %v4754, %v4750
      %v4915 = vpack.c.b16 %v4755, %v4751
      %v4916 = vpack.c.b16 %v4760, %v4756
      %v4917 = vpack.c.b16 %v4761, %v4757
      %v4918 = vpack.c.b16 %v4762, %v4758
      %v4919 = vpack.c.b16 %v4763, %v4759
      %v4920 = vpack.c.b16 %v4768, %v4764
      %v4921 = vpack.c.b16 %v4769, %v4765
      %v4922 = vpack.c.b16 %v4770, %v4766
      %v4923 = vpack.c.b16 %v4771, %v4767
      %v4924 = vpack.c.b16 %v4776, %v4772
      %v4925 = vpack.c.b16 %v4777, %v4773
      %v4926 = vpack.c.b16 %v4778, %v4774
      %v4927 = vpack.c.b16 %v4779, %v4775
      %v4928 = vpack.c.b16 %v4784, %v4780
      %v4929 = vpack.c.b16 %v4785, %v4781
      %v4930 = vpack.c.b16 %v4786, %v4782
      %v4931 = vpack.c.b16 %v4787, %v4783
      %v4932 = vpack.c.b16 %v4792, %v4788
      %v4933 = vpack.c.b16 %v4793, %v4789
      %v4934 = vpack.c.b16 %v4794, %v4790
      %v4935 = vpack.c.b16 %v4795, %v4791
      %v4936 = vpack.c.b16 %v4800, %v4796
      %v4937 = vpack.c.b16 %v4801, %v4797
      %v4938 = vpack.c.b16 %v4802, %v4798
      %v4939 = vpack.c.b16 %v4803, %v4799
      %v4940 = vpack.c.b16 %v4808, %v4804
      %v4941 = vpack.c.b16 %v4809, %v4805
      %v4942 = vpack.c.b16 %v4810, %v4806
      %v4943 = vpack.c.b16 %v4811, %v4807
      %v4944 = vpack.c.b16 %v4816, %v4812
      %v4945 = vpack.c.b16 %v4817, %v4813
      %v4946 = vpack.c.b16 %v4818, %v4814
      %v4947 = vpack.c.b16 %v4819, %v4815
      %5076 = vmatpush.bf16.msra.mxu0 %v4848
      %5077 = vmatpush.bf16.msra.mxu0 %v4844
      %5078 = vmatpush.bf16.msra.mxu0 %v4840
      %5079 = vmatpush.bf16.msra.mxu0 %v4836
      %5080 = vmatpush.bf16.msra.mxu0 %v4832
      %5081 = vmatpush.bf16.msra.mxu0 %v4828
      %5082 = vmatpush.bf16.msra.mxu0 %v4824
      %5083 = vmatpush.bf16.msra.mxu0 %v4820
      %5084 = vmatmul.bf16.gmra.mxu0 %v4234
      %v5085 = vpop.f32.mrf.mxu0
      %v5086 = vadd.f32 %v4428, %v5085
      %v5087 = vpop.f32.mrf.mxu0
      %v5088 = vadd.f32 %v4428, %v5087
      %5089 = vmatmul.bf16.gmra.mxu0 %v4238
      %v5090 = vpop.f32.mrf.mxu0
      %v5091 = vadd.f32 %v4428, %v5090
      %v5092 = vpop.f32.mrf.mxu0
      %v5093 = vadd.f32 %v4428, %v5092
      %5094 = vmatmul.bf16.gmra.mxu0 %v4242
      %v5095 = vpop.f32.mrf.mxu0
      %v5096 = vadd.f32 %v4428, %v5095
      %v5097 = vpop.f32.mrf.mxu0
      %v5098 = vadd.f32 %v4428, %v5097
      %5099 = vmatmul.bf16.gmra.mxu0 %v4246
      %v5100 = vpop.f32.mrf.mxu0
      %v5101 = vadd.f32 %v4428, %v5100
      %v5102 = vpop.f32.mrf.mxu0
      %v5103 = vadd.f32 %v4428, %v5102
      %5104 = vmatmul.bf16.gmra.mxu0 %v4250
      %v5105 = vpop.f32.mrf.mxu0
      %v5106 = vadd.f32 %v4428, %v5105
      %v5107 = vpop.f32.mrf.mxu0
      %v5108 = vadd.f32 %v4428, %v5107
      %5109 = vmatmul.bf16.gmra.mxu0 %v4254
      %v5110 = vpop.f32.mrf.mxu0
      %v5111 = vadd.f32 %v4428, %v5110
      %v5112 = vpop.f32.mrf.mxu0
      %v5113 = vadd.f32 %v4428, %v5112
      %5114 = vmatmul.bf16.gmra.mxu0 %v4258
      %v5115 = vpop.f32.mrf.mxu0
      %v5116 = vadd.f32 %v4428, %v5115
      %v5117 = vpop.f32.mrf.mxu0
      %v5118 = vadd.f32 %v4428, %v5117
      %5119 = vmatmul.bf16.gmra.mxu0 %v4262
      %v5120 = vpop.f32.mrf.mxu0
      %v5121 = vadd.f32 %v4428, %v5120
      %v5122 = vpop.f32.mrf.mxu0
      %v5123 = vadd.f32 %v4428, %v5122
      %5124 = vmatmul.bf16.gmra.mxu0 %v4266
      %v5125 = vpop.f32.mrf.mxu0
      %v5126 = vadd.f32 %v4428, %v5125
      %v5127 = vpop.f32.mrf.mxu0
      %v5128 = vadd.f32 %v4428, %v5127
      %5129 = vmatmul.bf16.gmra.mxu0 %v4270
      %v5130 = vpop.f32.mrf.mxu0
      %v5131 = vadd.f32 %v4428, %v5130
      %v5132 = vpop.f32.mrf.mxu0
      %v5133 = vadd.f32 %v4428, %v5132
      %5134 = vmatmul.bf16.gmra.mxu0 %v4274
      %v5135 = vpop.f32.mrf.mxu0
      %v5136 = vadd.f32 %v4428, %v5135
      %v5137 = vpop.f32.mrf.mxu0
      %v5138 = vadd.f32 %v4428, %v5137
      %5139 = vmatmul.bf16.gmra.mxu0 %v4278
      %v5140 = vpop.f32.mrf.mxu0
      %v5141 = vadd.f32 %v4428, %v5140
      %v5142 = vpop.f32.mrf.mxu0
      %v5143 = vadd.f32 %v4428, %v5142
      %5144 = vmatmul.bf16.gmra.mxu0 %v4282
      %v5145 = vpop.f32.mrf.mxu0
      %v5146 = vadd.f32 %v4428, %v5145
      %v5147 = vpop.f32.mrf.mxu0
      %v5148 = vadd.f32 %v4428, %v5147
      %5149 = vmatmul.bf16.gmra.mxu0 %v4286
      %v5150 = vpop.f32.mrf.mxu0
      %v5151 = vadd.f32 %v4428, %v5150
      %v5152 = vpop.f32.mrf.mxu0
      %v5153 = vadd.f32 %v4428, %v5152
      %5154 = vmatmul.bf16.gmra.mxu0 %v4290
      %v5155 = vpop.f32.mrf.mxu0
      %v5156 = vadd.f32 %v4428, %v5155
      %v5157 = vpop.f32.mrf.mxu0
      %v5158 = vadd.f32 %v4428, %v5157
      %5159 = vmatmul.bf16.gmra.mxu0 %v4294
      %v5160 = vpop.f32.mrf.mxu0
      %v5161 = vadd.f32 %v4428, %v5160
      %v5162 = vpop.f32.mrf.mxu0
      %v5163 = vadd.f32 %v4428, %v5162
      %5164 = vdwg.mxu0
      %5165 = vmatpush.bf16.msra.mxu0 %v4880
      %5166 = vmatpush.bf16.msra.mxu0 %v4876
      %5167 = vmatpush.bf16.msra.mxu0 %v4872
      %5168 = vmatpush.bf16.msra.mxu0 %v4868
      %5169 = vmatpush.bf16.msra.mxu0 %v4864
      %5170 = vmatpush.bf16.msra.mxu0 %v4860
      %5171 = vmatpush.bf16.msra.mxu0 %v4856
      %5172 = vmatpush.bf16.msra.mxu0 %v4852
      %5173 = vmatmul.bf16.gmra.mxu0 %v4235
      %v5174 = vpop.f32.mrf.mxu0
      %v5175 = vadd.f32 %v5086, %v5174
      %v5176 = vpop.f32.mrf.mxu0
      %v5177 = vadd.f32 %v5088, %v5176
      %5178 = vmatmul.bf16.gmra.mxu0 %v4239
      %v5179 = vpop.f32.mrf.mxu0
      %v5180 = vadd.f32 %v5091, %v5179
      %v5181 = vpop.f32.mrf.mxu0
      %v5182 = vadd.f32 %v5093, %v5181
      %5183 = vmatmul.bf16.gmra.mxu0 %v4243
      %v5184 = vpop.f32.mrf.mxu0
      %v5185 = vadd.f32 %v5096, %v5184
      %v5186 = vpop.f32.mrf.mxu0
      %v5187 = vadd.f32 %v5098, %v5186
      %5188 = vmatmul.bf16.gmra.mxu0 %v4247
      %v5189 = vpop.f32.mrf.mxu0
      %v5190 = vadd.f32 %v5101, %v5189
      %v5191 = vpop.f32.mrf.mxu0
      %v5192 = vadd.f32 %v5103, %v5191
      %5193 = vmatmul.bf16.gmra.mxu0 %v4251
      %v5194 = vpop.f32.mrf.mxu0
      %v5195 = vadd.f32 %v5106, %v5194
      %v5196 = vpop.f32.mrf.mxu0
      %v5197 = vadd.f32 %v5108, %v5196
      %5198 = vmatmul.bf16.gmra.mxu0 %v4255
      %v5199 = vpop.f32.mrf.mxu0
      %v5200 = vadd.f32 %v5111, %v5199
      %v5201 = vpop.f32.mrf.mxu0
      %v5202 = vadd.f32 %v5113, %v5201
      %5203 = vmatmul.bf16.gmra.mxu0 %v4259
      %v5204 = vpop.f32.mrf.mxu0
      %v5205 = vadd.f32 %v5116, %v5204
      %v5206 = vpop.f32.mrf.mxu0
      %v5207 = vadd.f32 %v5118, %v5206
      %5208 = vmatmul.bf16.gmra.mxu0 %v4263
      %v5209 = vpop.f32.mrf.mxu0
      %v5210 = vadd.f32 %v5121, %v5209
      %v5211 = vpop.f32.mrf.mxu0
      %v5212 = vadd.f32 %v5123, %v5211
      %5213 = vmatmul.bf16.gmra.mxu0 %v4267
      %v5214 = vpop.f32.mrf.mxu0
      %v5215 = vadd.f32 %v5126, %v5214
      %v5216 = vpop.f32.mrf.mxu0
      %v5217 = vadd.f32 %v5128, %v5216
      %5218 = vmatmul.bf16.gmra.mxu0 %v4271
      %v5219 = vpop.f32.mrf.mxu0
      %v5220 = vadd.f32 %v5131, %v5219
      %v5221 = vpop.f32.mrf.mxu0
      %v5222 = vadd.f32 %v5133, %v5221
      %5223 = vmatmul.bf16.gmra.mxu0 %v4275
      %v5224 = vpop.f32.mrf.mxu0
      %v5225 = vadd.f32 %v5136, %v5224
      %v5226 = vpop.f32.mrf.mxu0
      %v5227 = vadd.f32 %v5138, %v5226
      %5228 = vmatmul.bf16.gmra.mxu0 %v4279
      %v5229 = vpop.f32.mrf.mxu0
      %v5230 = vadd.f32 %v5141, %v5229
      %v5231 = vpop.f32.mrf.mxu0
      %v5232 = vadd.f32 %v5143, %v5231
      %5233 = vmatmul.bf16.gmra.mxu0 %v4283
      %v5234 = vpop.f32.mrf.mxu0
      %v5235 = vadd.f32 %v5146, %v5234
      %v5236 = vpop.f32.mrf.mxu0
      %v5237 = vadd.f32 %v5148, %v5236
      %5238 = vmatmul.bf16.gmra.mxu0 %v4287
      %v5239 = vpop.f32.mrf.mxu0
      %v5240 = vadd.f32 %v5151, %v5239
      %v5241 = vpop.f32.mrf.mxu0
      %v5242 = vadd.f32 %v5153, %v5241
      %5243 = vmatmul.bf16.gmra.mxu0 %v4291
      %v5244 = vpop.f32.mrf.mxu0
      %v5245 = vadd.f32 %v5156, %v5244
      %v5246 = vpop.f32.mrf.mxu0
      %v5247 = vadd.f32 %v5158, %v5246
      %5248 = vmatmul.bf16.gmra.mxu0 %v4295
      %v5249 = vpop.f32.mrf.mxu0
      %v5250 = vadd.f32 %v5161, %v5249
      %v5251 = vpop.f32.mrf.mxu0
      %v5252 = vadd.f32 %v5163, %v5251
      %5253 = vdwg.mxu0
      %5254 = vmatpush.bf16.msra.mxu0 %v4912
      %5255 = vmatpush.bf16.msra.mxu0 %v4908
      %5256 = vmatpush.bf16.msra.mxu0 %v4904
      %5257 = vmatpush.bf16.msra.mxu0 %v4900
      %5258 = vmatpush.bf16.msra.mxu0 %v4896
      %5259 = vmatpush.bf16.msra.mxu0 %v4892
      %5260 = vmatpush.bf16.msra.mxu0 %v4888
      %5261 = vmatpush.bf16.msra.mxu0 %v4884
      %5262 = vmatmul.bf16.gmra.mxu0 %v4236
      %v5263 = vpop.f32.mrf.mxu0
      %v5264 = vadd.f32 %v5175, %v5263
      %v5265 = vpop.f32.mrf.mxu0
      %v5266 = vadd.f32 %v5177, %v5265
      %5267 = vmatmul.bf16.gmra.mxu0 %v4240
      %v5268 = vpop.f32.mrf.mxu0
      %v5269 = vadd.f32 %v5180, %v5268
      %v5270 = vpop.f32.mrf.mxu0
      %v5271 = vadd.f32 %v5182, %v5270
      %5272 = vmatmul.bf16.gmra.mxu0 %v4244
      %v5273 = vpop.f32.mrf.mxu0
      %v5274 = vadd.f32 %v5185, %v5273
      %v5275 = vpop.f32.mrf.mxu0
      %v5276 = vadd.f32 %v5187, %v5275
      %5277 = vmatmul.bf16.gmra.mxu0 %v4248
      %v5278 = vpop.f32.mrf.mxu0
      %v5279 = vadd.f32 %v5190, %v5278
      %v5280 = vpop.f32.mrf.mxu0
      %v5281 = vadd.f32 %v5192, %v5280
      %5282 = vmatmul.bf16.gmra.mxu0 %v4252
      %v5283 = vpop.f32.mrf.mxu0
      %v5284 = vadd.f32 %v5195, %v5283
      %v5285 = vpop.f32.mrf.mxu0
      %v5286 = vadd.f32 %v5197, %v5285
      %5287 = vmatmul.bf16.gmra.mxu0 %v4256
      %v5288 = vpop.f32.mrf.mxu0
      %v5289 = vadd.f32 %v5200, %v5288
      %v5290 = vpop.f32.mrf.mxu0
      %v5291 = vadd.f32 %v5202, %v5290
      %5292 = vmatmul.bf16.gmra.mxu0 %v4260
      %v5293 = vpop.f32.mrf.mxu0
      %v5294 = vadd.f32 %v5205, %v5293
      %v5295 = vpop.f32.mrf.mxu0
      %v5296 = vadd.f32 %v5207, %v5295
      %5297 = vmatmul.bf16.gmra.mxu0 %v4264
      %v5298 = vpop.f32.mrf.mxu0
      %v5299 = vadd.f32 %v5210, %v5298
      %v5300 = vpop.f32.mrf.mxu0
      %v5301 = vadd.f32 %v5212, %v5300
      %5302 = vmatmul.bf16.gmra.mxu0 %v4268
      %v5303 = vpop.f32.mrf.mxu0
      %v5304 = vadd.f32 %v5215, %v5303
      %v5305 = vpop.f32.mrf.mxu0
      %v5306 = vadd.f32 %v5217, %v5305
      %5307 = vmatmul.bf16.gmra.mxu0 %v4272
      %v5308 = vpop.f32.mrf.mxu0
      %v5309 = vadd.f32 %v5220, %v5308
      %v5310 = vpop.f32.mrf.mxu0
      %v5311 = vadd.f32 %v5222, %v5310
      %5312 = vmatmul.bf16.gmra.mxu0 %v4276
      %v5313 = vpop.f32.mrf.mxu0
      %v5314 = vadd.f32 %v5225, %v5313
      %v5315 = vpop.f32.mrf.mxu0
      %v5316 = vadd.f32 %v5227, %v5315
      %5317 = vmatmul.bf16.gmra.mxu0 %v4280
      %v5318 = vpop.f32.mrf.mxu0
      %v5319 = vadd.f32 %v5230, %v5318
      %v5320 = vpop.f32.mrf.mxu0
      %v5321 = vadd.f32 %v5232, %v5320
      %5322 = vmatmul.bf16.gmra.mxu0 %v4284
      %v5323 = vpop.f32.mrf.mxu0
      %v5324 = vadd.f32 %v5235, %v5323
      %v5325 = vpop.f32.mrf.mxu0
      %v5326 = vadd.f32 %v5237, %v5325
      %5327 = vmatmul.bf16.gmra.mxu0 %v4288
      %v5328 = vpop.f32.mrf.mxu0
      %v5329 = vadd.f32 %v5240, %v5328
      %v5330 = vpop.f32.mrf.mxu0
      %v5331 = vadd.f32 %v5242, %v5330
      %5332 = vmatmul.bf16.gmra.mxu0 %v4292
      %v5333 = vpop.f32.mrf.mxu0
      %v5334 = vadd.f32 %v5245, %v5333
      %v5335 = vpop.f32.mrf.mxu0
      %v5336 = vadd.f32 %v5247, %v5335
      %5337 = vmatmul.bf16.gmra.mxu0 %v4296
      %v5338 = vpop.f32.mrf.mxu0
      %v5339 = vadd.f32 %v5250, %v5338
      %v5340 = vpop.f32.mrf.mxu0
      %v5341 = vadd.f32 %v5252, %v5340
      %5342 = vdwg.mxu0
      %5343 = vmatpush.bf16.msra.mxu0 %v4944
      %5344 = vmatpush.bf16.msra.mxu0 %v4940
      %5345 = vmatpush.bf16.msra.mxu0 %v4936
      %5346 = vmatpush.bf16.msra.mxu0 %v4932
      %5347 = vmatpush.bf16.msra.mxu0 %v4928
      %5348 = vmatpush.bf16.msra.mxu0 %v4924
      %5349 = vmatpush.bf16.msra.mxu0 %v4920
      %5350 = vmatpush.bf16.msra.mxu0 %v4916
      %5351 = vmatmul.bf16.gmra.mxu0 %v4237
      %v5352 = vpop.f32.mrf.mxu0
      %v5353 = vadd.f32 %v5264, %v5352
      %v5354 = vpop.f32.mrf.mxu0
      %v5355 = vadd.f32 %v5266, %v5354
      %5356 = vmatmul.bf16.gmra.mxu0 %v4241
      %v5357 = vpop.f32.mrf.mxu0
      %v5358 = vadd.f32 %v5269, %v5357
      %v5359 = vpop.f32.mrf.mxu0
      %v5360 = vadd.f32 %v5271, %v5359
      %5361 = vmatmul.bf16.gmra.mxu0 %v4245
      %v5362 = vpop.f32.mrf.mxu0
      %v5363 = vadd.f32 %v5274, %v5362
      %v5364 = vpop.f32.mrf.mxu0
      %v5365 = vadd.f32 %v5276, %v5364
      %5366 = vmatmul.bf16.gmra.mxu0 %v4249
      %v5367 = vpop.f32.mrf.mxu0
      %v5368 = vadd.f32 %v5279, %v5367
      %v5369 = vpop.f32.mrf.mxu0
      %v5370 = vadd.f32 %v5281, %v5369
      %5371 = vmatmul.bf16.gmra.mxu0 %v4253
      %v5372 = vpop.f32.mrf.mxu0
      %v5373 = vadd.f32 %v5284, %v5372
      %v5374 = vpop.f32.mrf.mxu0
      %v5375 = vadd.f32 %v5286, %v5374
      %5376 = vmatmul.bf16.gmra.mxu0 %v4257
      %v5377 = vpop.f32.mrf.mxu0
      %v5378 = vadd.f32 %v5289, %v5377
      %v5379 = vpop.f32.mrf.mxu0
      %v5380 = vadd.f32 %v5291, %v5379
      %5381 = vmatmul.bf16.gmra.mxu0 %v4261
      %v5382 = vpop.f32.mrf.mxu0
      %v5383 = vadd.f32 %v5294, %v5382
      %v5384 = vpop.f32.mrf.mxu0
      %v5385 = vadd.f32 %v5296, %v5384
      %5386 = vmatmul.bf16.gmra.mxu0 %v4265
      %v5387 = vpop.f32.mrf.mxu0
      %v5388 = vadd.f32 %v5299, %v5387
      %v5389 = vpop.f32.mrf.mxu0
      %v5390 = vadd.f32 %v5301, %v5389
      %5391 = vmatmul.bf16.gmra.mxu0 %v4269
      %v5392 = vpop.f32.mrf.mxu0
      %v5393 = vadd.f32 %v5304, %v5392
      %v5394 = vpop.f32.mrf.mxu0
      %v5395 = vadd.f32 %v5306, %v5394
      %5396 = vmatmul.bf16.gmra.mxu0 %v4273
      %v5397 = vpop.f32.mrf.mxu0
      %v5398 = vadd.f32 %v5309, %v5397
      %v5399 = vpop.f32.mrf.mxu0
      %v5400 = vadd.f32 %v5311, %v5399
      %5401 = vmatmul.bf16.gmra.mxu0 %v4277
      %v5402 = vpop.f32.mrf.mxu0
      %v5403 = vadd.f32 %v5314, %v5402
      %v5404 = vpop.f32.mrf.mxu0
      %v5405 = vadd.f32 %v5316, %v5404
      %5406 = vmatmul.bf16.gmra.mxu0 %v4281
      %v5407 = vpop.f32.mrf.mxu0
      %v5408 = vadd.f32 %v5319, %v5407
      %v5409 = vpop.f32.mrf.mxu0
      %v5410 = vadd.f32 %v5321, %v5409
      %5411 = vmatmul.bf16.gmra.mxu0 %v4285
      %v5412 = vpop.f32.mrf.mxu0
      %v5413 = vadd.f32 %v5324, %v5412
      %v5414 = vpop.f32.mrf.mxu0
      %v5415 = vadd.f32 %v5326, %v5414
      %5416 = vmatmul.bf16.gmra.mxu0 %v4289
      %v5417 = vpop.f32.mrf.mxu0
      %v5418 = vadd.f32 %v5329, %v5417
      %v5419 = vpop.f32.mrf.mxu0
      %v5420 = vadd.f32 %v5331, %v5419
      %5421 = vmatmul.bf16.gmra.mxu0 %v4293
      %v5422 = vpop.f32.mrf.mxu0
      %v5423 = vadd.f32 %v5334, %v5422
      %v5424 = vpop.f32.mrf.mxu0
      %v5425 = vadd.f32 %v5336, %v5424
      %5426 = vmatmul.bf16.gmra.mxu0 %v4297
      %v5427 = vpop.f32.mrf.mxu0
      %v5428 = vadd.f32 %v5339, %v5427
      %v5429 = vpop.f32.mrf.mxu0
      %v5430 = vadd.f32 %v5341, %v5429
      %5431 = vdwg.mxu0
      %5432 = vmatpush.bf16.msra.mxu0 %v4849
      %5433 = vmatpush.bf16.msra.mxu0 %v4845
      %5434 = vmatpush.bf16.msra.mxu0 %v4841
      %5435 = vmatpush.bf16.msra.mxu0 %v4837
      %5436 = vmatpush.bf16.msra.mxu0 %v4833
      %5437 = vmatpush.bf16.msra.mxu0 %v4829
      %5438 = vmatpush.bf16.msra.mxu0 %v4825
      %5439 = vmatpush.bf16.msra.mxu0 %v4821
      %5440 = vmatmul.bf16.gmra.mxu0 %v4234
      %v5441 = vpop.f32.mrf.mxu0
      %v5442 = vadd.f32 %v4429, %v5441
      %v5443 = vpop.f32.mrf.mxu0
      %v5444 = vadd.f32 %v4429, %v5443
      %5445 = vmatmul.bf16.gmra.mxu0 %v4238
      %v5446 = vpop.f32.mrf.mxu0
      %v5447 = vadd.f32 %v4429, %v5446
      %v5448 = vpop.f32.mrf.mxu0
      %v5449 = vadd.f32 %v4429, %v5448
      %5450 = vmatmul.bf16.gmra.mxu0 %v4242
      %v5451 = vpop.f32.mrf.mxu0
      %v5452 = vadd.f32 %v4429, %v5451
      %v5453 = vpop.f32.mrf.mxu0
      %v5454 = vadd.f32 %v4429, %v5453
      %5455 = vmatmul.bf16.gmra.mxu0 %v4246
      %v5456 = vpop.f32.mrf.mxu0
      %v5457 = vadd.f32 %v4429, %v5456
      %v5458 = vpop.f32.mrf.mxu0
      %v5459 = vadd.f32 %v4429, %v5458
      %5460 = vmatmul.bf16.gmra.mxu0 %v4250
      %v5461 = vpop.f32.mrf.mxu0
      %v5462 = vadd.f32 %v4429, %v5461
      %v5463 = vpop.f32.mrf.mxu0
      %v5464 = vadd.f32 %v4429, %v5463
      %5465 = vmatmul.bf16.gmra.mxu0 %v4254
      %v5466 = vpop.f32.mrf.mxu0
      %v5467 = vadd.f32 %v4429, %v5466
      %v5468 = vpop.f32.mrf.mxu0
      %v5469 = vadd.f32 %v4429, %v5468
      %5470 = vmatmul.bf16.gmra.mxu0 %v4258
      %v5471 = vpop.f32.mrf.mxu0
      %v5472 = vadd.f32 %v4429, %v5471
      %v5473 = vpop.f32.mrf.mxu0
      %v5474 = vadd.f32 %v4429, %v5473
      %5475 = vmatmul.bf16.gmra.mxu0 %v4262
      %v5476 = vpop.f32.mrf.mxu0
      %v5477 = vadd.f32 %v4429, %v5476
      %v5478 = vpop.f32.mrf.mxu0
      %v5479 = vadd.f32 %v4429, %v5478
      %5480 = vmatmul.bf16.gmra.mxu0 %v4266
      %v5481 = vpop.f32.mrf.mxu0
      %v5482 = vadd.f32 %v4429, %v5481
      %v5483 = vpop.f32.mrf.mxu0
      %v5484 = vadd.f32 %v4429, %v5483
      %5485 = vmatmul.bf16.gmra.mxu0 %v4270
      %v5486 = vpop.f32.mrf.mxu0
      %v5487 = vadd.f32 %v4429, %v5486
      %v5488 = vpop.f32.mrf.mxu0
      %v5489 = vadd.f32 %v4429, %v5488
      %5490 = vmatmul.bf16.gmra.mxu0 %v4274
      %v5491 = vpop.f32.mrf.mxu0
      %v5492 = vadd.f32 %v4429, %v5491
      %v5493 = vpop.f32.mrf.mxu0
      %v5494 = vadd.f32 %v4429, %v5493
      %5495 = vmatmul.bf16.gmra.mxu0 %v4278
      %v5496 = vpop.f32.mrf.mxu0
      %v5497 = vadd.f32 %v4429, %v5496
      %v5498 = vpop.f32.mrf.mxu0
      %v5499 = vadd.f32 %v4429, %v5498
      %5500 = vmatmul.bf16.gmra.mxu0 %v4282
      %v5501 = vpop.f32.mrf.mxu0
      %v5502 = vadd.f32 %v4429, %v5501
      %v5503 = vpop.f32.mrf.mxu0
      %v5504 = vadd.f32 %v4429, %v5503
      %5505 = vmatmul.bf16.gmra.mxu0 %v4286
      %v5506 = vpop.f32.mrf.mxu0
      %v5507 = vadd.f32 %v4429, %v5506
      %v5508 = vpop.f32.mrf.mxu0
      %v5509 = vadd.f32 %v4429, %v5508
      %5510 = vmatmul.bf16.gmra.mxu0 %v4290
      %v5511 = vpop.f32.mrf.mxu0
      %v5512 = vadd.f32 %v4429, %v5511
      %v5513 = vpop.f32.mrf.mxu0
      %v5514 = vadd.f32 %v4429, %v5513
      %5515 = vmatmul.bf16.gmra.mxu0 %v4294
      %v5516 = vpop.f32.mrf.mxu0
      %v5517 = vadd.f32 %v4429, %v5516
      %v5518 = vpop.f32.mrf.mxu0
      %v5519 = vadd.f32 %v4429, %v5518
      %5520 = vdwg.mxu0
      %5521 = vmatpush.bf16.msra.mxu0 %v4881
      %5522 = vmatpush.bf16.msra.mxu0 %v4877
      %5523 = vmatpush.bf16.msra.mxu0 %v4873
      %5524 = vmatpush.bf16.msra.mxu0 %v4869
      %5525 = vmatpush.bf16.msra.mxu0 %v4865
      %5526 = vmatpush.bf16.msra.mxu0 %v4861
      %5527 = vmatpush.bf16.msra.mxu0 %v4857
      %5528 = vmatpush.bf16.msra.mxu0 %v4853
      %5529 = vmatmul.bf16.gmra.mxu0 %v4235
      %v5530 = vpop.f32.mrf.mxu0
      %v5531 = vadd.f32 %v5442, %v5530
      %v5532 = vpop.f32.mrf.mxu0
      %v5533 = vadd.f32 %v5444, %v5532
      %5534 = vmatmul.bf16.gmra.mxu0 %v4239
      %v5535 = vpop.f32.mrf.mxu0
      %v5536 = vadd.f32 %v5447, %v5535
      %v5537 = vpop.f32.mrf.mxu0
      %v5538 = vadd.f32 %v5449, %v5537
      %5539 = vmatmul.bf16.gmra.mxu0 %v4243
      %v5540 = vpop.f32.mrf.mxu0
      %v5541 = vadd.f32 %v5452, %v5540
      %v5542 = vpop.f32.mrf.mxu0
      %v5543 = vadd.f32 %v5454, %v5542
      %5544 = vmatmul.bf16.gmra.mxu0 %v4247
      %v5545 = vpop.f32.mrf.mxu0
      %v5546 = vadd.f32 %v5457, %v5545
      %v5547 = vpop.f32.mrf.mxu0
      %v5548 = vadd.f32 %v5459, %v5547
      %5549 = vmatmul.bf16.gmra.mxu0 %v4251
      %v5550 = vpop.f32.mrf.mxu0
      %v5551 = vadd.f32 %v5462, %v5550
      %v5552 = vpop.f32.mrf.mxu0
      %v5553 = vadd.f32 %v5464, %v5552
      %5554 = vmatmul.bf16.gmra.mxu0 %v4255
      %v5555 = vpop.f32.mrf.mxu0
      %v5556 = vadd.f32 %v5467, %v5555
      %v5557 = vpop.f32.mrf.mxu0
      %v5558 = vadd.f32 %v5469, %v5557
      %5559 = vmatmul.bf16.gmra.mxu0 %v4259
      %v5560 = vpop.f32.mrf.mxu0
      %v5561 = vadd.f32 %v5472, %v5560
      %v5562 = vpop.f32.mrf.mxu0
      %v5563 = vadd.f32 %v5474, %v5562
      %5564 = vmatmul.bf16.gmra.mxu0 %v4263
      %v5565 = vpop.f32.mrf.mxu0
      %v5566 = vadd.f32 %v5477, %v5565
      %v5567 = vpop.f32.mrf.mxu0
      %v5568 = vadd.f32 %v5479, %v5567
      %5569 = vmatmul.bf16.gmra.mxu0 %v4267
      %v5570 = vpop.f32.mrf.mxu0
      %v5571 = vadd.f32 %v5482, %v5570
      %v5572 = vpop.f32.mrf.mxu0
      %v5573 = vadd.f32 %v5484, %v5572
      %5574 = vmatmul.bf16.gmra.mxu0 %v4271
      %v5575 = vpop.f32.mrf.mxu0
      %v5576 = vadd.f32 %v5487, %v5575
      %v5577 = vpop.f32.mrf.mxu0
      %v5578 = vadd.f32 %v5489, %v5577
      %5579 = vmatmul.bf16.gmra.mxu0 %v4275
      %v5580 = vpop.f32.mrf.mxu0
      %v5581 = vadd.f32 %v5492, %v5580
      %v5582 = vpop.f32.mrf.mxu0
      %v5583 = vadd.f32 %v5494, %v5582
      %5584 = vmatmul.bf16.gmra.mxu0 %v4279
      %v5585 = vpop.f32.mrf.mxu0
      %v5586 = vadd.f32 %v5497, %v5585
      %v5587 = vpop.f32.mrf.mxu0
      %v5588 = vadd.f32 %v5499, %v5587
      %5589 = vmatmul.bf16.gmra.mxu0 %v4283
      %v5590 = vpop.f32.mrf.mxu0
      %v5591 = vadd.f32 %v5502, %v5590
      %v5592 = vpop.f32.mrf.mxu0
      %v5593 = vadd.f32 %v5504, %v5592
      %5594 = vmatmul.bf16.gmra.mxu0 %v4287
      %v5595 = vpop.f32.mrf.mxu0
      %v5596 = vadd.f32 %v5507, %v5595
      %v5597 = vpop.f32.mrf.mxu0
      %v5598 = vadd.f32 %v5509, %v5597
      %5599 = vmatmul.bf16.gmra.mxu0 %v4291
      %v5600 = vpop.f32.mrf.mxu0
      %v5601 = vadd.f32 %v5512, %v5600
      %v5602 = vpop.f32.mrf.mxu0
      %v5603 = vadd.f32 %v5514, %v5602
      %5604 = vmatmul.bf16.gmra.mxu0 %v4295
      %v5605 = vpop.f32.mrf.mxu0
      %v5606 = vadd.f32 %v5517, %v5605
      %v5607 = vpop.f32.mrf.mxu0
      %v5608 = vadd.f32 %v5519, %v5607
      %5609 = vdwg.mxu0
      %5610 = vmatpush.bf16.msra.mxu0 %v4913
      %5611 = vmatpush.bf16.msra.mxu0 %v4909
      %5612 = vmatpush.bf16.msra.mxu0 %v4905
      %5613 = vmatpush.bf16.msra.mxu0 %v4901
      %5614 = vmatpush.bf16.msra.mxu0 %v4897
      %5615 = vmatpush.bf16.msra.mxu0 %v4893
      %5616 = vmatpush.bf16.msra.mxu0 %v4889
      %5617 = vmatpush.bf16.msra.mxu0 %v4885
      %5618 = vmatmul.bf16.gmra.mxu0 %v4236
      %v5619 = vpop.f32.mrf.mxu0
      %v5620 = vadd.f32 %v5531, %v5619
      %v5621 = vpop.f32.mrf.mxu0
      %v5622 = vadd.f32 %v5533, %v5621
      %5623 = vmatmul.bf16.gmra.mxu0 %v4240
      %v5624 = vpop.f32.mrf.mxu0
      %v5625 = vadd.f32 %v5536, %v5624
      %v5626 = vpop.f32.mrf.mxu0
      %v5627 = vadd.f32 %v5538, %v5626
      %5628 = vmatmul.bf16.gmra.mxu0 %v4244
      %v5629 = vpop.f32.mrf.mxu0
      %v5630 = vadd.f32 %v5541, %v5629
      %v5631 = vpop.f32.mrf.mxu0
      %v5632 = vadd.f32 %v5543, %v5631
      %5633 = vmatmul.bf16.gmra.mxu0 %v4248
      %v5634 = vpop.f32.mrf.mxu0
      %v5635 = vadd.f32 %v5546, %v5634
      %v5636 = vpop.f32.mrf.mxu0
      %v5637 = vadd.f32 %v5548, %v5636
      %5638 = vmatmul.bf16.gmra.mxu0 %v4252
      %v5639 = vpop.f32.mrf.mxu0
      %v5640 = vadd.f32 %v5551, %v5639
      %v5641 = vpop.f32.mrf.mxu0
      %v5642 = vadd.f32 %v5553, %v5641
      %5643 = vmatmul.bf16.gmra.mxu0 %v4256
      %v5644 = vpop.f32.mrf.mxu0
      %v5645 = vadd.f32 %v5556, %v5644
      %v5646 = vpop.f32.mrf.mxu0
      %v5647 = vadd.f32 %v5558, %v5646
      %5648 = vmatmul.bf16.gmra.mxu0 %v4260
      %v5649 = vpop.f32.mrf.mxu0
      %v5650 = vadd.f32 %v5561, %v5649
      %v5651 = vpop.f32.mrf.mxu0
      %v5652 = vadd.f32 %v5563, %v5651
      %5653 = vmatmul.bf16.gmra.mxu0 %v4264
      %v5654 = vpop.f32.mrf.mxu0
      %v5655 = vadd.f32 %v5566, %v5654
      %v5656 = vpop.f32.mrf.mxu0
      %v5657 = vadd.f32 %v5568, %v5656
      %5658 = vmatmul.bf16.gmra.mxu0 %v4268
      %v5659 = vpop.f32.mrf.mxu0
      %v5660 = vadd.f32 %v5571, %v5659
      %v5661 = vpop.f32.mrf.mxu0
      %v5662 = vadd.f32 %v5573, %v5661
      %5663 = vmatmul.bf16.gmra.mxu0 %v4272
      %v5664 = vpop.f32.mrf.mxu0
      %v5665 = vadd.f32 %v5576, %v5664
      %v5666 = vpop.f32.mrf.mxu0
      %v5667 = vadd.f32 %v5578, %v5666
      %5668 = vmatmul.bf16.gmra.mxu0 %v4276
      %v5669 = vpop.f32.mrf.mxu0
      %v5670 = vadd.f32 %v5581, %v5669
      %v5671 = vpop.f32.mrf.mxu0
      %v5672 = vadd.f32 %v5583, %v5671
      %5673 = vmatmul.bf16.gmra.mxu0 %v4280
      %v5674 = vpop.f32.mrf.mxu0
      %v5675 = vadd.f32 %v5586, %v5674
      %v5676 = vpop.f32.mrf.mxu0
      %v5677 = vadd.f32 %v5588, %v5676
      %5678 = vmatmul.bf16.gmra.mxu0 %v4284
      %v5679 = vpop.f32.mrf.mxu0
      %v5680 = vadd.f32 %v5591, %v5679
      %v5681 = vpop.f32.mrf.mxu0
      %v5682 = vadd.f32 %v5593, %v5681
      %5683 = vmatmul.bf16.gmra.mxu0 %v4288
      %v5684 = vpop.f32.mrf.mxu0
      %v5685 = vadd.f32 %v5596, %v5684
      %v5686 = vpop.f32.mrf.mxu0
      %v5687 = vadd.f32 %v5598, %v5686
      %5688 = vmatmul.bf16.gmra.mxu0 %v4292
      %v5689 = vpop.f32.mrf.mxu0
      %v5690 = vadd.f32 %v5601, %v5689
      %v5691 = vpop.f32.mrf.mxu0
      %v5692 = vadd.f32 %v5603, %v5691
      %5693 = vmatmul.bf16.gmra.mxu0 %v4296
      %v5694 = vpop.f32.mrf.mxu0
      %v5695 = vadd.f32 %v5606, %v5694
      %v5696 = vpop.f32.mrf.mxu0
      %v5697 = vadd.f32 %v5608, %v5696
      %5698 = vdwg.mxu0
      %5699 = vmatpush.bf16.msra.mxu0 %v4945
      %5700 = vmatpush.bf16.msra.mxu0 %v4941
      %5701 = vmatpush.bf16.msra.mxu0 %v4937
      %5702 = vmatpush.bf16.msra.mxu0 %v4933
      %5703 = vmatpush.bf16.msra.mxu0 %v4929
      %5704 = vmatpush.bf16.msra.mxu0 %v4925
      %5705 = vmatpush.bf16.msra.mxu0 %v4921
      %5706 = vmatpush.bf16.msra.mxu0 %v4917
      %5707 = vmatmul.bf16.gmra.mxu0 %v4237
      %v5708 = vpop.f32.mrf.mxu0
      %v5709 = vadd.f32 %v5620, %v5708
      %v5710 = vpop.f32.mrf.mxu0
      %v5711 = vadd.f32 %v5622, %v5710
      %5712 = vmatmul.bf16.gmra.mxu0 %v4241
      %v5713 = vpop.f32.mrf.mxu0
      %v5714 = vadd.f32 %v5625, %v5713
      %v5715 = vpop.f32.mrf.mxu0
      %v5716 = vadd.f32 %v5627, %v5715
      %5717 = vmatmul.bf16.gmra.mxu0 %v4245
      %v5718 = vpop.f32.mrf.mxu0
      %v5719 = vadd.f32 %v5630, %v5718
      %v5720 = vpop.f32.mrf.mxu0
      %v5721 = vadd.f32 %v5632, %v5720
      %5722 = vmatmul.bf16.gmra.mxu0 %v4249
      %v5723 = vpop.f32.mrf.mxu0
      %v5724 = vadd.f32 %v5635, %v5723
      %v5725 = vpop.f32.mrf.mxu0
      %v5726 = vadd.f32 %v5637, %v5725
      %5727 = vmatmul.bf16.gmra.mxu0 %v4253
      %v5728 = vpop.f32.mrf.mxu0
      %v5729 = vadd.f32 %v5640, %v5728
      %v5730 = vpop.f32.mrf.mxu0
      %v5731 = vadd.f32 %v5642, %v5730
      %5732 = vmatmul.bf16.gmra.mxu0 %v4257
      %v5733 = vpop.f32.mrf.mxu0
      %v5734 = vadd.f32 %v5645, %v5733
      %v5735 = vpop.f32.mrf.mxu0
      %v5736 = vadd.f32 %v5647, %v5735
      %5737 = vmatmul.bf16.gmra.mxu0 %v4261
      %v5738 = vpop.f32.mrf.mxu0
      %v5739 = vadd.f32 %v5650, %v5738
      %v5740 = vpop.f32.mrf.mxu0
      %v5741 = vadd.f32 %v5652, %v5740
      %5742 = vmatmul.bf16.gmra.mxu0 %v4265
      %v5743 = vpop.f32.mrf.mxu0
      %v5744 = vadd.f32 %v5655, %v5743
      %v5745 = vpop.f32.mrf.mxu0
      %v5746 = vadd.f32 %v5657, %v5745
      %5747 = vmatmul.bf16.gmra.mxu0 %v4269
      %v5748 = vpop.f32.mrf.mxu0
      %v5749 = vadd.f32 %v5660, %v5748
      %v5750 = vpop.f32.mrf.mxu0
      %v5751 = vadd.f32 %v5662, %v5750
      %5752 = vmatmul.bf16.gmra.mxu0 %v4273
      %v5753 = vpop.f32.mrf.mxu0
      %v5754 = vadd.f32 %v5665, %v5753
      %v5755 = vpop.f32.mrf.mxu0
      %v5756 = vadd.f32 %v5667, %v5755
      %5757 = vmatmul.bf16.gmra.mxu0 %v4277
      %v5758 = vpop.f32.mrf.mxu0
      %v5759 = vadd.f32 %v5670, %v5758
      %v5760 = vpop.f32.mrf.mxu0
      %v5761 = vadd.f32 %v5672, %v5760
      %5762 = vmatmul.bf16.gmra.mxu0 %v4281
      %v5763 = vpop.f32.mrf.mxu0
      %v5764 = vadd.f32 %v5675, %v5763
      %v5765 = vpop.f32.mrf.mxu0
      %v5766 = vadd.f32 %v5677, %v5765
      %5767 = vmatmul.bf16.gmra.mxu0 %v4285
      %v5768 = vpop.f32.mrf.mxu0
      %v5769 = vadd.f32 %v5680, %v5768
      %v5770 = vpop.f32.mrf.mxu0
      %v5771 = vadd.f32 %v5682, %v5770
      %5772 = vmatmul.bf16.gmra.mxu0 %v4289
      %v5773 = vpop.f32.mrf.mxu0
      %v5774 = vadd.f32 %v5685, %v5773
      %v5775 = vpop.f32.mrf.mxu0
      %v5776 = vadd.f32 %v5687, %v5775
      %5777 = vmatmul.bf16.gmra.mxu0 %v4293
      %v5778 = vpop.f32.mrf.mxu0
      %v5779 = vadd.f32 %v5690, %v5778
      %v5780 = vpop.f32.mrf.mxu0
      %v5781 = vadd.f32 %v5692, %v5780
      %5782 = vmatmul.bf16.gmra.mxu0 %v4297
      %v5783 = vpop.f32.mrf.mxu0
      %v5784 = vadd.f32 %v5695, %v5783
      %v5785 = vpop.f32.mrf.mxu0
      %v5786 = vadd.f32 %v5697, %v5785
      %5787 = vdwg.mxu0
      %5788 = vmatpush.bf16.msra.mxu0 %v4850
      %5789 = vmatpush.bf16.msra.mxu0 %v4846
      %5790 = vmatpush.bf16.msra.mxu0 %v4842
      %5791 = vmatpush.bf16.msra.mxu0 %v4838
      %5792 = vmatpush.bf16.msra.mxu0 %v4834
      %5793 = vmatpush.bf16.msra.mxu0 %v4830
      %5794 = vmatpush.bf16.msra.mxu0 %v4826
      %5795 = vmatpush.bf16.msra.mxu0 %v4822
      %5796 = vmatmul.bf16.gmra.mxu0 %v4234
      %v5797 = vpop.f32.mrf.mxu0
      %v5798 = vadd.f32 %v4430, %v5797
      %v5799 = vpop.f32.mrf.mxu0
      %v5800 = vadd.f32 %v4430, %v5799
      %5801 = vmatmul.bf16.gmra.mxu0 %v4238
      %v5802 = vpop.f32.mrf.mxu0
      %v5803 = vadd.f32 %v4430, %v5802
      %v5804 = vpop.f32.mrf.mxu0
      %v5805 = vadd.f32 %v4430, %v5804
      %5806 = vmatmul.bf16.gmra.mxu0 %v4242
      %v5807 = vpop.f32.mrf.mxu0
      %v5808 = vadd.f32 %v4430, %v5807
      %v5809 = vpop.f32.mrf.mxu0
      %v5810 = vadd.f32 %v4430, %v5809
      %5811 = vmatmul.bf16.gmra.mxu0 %v4246
      %v5812 = vpop.f32.mrf.mxu0
      %v5813 = vadd.f32 %v4430, %v5812
      %v5814 = vpop.f32.mrf.mxu0
      %v5815 = vadd.f32 %v4430, %v5814
      %5816 = vmatmul.bf16.gmra.mxu0 %v4250
      %v5817 = vpop.f32.mrf.mxu0
      %v5818 = vadd.f32 %v4430, %v5817
      %v5819 = vpop.f32.mrf.mxu0
      %v5820 = vadd.f32 %v4430, %v5819
      %5821 = vmatmul.bf16.gmra.mxu0 %v4254
      %v5822 = vpop.f32.mrf.mxu0
      %v5823 = vadd.f32 %v4430, %v5822
      %v5824 = vpop.f32.mrf.mxu0
      %v5825 = vadd.f32 %v4430, %v5824
      %5826 = vmatmul.bf16.gmra.mxu0 %v4258
      %v5827 = vpop.f32.mrf.mxu0
      %v5828 = vadd.f32 %v4430, %v5827
      %v5829 = vpop.f32.mrf.mxu0
      %v5830 = vadd.f32 %v4430, %v5829
      %5831 = vmatmul.bf16.gmra.mxu0 %v4262
      %v5832 = vpop.f32.mrf.mxu0
      %v5833 = vadd.f32 %v4430, %v5832
      %v5834 = vpop.f32.mrf.mxu0
      %v5835 = vadd.f32 %v4430, %v5834
      %5836 = vmatmul.bf16.gmra.mxu0 %v4266
      %v5837 = vpop.f32.mrf.mxu0
      %v5838 = vadd.f32 %v4430, %v5837
      %v5839 = vpop.f32.mrf.mxu0
      %v5840 = vadd.f32 %v4430, %v5839
      %5841 = vmatmul.bf16.gmra.mxu0 %v4270
      %v5842 = vpop.f32.mrf.mxu0
      %v5843 = vadd.f32 %v4430, %v5842
      %v5844 = vpop.f32.mrf.mxu0
      %v5845 = vadd.f32 %v4430, %v5844
      %5846 = vmatmul.bf16.gmra.mxu0 %v4274
      %v5847 = vpop.f32.mrf.mxu0
      %v5848 = vadd.f32 %v4430, %v5847
      %v5849 = vpop.f32.mrf.mxu0
      %v5850 = vadd.f32 %v4430, %v5849
      %5851 = vmatmul.bf16.gmra.mxu0 %v4278
      %v5852 = vpop.f32.mrf.mxu0
      %v5853 = vadd.f32 %v4430, %v5852
      %v5854 = vpop.f32.mrf.mxu0
      %v5855 = vadd.f32 %v4430, %v5854
      %5856 = vmatmul.bf16.gmra.mxu0 %v4282
      %v5857 = vpop.f32.mrf.mxu0
      %v5858 = vadd.f32 %v4430, %v5857
      %v5859 = vpop.f32.mrf.mxu0
      %v5860 = vadd.f32 %v4430, %v5859
      %5861 = vmatmul.bf16.gmra.mxu0 %v4286
      %v5862 = vpop.f32.mrf.mxu0
      %v5863 = vadd.f32 %v4430, %v5862
      %v5864 = vpop.f32.mrf.mxu0
      %v5865 = vadd.f32 %v4430, %v5864
      %5866 = vmatmul.bf16.gmra.mxu0 %v4290
      %v5867 = vpop.f32.mrf.mxu0
      %v5868 = vadd.f32 %v4430, %v5867
      %v5869 = vpop.f32.mrf.mxu0
      %v5870 = vadd.f32 %v4430, %v5869
      %5871 = vmatmul.bf16.gmra.mxu0 %v4294
      %v5872 = vpop.f32.mrf.mxu0
      %v5873 = vadd.f32 %v4430, %v5872
      %v5874 = vpop.f32.mrf.mxu0
      %v5875 = vadd.f32 %v4430, %v5874
      %5876 = vdwg.mxu0
      %5877 = vmatpush.bf16.msra.mxu0 %v4882
      %5878 = vmatpush.bf16.msra.mxu0 %v4878
      %5879 = vmatpush.bf16.msra.mxu0 %v4874
      %5880 = vmatpush.bf16.msra.mxu0 %v4870
      %5881 = vmatpush.bf16.msra.mxu0 %v4866
      %5882 = vmatpush.bf16.msra.mxu0 %v4862
      %5883 = vmatpush.bf16.msra.mxu0 %v4858
      %5884 = vmatpush.bf16.msra.mxu0 %v4854
      %5885 = vmatmul.bf16.gmra.mxu0 %v4235
      %v5886 = vpop.f32.mrf.mxu0
      %v5887 = vadd.f32 %v5798, %v5886
      %v5888 = vpop.f32.mrf.mxu0
      %v5889 = vadd.f32 %v5800, %v5888
      %5890 = vmatmul.bf16.gmra.mxu0 %v4239
      %v5891 = vpop.f32.mrf.mxu0
      %v5892 = vadd.f32 %v5803, %v5891
      %v5893 = vpop.f32.mrf.mxu0
      %v5894 = vadd.f32 %v5805, %v5893
      %5895 = vmatmul.bf16.gmra.mxu0 %v4243
      %v5896 = vpop.f32.mrf.mxu0
      %v5897 = vadd.f32 %v5808, %v5896
      %v5898 = vpop.f32.mrf.mxu0
      %v5899 = vadd.f32 %v5810, %v5898
      %5900 = vmatmul.bf16.gmra.mxu0 %v4247
      %v5901 = vpop.f32.mrf.mxu0
      %v5902 = vadd.f32 %v5813, %v5901
      %v5903 = vpop.f32.mrf.mxu0
      %v5904 = vadd.f32 %v5815, %v5903
      %5905 = vmatmul.bf16.gmra.mxu0 %v4251
      %v5906 = vpop.f32.mrf.mxu0
      %v5907 = vadd.f32 %v5818, %v5906
      %v5908 = vpop.f32.mrf.mxu0
      %v5909 = vadd.f32 %v5820, %v5908
      %5910 = vmatmul.bf16.gmra.mxu0 %v4255
      %v5911 = vpop.f32.mrf.mxu0
      %v5912 = vadd.f32 %v5823, %v5911
      %v5913 = vpop.f32.mrf.mxu0
      %v5914 = vadd.f32 %v5825, %v5913
      %5915 = vmatmul.bf16.gmra.mxu0 %v4259
      %v5916 = vpop.f32.mrf.mxu0
      %v5917 = vadd.f32 %v5828, %v5916
      %v5918 = vpop.f32.mrf.mxu0
      %v5919 = vadd.f32 %v5830, %v5918
      %5920 = vmatmul.bf16.gmra.mxu0 %v4263
      %v5921 = vpop.f32.mrf.mxu0
      %v5922 = vadd.f32 %v5833, %v5921
      %v5923 = vpop.f32.mrf.mxu0
      %v5924 = vadd.f32 %v5835, %v5923
      %5925 = vmatmul.bf16.gmra.mxu0 %v4267
      %v5926 = vpop.f32.mrf.mxu0
      %v5927 = vadd.f32 %v5838, %v5926
      %v5928 = vpop.f32.mrf.mxu0
      %v5929 = vadd.f32 %v5840, %v5928
      %5930 = vmatmul.bf16.gmra.mxu0 %v4271
      %v5931 = vpop.f32.mrf.mxu0
      %v5932 = vadd.f32 %v5843, %v5931
      %v5933 = vpop.f32.mrf.mxu0
      %v5934 = vadd.f32 %v5845, %v5933
      %5935 = vmatmul.bf16.gmra.mxu0 %v4275
      %v5936 = vpop.f32.mrf.mxu0
      %v5937 = vadd.f32 %v5848, %v5936
      %v5938 = vpop.f32.mrf.mxu0
      %v5939 = vadd.f32 %v5850, %v5938
      %5940 = vmatmul.bf16.gmra.mxu0 %v4279
      %v5941 = vpop.f32.mrf.mxu0
      %v5942 = vadd.f32 %v5853, %v5941
      %v5943 = vpop.f32.mrf.mxu0
      %v5944 = vadd.f32 %v5855, %v5943
      %5945 = vmatmul.bf16.gmra.mxu0 %v4283
      %v5946 = vpop.f32.mrf.mxu0
      %v5947 = vadd.f32 %v5858, %v5946
      %v5948 = vpop.f32.mrf.mxu0
      %v5949 = vadd.f32 %v5860, %v5948
      %5950 = vmatmul.bf16.gmra.mxu0 %v4287
      %v5951 = vpop.f32.mrf.mxu0
      %v5952 = vadd.f32 %v5863, %v5951
      %v5953 = vpop.f32.mrf.mxu0
      %v5954 = vadd.f32 %v5865, %v5953
      %5955 = vmatmul.bf16.gmra.mxu0 %v4291
      %v5956 = vpop.f32.mrf.mxu0
      %v5957 = vadd.f32 %v5868, %v5956
      %v5958 = vpop.f32.mrf.mxu0
      %v5959 = vadd.f32 %v5870, %v5958
      %5960 = vmatmul.bf16.gmra.mxu0 %v4295
      %v5961 = vpop.f32.mrf.mxu0
      %v5962 = vadd.f32 %v5873, %v5961
      %v5963 = vpop.f32.mrf.mxu0
      %v5964 = vadd.f32 %v5875, %v5963
      %5965 = vdwg.mxu0
      %5966 = vmatpush.bf16.msra.mxu0 %v4914
      %5967 = vmatpush.bf16.msra.mxu0 %v4910
      %5968 = vmatpush.bf16.msra.mxu0 %v4906
      %5969 = vmatpush.bf16.msra.mxu0 %v4902
      %5970 = vmatpush.bf16.msra.mxu0 %v4898
      %5971 = vmatpush.bf16.msra.mxu0 %v4894
      %5972 = vmatpush.bf16.msra.mxu0 %v4890
      %5973 = vmatpush.bf16.msra.mxu0 %v4886
      %5974 = vmatmul.bf16.gmra.mxu0 %v4236
      %v5975 = vpop.f32.mrf.mxu0
      %v5976 = vadd.f32 %v5887, %v5975
      %v5977 = vpop.f32.mrf.mxu0
      %v5978 = vadd.f32 %v5889, %v5977
      %5979 = vmatmul.bf16.gmra.mxu0 %v4240
      %v5980 = vpop.f32.mrf.mxu0
      %v5981 = vadd.f32 %v5892, %v5980
      %v5982 = vpop.f32.mrf.mxu0
      %v5983 = vadd.f32 %v5894, %v5982
      %5984 = vmatmul.bf16.gmra.mxu0 %v4244
      %v5985 = vpop.f32.mrf.mxu0
      %v5986 = vadd.f32 %v5897, %v5985
      %v5987 = vpop.f32.mrf.mxu0
      %v5988 = vadd.f32 %v5899, %v5987
      %5989 = vmatmul.bf16.gmra.mxu0 %v4248
      %v5990 = vpop.f32.mrf.mxu0
      %v5991 = vadd.f32 %v5902, %v5990
      %v5992 = vpop.f32.mrf.mxu0
      %v5993 = vadd.f32 %v5904, %v5992
      %5994 = vmatmul.bf16.gmra.mxu0 %v4252
      %v5995 = vpop.f32.mrf.mxu0
      %v5996 = vadd.f32 %v5907, %v5995
      %v5997 = vpop.f32.mrf.mxu0
      %v5998 = vadd.f32 %v5909, %v5997
      %5999 = vmatmul.bf16.gmra.mxu0 %v4256
      %v6000 = vpop.f32.mrf.mxu0
      %v6001 = vadd.f32 %v5912, %v6000
      %v6002 = vpop.f32.mrf.mxu0
      %v6003 = vadd.f32 %v5914, %v6002
      %6004 = vmatmul.bf16.gmra.mxu0 %v4260
      %v6005 = vpop.f32.mrf.mxu0
      %v6006 = vadd.f32 %v5917, %v6005
      %v6007 = vpop.f32.mrf.mxu0
      %v6008 = vadd.f32 %v5919, %v6007
      %6009 = vmatmul.bf16.gmra.mxu0 %v4264
      %v6010 = vpop.f32.mrf.mxu0
      %v6011 = vadd.f32 %v5922, %v6010
      %v6012 = vpop.f32.mrf.mxu0
      %v6013 = vadd.f32 %v5924, %v6012
      %6014 = vmatmul.bf16.gmra.mxu0 %v4268
      %v6015 = vpop.f32.mrf.mxu0
      %v6016 = vadd.f32 %v5927, %v6015
      %v6017 = vpop.f32.mrf.mxu0
      %v6018 = vadd.f32 %v5929, %v6017
      %6019 = vmatmul.bf16.gmra.mxu0 %v4272
      %v6020 = vpop.f32.mrf.mxu0
      %v6021 = vadd.f32 %v5932, %v6020
      %v6022 = vpop.f32.mrf.mxu0
      %v6023 = vadd.f32 %v5934, %v6022
      %6024 = vmatmul.bf16.gmra.mxu0 %v4276
      %v6025 = vpop.f32.mrf.mxu0
      %v6026 = vadd.f32 %v5937, %v6025
      %v6027 = vpop.f32.mrf.mxu0
      %v6028 = vadd.f32 %v5939, %v6027
      %6029 = vmatmul.bf16.gmra.mxu0 %v4280
      %v6030 = vpop.f32.mrf.mxu0
      %v6031 = vadd.f32 %v5942, %v6030
      %v6032 = vpop.f32.mrf.mxu0
      %v6033 = vadd.f32 %v5944, %v6032
      %6034 = vmatmul.bf16.gmra.mxu0 %v4284
      %v6035 = vpop.f32.mrf.mxu0
      %v6036 = vadd.f32 %v5947, %v6035
      %v6037 = vpop.f32.mrf.mxu0
      %v6038 = vadd.f32 %v5949, %v6037
      %6039 = vmatmul.bf16.gmra.mxu0 %v4288
      %v6040 = vpop.f32.mrf.mxu0
      %v6041 = vadd.f32 %v5952, %v6040
      %v6042 = vpop.f32.mrf.mxu0
      %v6043 = vadd.f32 %v5954, %v6042
      %6044 = vmatmul.bf16.gmra.mxu0 %v4292
      %v6045 = vpop.f32.mrf.mxu0
      %v6046 = vadd.f32 %v5957, %v6045
      %v6047 = vpop.f32.mrf.mxu0
      %v6048 = vadd.f32 %v5959, %v6047
      %6049 = vmatmul.bf16.gmra.mxu0 %v4296
      %v6050 = vpop.f32.mrf.mxu0
      %v6051 = vadd.f32 %v5962, %v6050
      %v6052 = vpop.f32.mrf.mxu0
      %v6053 = vadd.f32 %v5964, %v6052
      %6054 = vdwg.mxu0
      %6055 = vmatpush.bf16.msra.mxu0 %v4946
      %6056 = vmatpush.bf16.msra.mxu0 %v4942
      %6057 = vmatpush.bf16.msra.mxu0 %v4938
      %6058 = vmatpush.bf16.msra.mxu0 %v4934
      %6059 = vmatpush.bf16.msra.mxu0 %v4930
      %6060 = vmatpush.bf16.msra.mxu0 %v4926
      %6061 = vmatpush.bf16.msra.mxu0 %v4922
      %6062 = vmatpush.bf16.msra.mxu0 %v4918
      %6063 = vmatmul.bf16.gmra.mxu0 %v4237
      %v6064 = vpop.f32.mrf.mxu0
      %v6065 = vadd.f32 %v5976, %v6064
      %v6066 = vpop.f32.mrf.mxu0
      %v6067 = vadd.f32 %v5978, %v6066
      %6068 = vmatmul.bf16.gmra.mxu0 %v4241
      %v6069 = vpop.f32.mrf.mxu0
      %v6070 = vadd.f32 %v5981, %v6069
      %v6071 = vpop.f32.mrf.mxu0
      %v6072 = vadd.f32 %v5983, %v6071
      %6073 = vmatmul.bf16.gmra.mxu0 %v4245
      %v6074 = vpop.f32.mrf.mxu0
      %v6075 = vadd.f32 %v5986, %v6074
      %v6076 = vpop.f32.mrf.mxu0
      %v6077 = vadd.f32 %v5988, %v6076
      %6078 = vmatmul.bf16.gmra.mxu0 %v4249
      %v6079 = vpop.f32.mrf.mxu0
      %v6080 = vadd.f32 %v5991, %v6079
      %v6081 = vpop.f32.mrf.mxu0
      %v6082 = vadd.f32 %v5993, %v6081
      %6083 = vmatmul.bf16.gmra.mxu0 %v4253
      %v6084 = vpop.f32.mrf.mxu0
      %v6085 = vadd.f32 %v5996, %v6084
      %v6086 = vpop.f32.mrf.mxu0
      %v6087 = vadd.f32 %v5998, %v6086
      %6088 = vmatmul.bf16.gmra.mxu0 %v4257
      %v6089 = vpop.f32.mrf.mxu0
      %v6090 = vadd.f32 %v6001, %v6089
      %v6091 = vpop.f32.mrf.mxu0
      %v6092 = vadd.f32 %v6003, %v6091
      %6093 = vmatmul.bf16.gmra.mxu0 %v4261
      %v6094 = vpop.f32.mrf.mxu0
      %v6095 = vadd.f32 %v6006, %v6094
      %v6096 = vpop.f32.mrf.mxu0
      %v6097 = vadd.f32 %v6008, %v6096
      %6098 = vmatmul.bf16.gmra.mxu0 %v4265
      %v6099 = vpop.f32.mrf.mxu0
      %v6100 = vadd.f32 %v6011, %v6099
      %v6101 = vpop.f32.mrf.mxu0
      %v6102 = vadd.f32 %v6013, %v6101
      %6103 = vmatmul.bf16.gmra.mxu0 %v4269
      %v6104 = vpop.f32.mrf.mxu0
      %v6105 = vadd.f32 %v6016, %v6104
      %v6106 = vpop.f32.mrf.mxu0
      %v6107 = vadd.f32 %v6018, %v6106
      %6108 = vmatmul.bf16.gmra.mxu0 %v4273
      %v6109 = vpop.f32.mrf.mxu0
      %v6110 = vadd.f32 %v6021, %v6109
      %v6111 = vpop.f32.mrf.mxu0
      %v6112 = vadd.f32 %v6023, %v6111
      %6113 = vmatmul.bf16.gmra.mxu0 %v4277
      %v6114 = vpop.f32.mrf.mxu0
      %v6115 = vadd.f32 %v6026, %v6114
      %v6116 = vpop.f32.mrf.mxu0
      %v6117 = vadd.f32 %v6028, %v6116
      %6118 = vmatmul.bf16.gmra.mxu0 %v4281
      %v6119 = vpop.f32.mrf.mxu0
      %v6120 = vadd.f32 %v6031, %v6119
      %v6121 = vpop.f32.mrf.mxu0
      %v6122 = vadd.f32 %v6033, %v6121
      %6123 = vmatmul.bf16.gmra.mxu0 %v4285
      %v6124 = vpop.f32.mrf.mxu0
      %v6125 = vadd.f32 %v6036, %v6124
      %v6126 = vpop.f32.mrf.mxu0
      %v6127 = vadd.f32 %v6038, %v6126
      %6128 = vmatmul.bf16.gmra.mxu0 %v4289
      %v6129 = vpop.f32.mrf.mxu0
      %v6130 = vadd.f32 %v6041, %v6129
      %v6131 = vpop.f32.mrf.mxu0
      %v6132 = vadd.f32 %v6043, %v6131
      %6133 = vmatmul.bf16.gmra.mxu0 %v4293
      %v6134 = vpop.f32.mrf.mxu0
      %v6135 = vadd.f32 %v6046, %v6134
      %v6136 = vpop.f32.mrf.mxu0
      %v6137 = vadd.f32 %v6048, %v6136
      %6138 = vmatmul.bf16.gmra.mxu0 %v4297
      %v6139 = vpop.f32.mrf.mxu0
      %v6140 = vadd.f32 %v6051, %v6139
      %v6141 = vpop.f32.mrf.mxu0
      %v6142 = vadd.f32 %v6053, %v6141
      %6143 = vdwg.mxu0
      %6144 = vmatpush.bf16.msra.mxu0 %v4851
      %6145 = vmatpush.bf16.msra.mxu0 %v4847
      %6146 = vmatpush.bf16.msra.mxu0 %v4843
      %6147 = vmatpush.bf16.msra.mxu0 %v4839
      %6148 = vmatpush.bf16.msra.mxu0 %v4835
      %6149 = vmatpush.bf16.msra.mxu0 %v4831
      %6150 = vmatpush.bf16.msra.mxu0 %v4827
      %6151 = vmatpush.bf16.msra.mxu0 %v4823
      %6152 = vmatmul.bf16.gmra.mxu0 %v4234
      %v6153 = vpop.f32.mrf.mxu0
      %v6154 = vadd.f32 %v4431, %v6153
      %v6155 = vpop.f32.mrf.mxu0
      %v6156 = vadd.f32 %v4431, %v6155
      %6157 = vmatmul.bf16.gmra.mxu0 %v4238
      %v6158 = vpop.f32.mrf.mxu0
      %v6159 = vadd.f32 %v4431, %v6158
      %v6160 = vpop.f32.mrf.mxu0
      %v6161 = vadd.f32 %v4431, %v6160
      %6162 = vmatmul.bf16.gmra.mxu0 %v4242
      %v6163 = vpop.f32.mrf.mxu0
      %v6164 = vadd.f32 %v4431, %v6163
      %v6165 = vpop.f32.mrf.mxu0
      %v6166 = vadd.f32 %v4431, %v6165
      %6167 = vmatmul.bf16.gmra.mxu0 %v4246
      %v6168 = vpop.f32.mrf.mxu0
      %v6169 = vadd.f32 %v4431, %v6168
      %v6170 = vpop.f32.mrf.mxu0
      %v6171 = vadd.f32 %v4431, %v6170
      %6172 = vmatmul.bf16.gmra.mxu0 %v4250
      %v6173 = vpop.f32.mrf.mxu0
      %v6174 = vadd.f32 %v4431, %v6173
      %v6175 = vpop.f32.mrf.mxu0
      %v6176 = vadd.f32 %v4431, %v6175
      %6177 = vmatmul.bf16.gmra.mxu0 %v4254
      %v6178 = vpop.f32.mrf.mxu0
      %v6179 = vadd.f32 %v4431, %v6178
      %v6180 = vpop.f32.mrf.mxu0
      %v6181 = vadd.f32 %v4431, %v6180
      %6182 = vmatmul.bf16.gmra.mxu0 %v4258
      %v6183 = vpop.f32.mrf.mxu0
      %v6184 = vadd.f32 %v4431, %v6183
      %v6185 = vpop.f32.mrf.mxu0
      %v6186 = vadd.f32 %v4431, %v6185
      %6187 = vmatmul.bf16.gmra.mxu0 %v4262
      %v6188 = vpop.f32.mrf.mxu0
      %v6189 = vadd.f32 %v4431, %v6188
      %v6190 = vpop.f32.mrf.mxu0
      %v6191 = vadd.f32 %v4431, %v6190
      %6192 = vmatmul.bf16.gmra.mxu0 %v4266
      %v6193 = vpop.f32.mrf.mxu0
      %v6194 = vadd.f32 %v4431, %v6193
      %v6195 = vpop.f32.mrf.mxu0
      %v6196 = vadd.f32 %v4431, %v6195
      %6197 = vmatmul.bf16.gmra.mxu0 %v4270
      %v6198 = vpop.f32.mrf.mxu0
      %v6199 = vadd.f32 %v4431, %v6198
      %v6200 = vpop.f32.mrf.mxu0
      %v6201 = vadd.f32 %v4431, %v6200
      %6202 = vmatmul.bf16.gmra.mxu0 %v4274
      %v6203 = vpop.f32.mrf.mxu0
      %v6204 = vadd.f32 %v4431, %v6203
      %v6205 = vpop.f32.mrf.mxu0
      %v6206 = vadd.f32 %v4431, %v6205
      %6207 = vmatmul.bf16.gmra.mxu0 %v4278
      %v6208 = vpop.f32.mrf.mxu0
      %v6209 = vadd.f32 %v4431, %v6208
      %v6210 = vpop.f32.mrf.mxu0
      %v6211 = vadd.f32 %v4431, %v6210
      %6212 = vmatmul.bf16.gmra.mxu0 %v4282
      %v6213 = vpop.f32.mrf.mxu0
      %v6214 = vadd.f32 %v4431, %v6213
      %v6215 = vpop.f32.mrf.mxu0
      %v6216 = vadd.f32 %v4431, %v6215
      %6217 = vmatmul.bf16.gmra.mxu0 %v4286
      %v6218 = vpop.f32.mrf.mxu0
      %v6219 = vadd.f32 %v4431, %v6218
      %v6220 = vpop.f32.mrf.mxu0
      %v6221 = vadd.f32 %v4431, %v6220
      %6222 = vmatmul.bf16.gmra.mxu0 %v4290
      %v6223 = vpop.f32.mrf.mxu0
      %v6224 = vadd.f32 %v4431, %v6223
      %v6225 = vpop.f32.mrf.mxu0
      %v6226 = vadd.f32 %v4431, %v6225
      %6227 = vmatmul.bf16.gmra.mxu0 %v4294
      %v6228 = vpop.f32.mrf.mxu0
      %v6229 = vadd.f32 %v4431, %v6228
      %v6230 = vpop.f32.mrf.mxu0
      %v6231 = vadd.f32 %v4431, %v6230
      %6232 = vdwg.mxu0
      %6233 = vmatpush.bf16.msra.mxu0 %v4883
      %6234 = vmatpush.bf16.msra.mxu0 %v4879
      %6235 = vmatpush.bf16.msra.mxu0 %v4875
      %6236 = vmatpush.bf16.msra.mxu0 %v4871
      %6237 = vmatpush.bf16.msra.mxu0 %v4867
      %6238 = vmatpush.bf16.msra.mxu0 %v4863
      %6239 = vmatpush.bf16.msra.mxu0 %v4859
      %6240 = vmatpush.bf16.msra.mxu0 %v4855
      %6241 = vmatmul.bf16.gmra.mxu0 %v4235
      %v6242 = vpop.f32.mrf.mxu0
      %v6243 = vadd.f32 %v6154, %v6242
      %v6244 = vpop.f32.mrf.mxu0
      %v6245 = vadd.f32 %v6156, %v6244
      %6246 = vmatmul.bf16.gmra.mxu0 %v4239
      %v6247 = vpop.f32.mrf.mxu0
      %v6248 = vadd.f32 %v6159, %v6247
      %v6249 = vpop.f32.mrf.mxu0
      %v6250 = vadd.f32 %v6161, %v6249
      %6251 = vmatmul.bf16.gmra.mxu0 %v4243
      %v6252 = vpop.f32.mrf.mxu0
      %v6253 = vadd.f32 %v6164, %v6252
      %v6254 = vpop.f32.mrf.mxu0
      %v6255 = vadd.f32 %v6166, %v6254
      %6256 = vmatmul.bf16.gmra.mxu0 %v4247
      %v6257 = vpop.f32.mrf.mxu0
      %v6258 = vadd.f32 %v6169, %v6257
      %v6259 = vpop.f32.mrf.mxu0
      %v6260 = vadd.f32 %v6171, %v6259
      %6261 = vmatmul.bf16.gmra.mxu0 %v4251
      %v6262 = vpop.f32.mrf.mxu0
      %v6263 = vadd.f32 %v6174, %v6262
      %v6264 = vpop.f32.mrf.mxu0
      %v6265 = vadd.f32 %v6176, %v6264
      %6266 = vmatmul.bf16.gmra.mxu0 %v4255
      %v6267 = vpop.f32.mrf.mxu0
      %v6268 = vadd.f32 %v6179, %v6267
      %v6269 = vpop.f32.mrf.mxu0
      %v6270 = vadd.f32 %v6181, %v6269
      %6271 = vmatmul.bf16.gmra.mxu0 %v4259
      %v6272 = vpop.f32.mrf.mxu0
      %v6273 = vadd.f32 %v6184, %v6272
      %v6274 = vpop.f32.mrf.mxu0
      %v6275 = vadd.f32 %v6186, %v6274
      %6276 = vmatmul.bf16.gmra.mxu0 %v4263
      %v6277 = vpop.f32.mrf.mxu0
      %v6278 = vadd.f32 %v6189, %v6277
      %v6279 = vpop.f32.mrf.mxu0
      %v6280 = vadd.f32 %v6191, %v6279
      %6281 = vmatmul.bf16.gmra.mxu0 %v4267
      %v6282 = vpop.f32.mrf.mxu0
      %v6283 = vadd.f32 %v6194, %v6282
      %v6284 = vpop.f32.mrf.mxu0
      %v6285 = vadd.f32 %v6196, %v6284
      %6286 = vmatmul.bf16.gmra.mxu0 %v4271
      %v6287 = vpop.f32.mrf.mxu0
      %v6288 = vadd.f32 %v6199, %v6287
      %v6289 = vpop.f32.mrf.mxu0
      %v6290 = vadd.f32 %v6201, %v6289
      %6291 = vmatmul.bf16.gmra.mxu0 %v4275
      %v6292 = vpop.f32.mrf.mxu0
      %v6293 = vadd.f32 %v6204, %v6292
      %v6294 = vpop.f32.mrf.mxu0
      %v6295 = vadd.f32 %v6206, %v6294
      %6296 = vmatmul.bf16.gmra.mxu0 %v4279
      %v6297 = vpop.f32.mrf.mxu0
      %v6298 = vadd.f32 %v6209, %v6297
      %v6299 = vpop.f32.mrf.mxu0
      %v6300 = vadd.f32 %v6211, %v6299
      %6301 = vmatmul.bf16.gmra.mxu0 %v4283
      %v6302 = vpop.f32.mrf.mxu0
      %v6303 = vadd.f32 %v6214, %v6302
      %v6304 = vpop.f32.mrf.mxu0
      %v6305 = vadd.f32 %v6216, %v6304
      %6306 = vmatmul.bf16.gmra.mxu0 %v4287
      %v6307 = vpop.f32.mrf.mxu0
      %v6308 = vadd.f32 %v6219, %v6307
      %v6309 = vpop.f32.mrf.mxu0
      %v6310 = vadd.f32 %v6221, %v6309
      %6311 = vmatmul.bf16.gmra.mxu0 %v4291
      %v6312 = vpop.f32.mrf.mxu0
      %v6313 = vadd.f32 %v6224, %v6312
      %v6314 = vpop.f32.mrf.mxu0
      %v6315 = vadd.f32 %v6226, %v6314
      %6316 = vmatmul.bf16.gmra.mxu0 %v4295
      %v6317 = vpop.f32.mrf.mxu0
      %v6318 = vadd.f32 %v6229, %v6317
      %v6319 = vpop.f32.mrf.mxu0
      %v6320 = vadd.f32 %v6231, %v6319
      %6321 = vdwg.mxu0
      %6322 = vmatpush.bf16.msra.mxu0 %v4915
      %6323 = vmatpush.bf16.msra.mxu0 %v4911
      %6324 = vmatpush.bf16.msra.mxu0 %v4907
      %6325 = vmatpush.bf16.msra.mxu0 %v4903
      %6326 = vmatpush.bf16.msra.mxu0 %v4899
      %6327 = vmatpush.bf16.msra.mxu0 %v4895
      %6328 = vmatpush.bf16.msra.mxu0 %v4891
      %6329 = vmatpush.bf16.msra.mxu0 %v4887
      %6330 = vmatmul.bf16.gmra.mxu0 %v4236
      %v6331 = vpop.f32.mrf.mxu0
      %v6332 = vadd.f32 %v6243, %v6331
      %v6333 = vpop.f32.mrf.mxu0
      %v6334 = vadd.f32 %v6245, %v6333
      %6335 = vmatmul.bf16.gmra.mxu0 %v4240
      %v6336 = vpop.f32.mrf.mxu0
      %v6337 = vadd.f32 %v6248, %v6336
      %v6338 = vpop.f32.mrf.mxu0
      %v6339 = vadd.f32 %v6250, %v6338
      %6340 = vmatmul.bf16.gmra.mxu0 %v4244
      %v6341 = vpop.f32.mrf.mxu0
      %v6342 = vadd.f32 %v6253, %v6341
      %v6343 = vpop.f32.mrf.mxu0
      %v6344 = vadd.f32 %v6255, %v6343
      %6345 = vmatmul.bf16.gmra.mxu0 %v4248
      %v6346 = vpop.f32.mrf.mxu0
      %v6347 = vadd.f32 %v6258, %v6346
      %v6348 = vpop.f32.mrf.mxu0
      %v6349 = vadd.f32 %v6260, %v6348
      %6350 = vmatmul.bf16.gmra.mxu0 %v4252
      %v6351 = vpop.f32.mrf.mxu0
      %v6352 = vadd.f32 %v6263, %v6351
      %v6353 = vpop.f32.mrf.mxu0
      %v6354 = vadd.f32 %v6265, %v6353
      %6355 = vmatmul.bf16.gmra.mxu0 %v4256
      %v6356 = vpop.f32.mrf.mxu0
      %v6357 = vadd.f32 %v6268, %v6356
      %v6358 = vpop.f32.mrf.mxu0
      %v6359 = vadd.f32 %v6270, %v6358
      %6360 = vmatmul.bf16.gmra.mxu0 %v4260
      %v6361 = vpop.f32.mrf.mxu0
      %v6362 = vadd.f32 %v6273, %v6361
      %v6363 = vpop.f32.mrf.mxu0
      %v6364 = vadd.f32 %v6275, %v6363
      %6365 = vmatmul.bf16.gmra.mxu0 %v4264
      %v6366 = vpop.f32.mrf.mxu0
      %v6367 = vadd.f32 %v6278, %v6366
      %v6368 = vpop.f32.mrf.mxu0
      %v6369 = vadd.f32 %v6280, %v6368
      %6370 = vmatmul.bf16.gmra.mxu0 %v4268
      %v6371 = vpop.f32.mrf.mxu0
      %v6372 = vadd.f32 %v6283, %v6371
      %v6373 = vpop.f32.mrf.mxu0
      %v6374 = vadd.f32 %v6285, %v6373
      %6375 = vmatmul.bf16.gmra.mxu0 %v4272
      %v6376 = vpop.f32.mrf.mxu0
      %v6377 = vadd.f32 %v6288, %v6376
      %v6378 = vpop.f32.mrf.mxu0
      %v6379 = vadd.f32 %v6290, %v6378
      %6380 = vmatmul.bf16.gmra.mxu0 %v4276
      %v6381 = vpop.f32.mrf.mxu0
      %v6382 = vadd.f32 %v6293, %v6381
      %v6383 = vpop.f32.mrf.mxu0
      %v6384 = vadd.f32 %v6295, %v6383
      %6385 = vmatmul.bf16.gmra.mxu0 %v4280
      %v6386 = vpop.f32.mrf.mxu0
      %v6387 = vadd.f32 %v6298, %v6386
      %v6388 = vpop.f32.mrf.mxu0
      %v6389 = vadd.f32 %v6300, %v6388
      %6390 = vmatmul.bf16.gmra.mxu0 %v4284
      %v6391 = vpop.f32.mrf.mxu0
      %v6392 = vadd.f32 %v6303, %v6391
      %v6393 = vpop.f32.mrf.mxu0
      %v6394 = vadd.f32 %v6305, %v6393
      %6395 = vmatmul.bf16.gmra.mxu0 %v4288
      %v6396 = vpop.f32.mrf.mxu0
      %v6397 = vadd.f32 %v6308, %v6396
      %v6398 = vpop.f32.mrf.mxu0
      %v6399 = vadd.f32 %v6310, %v6398
      %6400 = vmatmul.bf16.gmra.mxu0 %v4292
      %v6401 = vpop.f32.mrf.mxu0
      %v6402 = vadd.f32 %v6313, %v6401
      %v6403 = vpop.f32.mrf.mxu0
      %v6404 = vadd.f32 %v6315, %v6403
      %6405 = vmatmul.bf16.gmra.mxu0 %v4296
      %v6406 = vpop.f32.mrf.mxu0
      %v6407 = vadd.f32 %v6318, %v6406
      %v6408 = vpop.f32.mrf.mxu0
      %v6409 = vadd.f32 %v6320, %v6408
      %6410 = vdwg.mxu0
      %6411 = vmatpush.bf16.msra.mxu0 %v4947
      %6412 = vmatpush.bf16.msra.mxu0 %v4943
      %6413 = vmatpush.bf16.msra.mxu0 %v4939
      %6414 = vmatpush.bf16.msra.mxu0 %v4935
      %6415 = vmatpush.bf16.msra.mxu0 %v4931
      %6416 = vmatpush.bf16.msra.mxu0 %v4927
      %6417 = vmatpush.bf16.msra.mxu0 %v4923
      %6418 = vmatpush.bf16.msra.mxu0 %v4919
      %6419 = vmatmul.bf16.gmra.mxu0 %v4237
      %v6420 = vpop.f32.mrf.mxu0
      %v6421 = vadd.f32 %v6332, %v6420
      %v6422 = vpop.f32.mrf.mxu0
      %v6423 = vadd.f32 %v6334, %v6422
      %6424 = vmatmul.bf16.gmra.mxu0 %v4241
      %v6425 = vpop.f32.mrf.mxu0
      %v6426 = vadd.f32 %v6337, %v6425
      %v6427 = vpop.f32.mrf.mxu0
      %v6428 = vadd.f32 %v6339, %v6427
      %6429 = vmatmul.bf16.gmra.mxu0 %v4245
      %v6430 = vpop.f32.mrf.mxu0
      %v6431 = vadd.f32 %v6342, %v6430
      %v6432 = vpop.f32.mrf.mxu0
      %v6433 = vadd.f32 %v6344, %v6432
      %6434 = vmatmul.bf16.gmra.mxu0 %v4249
      %v6435 = vpop.f32.mrf.mxu0
      %v6436 = vadd.f32 %v6347, %v6435
      %v6437 = vpop.f32.mrf.mxu0
      %v6438 = vadd.f32 %v6349, %v6437
      %6439 = vmatmul.bf16.gmra.mxu0 %v4253
      %v6440 = vpop.f32.mrf.mxu0
      %v6441 = vadd.f32 %v6352, %v6440
      %v6442 = vpop.f32.mrf.mxu0
      %v6443 = vadd.f32 %v6354, %v6442
      %6444 = vmatmul.bf16.gmra.mxu0 %v4257
      %v6445 = vpop.f32.mrf.mxu0
      %v6446 = vadd.f32 %v6357, %v6445
      %v6447 = vpop.f32.mrf.mxu0
      %v6448 = vadd.f32 %v6359, %v6447
      %6449 = vmatmul.bf16.gmra.mxu0 %v4261
      %v6450 = vpop.f32.mrf.mxu0
      %v6451 = vadd.f32 %v6362, %v6450
      %v6452 = vpop.f32.mrf.mxu0
      %v6453 = vadd.f32 %v6364, %v6452
      %6454 = vmatmul.bf16.gmra.mxu0 %v4265
      %v6455 = vpop.f32.mrf.mxu0
      %v6456 = vadd.f32 %v6367, %v6455
      %v6457 = vpop.f32.mrf.mxu0
      %v6458 = vadd.f32 %v6369, %v6457
      %6459 = vmatmul.bf16.gmra.mxu0 %v4269
      %v6460 = vpop.f32.mrf.mxu0
      %v6461 = vadd.f32 %v6372, %v6460
      %v6462 = vpop.f32.mrf.mxu0
      %v6463 = vadd.f32 %v6374, %v6462
      %6464 = vmatmul.bf16.gmra.mxu0 %v4273
      %v6465 = vpop.f32.mrf.mxu0
      %v6466 = vadd.f32 %v6377, %v6465
      %v6467 = vpop.f32.mrf.mxu0
      %v6468 = vadd.f32 %v6379, %v6467
      %6469 = vmatmul.bf16.gmra.mxu0 %v4277
      %v6470 = vpop.f32.mrf.mxu0
      %v6471 = vadd.f32 %v6382, %v6470
      %v6472 = vpop.f32.mrf.mxu0
      %v6473 = vadd.f32 %v6384, %v6472
      %6474 = vmatmul.bf16.gmra.mxu0 %v4281
      %v6475 = vpop.f32.mrf.mxu0
      %v6476 = vadd.f32 %v6387, %v6475
      %v6477 = vpop.f32.mrf.mxu0
      %v6478 = vadd.f32 %v6389, %v6477
      %6479 = vmatmul.bf16.gmra.mxu0 %v4285
      %v6480 = vpop.f32.mrf.mxu0
      %v6481 = vadd.f32 %v6392, %v6480
      %v6482 = vpop.f32.mrf.mxu0
      %v6483 = vadd.f32 %v6394, %v6482
      %6484 = vmatmul.bf16.gmra.mxu0 %v4289
      %v6485 = vpop.f32.mrf.mxu0
      %v6486 = vadd.f32 %v6397, %v6485
      %v6487 = vpop.f32.mrf.mxu0
      %v6488 = vadd.f32 %v6399, %v6487
      %6489 = vmatmul.bf16.gmra.mxu0 %v4293
      %v6490 = vpop.f32.mrf.mxu0
      %v6491 = vadd.f32 %v6402, %v6490
      %v6492 = vpop.f32.mrf.mxu0
      %v6493 = vadd.f32 %v6404, %v6492
      %6494 = vmatmul.bf16.gmra.mxu0 %v4297
      %v6495 = vpop.f32.mrf.mxu0
      %v6496 = vadd.f32 %v6407, %v6495
      %v6497 = vpop.f32.mrf.mxu0
      %v6498 = vadd.f32 %v6409, %v6497
      %6499 = vdwg.mxu0
      %v6500 = vld [vmem:[%s8] sm:$0xff]
      %v6501 = vld [vmem:[%s8 + $0x8] sm:$0xff]
      %v6502 = vld [vmem:[%s8 + $0x10] sm:$0xff]
      %v6503 = vld [vmem:[%s8 + $0x18] sm:$0xff]
      %v6504 = vld [vmem:[%s8 + $0x20] sm:$0xff]
      %v6505 = vld [vmem:[%s8 + $0x28] sm:$0xff]
      %v6506 = vld [vmem:[%s8 + $0x30] sm:$0xff]
      %v6507 = vld [vmem:[%s8 + $0x38] sm:$0xff]
      %v6508 = vld [vmem:[%s8 + $0x40] sm:$0xff]
      %v6509 = vld [vmem:[%s8 + $0x48] sm:$0xff]
      %v6510 = vld [vmem:[%s8 + $0x50] sm:$0xff]
      %v6511 = vld [vmem:[%s8 + $0x58] sm:$0xff]
      %v6512 = vld [vmem:[%s8 + $0x60] sm:$0xff]
      %v6513 = vld [vmem:[%s8 + $0x68] sm:$0xff]
      %v6514 = vld [vmem:[%s8 + $0x70] sm:$0xff]
      %v6515 = vld [vmem:[%s8 + $0x78] sm:$0xff]
      %v6516 = vld [vmem:[%s8 + $0x80] sm:$0xff]
      %v6517 = vld [vmem:[%s8 + $0x88] sm:$0xff]
      %v6518 = vld [vmem:[%s8 + $0x90] sm:$0xff]
      %v6519 = vld [vmem:[%s8 + $0x98] sm:$0xff]
      %v6520 = vld [vmem:[%s8 + $0xa0] sm:$0xff]
      %v6521 = vld [vmem:[%s8 + $0xa8] sm:$0xff]
      %v6522 = vld [vmem:[%s8 + $0xb0] sm:$0xff]
      %v6523 = vld [vmem:[%s8 + $0xb8] sm:$0xff]
      %v6524 = vld [vmem:[%s8 + $0xc0] sm:$0xff]
      %v6525 = vld [vmem:[%s8 + $0xc8] sm:$0xff]
      %v6526 = vld [vmem:[%s8 + $0xd0] sm:$0xff]
      %v6527 = vld [vmem:[%s8 + $0xd8] sm:$0xff]
      %v6528 = vld [vmem:[%s8 + $0xe0] sm:$0xff]
      %v6529 = vld [vmem:[%s8 + $0xe8] sm:$0xff]
      %v6530 = vld [vmem:[%s8 + $0xf0] sm:$0xff]
      %v6531 = vld [vmem:[%s8 + $0xf8] sm:$0xff]
      %v6532 = vld [vmem:[%s8 + $0x100] sm:$0xff]
      %v6533 = vld [vmem:[%s8 + $0x108] sm:$0xff]
      %v6534 = vld [vmem:[%s8 + $0x110] sm:$0xff]
      %v6535 = vld [vmem:[%s8 + $0x118] sm:$0xff]
      %v6536 = vld [vmem:[%s8 + $0x120] sm:$0xff]
      %v6537 = vld [vmem:[%s8 + $0x128] sm:$0xff]
      %v6538 = vld [vmem:[%s8 + $0x130] sm:$0xff]
      %v6539 = vld [vmem:[%s8 + $0x138] sm:$0xff]
      %v6540 = vld [vmem:[%s8 + $0x140] sm:$0xff]
      %v6541 = vld [vmem:[%s8 + $0x148] sm:$0xff]
      %v6542 = vld [vmem:[%s8 + $0x150] sm:$0xff]
      %v6543 = vld [vmem:[%s8 + $0x158] sm:$0xff]
      %v6544 = vld [vmem:[%s8 + $0x160] sm:$0xff]
      %v6545 = vld [vmem:[%s8 + $0x168] sm:$0xff]
      %v6546 = vld [vmem:[%s8 + $0x170] sm:$0xff]
      %v6547 = vld [vmem:[%s8 + $0x178] sm:$0xff]
      %v6548 = vld [vmem:[%s8 + $0x180] sm:$0xff]
      %v6549 = vld [vmem:[%s8 + $0x188] sm:$0xff]
      %v6550 = vld [vmem:[%s8 + $0x190] sm:$0xff]
      %v6551 = vld [vmem:[%s8 + $0x198] sm:$0xff]
      %v6552 = vld [vmem:[%s8 + $0x1a0] sm:$0xff]
      %v6553 = vld [vmem:[%s8 + $0x1a8] sm:$0xff]
      %v6554 = vld [vmem:[%s8 + $0x1b0] sm:$0xff]
      %v6555 = vld [vmem:[%s8 + $0x1b8] sm:$0xff]
      %v6556 = vld [vmem:[%s8 + $0x1c0] sm:$0xff]
      %v6557 = vld [vmem:[%s8 + $0x1c8] sm:$0xff]
      %v6558 = vld [vmem:[%s8 + $0x1d0] sm:$0xff]
      %v6559 = vld [vmem:[%s8 + $0x1d8] sm:$0xff]
      %v6560 = vld [vmem:[%s8 + $0x1e0] sm:$0xff]
      %v6561 = vld [vmem:[%s8 + $0x1e8] sm:$0xff]
      %v6562 = vld [vmem:[%s8 + $0x1f0] sm:$0xff]
      %v6563 = vld [vmem:[%s8 + $0x1f8] sm:$0xff]
      %6564 = vmatpush.msra.mxu0 %v6515
      %6565 = vmatpush.msra.mxu0 %v6514
      %6566 = vmatpush.msra.mxu0 %v6513
      %6567 = vmatpush.msra.mxu0 %v6512
      %6568 = vmatpush.msra.mxu0 %v6511
      %6569 = vmatpush.msra.mxu0 %v6510
      %6570 = vmatpush.msra.mxu0 %v6509
      %6571 = vmatpush.msra.mxu0 %v6508
      %6572 = vmatpush.msra.mxu0 %v6507
      %6573 = vmatpush.msra.mxu0 %v6506
      %6574 = vmatpush.msra.mxu0 %v6505
      %6575 = vmatpush.msra.mxu0 %v6504
      %6576 = vmatpush.msra.mxu0 %v6503
      %6577 = vmatpush.msra.mxu0 %v6502
      %6578 = vmatpush.msra.mxu0 %v6501
      %6579 = vmatpush.msra.mxu0 %v6500
      %6580 = vmatmul.f32.gmra.mxu0 %v5353
      %v6581 = vpop.f32.mrf.mxu0
      %v6582 = vadd.f32 0.0, %v6581
      %6583 = vmatmul.f32.gmra.mxu0 %v5355
      %v6584 = vpop.f32.mrf.mxu0
      %v6585 = vadd.f32 0.0, %v6584
      %6586 = vmatmul.f32.gmra.mxu0 %v5358
      %v6587 = vpop.f32.mrf.mxu0
      %v6588 = vadd.f32 0.0, %v6587
      %6589 = vmatmul.f32.gmra.mxu0 %v5360
      %v6590 = vpop.f32.mrf.mxu0
      %v6591 = vadd.f32 0.0, %v6590
      %6592 = vmatmul.f32.gmra.mxu0 %v5363
      %v6593 = vpop.f32.mrf.mxu0
      %v6594 = vadd.f32 0.0, %v6593
      %6595 = vmatmul.f32.gmra.mxu0 %v5365
      %v6596 = vpop.f32.mrf.mxu0
      %v6597 = vadd.f32 0.0, %v6596
      %6598 = vmatmul.f32.gmra.mxu0 %v5368
      %v6599 = vpop.f32.mrf.mxu0
      %v6600 = vadd.f32 0.0, %v6599
      %6601 = vmatmul.f32.gmra.mxu0 %v5370
      %v6602 = vpop.f32.mrf.mxu0
      %v6603 = vadd.f32 0.0, %v6602
      %6604 = vmatmul.f32.gmra.mxu0 %v5373
      %v6605 = vpop.f32.mrf.mxu0
      %v6606 = vadd.f32 0.0, %v6605
      %6607 = vmatmul.f32.gmra.mxu0 %v5375
      %v6608 = vpop.f32.mrf.mxu0
      %v6609 = vadd.f32 0.0, %v6608
      %6610 = vmatmul.f32.gmra.mxu0 %v5378
      %v6611 = vpop.f32.mrf.mxu0
      %v6612 = vadd.f32 0.0, %v6611
      %6613 = vmatmul.f32.gmra.mxu0 %v5380
      %v6614 = vpop.f32.mrf.mxu0
      %v6615 = vadd.f32 0.0, %v6614
      %6616 = vmatmul.f32.gmra.mxu0 %v5383
      %v6617 = vpop.f32.mrf.mxu0
      %v6618 = vadd.f32 0.0, %v6617
      %6619 = vmatmul.f32.gmra.mxu0 %v5385
      %v6620 = vpop.f32.mrf.mxu0
      %v6621 = vadd.f32 0.0, %v6620
      %6622 = vmatmul.f32.gmra.mxu0 %v5388
      %v6623 = vpop.f32.mrf.mxu0
      %v6624 = vadd.f32 0.0, %v6623
      %6625 = vmatmul.f32.gmra.mxu0 %v5390
      %v6626 = vpop.f32.mrf.mxu0
      %v6627 = vadd.f32 0.0, %v6626
      %6628 = vmatmul.f32.gmra.mxu0 %v5393
      %v6629 = vpop.f32.mrf.mxu0
      %v6630 = vadd.f32 0.0, %v6629
      %6631 = vmatmul.f32.gmra.mxu0 %v5395
      %v6632 = vpop.f32.mrf.mxu0
      %v6633 = vadd.f32 0.0, %v6632
      %6634 = vmatmul.f32.gmra.mxu0 %v5398
      %v6635 = vpop.f32.mrf.mxu0
      %v6636 = vadd.f32 0.0, %v6635
      %6637 = vmatmul.f32.gmra.mxu0 %v5400
      %v6638 = vpop.f32.mrf.mxu0
      %v6639 = vadd.f32 0.0, %v6638
      %6640 = vmatmul.f32.gmra.mxu0 %v5403
      %v6641 = vpop.f32.mrf.mxu0
      %v6642 = vadd.f32 0.0, %v6641
      %6643 = vmatmul.f32.gmra.mxu0 %v5405
      %v6644 = vpop.f32.mrf.mxu0
      %v6645 = vadd.f32 0.0, %v6644
      %6646 = vmatmul.f32.gmra.mxu0 %v5408
      %v6647 = vpop.f32.mrf.mxu0
      %v6648 = vadd.f32 0.0, %v6647
      %6649 = vmatmul.f32.gmra.mxu0 %v5410
      %v6650 = vpop.f32.mrf.mxu0
      %v6651 = vadd.f32 0.0, %v6650
      %6652 = vmatmul.f32.gmra.mxu0 %v5413
      %v6653 = vpop.f32.mrf.mxu0
      %v6654 = vadd.f32 0.0, %v6653
      %6655 = vmatmul.f32.gmra.mxu0 %v5415
      %v6656 = vpop.f32.mrf.mxu0
      %v6657 = vadd.f32 0.0, %v6656
      %6658 = vmatmul.f32.gmra.mxu0 %v5418
      %v6659 = vpop.f32.mrf.mxu0
      %v6660 = vadd.f32 0.0, %v6659
      %6661 = vmatmul.f32.gmra.mxu0 %v5420
      %v6662 = vpop.f32.mrf.mxu0
      %v6663 = vadd.f32 0.0, %v6662
      %6664 = vmatmul.f32.gmra.mxu0 %v5423
      %v6665 = vpop.f32.mrf.mxu0
      %v6666 = vadd.f32 0.0, %v6665
      %6667 = vmatmul.f32.gmra.mxu0 %v5425
      %v6668 = vpop.f32.mrf.mxu0
      %v6669 = vadd.f32 0.0, %v6668
      %6670 = vmatmul.f32.gmra.mxu0 %v5428
      %v6671 = vpop.f32.mrf.mxu0
      %v6672 = vadd.f32 0.0, %v6671
      %6673 = vmatmul.f32.gmra.mxu0 %v5430
      %v6674 = vpop.f32.mrf.mxu0
      %v6675 = vadd.f32 0.0, %v6674
      %6676 = vdwg.mxu0
      %6677 = vmatpush.msra.mxu0 %v6531
      %6678 = vmatpush.msra.mxu0 %v6530
      %6679 = vmatpush.msra.mxu0 %v6529
      %6680 = vmatpush.msra.mxu0 %v6528
      %6681 = vmatpush.msra.mxu0 %v6527
      %6682 = vmatpush.msra.mxu0 %v6526
      %6683 = vmatpush.msra.mxu0 %v6525
      %6684 = vmatpush.msra.mxu0 %v6524
      %6685 = vmatpush.msra.mxu0 %v6523
      %6686 = vmatpush.msra.mxu0 %v6522
      %6687 = vmatpush.msra.mxu0 %v6521
      %6688 = vmatpush.msra.mxu0 %v6520
      %6689 = vmatpush.msra.mxu0 %v6519
      %6690 = vmatpush.msra.mxu0 %v6518
      %6691 = vmatpush.msra.mxu0 %v6517
      %6692 = vmatpush.msra.mxu0 %v6516
      %6693 = vmatmul.f32.gmra.mxu0 %v5709
      %v6694 = vpop.f32.mrf.mxu0
      %v6695 = vadd.f32 %v6582, %v6694
      %6696 = vmatmul.f32.gmra.mxu0 %v5711
      %v6697 = vpop.f32.mrf.mxu0
      %v6698 = vadd.f32 %v6585, %v6697
      %6699 = vmatmul.f32.gmra.mxu0 %v5714
      %v6700 = vpop.f32.mrf.mxu0
      %v6701 = vadd.f32 %v6588, %v6700
      %6702 = vmatmul.f32.gmra.mxu0 %v5716
      %v6703 = vpop.f32.mrf.mxu0
      %v6704 = vadd.f32 %v6591, %v6703
      %6705 = vmatmul.f32.gmra.mxu0 %v5719
      %v6706 = vpop.f32.mrf.mxu0
      %v6707 = vadd.f32 %v6594, %v6706
      %6708 = vmatmul.f32.gmra.mxu0 %v5721
      %v6709 = vpop.f32.mrf.mxu0
      %v6710 = vadd.f32 %v6597, %v6709
      %6711 = vmatmul.f32.gmra.mxu0 %v5724
      %v6712 = vpop.f32.mrf.mxu0
      %v6713 = vadd.f32 %v6600, %v6712
      %6714 = vmatmul.f32.gmra.mxu0 %v5726
      %v6715 = vpop.f32.mrf.mxu0
      %v6716 = vadd.f32 %v6603, %v6715
      %6717 = vmatmul.f32.gmra.mxu0 %v5729
      %v6718 = vpop.f32.mrf.mxu0
      %v6719 = vadd.f32 %v6606, %v6718
      %6720 = vmatmul.f32.gmra.mxu0 %v5731
      %v6721 = vpop.f32.mrf.mxu0
      %v6722 = vadd.f32 %v6609, %v6721
      %6723 = vmatmul.f32.gmra.mxu0 %v5734
      %v6724 = vpop.f32.mrf.mxu0
      %v6725 = vadd.f32 %v6612, %v6724
      %6726 = vmatmul.f32.gmra.mxu0 %v5736
      %v6727 = vpop.f32.mrf.mxu0
      %v6728 = vadd.f32 %v6615, %v6727
      %6729 = vmatmul.f32.gmra.mxu0 %v5739
      %v6730 = vpop.f32.mrf.mxu0
      %v6731 = vadd.f32 %v6618, %v6730
      %6732 = vmatmul.f32.gmra.mxu0 %v5741
      %v6733 = vpop.f32.mrf.mxu0
      %v6734 = vadd.f32 %v6621, %v6733
      %6735 = vmatmul.f32.gmra.mxu0 %v5744
      %v6736 = vpop.f32.mrf.mxu0
      %v6737 = vadd.f32 %v6624, %v6736
      %6738 = vmatmul.f32.gmra.mxu0 %v5746
      %v6739 = vpop.f32.mrf.mxu0
      %v6740 = vadd.f32 %v6627, %v6739
      %6741 = vmatmul.f32.gmra.mxu0 %v5749
      %v6742 = vpop.f32.mrf.mxu0
      %v6743 = vadd.f32 %v6630, %v6742
      %6744 = vmatmul.f32.gmra.mxu0 %v5751
      %v6745 = vpop.f32.mrf.mxu0
      %v6746 = vadd.f32 %v6633, %v6745
      %6747 = vmatmul.f32.gmra.mxu0 %v5754
      %v6748 = vpop.f32.mrf.mxu0
      %v6749 = vadd.f32 %v6636, %v6748
      %6750 = vmatmul.f32.gmra.mxu0 %v5756
      %v6751 = vpop.f32.mrf.mxu0
      %v6752 = vadd.f32 %v6639, %v6751
      %6753 = vmatmul.f32.gmra.mxu0 %v5759
      %v6754 = vpop.f32.mrf.mxu0
      %v6755 = vadd.f32 %v6642, %v6754
      %6756 = vmatmul.f32.gmra.mxu0 %v5761
      %v6757 = vpop.f32.mrf.mxu0
      %v6758 = vadd.f32 %v6645, %v6757
      %6759 = vmatmul.f32.gmra.mxu0 %v5764
      %v6760 = vpop.f32.mrf.mxu0
      %v6761 = vadd.f32 %v6648, %v6760
      %6762 = vmatmul.f32.gmra.mxu0 %v5766
      %v6763 = vpop.f32.mrf.mxu0
      %v6764 = vadd.f32 %v6651, %v6763
      %6765 = vmatmul.f32.gmra.mxu0 %v5769
      %v6766 = vpop.f32.mrf.mxu0
      %v6767 = vadd.f32 %v6654, %v6766
      %6768 = vmatmul.f32.gmra.mxu0 %v5771
      %v6769 = vpop.f32.mrf.mxu0
      %v6770 = vadd.f32 %v6657, %v6769
      %6771 = vmatmul.f32.gmra.mxu0 %v5774
      %v6772 = vpop.f32.mrf.mxu0
      %v6773 = vadd.f32 %v6660, %v6772
      %6774 = vmatmul.f32.gmra.mxu0 %v5776
      %v6775 = vpop.f32.mrf.mxu0
      %v6776 = vadd.f32 %v6663, %v6775
      %6777 = vmatmul.f32.gmra.mxu0 %v5779
      %v6778 = vpop.f32.mrf.mxu0
      %v6779 = vadd.f32 %v6666, %v6778
      %6780 = vmatmul.f32.gmra.mxu0 %v5781
      %v6781 = vpop.f32.mrf.mxu0
      %v6782 = vadd.f32 %v6669, %v6781
      %6783 = vmatmul.f32.gmra.mxu0 %v5784
      %v6784 = vpop.f32.mrf.mxu0
      %v6785 = vadd.f32 %v6672, %v6784
      %6786 = vmatmul.f32.gmra.mxu0 %v5786
      %v6787 = vpop.f32.mrf.mxu0
      %v6788 = vadd.f32 %v6675, %v6787
      %6789 = vdwg.mxu0
      %6790 = vmatpush.msra.mxu0 %v6547
      %6791 = vmatpush.msra.mxu0 %v6546
      %6792 = vmatpush.msra.mxu0 %v6545
      %6793 = vmatpush.msra.mxu0 %v6544
      %6794 = vmatpush.msra.mxu0 %v6543
      %6795 = vmatpush.msra.mxu0 %v6542
      %6796 = vmatpush.msra.mxu0 %v6541
      %6797 = vmatpush.msra.mxu0 %v6540
      %6798 = vmatpush.msra.mxu0 %v6539
      %6799 = vmatpush.msra.mxu0 %v6538
      %6800 = vmatpush.msra.mxu0 %v6537
      %6801 = vmatpush.msra.mxu0 %v6536
      %6802 = vmatpush.msra.mxu0 %v6535
      %6803 = vmatpush.msra.mxu0 %v6534
      %6804 = vmatpush.msra.mxu0 %v6533
      %6805 = vmatpush.msra.mxu0 %v6532
      %6806 = vmatmul.f32.gmra.mxu0 %v6065
      %v6807 = vpop.f32.mrf.mxu0
      %v6808 = vadd.f32 %v6695, %v6807
      %6809 = vmatmul.f32.gmra.mxu0 %v6067
      %v6810 = vpop.f32.mrf.mxu0
      %v6811 = vadd.f32 %v6698, %v6810
      %6812 = vmatmul.f32.gmra.mxu0 %v6070
      %v6813 = vpop.f32.mrf.mxu0
      %v6814 = vadd.f32 %v6701, %v6813
      %6815 = vmatmul.f32.gmra.mxu0 %v6072
      %v6816 = vpop.f32.mrf.mxu0
      %v6817 = vadd.f32 %v6704, %v6816
      %6818 = vmatmul.f32.gmra.mxu0 %v6075
      %v6819 = vpop.f32.mrf.mxu0
      %v6820 = vadd.f32 %v6707, %v6819
      %6821 = vmatmul.f32.gmra.mxu0 %v6077
      %v6822 = vpop.f32.mrf.mxu0
      %v6823 = vadd.f32 %v6710, %v6822
      %6824 = vmatmul.f32.gmra.mxu0 %v6080
      %v6825 = vpop.f32.mrf.mxu0
      %v6826 = vadd.f32 %v6713, %v6825
      %6827 = vmatmul.f32.gmra.mxu0 %v6082
      %v6828 = vpop.f32.mrf.mxu0
      %v6829 = vadd.f32 %v6716, %v6828
      %6830 = vmatmul.f32.gmra.mxu0 %v6085
      %v6831 = vpop.f32.mrf.mxu0
      %v6832 = vadd.f32 %v6719, %v6831
      %6833 = vmatmul.f32.gmra.mxu0 %v6087
      %v6834 = vpop.f32.mrf.mxu0
      %v6835 = vadd.f32 %v6722, %v6834
      %6836 = vmatmul.f32.gmra.mxu0 %v6090
      %v6837 = vpop.f32.mrf.mxu0
      %v6838 = vadd.f32 %v6725, %v6837
      %6839 = vmatmul.f32.gmra.mxu0 %v6092
      %v6840 = vpop.f32.mrf.mxu0
      %v6841 = vadd.f32 %v6728, %v6840
      %6842 = vmatmul.f32.gmra.mxu0 %v6095
      %v6843 = vpop.f32.mrf.mxu0
      %v6844 = vadd.f32 %v6731, %v6843
      %6845 = vmatmul.f32.gmra.mxu0 %v6097
      %v6846 = vpop.f32.mrf.mxu0
      %v6847 = vadd.f32 %v6734, %v6846
      %6848 = vmatmul.f32.gmra.mxu0 %v6100
      %v6849 = vpop.f32.mrf.mxu0
      %v6850 = vadd.f32 %v6737, %v6849
      %6851 = vmatmul.f32.gmra.mxu0 %v6102
      %v6852 = vpop.f32.mrf.mxu0
      %v6853 = vadd.f32 %v6740, %v6852
      %6854 = vmatmul.f32.gmra.mxu0 %v6105
      %v6855 = vpop.f32.mrf.mxu0
      %v6856 = vadd.f32 %v6743, %v6855
      %6857 = vmatmul.f32.gmra.mxu0 %v6107
      %v6858 = vpop.f32.mrf.mxu0
      %v6859 = vadd.f32 %v6746, %v6858
      %6860 = vmatmul.f32.gmra.mxu0 %v6110
      %v6861 = vpop.f32.mrf.mxu0
      %v6862 = vadd.f32 %v6749, %v6861
      %6863 = vmatmul.f32.gmra.mxu0 %v6112
      %v6864 = vpop.f32.mrf.mxu0
      %v6865 = vadd.f32 %v6752, %v6864
      %6866 = vmatmul.f32.gmra.mxu0 %v6115
      %v6867 = vpop.f32.mrf.mxu0
      %v6868 = vadd.f32 %v6755, %v6867
      %6869 = vmatmul.f32.gmra.mxu0 %v6117
      %v6870 = vpop.f32.mrf.mxu0
      %v6871 = vadd.f32 %v6758, %v6870
      %6872 = vmatmul.f32.gmra.mxu0 %v6120
      %v6873 = vpop.f32.mrf.mxu0
      %v6874 = vadd.f32 %v6761, %v6873
      %6875 = vmatmul.f32.gmra.mxu0 %v6122
      %v6876 = vpop.f32.mrf.mxu0
      %v6877 = vadd.f32 %v6764, %v6876
      %6878 = vmatmul.f32.gmra.mxu0 %v6125
      %v6879 = vpop.f32.mrf.mxu0
      %v6880 = vadd.f32 %v6767, %v6879
      %6881 = vmatmul.f32.gmra.mxu0 %v6127
      %v6882 = vpop.f32.mrf.mxu0
      %v6883 = vadd.f32 %v6770, %v6882
      %6884 = vmatmul.f32.gmra.mxu0 %v6130
      %v6885 = vpop.f32.mrf.mxu0
      %v6886 = vadd.f32 %v6773, %v6885
      %6887 = vmatmul.f32.gmra.mxu0 %v6132
      %v6888 = vpop.f32.mrf.mxu0
      %v6889 = vadd.f32 %v6776, %v6888
      %6890 = vmatmul.f32.gmra.mxu0 %v6135
      %v6891 = vpop.f32.mrf.mxu0
      %v6892 = vadd.f32 %v6779, %v6891
      %6893 = vmatmul.f32.gmra.mxu0 %v6137
      %v6894 = vpop.f32.mrf.mxu0
      %v6895 = vadd.f32 %v6782, %v6894
      %6896 = vmatmul.f32.gmra.mxu0 %v6140
      %v6897 = vpop.f32.mrf.mxu0
      %v6898 = vadd.f32 %v6785, %v6897
      %6899 = vmatmul.f32.gmra.mxu0 %v6142
      %v6900 = vpop.f32.mrf.mxu0
      %v6901 = vadd.f32 %v6788, %v6900
      %6902 = vdwg.mxu0
      %6903 = vmatpush.msra.mxu0 %v6563
      %6904 = vmatpush.msra.mxu0 %v6562
      %6905 = vmatpush.msra.mxu0 %v6561
      %6906 = vmatpush.msra.mxu0 %v6560
      %6907 = vmatpush.msra.mxu0 %v6559
      %6908 = vmatpush.msra.mxu0 %v6558
      %6909 = vmatpush.msra.mxu0 %v6557
      %6910 = vmatpush.msra.mxu0 %v6556
      %6911 = vmatpush.msra.mxu0 %v6555
      %6912 = vmatpush.msra.mxu0 %v6554
      %6913 = vmatpush.msra.mxu0 %v6553
      %6914 = vmatpush.msra.mxu0 %v6552
      %6915 = vmatpush.msra.mxu0 %v6551
      %6916 = vmatpush.msra.mxu0 %v6550
      %6917 = vmatpush.msra.mxu0 %v6549
      %6918 = vmatpush.msra.mxu0 %v6548
      %6919 = vmatmul.f32.gmra.mxu0 %v6421
      %v6920 = vpop.f32.mrf.mxu0
      %v6921 = vadd.f32 %v6808, %v6920
      %6922 = vmatmul.f32.gmra.mxu0 %v6423
      %v6923 = vpop.f32.mrf.mxu0
      %v6924 = vadd.f32 %v6811, %v6923
      %6925 = vmatmul.f32.gmra.mxu0 %v6426
      %v6926 = vpop.f32.mrf.mxu0
      %v6927 = vadd.f32 %v6814, %v6926
      %6928 = vmatmul.f32.gmra.mxu0 %v6428
      %v6929 = vpop.f32.mrf.mxu0
      %v6930 = vadd.f32 %v6817, %v6929
      %6931 = vmatmul.f32.gmra.mxu0 %v6431
      %v6932 = vpop.f32.mrf.mxu0
      %v6933 = vadd.f32 %v6820, %v6932
      %6934 = vmatmul.f32.gmra.mxu0 %v6433
      %v6935 = vpop.f32.mrf.mxu0
      %v6936 = vadd.f32 %v6823, %v6935
      %6937 = vmatmul.f32.gmra.mxu0 %v6436
      %v6938 = vpop.f32.mrf.mxu0
      %v6939 = vadd.f32 %v6826, %v6938
      %6940 = vmatmul.f32.gmra.mxu0 %v6438
      %v6941 = vpop.f32.mrf.mxu0
      %v6942 = vadd.f32 %v6829, %v6941
      %6943 = vmatmul.f32.gmra.mxu0 %v6441
      %v6944 = vpop.f32.mrf.mxu0
      %v6945 = vadd.f32 %v6832, %v6944
      %6946 = vmatmul.f32.gmra.mxu0 %v6443
      %v6947 = vpop.f32.mrf.mxu0
      %v6948 = vadd.f32 %v6835, %v6947
      %6949 = vmatmul.f32.gmra.mxu0 %v6446
      %v6950 = vpop.f32.mrf.mxu0
      %v6951 = vadd.f32 %v6838, %v6950
      %6952 = vmatmul.f32.gmra.mxu0 %v6448
      %v6953 = vpop.f32.mrf.mxu0
      %v6954 = vadd.f32 %v6841, %v6953
      %6955 = vmatmul.f32.gmra.mxu0 %v6451
      %v6956 = vpop.f32.mrf.mxu0
      %v6957 = vadd.f32 %v6844, %v6956
      %6958 = vmatmul.f32.gmra.mxu0 %v6453
      %v6959 = vpop.f32.mrf.mxu0
      %v6960 = vadd.f32 %v6847, %v6959
      %6961 = vmatmul.f32.gmra.mxu0 %v6456
      %v6962 = vpop.f32.mrf.mxu0
      %v6963 = vadd.f32 %v6850, %v6962
      %6964 = vmatmul.f32.gmra.mxu0 %v6458
      %v6965 = vpop.f32.mrf.mxu0
      %v6966 = vadd.f32 %v6853, %v6965
      %6967 = vmatmul.f32.gmra.mxu0 %v6461
      %v6968 = vpop.f32.mrf.mxu0
      %v6969 = vadd.f32 %v6856, %v6968
      %6970 = vmatmul.f32.gmra.mxu0 %v6463
      %v6971 = vpop.f32.mrf.mxu0
      %v6972 = vadd.f32 %v6859, %v6971
      %6973 = vmatmul.f32.gmra.mxu0 %v6466
      %v6974 = vpop.f32.mrf.mxu0
      %v6975 = vadd.f32 %v6862, %v6974
      %6976 = vmatmul.f32.gmra.mxu0 %v6468
      %v6977 = vpop.f32.mrf.mxu0
      %v6978 = vadd.f32 %v6865, %v6977
      %6979 = vmatmul.f32.gmra.mxu0 %v6471
      %v6980 = vpop.f32.mrf.mxu0
      %v6981 = vadd.f32 %v6868, %v6980
      %6982 = vmatmul.f32.gmra.mxu0 %v6473
      %v6983 = vpop.f32.mrf.mxu0
      %v6984 = vadd.f32 %v6871, %v6983
      %6985 = vmatmul.f32.gmra.mxu0 %v6476
      %v6986 = vpop.f32.mrf.mxu0
      %v6987 = vadd.f32 %v6874, %v6986
      %6988 = vmatmul.f32.gmra.mxu0 %v6478
      %v6989 = vpop.f32.mrf.mxu0
      %v6990 = vadd.f32 %v6877, %v6989
      %6991 = vmatmul.f32.gmra.mxu0 %v6481
      %v6992 = vpop.f32.mrf.mxu0
      %v6993 = vadd.f32 %v6880, %v6992
      %6994 = vmatmul.f32.gmra.mxu0 %v6483
      %v6995 = vpop.f32.mrf.mxu0
      %v6996 = vadd.f32 %v6883, %v6995
      %6997 = vmatmul.f32.gmra.mxu0 %v6486
      %v6998 = vpop.f32.mrf.mxu0
      %v6999 = vadd.f32 %v6886, %v6998
      %7000 = vmatmul.f32.gmra.mxu0 %v6488
      %v7001 = vpop.f32.mrf.mxu0
      %v7002 = vadd.f32 %v6889, %v7001
      %7003 = vmatmul.f32.gmra.mxu0 %v6491
      %v7004 = vpop.f32.mrf.mxu0
      %v7005 = vadd.f32 %v6892, %v7004
      %7006 = vmatmul.f32.gmra.mxu0 %v6493
      %v7007 = vpop.f32.mrf.mxu0
      %v7008 = vadd.f32 %v6895, %v7007
      %7009 = vmatmul.f32.gmra.mxu0 %v6496
      %v7010 = vpop.f32.mrf.mxu0
      %v7011 = vadd.f32 %v6898, %v7010
      %7012 = vmatmul.f32.gmra.mxu0 %v6498
      %v7013 = vpop.f32.mrf.mxu0
      %v7014 = vadd.f32 %v6901, %v7013
      %7015 = vdwg.mxu0
      %v7016 = vld [vmem:[%s9] sm:$0xff]
      %v7017 = vld [vmem:[%s9 + $0x8] sm:$0xff]
      %v7018 = vld [vmem:[%s9 + $0x10] sm:$0xff]
      %v7019 = vld [vmem:[%s9 + $0x18] sm:$0xff]
      %v7020 = vld [vmem:[%s9 + $0x20] sm:$0xff]
      %v7021 = vld [vmem:[%s9 + $0x28] sm:$0xff]
      %v7022 = vld [vmem:[%s9 + $0x30] sm:$0xff]
      %v7023 = vld [vmem:[%s9 + $0x38] sm:$0xff]
      %v7025 = vsel %vm1577, %v6921, 0
      %v7028 = vsel %vm1577, %v6924, 0
      %v7031 = vsel %vm1577, %v6927, 0
      %v7034 = vsel %vm1577, %v6930, 0
      %v7037 = vsel %vm1577, %v6933, 0
      %v7040 = vsel %vm1577, %v6936, 0
      %v7043 = vsel %vm1577, %v6939, 0
      %v7046 = vsel %vm1577, %v6942, 0
      %v7049 = vsel %vm1577, %v6945, 0
      %v7052 = vsel %vm1577, %v6948, 0
      %v7055 = vsel %vm1577, %v6951, 0
      %v7058 = vsel %vm1577, %v6954, 0
      %v7061 = vsel %vm1577, %v6957, 0
      %v7064 = vsel %vm1577, %v6960, 0
      %v7067 = vsel %vm1577, %v6963, 0
      %v7070 = vsel %vm1577, %v6966, 0
      %v7073 = vsel %vm1577, %v6969, 0
      %v7076 = vsel %vm1577, %v6972, 0
      %v7079 = vsel %vm1577, %v6975, 0
      %v7082 = vsel %vm1577, %v6978, 0
      %v7085 = vsel %vm1577, %v6981, 0
      %v7088 = vsel %vm1577, %v6984, 0
      %v7091 = vsel %vm1577, %v6987, 0
      %v7094 = vsel %vm1577, %v6990, 0
      %v7097 = vsel %vm1577, %v6993, 0
      %v7100 = vsel %vm1577, %v6996, 0
      %v7103 = vsel %vm1577, %v6999, 0
      %v7106 = vsel %vm1577, %v7002, 0
      %v7109 = vsel %vm1577, %v7005, 0
      %v7112 = vsel %vm1577, %v7008, 0
      %v7115 = vsel %vm1577, %v7011, 0
      %v7118 = vsel %vm1577, %v7014, 0
      %7120 = vmatpush.msra.mxu0 0.0
      %7121 = vmatpush.msra.mxu0 0.0
      %7122 = vmatpush.msra.mxu0 0.0
      %7123 = vmatpush.msra.mxu0 0.0
      %7124 = vmatpush.msra.mxu0 0.0
      %7125 = vmatpush.msra.mxu0 0.0
      %7126 = vmatpush.msra.mxu0 0.0
      %7127 = vmatpush.msra.mxu0 0.0
      %7128 = vmatpush.msra.mxu0 0.0
      %7129 = vmatpush.msra.mxu0 0.0
      %7130 = vmatpush.msra.mxu0 0.0
      %7131 = vmatpush.msra.mxu0 0.0
      %7132 = vmatpush.msra.mxu0 0.0
      %7133 = vmatpush.msra.mxu0 0.0
      %7134 = vmatpush.msra.mxu0 %v7020
      %7135 = vmatpush.msra.mxu0 %v7016
      %7136 = vmatmul.f32.gmra.mxu0 %v7025
      %v7137 = vpop.f32.mrf.mxu0
      %v7138 = vadd.f32 0.0, %v7137
      %7139 = vmatmul.f32.gmra.mxu0 %v7028
      %v7140 = vpop.f32.mrf.mxu0
      %v7141 = vadd.f32 0.0, %v7140
      %7142 = vmatmul.f32.gmra.mxu0 %v7031
      %v7143 = vpop.f32.mrf.mxu0
      %v7144 = vadd.f32 0.0, %v7143
      %7145 = vmatmul.f32.gmra.mxu0 %v7034
      %v7146 = vpop.f32.mrf.mxu0
      %v7147 = vadd.f32 0.0, %v7146
      %7148 = vmatmul.f32.gmra.mxu0 %v7037
      %v7149 = vpop.f32.mrf.mxu0
      %v7150 = vadd.f32 0.0, %v7149
      %7151 = vmatmul.f32.gmra.mxu0 %v7040
      %v7152 = vpop.f32.mrf.mxu0
      %v7153 = vadd.f32 0.0, %v7152
      %7154 = vmatmul.f32.gmra.mxu0 %v7043
      %v7155 = vpop.f32.mrf.mxu0
      %v7156 = vadd.f32 0.0, %v7155
      %7157 = vmatmul.f32.gmra.mxu0 %v7046
      %v7158 = vpop.f32.mrf.mxu0
      %v7159 = vadd.f32 0.0, %v7158
      %7160 = vmatmul.f32.gmra.mxu0 %v7049
      %v7161 = vpop.f32.mrf.mxu0
      %v7162 = vadd.f32 0.0, %v7161
      %7163 = vmatmul.f32.gmra.mxu0 %v7052
      %v7164 = vpop.f32.mrf.mxu0
      %v7165 = vadd.f32 0.0, %v7164
      %7166 = vmatmul.f32.gmra.mxu0 %v7055
      %v7167 = vpop.f32.mrf.mxu0
      %v7168 = vadd.f32 0.0, %v7167
      %7169 = vmatmul.f32.gmra.mxu0 %v7058
      %v7170 = vpop.f32.mrf.mxu0
      %v7171 = vadd.f32 0.0, %v7170
      %7172 = vmatmul.f32.gmra.mxu0 %v7061
      %v7173 = vpop.f32.mrf.mxu0
      %v7174 = vadd.f32 0.0, %v7173
      %7175 = vmatmul.f32.gmra.mxu0 %v7064
      %v7176 = vpop.f32.mrf.mxu0
      %v7177 = vadd.f32 0.0, %v7176
      %7178 = vmatmul.f32.gmra.mxu0 %v7067
      %v7179 = vpop.f32.mrf.mxu0
      %v7180 = vadd.f32 0.0, %v7179
      %7181 = vmatmul.f32.gmra.mxu0 %v7070
      %v7182 = vpop.f32.mrf.mxu0
      %v7183 = vadd.f32 0.0, %v7182
      %7184 = vmatmul.f32.gmra.mxu0 %v7073
      %v7185 = vpop.f32.mrf.mxu0
      %v7186 = vadd.f32 0.0, %v7185
      %7187 = vmatmul.f32.gmra.mxu0 %v7076
      %v7188 = vpop.f32.mrf.mxu0
      %v7189 = vadd.f32 0.0, %v7188
      %7190 = vmatmul.f32.gmra.mxu0 %v7079
      %v7191 = vpop.f32.mrf.mxu0
      %v7192 = vadd.f32 0.0, %v7191
      %7193 = vmatmul.f32.gmra.mxu0 %v7082
      %v7194 = vpop.f32.mrf.mxu0
      %v7195 = vadd.f32 0.0, %v7194
      %7196 = vmatmul.f32.gmra.mxu0 %v7085
      %v7197 = vpop.f32.mrf.mxu0
      %v7198 = vadd.f32 0.0, %v7197
      %7199 = vmatmul.f32.gmra.mxu0 %v7088
      %v7200 = vpop.f32.mrf.mxu0
      %v7201 = vadd.f32 0.0, %v7200
      %7202 = vmatmul.f32.gmra.mxu0 %v7091
      %v7203 = vpop.f32.mrf.mxu0
      %v7204 = vadd.f32 0.0, %v7203
      %7205 = vmatmul.f32.gmra.mxu0 %v7094
      %v7206 = vpop.f32.mrf.mxu0
      %v7207 = vadd.f32 0.0, %v7206
      %7208 = vmatmul.f32.gmra.mxu0 %v7097
      %v7209 = vpop.f32.mrf.mxu0
      %v7210 = vadd.f32 0.0, %v7209
      %7211 = vmatmul.f32.gmra.mxu0 %v7100
      %v7212 = vpop.f32.mrf.mxu0
      %v7213 = vadd.f32 0.0, %v7212
      %7214 = vmatmul.f32.gmra.mxu0 %v7103
      %v7215 = vpop.f32.mrf.mxu0
      %v7216 = vadd.f32 0.0, %v7215
      %7217 = vmatmul.f32.gmra.mxu0 %v7106
      %v7218 = vpop.f32.mrf.mxu0
      %v7219 = vadd.f32 0.0, %v7218
      %7220 = vmatmul.f32.gmra.mxu0 %v7109
      %v7221 = vpop.f32.mrf.mxu0
      %v7222 = vadd.f32 0.0, %v7221
      %7223 = vmatmul.f32.gmra.mxu0 %v7112
      %v7224 = vpop.f32.mrf.mxu0
      %v7225 = vadd.f32 0.0, %v7224
      %7226 = vmatmul.f32.gmra.mxu0 %v7115
      %v7227 = vpop.f32.mrf.mxu0
      %v7228 = vadd.f32 0.0, %v7227
      %7229 = vmatmul.f32.gmra.mxu0 %v7118
      %v7230 = vpop.f32.mrf.mxu0
      %v7231 = vadd.f32 0.0, %v7230
      %7232 = vdwg.mxu0
      %7233 = vmatpush.msra.mxu0 0.0
      %7234 = vmatpush.msra.mxu0 0.0
      %7235 = vmatpush.msra.mxu0 0.0
      %7236 = vmatpush.msra.mxu0 0.0
      %7237 = vmatpush.msra.mxu0 0.0
      %7238 = vmatpush.msra.mxu0 0.0
      %7239 = vmatpush.msra.mxu0 0.0
      %7240 = vmatpush.msra.mxu0 0.0
      %7241 = vmatpush.msra.mxu0 0.0
      %7242 = vmatpush.msra.mxu0 0.0
      %7243 = vmatpush.msra.mxu0 0.0
      %7244 = vmatpush.msra.mxu0 0.0
      %7245 = vmatpush.msra.mxu0 0.0
      %7246 = vmatpush.msra.mxu0 0.0
      %7247 = vmatpush.msra.mxu0 %v7021
      %7248 = vmatpush.msra.mxu0 %v7017
      %7249 = vmatmul.f32.gmra.mxu0 %v7025
      %v7250 = vpop.f32.mrf.mxu0
      %v7251 = vadd.f32 0.0, %v7250
      %7252 = vmatmul.f32.gmra.mxu0 %v7028
      %v7253 = vpop.f32.mrf.mxu0
      %v7254 = vadd.f32 0.0, %v7253
      %7255 = vmatmul.f32.gmra.mxu0 %v7031
      %v7256 = vpop.f32.mrf.mxu0
      %v7257 = vadd.f32 0.0, %v7256
      %7258 = vmatmul.f32.gmra.mxu0 %v7034
      %v7259 = vpop.f32.mrf.mxu0
      %v7260 = vadd.f32 0.0, %v7259
      %7261 = vmatmul.f32.gmra.mxu0 %v7037
      %v7262 = vpop.f32.mrf.mxu0
      %v7263 = vadd.f32 0.0, %v7262
      %7264 = vmatmul.f32.gmra.mxu0 %v7040
      %v7265 = vpop.f32.mrf.mxu0
      %v7266 = vadd.f32 0.0, %v7265
      %7267 = vmatmul.f32.gmra.mxu0 %v7043
      %v7268 = vpop.f32.mrf.mxu0
      %v7269 = vadd.f32 0.0, %v7268
      %7270 = vmatmul.f32.gmra.mxu0 %v7046
      %v7271 = vpop.f32.mrf.mxu0
      %v7272 = vadd.f32 0.0, %v7271
      %7273 = vmatmul.f32.gmra.mxu0 %v7049
      %v7274 = vpop.f32.mrf.mxu0
      %v7275 = vadd.f32 0.0, %v7274
      %7276 = vmatmul.f32.gmra.mxu0 %v7052
      %v7277 = vpop.f32.mrf.mxu0
      %v7278 = vadd.f32 0.0, %v7277
      %7279 = vmatmul.f32.gmra.mxu0 %v7055
      %v7280 = vpop.f32.mrf.mxu0
      %v7281 = vadd.f32 0.0, %v7280
      %7282 = vmatmul.f32.gmra.mxu0 %v7058
      %v7283 = vpop.f32.mrf.mxu0
      %v7284 = vadd.f32 0.0, %v7283
      %7285 = vmatmul.f32.gmra.mxu0 %v7061
      %v7286 = vpop.f32.mrf.mxu0
      %v7287 = vadd.f32 0.0, %v7286
      %7288 = vmatmul.f32.gmra.mxu0 %v7064
      %v7289 = vpop.f32.mrf.mxu0
      %v7290 = vadd.f32 0.0, %v7289
      %7291 = vmatmul.f32.gmra.mxu0 %v7067
      %v7292 = vpop.f32.mrf.mxu0
      %v7293 = vadd.f32 0.0, %v7292
      %7294 = vmatmul.f32.gmra.mxu0 %v7070
      %v7295 = vpop.f32.mrf.mxu0
      %v7296 = vadd.f32 0.0, %v7295
      %7297 = vmatmul.f32.gmra.mxu0 %v7073
      %v7298 = vpop.f32.mrf.mxu0
      %v7299 = vadd.f32 0.0, %v7298
      %7300 = vmatmul.f32.gmra.mxu0 %v7076
      %v7301 = vpop.f32.mrf.mxu0
      %v7302 = vadd.f32 0.0, %v7301
      %7303 = vmatmul.f32.gmra.mxu0 %v7079
      %v7304 = vpop.f32.mrf.mxu0
      %v7305 = vadd.f32 0.0, %v7304
      %7306 = vmatmul.f32.gmra.mxu0 %v7082
      %v7307 = vpop.f32.mrf.mxu0
      %v7308 = vadd.f32 0.0, %v7307
      %7309 = vmatmul.f32.gmra.mxu0 %v7085
      %v7310 = vpop.f32.mrf.mxu0
      %v7311 = vadd.f32 0.0, %v7310
      %7312 = vmatmul.f32.gmra.mxu0 %v7088
      %v7313 = vpop.f32.mrf.mxu0
      %v7314 = vadd.f32 0.0, %v7313
      %7315 = vmatmul.f32.gmra.mxu0 %v7091
      %v7316 = vpop.f32.mrf.mxu0
      %v7317 = vadd.f32 0.0, %v7316
      %7318 = vmatmul.f32.gmra.mxu0 %v7094
      %v7319 = vpop.f32.mrf.mxu0
      %v7320 = vadd.f32 0.0, %v7319
      %7321 = vmatmul.f32.gmra.mxu0 %v7097
      %v7322 = vpop.f32.mrf.mxu0
      %v7323 = vadd.f32 0.0, %v7322
      %7324 = vmatmul.f32.gmra.mxu0 %v7100
      %v7325 = vpop.f32.mrf.mxu0
      %v7326 = vadd.f32 0.0, %v7325
      %7327 = vmatmul.f32.gmra.mxu0 %v7103
      %v7328 = vpop.f32.mrf.mxu0
      %v7329 = vadd.f32 0.0, %v7328
      %7330 = vmatmul.f32.gmra.mxu0 %v7106
      %v7331 = vpop.f32.mrf.mxu0
      %v7332 = vadd.f32 0.0, %v7331
      %7333 = vmatmul.f32.gmra.mxu0 %v7109
      %v7334 = vpop.f32.mrf.mxu0
      %v7335 = vadd.f32 0.0, %v7334
      %7336 = vmatmul.f32.gmra.mxu0 %v7112
      %v7337 = vpop.f32.mrf.mxu0
      %v7338 = vadd.f32 0.0, %v7337
      %7339 = vmatmul.f32.gmra.mxu0 %v7115
      %v7340 = vpop.f32.mrf.mxu0
      %v7341 = vadd.f32 0.0, %v7340
      %7342 = vmatmul.f32.gmra.mxu0 %v7118
      %v7343 = vpop.f32.mrf.mxu0
      %v7344 = vadd.f32 0.0, %v7343
      %7345 = vdwg.mxu0
      %7346 = vmatpush.msra.mxu0 0.0
      %7347 = vmatpush.msra.mxu0 0.0
      %7348 = vmatpush.msra.mxu0 0.0
      %7349 = vmatpush.msra.mxu0 0.0
      %7350 = vmatpush.msra.mxu0 0.0
      %7351 = vmatpush.msra.mxu0 0.0
      %7352 = vmatpush.msra.mxu0 0.0
      %7353 = vmatpush.msra.mxu0 0.0
      %7354 = vmatpush.msra.mxu0 0.0
      %7355 = vmatpush.msra.mxu0 0.0
      %7356 = vmatpush.msra.mxu0 0.0
      %7357 = vmatpush.msra.mxu0 0.0
      %7358 = vmatpush.msra.mxu0 0.0
      %7359 = vmatpush.msra.mxu0 0.0
      %7360 = vmatpush.msra.mxu0 %v7022
      %7361 = vmatpush.msra.mxu0 %v7018
      %7362 = vmatmul.f32.gmra.mxu0 %v7025
      %v7363 = vpop.f32.mrf.mxu0
      %v7364 = vadd.f32 0.0, %v7363
      %7365 = vmatmul.f32.gmra.mxu0 %v7028
      %v7366 = vpop.f32.mrf.mxu0
      %v7367 = vadd.f32 0.0, %v7366
      %7368 = vmatmul.f32.gmra.mxu0 %v7031
      %v7369 = vpop.f32.mrf.mxu0
      %v7370 = vadd.f32 0.0, %v7369
      %7371 = vmatmul.f32.gmra.mxu0 %v7034
      %v7372 = vpop.f32.mrf.mxu0
      %v7373 = vadd.f32 0.0, %v7372
      %7374 = vmatmul.f32.gmra.mxu0 %v7037
      %v7375 = vpop.f32.mrf.mxu0
      %v7376 = vadd.f32 0.0, %v7375
      %7377 = vmatmul.f32.gmra.mxu0 %v7040
      %v7378 = vpop.f32.mrf.mxu0
      %v7379 = vadd.f32 0.0, %v7378
      %7380 = vmatmul.f32.gmra.mxu0 %v7043
      %v7381 = vpop.f32.mrf.mxu0
      %v7382 = vadd.f32 0.0, %v7381
      %7383 = vmatmul.f32.gmra.mxu0 %v7046
      %v7384 = vpop.f32.mrf.mxu0
      %v7385 = vadd.f32 0.0, %v7384
      %7386 = vmatmul.f32.gmra.mxu0 %v7049
      %v7387 = vpop.f32.mrf.mxu0
      %v7388 = vadd.f32 0.0, %v7387
      %7389 = vmatmul.f32.gmra.mxu0 %v7052
      %v7390 = vpop.f32.mrf.mxu0
      %v7391 = vadd.f32 0.0, %v7390
      %7392 = vmatmul.f32.gmra.mxu0 %v7055
      %v7393 = vpop.f32.mrf.mxu0
      %v7394 = vadd.f32 0.0, %v7393
      %7395 = vmatmul.f32.gmra.mxu0 %v7058
      %v7396 = vpop.f32.mrf.mxu0
      %v7397 = vadd.f32 0.0, %v7396
      %7398 = vmatmul.f32.gmra.mxu0 %v7061
      %v7399 = vpop.f32.mrf.mxu0
      %v7400 = vadd.f32 0.0, %v7399
      %7401 = vmatmul.f32.gmra.mxu0 %v7064
      %v7402 = vpop.f32.mrf.mxu0
      %v7403 = vadd.f32 0.0, %v7402
      %7404 = vmatmul.f32.gmra.mxu0 %v7067
      %v7405 = vpop.f32.mrf.mxu0
      %v7406 = vadd.f32 0.0, %v7405
      %7407 = vmatmul.f32.gmra.mxu0 %v7070
      %v7408 = vpop.f32.mrf.mxu0
      %v7409 = vadd.f32 0.0, %v7408
      %7410 = vmatmul.f32.gmra.mxu0 %v7073
      %v7411 = vpop.f32.mrf.mxu0
      %v7412 = vadd.f32 0.0, %v7411
      %7413 = vmatmul.f32.gmra.mxu0 %v7076
      %v7414 = vpop.f32.mrf.mxu0
      %v7415 = vadd.f32 0.0, %v7414
      %7416 = vmatmul.f32.gmra.mxu0 %v7079
      %v7417 = vpop.f32.mrf.mxu0
      %v7418 = vadd.f32 0.0, %v7417
      %7419 = vmatmul.f32.gmra.mxu0 %v7082
      %v7420 = vpop.f32.mrf.mxu0
      %v7421 = vadd.f32 0.0, %v7420
      %7422 = vmatmul.f32.gmra.mxu0 %v7085
      %v7423 = vpop.f32.mrf.mxu0
      %v7424 = vadd.f32 0.0, %v7423
      %7425 = vmatmul.f32.gmra.mxu0 %v7088
      %v7426 = vpop.f32.mrf.mxu0
      %v7427 = vadd.f32 0.0, %v7426
      %7428 = vmatmul.f32.gmra.mxu0 %v7091
      %v7429 = vpop.f32.mrf.mxu0
      %v7430 = vadd.f32 0.0, %v7429
      %7431 = vmatmul.f32.gmra.mxu0 %v7094
      %v7432 = vpop.f32.mrf.mxu0
      %v7433 = vadd.f32 0.0, %v7432
      %7434 = vmatmul.f32.gmra.mxu0 %v7097
      %v7435 = vpop.f32.mrf.mxu0
      %v7436 = vadd.f32 0.0, %v7435
      %7437 = vmatmul.f32.gmra.mxu0 %v7100
      %v7438 = vpop.f32.mrf.mxu0
      %v7439 = vadd.f32 0.0, %v7438
      %7440 = vmatmul.f32.gmra.mxu0 %v7103
      %v7441 = vpop.f32.mrf.mxu0
      %v7442 = vadd.f32 0.0, %v7441
      %7443 = vmatmul.f32.gmra.mxu0 %v7106
      %v7444 = vpop.f32.mrf.mxu0
      %v7445 = vadd.f32 0.0, %v7444
      %7446 = vmatmul.f32.gmra.mxu0 %v7109
      %v7447 = vpop.f32.mrf.mxu0
      %v7448 = vadd.f32 0.0, %v7447
      %7449 = vmatmul.f32.gmra.mxu0 %v7112
      %v7450 = vpop.f32.mrf.mxu0
      %v7451 = vadd.f32 0.0, %v7450
      %7452 = vmatmul.f32.gmra.mxu0 %v7115
      %v7453 = vpop.f32.mrf.mxu0
      %v7454 = vadd.f32 0.0, %v7453
      %7455 = vmatmul.f32.gmra.mxu0 %v7118
      %v7456 = vpop.f32.mrf.mxu0
      %v7457 = vadd.f32 0.0, %v7456
      %7458 = vdwg.mxu0
      %7459 = vmatpush.msra.mxu0 0.0
      %7460 = vmatpush.msra.mxu0 0.0
      %7461 = vmatpush.msra.mxu0 0.0
      %7462 = vmatpush.msra.mxu0 0.0
      %7463 = vmatpush.msra.mxu0 0.0
      %7464 = vmatpush.msra.mxu0 0.0
      %7465 = vmatpush.msra.mxu0 0.0
      %7466 = vmatpush.msra.mxu0 0.0
      %7467 = vmatpush.msra.mxu0 0.0
      %7468 = vmatpush.msra.mxu0 0.0
      %7469 = vmatpush.msra.mxu0 0.0
      %7470 = vmatpush.msra.mxu0 0.0
      %7471 = vmatpush.msra.mxu0 0.0
      %7472 = vmatpush.msra.mxu0 0.0
      %7473 = vmatpush.msra.mxu0 %v7023
      %7474 = vmatpush.msra.mxu0 %v7019
      %7475 = vmatmul.f32.gmra.mxu0 %v7025
      %v7476 = vpop.f32.mrf.mxu0
      %v7477 = vadd.f32 0.0, %v7476
      %7478 = vmatmul.f32.gmra.mxu0 %v7028
      %v7479 = vpop.f32.mrf.mxu0
      %v7480 = vadd.f32 0.0, %v7479
      %7481 = vmatmul.f32.gmra.mxu0 %v7031
      %v7482 = vpop.f32.mrf.mxu0
      %v7483 = vadd.f32 0.0, %v7482
      %7484 = vmatmul.f32.gmra.mxu0 %v7034
      %v7485 = vpop.f32.mrf.mxu0
      %v7486 = vadd.f32 0.0, %v7485
      %7487 = vmatmul.f32.gmra.mxu0 %v7037
      %v7488 = vpop.f32.mrf.mxu0
      %v7489 = vadd.f32 0.0, %v7488
      %7490 = vmatmul.f32.gmra.mxu0 %v7040
      %v7491 = vpop.f32.mrf.mxu0
      %v7492 = vadd.f32 0.0, %v7491
      %7493 = vmatmul.f32.gmra.mxu0 %v7043
      %v7494 = vpop.f32.mrf.mxu0
      %v7495 = vadd.f32 0.0, %v7494
      %7496 = vmatmul.f32.gmra.mxu0 %v7046
      %v7497 = vpop.f32.mrf.mxu0
      %v7498 = vadd.f32 0.0, %v7497
      %7499 = vmatmul.f32.gmra.mxu0 %v7049
      %v7500 = vpop.f32.mrf.mxu0
      %v7501 = vadd.f32 0.0, %v7500
      %7502 = vmatmul.f32.gmra.mxu0 %v7052
      %v7503 = vpop.f32.mrf.mxu0
      %v7504 = vadd.f32 0.0, %v7503
      %7505 = vmatmul.f32.gmra.mxu0 %v7055
      %v7506 = vpop.f32.mrf.mxu0
      %v7507 = vadd.f32 0.0, %v7506
      %7508 = vmatmul.f32.gmra.mxu0 %v7058
      %v7509 = vpop.f32.mrf.mxu0
      %v7510 = vadd.f32 0.0, %v7509
      %7511 = vmatmul.f32.gmra.mxu0 %v7061
      %v7512 = vpop.f32.mrf.mxu0
      %v7513 = vadd.f32 0.0, %v7512
      %7514 = vmatmul.f32.gmra.mxu0 %v7064
      %v7515 = vpop.f32.mrf.mxu0
      %v7516 = vadd.f32 0.0, %v7515
      %7517 = vmatmul.f32.gmra.mxu0 %v7067
      %v7518 = vpop.f32.mrf.mxu0
      %v7519 = vadd.f32 0.0, %v7518
      %7520 = vmatmul.f32.gmra.mxu0 %v7070
      %v7521 = vpop.f32.mrf.mxu0
      %v7522 = vadd.f32 0.0, %v7521
      %7523 = vmatmul.f32.gmra.mxu0 %v7073
      %v7524 = vpop.f32.mrf.mxu0
      %v7525 = vadd.f32 0.0, %v7524
      %7526 = vmatmul.f32.gmra.mxu0 %v7076
      %v7527 = vpop.f32.mrf.mxu0
      %v7528 = vadd.f32 0.0, %v7527
      %7529 = vmatmul.f32.gmra.mxu0 %v7079
      %v7530 = vpop.f32.mrf.mxu0
      %v7531 = vadd.f32 0.0, %v7530
      %7532 = vmatmul.f32.gmra.mxu0 %v7082
      %v7533 = vpop.f32.mrf.mxu0
      %v7534 = vadd.f32 0.0, %v7533
      %7535 = vmatmul.f32.gmra.mxu0 %v7085
      %v7536 = vpop.f32.mrf.mxu0
      %v7537 = vadd.f32 0.0, %v7536
      %7538 = vmatmul.f32.gmra.mxu0 %v7088
      %v7539 = vpop.f32.mrf.mxu0
      %v7540 = vadd.f32 0.0, %v7539
      %7541 = vmatmul.f32.gmra.mxu0 %v7091
      %v7542 = vpop.f32.mrf.mxu0
      %v7543 = vadd.f32 0.0, %v7542
      %7544 = vmatmul.f32.gmra.mxu0 %v7094
      %v7545 = vpop.f32.mrf.mxu0
      %v7546 = vadd.f32 0.0, %v7545
      %7547 = vmatmul.f32.gmra.mxu0 %v7097
      %v7548 = vpop.f32.mrf.mxu0
      %v7549 = vadd.f32 0.0, %v7548
      %7550 = vmatmul.f32.gmra.mxu0 %v7100
      %v7551 = vpop.f32.mrf.mxu0
      %v7552 = vadd.f32 0.0, %v7551
      %7553 = vmatmul.f32.gmra.mxu0 %v7103
      %v7554 = vpop.f32.mrf.mxu0
      %v7555 = vadd.f32 0.0, %v7554
      %7556 = vmatmul.f32.gmra.mxu0 %v7106
      %v7557 = vpop.f32.mrf.mxu0
      %v7558 = vadd.f32 0.0, %v7557
      %7559 = vmatmul.f32.gmra.mxu0 %v7109
      %v7560 = vpop.f32.mrf.mxu0
      %v7561 = vadd.f32 0.0, %v7560
      %7562 = vmatmul.f32.gmra.mxu0 %v7112
      %v7563 = vpop.f32.mrf.mxu0
      %v7564 = vadd.f32 0.0, %v7563
      %7565 = vmatmul.f32.gmra.mxu0 %v7115
      %v7566 = vpop.f32.mrf.mxu0
      %v7567 = vadd.f32 0.0, %v7566
      %7568 = vmatmul.f32.gmra.mxu0 %v7118
      %v7569 = vpop.f32.mrf.mxu0
      %v7570 = vadd.f32 0.0, %v7569
      %7571 = vdwg.mxu0
      %v7572 = vsub.f32 %v5353, %v7138
      %v7573 = vsub.f32 %v5709, %v7251
      %v7574 = vsub.f32 %v6065, %v7364
      %v7575 = vsub.f32 %v6421, %v7477
      %v7576 = vsub.f32 %v5355, %v7141
      %v7577 = vsub.f32 %v5711, %v7254
      %v7578 = vsub.f32 %v6067, %v7367
      %v7579 = vsub.f32 %v6423, %v7480
      %v7580 = vsub.f32 %v5358, %v7144
      %v7581 = vsub.f32 %v5714, %v7257
      %v7582 = vsub.f32 %v6070, %v7370
      %v7583 = vsub.f32 %v6426, %v7483
      %v7584 = vsub.f32 %v5360, %v7147
      %v7585 = vsub.f32 %v5716, %v7260
      %v7586 = vsub.f32 %v6072, %v7373
      %v7587 = vsub.f32 %v6428, %v7486
      %v7588 = vsub.f32 %v5363, %v7150
      %v7589 = vsub.f32 %v5719, %v7263
      %v7590 = vsub.f32 %v6075, %v7376
      %v7591 = vsub.f32 %v6431, %v7489
      %v7592 = vsub.f32 %v5365, %v7153
      %v7593 = vsub.f32 %v5721, %v7266
      %v7594 = vsub.f32 %v6077, %v7379
      %v7595 = vsub.f32 %v6433, %v7492
      %v7596 = vsub.f32 %v5368, %v7156
      %v7597 = vsub.f32 %v5724, %v7269
      %v7598 = vsub.f32 %v6080, %v7382
      %v7599 = vsub.f32 %v6436, %v7495
      %v7600 = vsub.f32 %v5370, %v7159
      %v7601 = vsub.f32 %v5726, %v7272
      %v7602 = vsub.f32 %v6082, %v7385
      %v7603 = vsub.f32 %v6438, %v7498
      %v7604 = vsub.f32 %v5373, %v7162
      %v7605 = vsub.f32 %v5729, %v7275
      %v7606 = vsub.f32 %v6085, %v7388
      %v7607 = vsub.f32 %v6441, %v7501
      %v7608 = vsub.f32 %v5375, %v7165
      %v7609 = vsub.f32 %v5731, %v7278
      %v7610 = vsub.f32 %v6087, %v7391
      %v7611 = vsub.f32 %v6443, %v7504
      %v7612 = vsub.f32 %v5378, %v7168
      %v7613 = vsub.f32 %v5734, %v7281
      %v7614 = vsub.f32 %v6090, %v7394
      %v7615 = vsub.f32 %v6446, %v7507
      %v7616 = vsub.f32 %v5380, %v7171
      %v7617 = vsub.f32 %v5736, %v7284
      %v7618 = vsub.f32 %v6092, %v7397
      %v7619 = vsub.f32 %v6448, %v7510
      %v7620 = vsub.f32 %v5383, %v7174
      %v7621 = vsub.f32 %v5739, %v7287
      %v7622 = vsub.f32 %v6095, %v7400
      %v7623 = vsub.f32 %v6451, %v7513
      %v7624 = vsub.f32 %v5385, %v7177
      %v7625 = vsub.f32 %v5741, %v7290
      %v7626 = vsub.f32 %v6097, %v7403
      %v7627 = vsub.f32 %v6453, %v7516
      %v7628 = vsub.f32 %v5388, %v7180
      %v7629 = vsub.f32 %v5744, %v7293
      %v7630 = vsub.f32 %v6100, %v7406
      %v7631 = vsub.f32 %v6456, %v7519
      %v7632 = vsub.f32 %v5390, %v7183
      %v7633 = vsub.f32 %v5746, %v7296
      %v7634 = vsub.f32 %v6102, %v7409
      %v7635 = vsub.f32 %v6458, %v7522
      %v7636 = vsub.f32 %v5393, %v7186
      %v7637 = vsub.f32 %v5749, %v7299
      %v7638 = vsub.f32 %v6105, %v7412
      %v7639 = vsub.f32 %v6461, %v7525
      %v7640 = vsub.f32 %v5395, %v7189
      %v7641 = vsub.f32 %v5751, %v7302
      %v7642 = vsub.f32 %v6107, %v7415
      %v7643 = vsub.f32 %v6463, %v7528
      %v7644 = vsub.f32 %v5398, %v7192
      %v7645 = vsub.f32 %v5754, %v7305
      %v7646 = vsub.f32 %v6110, %v7418
      %v7647 = vsub.f32 %v6466, %v7531
      %v7648 = vsub.f32 %v5400, %v7195
      %v7649 = vsub.f32 %v5756, %v7308
      %v7650 = vsub.f32 %v6112, %v7421
      %v7651 = vsub.f32 %v6468, %v7534
      %v7652 = vsub.f32 %v5403, %v7198
      %v7653 = vsub.f32 %v5759, %v7311
      %v7654 = vsub.f32 %v6115, %v7424
      %v7655 = vsub.f32 %v6471, %v7537
      %v7656 = vsub.f32 %v5405, %v7201
      %v7657 = vsub.f32 %v5761, %v7314
      %v7658 = vsub.f32 %v6117, %v7427
      %v7659 = vsub.f32 %v6473, %v7540
      %v7660 = vsub.f32 %v5408, %v7204
      %v7661 = vsub.f32 %v5764, %v7317
      %v7662 = vsub.f32 %v6120, %v7430
      %v7663 = vsub.f32 %v6476, %v7543
      %v7664 = vsub.f32 %v5410, %v7207
      %v7665 = vsub.f32 %v5766, %v7320
      %v7666 = vsub.f32 %v6122, %v7433
      %v7667 = vsub.f32 %v6478, %v7546
      %v7668 = vsub.f32 %v5413, %v7210
      %v7669 = vsub.f32 %v5769, %v7323
      %v7670 = vsub.f32 %v6125, %v7436
      %v7671 = vsub.f32 %v6481, %v7549
      %v7672 = vsub.f32 %v5415, %v7213
      %v7673 = vsub.f32 %v5771, %v7326
      %v7674 = vsub.f32 %v6127, %v7439
      %v7675 = vsub.f32 %v6483, %v7552
      %v7676 = vsub.f32 %v5418, %v7216
      %v7677 = vsub.f32 %v5774, %v7329
      %v7678 = vsub.f32 %v6130, %v7442
      %v7679 = vsub.f32 %v6486, %v7555
      %v7680 = vsub.f32 %v5420, %v7219
      %v7681 = vsub.f32 %v5776, %v7332
      %v7682 = vsub.f32 %v6132, %v7445
      %v7683 = vsub.f32 %v6488, %v7558
      %v7684 = vsub.f32 %v5423, %v7222
      %v7685 = vsub.f32 %v5779, %v7335
      %v7686 = vsub.f32 %v6135, %v7448
      %v7687 = vsub.f32 %v6491, %v7561
      %v7688 = vsub.f32 %v5425, %v7225
      %v7689 = vsub.f32 %v5781, %v7338
      %v7690 = vsub.f32 %v6137, %v7451
      %v7691 = vsub.f32 %v6493, %v7564
      %v7692 = vsub.f32 %v5428, %v7228
      %v7693 = vsub.f32 %v5784, %v7341
      %v7694 = vsub.f32 %v6140, %v7454
      %v7695 = vsub.f32 %v6496, %v7567
      %v7696 = vsub.f32 %v5430, %v7231
      %v7697 = vsub.f32 %v5786, %v7344
      %v7698 = vsub.f32 %v6142, %v7457
      %v7699 = vsub.f32 %v6498, %v7570
      %v7700 = vmul.f32 %v7572, %v7572
      %v7701 = vmul.f32 %v7573, %v7573
      %v7702 = vmul.f32 %v7574, %v7574
      %v7703 = vmul.f32 %v7575, %v7575
      %v7704 = vmul.f32 %v7576, %v7576
      %v7705 = vmul.f32 %v7577, %v7577
      %v7706 = vmul.f32 %v7578, %v7578
      %v7707 = vmul.f32 %v7579, %v7579
      %v7708 = vmul.f32 %v7580, %v7580
      %v7709 = vmul.f32 %v7581, %v7581
      %v7710 = vmul.f32 %v7582, %v7582
      %v7711 = vmul.f32 %v7583, %v7583
      %v7712 = vmul.f32 %v7584, %v7584
      %v7713 = vmul.f32 %v7585, %v7585
      %v7714 = vmul.f32 %v7586, %v7586
      %v7715 = vmul.f32 %v7587, %v7587
      %v7716 = vmul.f32 %v7588, %v7588
      %v7717 = vmul.f32 %v7589, %v7589
      %v7718 = vmul.f32 %v7590, %v7590
      %v7719 = vmul.f32 %v7591, %v7591
      %v7720 = vmul.f32 %v7592, %v7592
      %v7721 = vmul.f32 %v7593, %v7593
      %v7722 = vmul.f32 %v7594, %v7594
      %v7723 = vmul.f32 %v7595, %v7595
      %v7724 = vmul.f32 %v7596, %v7596
      %v7725 = vmul.f32 %v7597, %v7597
      %v7726 = vmul.f32 %v7598, %v7598
      %v7727 = vmul.f32 %v7599, %v7599
      %v7728 = vmul.f32 %v7600, %v7600
      %v7729 = vmul.f32 %v7601, %v7601
      %v7730 = vmul.f32 %v7602, %v7602
      %v7731 = vmul.f32 %v7603, %v7603
      %v7732 = vmul.f32 %v7604, %v7604
      %v7733 = vmul.f32 %v7605, %v7605
      %v7734 = vmul.f32 %v7606, %v7606
      %v7735 = vmul.f32 %v7607, %v7607
      %v7736 = vmul.f32 %v7608, %v7608
      %v7737 = vmul.f32 %v7609, %v7609
      %v7738 = vmul.f32 %v7610, %v7610
      %v7739 = vmul.f32 %v7611, %v7611
      %v7740 = vmul.f32 %v7612, %v7612
      %v7741 = vmul.f32 %v7613, %v7613
      %v7742 = vmul.f32 %v7614, %v7614
      %v7743 = vmul.f32 %v7615, %v7615
      %v7744 = vmul.f32 %v7616, %v7616
      %v7745 = vmul.f32 %v7617, %v7617
      %v7746 = vmul.f32 %v7618, %v7618
      %v7747 = vmul.f32 %v7619, %v7619
      %v7748 = vmul.f32 %v7620, %v7620
      %v7749 = vmul.f32 %v7621, %v7621
      %v7750 = vmul.f32 %v7622, %v7622
      %v7751 = vmul.f32 %v7623, %v7623
      %v7752 = vmul.f32 %v7624, %v7624
      %v7753 = vmul.f32 %v7625, %v7625
      %v7754 = vmul.f32 %v7626, %v7626
      %v7755 = vmul.f32 %v7627, %v7627
      %v7756 = vmul.f32 %v7628, %v7628
      %v7757 = vmul.f32 %v7629, %v7629
      %v7758 = vmul.f32 %v7630, %v7630
      %v7759 = vmul.f32 %v7631, %v7631
      %v7760 = vmul.f32 %v7632, %v7632
      %v7761 = vmul.f32 %v7633, %v7633
      %v7762 = vmul.f32 %v7634, %v7634
      %v7763 = vmul.f32 %v7635, %v7635
      %v7764 = vmul.f32 %v7636, %v7636
      %v7765 = vmul.f32 %v7637, %v7637
      %v7766 = vmul.f32 %v7638, %v7638
      %v7767 = vmul.f32 %v7639, %v7639
      %v7768 = vmul.f32 %v7640, %v7640
      %v7769 = vmul.f32 %v7641, %v7641
      %v7770 = vmul.f32 %v7642, %v7642
      %v7771 = vmul.f32 %v7643, %v7643
      %v7772 = vmul.f32 %v7644, %v7644
      %v7773 = vmul.f32 %v7645, %v7645
      %v7774 = vmul.f32 %v7646, %v7646
      %v7775 = vmul.f32 %v7647, %v7647
      %v7776 = vmul.f32 %v7648, %v7648
      %v7777 = vmul.f32 %v7649, %v7649
      %v7778 = vmul.f32 %v7650, %v7650
      %v7779 = vmul.f32 %v7651, %v7651
      %v7780 = vmul.f32 %v7652, %v7652
      %v7781 = vmul.f32 %v7653, %v7653
      %v7782 = vmul.f32 %v7654, %v7654
      %v7783 = vmul.f32 %v7655, %v7655
      %v7784 = vmul.f32 %v7656, %v7656
      %v7785 = vmul.f32 %v7657, %v7657
      %v7786 = vmul.f32 %v7658, %v7658
      %v7787 = vmul.f32 %v7659, %v7659
      %v7788 = vmul.f32 %v7660, %v7660
      %v7789 = vmul.f32 %v7661, %v7661
      %v7790 = vmul.f32 %v7662, %v7662
      %v7791 = vmul.f32 %v7663, %v7663
      %v7792 = vmul.f32 %v7664, %v7664
      %v7793 = vmul.f32 %v7665, %v7665
      %v7794 = vmul.f32 %v7666, %v7666
      %v7795 = vmul.f32 %v7667, %v7667
      %v7796 = vmul.f32 %v7668, %v7668
      %v7797 = vmul.f32 %v7669, %v7669
      %v7798 = vmul.f32 %v7670, %v7670
      %v7799 = vmul.f32 %v7671, %v7671
      %v7800 = vmul.f32 %v7672, %v7672
      %v7801 = vmul.f32 %v7673, %v7673
      %v7802 = vmul.f32 %v7674, %v7674
      %v7803 = vmul.f32 %v7675, %v7675
      %v7804 = vmul.f32 %v7676, %v7676
      %v7805 = vmul.f32 %v7677, %v7677
      %v7806 = vmul.f32 %v7678, %v7678
      %v7807 = vmul.f32 %v7679, %v7679
      %v7808 = vmul.f32 %v7680, %v7680
      %v7809 = vmul.f32 %v7681, %v7681
      %v7810 = vmul.f32 %v7682, %v7682
      %v7811 = vmul.f32 %v7683, %v7683
      %v7812 = vmul.f32 %v7684, %v7684
      %v7813 = vmul.f32 %v7685, %v7685
      %v7814 = vmul.f32 %v7686, %v7686
      %v7815 = vmul.f32 %v7687, %v7687
      %v7816 = vmul.f32 %v7688, %v7688
      %v7817 = vmul.f32 %v7689, %v7689
      %v7818 = vmul.f32 %v7690, %v7690
      %v7819 = vmul.f32 %v7691, %v7691
      %v7820 = vmul.f32 %v7692, %v7692
      %v7821 = vmul.f32 %v7693, %v7693
      %v7822 = vmul.f32 %v7694, %v7694
      %v7823 = vmul.f32 %v7695, %v7695
      %v7824 = vmul.f32 %v7696, %v7696
      %v7825 = vmul.f32 %v7697, %v7697
      %v7826 = vmul.f32 %v7698, %v7698
      %v7827 = vmul.f32 %v7699, %v7699
      %7828 = vmatpush.msra.mxu0 %v6515
      %7829 = vmatpush.msra.mxu0 %v6514
      %7830 = vmatpush.msra.mxu0 %v6513
      %7831 = vmatpush.msra.mxu0 %v6512
      %7832 = vmatpush.msra.mxu0 %v6511
      %7833 = vmatpush.msra.mxu0 %v6510
      %7834 = vmatpush.msra.mxu0 %v6509
      %7835 = vmatpush.msra.mxu0 %v6508
      %7836 = vmatpush.msra.mxu0 %v6507
      %7837 = vmatpush.msra.mxu0 %v6506
      %7838 = vmatpush.msra.mxu0 %v6505
      %7839 = vmatpush.msra.mxu0 %v6504
      %7840 = vmatpush.msra.mxu0 %v6503
      %7841 = vmatpush.msra.mxu0 %v6502
      %7842 = vmatpush.msra.mxu0 %v6501
      %7843 = vmatpush.msra.mxu0 %v6500
      %7844 = vmatmul.f32.gmra.mxu0 %v7700
      %v7845 = vpop.f32.mrf.mxu0
      %v7846 = vadd.f32 1e-05, %v7845
      %7847 = vmatmul.f32.gmra.mxu0 %v7704
      %v7848 = vpop.f32.mrf.mxu0
      %v7849 = vadd.f32 1e-05, %v7848
      %7850 = vmatmul.f32.gmra.mxu0 %v7708
      %v7851 = vpop.f32.mrf.mxu0
      %v7852 = vadd.f32 1e-05, %v7851
      %7853 = vmatmul.f32.gmra.mxu0 %v7712
      %v7854 = vpop.f32.mrf.mxu0
      %v7855 = vadd.f32 1e-05, %v7854
      %7856 = vmatmul.f32.gmra.mxu0 %v7716
      %v7857 = vpop.f32.mrf.mxu0
      %v7858 = vadd.f32 1e-05, %v7857
      %7859 = vmatmul.f32.gmra.mxu0 %v7720
      %v7860 = vpop.f32.mrf.mxu0
      %v7861 = vadd.f32 1e-05, %v7860
      %7862 = vmatmul.f32.gmra.mxu0 %v7724
      %v7863 = vpop.f32.mrf.mxu0
      %v7864 = vadd.f32 1e-05, %v7863
      %7865 = vmatmul.f32.gmra.mxu0 %v7728
      %v7866 = vpop.f32.mrf.mxu0
      %v7867 = vadd.f32 1e-05, %v7866
      %7868 = vmatmul.f32.gmra.mxu0 %v7732
      %v7869 = vpop.f32.mrf.mxu0
      %v7870 = vadd.f32 1e-05, %v7869
      %7871 = vmatmul.f32.gmra.mxu0 %v7736
      %v7872 = vpop.f32.mrf.mxu0
      %v7873 = vadd.f32 1e-05, %v7872
      %7874 = vmatmul.f32.gmra.mxu0 %v7740
      %v7875 = vpop.f32.mrf.mxu0
      %v7876 = vadd.f32 1e-05, %v7875
      %7877 = vmatmul.f32.gmra.mxu0 %v7744
      %v7878 = vpop.f32.mrf.mxu0
      %v7879 = vadd.f32 1e-05, %v7878
      %7880 = vmatmul.f32.gmra.mxu0 %v7748
      %v7881 = vpop.f32.mrf.mxu0
      %v7882 = vadd.f32 1e-05, %v7881
      %7883 = vmatmul.f32.gmra.mxu0 %v7752
      %v7884 = vpop.f32.mrf.mxu0
      %v7885 = vadd.f32 1e-05, %v7884
      %7886 = vmatmul.f32.gmra.mxu0 %v7756
      %v7887 = vpop.f32.mrf.mxu0
      %v7888 = vadd.f32 1e-05, %v7887
      %7889 = vmatmul.f32.gmra.mxu0 %v7760
      %v7890 = vpop.f32.mrf.mxu0
      %v7891 = vadd.f32 1e-05, %v7890
      %7892 = vmatmul.f32.gmra.mxu0 %v7764
      %v7893 = vpop.f32.mrf.mxu0
      %v7894 = vadd.f32 1e-05, %v7893
      %7895 = vmatmul.f32.gmra.mxu0 %v7768
      %v7896 = vpop.f32.mrf.mxu0
      %v7897 = vadd.f32 1e-05, %v7896
      %7898 = vmatmul.f32.gmra.mxu0 %v7772
      %v7899 = vpop.f32.mrf.mxu0
      %v7900 = vadd.f32 1e-05, %v7899
      %7901 = vmatmul.f32.gmra.mxu0 %v7776
      %v7902 = vpop.f32.mrf.mxu0
      %v7903 = vadd.f32 1e-05, %v7902
      %7904 = vmatmul.f32.gmra.mxu0 %v7780
      %v7905 = vpop.f32.mrf.mxu0
      %v7906 = vadd.f32 1e-05, %v7905
      %7907 = vmatmul.f32.gmra.mxu0 %v7784
      %v7908 = vpop.f32.mrf.mxu0
      %v7909 = vadd.f32 1e-05, %v7908
      %7910 = vmatmul.f32.gmra.mxu0 %v7788
      %v7911 = vpop.f32.mrf.mxu0
      %v7912 = vadd.f32 1e-05, %v7911
      %7913 = vmatmul.f32.gmra.mxu0 %v7792
      %v7914 = vpop.f32.mrf.mxu0
      %v7915 = vadd.f32 1e-05, %v7914
      %7916 = vmatmul.f32.gmra.mxu0 %v7796
      %v7917 = vpop.f32.mrf.mxu0
      %v7918 = vadd.f32 1e-05, %v7917
      %7919 = vmatmul.f32.gmra.mxu0 %v7800
      %v7920 = vpop.f32.mrf.mxu0
      %v7921 = vadd.f32 1e-05, %v7920
      %7922 = vmatmul.f32.gmra.mxu0 %v7804
      %v7923 = vpop.f32.mrf.mxu0
      %v7924 = vadd.f32 1e-05, %v7923
      %7925 = vmatmul.f32.gmra.mxu0 %v7808
      %v7926 = vpop.f32.mrf.mxu0
      %v7927 = vadd.f32 1e-05, %v7926
      %7928 = vmatmul.f32.gmra.mxu0 %v7812
      %v7929 = vpop.f32.mrf.mxu0
      %v7930 = vadd.f32 1e-05, %v7929
      %7931 = vmatmul.f32.gmra.mxu0 %v7816
      %v7932 = vpop.f32.mrf.mxu0
      %v7933 = vadd.f32 1e-05, %v7932
      %7934 = vmatmul.f32.gmra.mxu0 %v7820
      %v7935 = vpop.f32.mrf.mxu0
      %v7936 = vadd.f32 1e-05, %v7935
      %7937 = vmatmul.f32.gmra.mxu0 %v7824
      %v7938 = vpop.f32.mrf.mxu0
      %v7939 = vadd.f32 1e-05, %v7938
      %7940 = vdwg.mxu0
      %7941 = vmatpush.msra.mxu0 %v6531
      %7942 = vmatpush.msra.mxu0 %v6530
      %7943 = vmatpush.msra.mxu0 %v6529
      %7944 = vmatpush.msra.mxu0 %v6528
      %7945 = vmatpush.msra.mxu0 %v6527
      %7946 = vmatpush.msra.mxu0 %v6526
      %7947 = vmatpush.msra.mxu0 %v6525
      %7948 = vmatpush.msra.mxu0 %v6524
      %7949 = vmatpush.msra.mxu0 %v6523
      %7950 = vmatpush.msra.mxu0 %v6522
      %7951 = vmatpush.msra.mxu0 %v6521
      %7952 = vmatpush.msra.mxu0 %v6520
      %7953 = vmatpush.msra.mxu0 %v6519
      %7954 = vmatpush.msra.mxu0 %v6518
      %7955 = vmatpush.msra.mxu0 %v6517
      %7956 = vmatpush.msra.mxu0 %v6516
      %7957 = vmatmul.f32.gmra.mxu0 %v7701
      %v7958 = vpop.f32.mrf.mxu0
      %v7959 = vadd.f32 %v7846, %v7958
      %7960 = vmatmul.f32.gmra.mxu0 %v7705
      %v7961 = vpop.f32.mrf.mxu0
      %v7962 = vadd.f32 %v7849, %v7961
      %7963 = vmatmul.f32.gmra.mxu0 %v7709
      %v7964 = vpop.f32.mrf.mxu0
      %v7965 = vadd.f32 %v7852, %v7964
      %7966 = vmatmul.f32.gmra.mxu0 %v7713
      %v7967 = vpop.f32.mrf.mxu0
      %v7968 = vadd.f32 %v7855, %v7967
      %7969 = vmatmul.f32.gmra.mxu0 %v7717
      %v7970 = vpop.f32.mrf.mxu0
      %v7971 = vadd.f32 %v7858, %v7970
      %7972 = vmatmul.f32.gmra.mxu0 %v7721
      %v7973 = vpop.f32.mrf.mxu0
      %v7974 = vadd.f32 %v7861, %v7973
      %7975 = vmatmul.f32.gmra.mxu0 %v7725
      %v7976 = vpop.f32.mrf.mxu0
      %v7977 = vadd.f32 %v7864, %v7976
      %7978 = vmatmul.f32.gmra.mxu0 %v7729
      %v7979 = vpop.f32.mrf.mxu0
      %v7980 = vadd.f32 %v7867, %v7979
      %7981 = vmatmul.f32.gmra.mxu0 %v7733
      %v7982 = vpop.f32.mrf.mxu0
      %v7983 = vadd.f32 %v7870, %v7982
      %7984 = vmatmul.f32.gmra.mxu0 %v7737
      %v7985 = vpop.f32.mrf.mxu0
      %v7986 = vadd.f32 %v7873, %v7985
      %7987 = vmatmul.f32.gmra.mxu0 %v7741
      %v7988 = vpop.f32.mrf.mxu0
      %v7989 = vadd.f32 %v7876, %v7988
      %7990 = vmatmul.f32.gmra.mxu0 %v7745
      %v7991 = vpop.f32.mrf.mxu0
      %v7992 = vadd.f32 %v7879, %v7991
      %7993 = vmatmul.f32.gmra.mxu0 %v7749
      %v7994 = vpop.f32.mrf.mxu0
      %v7995 = vadd.f32 %v7882, %v7994
      %7996 = vmatmul.f32.gmra.mxu0 %v7753
      %v7997 = vpop.f32.mrf.mxu0
      %v7998 = vadd.f32 %v7885, %v7997
      %7999 = vmatmul.f32.gmra.mxu0 %v7757
      %v8000 = vpop.f32.mrf.mxu0
      %v8001 = vadd.f32 %v7888, %v8000
      %8002 = vmatmul.f32.gmra.mxu0 %v7761
      %v8003 = vpop.f32.mrf.mxu0
      %v8004 = vadd.f32 %v7891, %v8003
      %8005 = vmatmul.f32.gmra.mxu0 %v7765
      %v8006 = vpop.f32.mrf.mxu0
      %v8007 = vadd.f32 %v7894, %v8006
      %8008 = vmatmul.f32.gmra.mxu0 %v7769
      %v8009 = vpop.f32.mrf.mxu0
      %v8010 = vadd.f32 %v7897, %v8009
      %8011 = vmatmul.f32.gmra.mxu0 %v7773
      %v8012 = vpop.f32.mrf.mxu0
      %v8013 = vadd.f32 %v7900, %v8012
      %8014 = vmatmul.f32.gmra.mxu0 %v7777
      %v8015 = vpop.f32.mrf.mxu0
      %v8016 = vadd.f32 %v7903, %v8015
      %8017 = vmatmul.f32.gmra.mxu0 %v7781
      %v8018 = vpop.f32.mrf.mxu0
      %v8019 = vadd.f32 %v7906, %v8018
      %8020 = vmatmul.f32.gmra.mxu0 %v7785
      %v8021 = vpop.f32.mrf.mxu0
      %v8022 = vadd.f32 %v7909, %v8021
      %8023 = vmatmul.f32.gmra.mxu0 %v7789
      %v8024 = vpop.f32.mrf.mxu0
      %v8025 = vadd.f32 %v7912, %v8024
      %8026 = vmatmul.f32.gmra.mxu0 %v7793
      %v8027 = vpop.f32.mrf.mxu0
      %v8028 = vadd.f32 %v7915, %v8027
      %8029 = vmatmul.f32.gmra.mxu0 %v7797
      %v8030 = vpop.f32.mrf.mxu0
      %v8031 = vadd.f32 %v7918, %v8030
      %8032 = vmatmul.f32.gmra.mxu0 %v7801
      %v8033 = vpop.f32.mrf.mxu0
      %v8034 = vadd.f32 %v7921, %v8033
      %8035 = vmatmul.f32.gmra.mxu0 %v7805
      %v8036 = vpop.f32.mrf.mxu0
      %v8037 = vadd.f32 %v7924, %v8036
      %8038 = vmatmul.f32.gmra.mxu0 %v7809
      %v8039 = vpop.f32.mrf.mxu0
      %v8040 = vadd.f32 %v7927, %v8039
      %8041 = vmatmul.f32.gmra.mxu0 %v7813
      %v8042 = vpop.f32.mrf.mxu0
      %v8043 = vadd.f32 %v7930, %v8042
      %8044 = vmatmul.f32.gmra.mxu0 %v7817
      %v8045 = vpop.f32.mrf.mxu0
      %v8046 = vadd.f32 %v7933, %v8045
      %8047 = vmatmul.f32.gmra.mxu0 %v7821
      %v8048 = vpop.f32.mrf.mxu0
      %v8049 = vadd.f32 %v7936, %v8048
      %8050 = vmatmul.f32.gmra.mxu0 %v7825
      %v8051 = vpop.f32.mrf.mxu0
      %v8052 = vadd.f32 %v7939, %v8051
      %8053 = vdwg.mxu0
      %8054 = vmatpush.msra.mxu0 %v6547
      %8055 = vmatpush.msra.mxu0 %v6546
      %8056 = vmatpush.msra.mxu0 %v6545
      %8057 = vmatpush.msra.mxu0 %v6544
      %8058 = vmatpush.msra.mxu0 %v6543
      %8059 = vmatpush.msra.mxu0 %v6542
      %8060 = vmatpush.msra.mxu0 %v6541
      %8061 = vmatpush.msra.mxu0 %v6540
      %8062 = vmatpush.msra.mxu0 %v6539
      %8063 = vmatpush.msra.mxu0 %v6538
      %8064 = vmatpush.msra.mxu0 %v6537
      %8065 = vmatpush.msra.mxu0 %v6536
      %8066 = vmatpush.msra.mxu0 %v6535
      %8067 = vmatpush.msra.mxu0 %v6534
      %8068 = vmatpush.msra.mxu0 %v6533
      %8069 = vmatpush.msra.mxu0 %v6532
      %8070 = vmatmul.f32.gmra.mxu0 %v7702
      %v8071 = vpop.f32.mrf.mxu0
      %v8072 = vadd.f32 %v7959, %v8071
      %8073 = vmatmul.f32.gmra.mxu0 %v7706
      %v8074 = vpop.f32.mrf.mxu0
      %v8075 = vadd.f32 %v7962, %v8074
      %8076 = vmatmul.f32.gmra.mxu0 %v7710
      %v8077 = vpop.f32.mrf.mxu0
      %v8078 = vadd.f32 %v7965, %v8077
      %8079 = vmatmul.f32.gmra.mxu0 %v7714
      %v8080 = vpop.f32.mrf.mxu0
      %v8081 = vadd.f32 %v7968, %v8080
      %8082 = vmatmul.f32.gmra.mxu0 %v7718
      %v8083 = vpop.f32.mrf.mxu0
      %v8084 = vadd.f32 %v7971, %v8083
      %8085 = vmatmul.f32.gmra.mxu0 %v7722
      %v8086 = vpop.f32.mrf.mxu0
      %v8087 = vadd.f32 %v7974, %v8086
      %8088 = vmatmul.f32.gmra.mxu0 %v7726
      %v8089 = vpop.f32.mrf.mxu0
      %v8090 = vadd.f32 %v7977, %v8089
      %8091 = vmatmul.f32.gmra.mxu0 %v7730
      %v8092 = vpop.f32.mrf.mxu0
      %v8093 = vadd.f32 %v7980, %v8092
      %8094 = vmatmul.f32.gmra.mxu0 %v7734
      %v8095 = vpop.f32.mrf.mxu0
      %v8096 = vadd.f32 %v7983, %v8095
      %8097 = vmatmul.f32.gmra.mxu0 %v7738
      %v8098 = vpop.f32.mrf.mxu0
      %v8099 = vadd.f32 %v7986, %v8098
      %8100 = vmatmul.f32.gmra.mxu0 %v7742
      %v8101 = vpop.f32.mrf.mxu0
      %v8102 = vadd.f32 %v7989, %v8101
      %8103 = vmatmul.f32.gmra.mxu0 %v7746
      %v8104 = vpop.f32.mrf.mxu0
      %v8105 = vadd.f32 %v7992, %v8104
      %8106 = vmatmul.f32.gmra.mxu0 %v7750
      %v8107 = vpop.f32.mrf.mxu0
      %v8108 = vadd.f32 %v7995, %v8107
      %8109 = vmatmul.f32.gmra.mxu0 %v7754
      %v8110 = vpop.f32.mrf.mxu0
      %v8111 = vadd.f32 %v7998, %v8110
      %8112 = vmatmul.f32.gmra.mxu0 %v7758
      %v8113 = vpop.f32.mrf.mxu0
      %v8114 = vadd.f32 %v8001, %v8113
      %8115 = vmatmul.f32.gmra.mxu0 %v7762
      %v8116 = vpop.f32.mrf.mxu0
      %v8117 = vadd.f32 %v8004, %v8116
      %8118 = vmatmul.f32.gmra.mxu0 %v7766
      %v8119 = vpop.f32.mrf.mxu0
      %v8120 = vadd.f32 %v8007, %v8119
      %8121 = vmatmul.f32.gmra.mxu0 %v7770
      %v8122 = vpop.f32.mrf.mxu0
      %v8123 = vadd.f32 %v8010, %v8122
      %8124 = vmatmul.f32.gmra.mxu0 %v7774
      %v8125 = vpop.f32.mrf.mxu0
      %v8126 = vadd.f32 %v8013, %v8125
      %8127 = vmatmul.f32.gmra.mxu0 %v7778
      %v8128 = vpop.f32.mrf.mxu0
      %v8129 = vadd.f32 %v8016, %v8128
      %8130 = vmatmul.f32.gmra.mxu0 %v7782
      %v8131 = vpop.f32.mrf.mxu0
      %v8132 = vadd.f32 %v8019, %v8131
      %8133 = vmatmul.f32.gmra.mxu0 %v7786
      %v8134 = vpop.f32.mrf.mxu0
      %v8135 = vadd.f32 %v8022, %v8134
      %8136 = vmatmul.f32.gmra.mxu0 %v7790
      %v8137 = vpop.f32.mrf.mxu0
      %v8138 = vadd.f32 %v8025, %v8137
      %8139 = vmatmul.f32.gmra.mxu0 %v7794
      %v8140 = vpop.f32.mrf.mxu0
      %v8141 = vadd.f32 %v8028, %v8140
      %8142 = vmatmul.f32.gmra.mxu0 %v7798
      %v8143 = vpop.f32.mrf.mxu0
      %v8144 = vadd.f32 %v8031, %v8143
      %8145 = vmatmul.f32.gmra.mxu0 %v7802
      %v8146 = vpop.f32.mrf.mxu0
      %v8147 = vadd.f32 %v8034, %v8146
      %8148 = vmatmul.f32.gmra.mxu0 %v7806
      %v8149 = vpop.f32.mrf.mxu0
      %v8150 = vadd.f32 %v8037, %v8149
      %8151 = vmatmul.f32.gmra.mxu0 %v7810
      %v8152 = vpop.f32.mrf.mxu0
      %v8153 = vadd.f32 %v8040, %v8152
      %8154 = vmatmul.f32.gmra.mxu0 %v7814
      %v8155 = vpop.f32.mrf.mxu0
      %v8156 = vadd.f32 %v8043, %v8155
      %8157 = vmatmul.f32.gmra.mxu0 %v7818
      %v8158 = vpop.f32.mrf.mxu0
      %v8159 = vadd.f32 %v8046, %v8158
      %8160 = vmatmul.f32.gmra.mxu0 %v7822
      %v8161 = vpop.f32.mrf.mxu0
      %v8162 = vadd.f32 %v8049, %v8161
      %8163 = vmatmul.f32.gmra.mxu0 %v7826
      %v8164 = vpop.f32.mrf.mxu0
      %v8165 = vadd.f32 %v8052, %v8164
      %8166 = vdwg.mxu0
      %8167 = vmatpush.msra.mxu0 %v6563
      %8168 = vmatpush.msra.mxu0 %v6562
      %8169 = vmatpush.msra.mxu0 %v6561
      %8170 = vmatpush.msra.mxu0 %v6560
      %8171 = vmatpush.msra.mxu0 %v6559
      %8172 = vmatpush.msra.mxu0 %v6558
      %8173 = vmatpush.msra.mxu0 %v6557
      %8174 = vmatpush.msra.mxu0 %v6556
      %8175 = vmatpush.msra.mxu0 %v6555
      %8176 = vmatpush.msra.mxu0 %v6554
      %8177 = vmatpush.msra.mxu0 %v6553
      %8178 = vmatpush.msra.mxu0 %v6552
      %8179 = vmatpush.msra.mxu0 %v6551
      %8180 = vmatpush.msra.mxu0 %v6550
      %8181 = vmatpush.msra.mxu0 %v6549
      %8182 = vmatpush.msra.mxu0 %v6548
      %8183 = vmatmul.f32.gmra.mxu0 %v7703
      %v8184 = vpop.f32.mrf.mxu0
      %v8185 = vadd.f32 %v8072, %v8184
      %8186 = vmatmul.f32.gmra.mxu0 %v7707
      %v8187 = vpop.f32.mrf.mxu0
      %v8188 = vadd.f32 %v8075, %v8187
      %8189 = vmatmul.f32.gmra.mxu0 %v7711
      %v8190 = vpop.f32.mrf.mxu0
      %v8191 = vadd.f32 %v8078, %v8190
      %8192 = vmatmul.f32.gmra.mxu0 %v7715
      %v8193 = vpop.f32.mrf.mxu0
      %v8194 = vadd.f32 %v8081, %v8193
      %8195 = vmatmul.f32.gmra.mxu0 %v7719
      %v8196 = vpop.f32.mrf.mxu0
      %v8197 = vadd.f32 %v8084, %v8196
      %8198 = vmatmul.f32.gmra.mxu0 %v7723
      %v8199 = vpop.f32.mrf.mxu0
      %v8200 = vadd.f32 %v8087, %v8199
      %8201 = vmatmul.f32.gmra.mxu0 %v7727
      %v8202 = vpop.f32.mrf.mxu0
      %v8203 = vadd.f32 %v8090, %v8202
      %8204 = vmatmul.f32.gmra.mxu0 %v7731
      %v8205 = vpop.f32.mrf.mxu0
      %v8206 = vadd.f32 %v8093, %v8205
      %8207 = vmatmul.f32.gmra.mxu0 %v7735
      %v8208 = vpop.f32.mrf.mxu0
      %v8209 = vadd.f32 %v8096, %v8208
      %8210 = vmatmul.f32.gmra.mxu0 %v7739
      %v8211 = vpop.f32.mrf.mxu0
      %v8212 = vadd.f32 %v8099, %v8211
      %8213 = vmatmul.f32.gmra.mxu0 %v7743
      %v8214 = vpop.f32.mrf.mxu0
      %v8215 = vadd.f32 %v8102, %v8214
      %8216 = vmatmul.f32.gmra.mxu0 %v7747
      %v8217 = vpop.f32.mrf.mxu0
      %v8218 = vadd.f32 %v8105, %v8217
      %8219 = vmatmul.f32.gmra.mxu0 %v7751
      %v8220 = vpop.f32.mrf.mxu0
      %v8221 = vadd.f32 %v8108, %v8220
      %8222 = vmatmul.f32.gmra.mxu0 %v7755
      %v8223 = vpop.f32.mrf.mxu0
      %v8224 = vadd.f32 %v8111, %v8223
      %8225 = vmatmul.f32.gmra.mxu0 %v7759
      %v8226 = vpop.f32.mrf.mxu0
      %v8227 = vadd.f32 %v8114, %v8226
      %8228 = vmatmul.f32.gmra.mxu0 %v7763
      %v8229 = vpop.f32.mrf.mxu0
      %v8230 = vadd.f32 %v8117, %v8229
      %8231 = vmatmul.f32.gmra.mxu0 %v7767
      %v8232 = vpop.f32.mrf.mxu0
      %v8233 = vadd.f32 %v8120, %v8232
      %8234 = vmatmul.f32.gmra.mxu0 %v7771
      %v8235 = vpop.f32.mrf.mxu0
      %v8236 = vadd.f32 %v8123, %v8235
      %8237 = vmatmul.f32.gmra.mxu0 %v7775
      %v8238 = vpop.f32.mrf.mxu0
      %v8239 = vadd.f32 %v8126, %v8238
      %8240 = vmatmul.f32.gmra.mxu0 %v7779
      %v8241 = vpop.f32.mrf.mxu0
      %v8242 = vadd.f32 %v8129, %v8241
      %8243 = vmatmul.f32.gmra.mxu0 %v7783
      %v8244 = vpop.f32.mrf.mxu0
      %v8245 = vadd.f32 %v8132, %v8244
      %8246 = vmatmul.f32.gmra.mxu0 %v7787
      %v8247 = vpop.f32.mrf.mxu0
      %v8248 = vadd.f32 %v8135, %v8247
      %8249 = vmatmul.f32.gmra.mxu0 %v7791
      %v8250 = vpop.f32.mrf.mxu0
      %v8251 = vadd.f32 %v8138, %v8250
      %8252 = vmatmul.f32.gmra.mxu0 %v7795
      %v8253 = vpop.f32.mrf.mxu0
      %v8254 = vadd.f32 %v8141, %v8253
      %8255 = vmatmul.f32.gmra.mxu0 %v7799
      %v8256 = vpop.f32.mrf.mxu0
      %v8257 = vadd.f32 %v8144, %v8256
      %8258 = vmatmul.f32.gmra.mxu0 %v7803
      %v8259 = vpop.f32.mrf.mxu0
      %v8260 = vadd.f32 %v8147, %v8259
      %8261 = vmatmul.f32.gmra.mxu0 %v7807
      %v8262 = vpop.f32.mrf.mxu0
      %v8263 = vadd.f32 %v8150, %v8262
      %8264 = vmatmul.f32.gmra.mxu0 %v7811
      %v8265 = vpop.f32.mrf.mxu0
      %v8266 = vadd.f32 %v8153, %v8265
      %8267 = vmatmul.f32.gmra.mxu0 %v7815
      %v8268 = vpop.f32.mrf.mxu0
      %v8269 = vadd.f32 %v8156, %v8268
      %8270 = vmatmul.f32.gmra.mxu0 %v7819
      %v8271 = vpop.f32.mrf.mxu0
      %v8272 = vadd.f32 %v8159, %v8271
      %8273 = vmatmul.f32.gmra.mxu0 %v7823
      %v8274 = vpop.f32.mrf.mxu0
      %v8275 = vadd.f32 %v8162, %v8274
      %8276 = vmatmul.f32.gmra.mxu0 %v7827
      %v8277 = vpop.f32.mrf.mxu0
      %v8278 = vadd.f32 %v8165, %v8277
      %8279 = vdwg.mxu0
      %v8280 = vrsqrt.pop %v8185
      %v8281 = vmul.f32 %v8280, %v8185
      %v8282 = vmul.f32 %v8281, %v8280
      %v8283 = vmul.f32 0.5, %v8282
      %v8284 = vsub.f32 1.5, %v8283
      %v8285 = vmul.f32 %v8280, %v8284
      %vm8286 = vweird.f32 %v8185
      %vm8287 = vweird.f32 %v8280
      %vm8288 = vmor %vm8286, %vm8287
      %v8289 = vsel %vm8288, %v8280, %v8285
      %v8290 = vrsqrt.pop %v8188
      %v8291 = vmul.f32 %v8290, %v8188
      %v8292 = vmul.f32 %v8291, %v8290
      %v8293 = vmul.f32 0.5, %v8292
      %v8294 = vsub.f32 1.5, %v8293
      %v8295 = vmul.f32 %v8290, %v8294
      %vm8296 = vweird.f32 %v8188
      %vm8297 = vweird.f32 %v8290
      %vm8298 = vmor %vm8296, %vm8297
      %v8299 = vsel %vm8298, %v8290, %v8295
      %v8300 = vrsqrt.pop %v8191
      %v8301 = vmul.f32 %v8300, %v8191
      %v8302 = vmul.f32 %v8301, %v8300
      %v8303 = vmul.f32 0.5, %v8302
      %v8304 = vsub.f32 1.5, %v8303
      %v8305 = vmul.f32 %v8300, %v8304
      %vm8306 = vweird.f32 %v8191
      %vm8307 = vweird.f32 %v8300
      %vm8308 = vmor %vm8306, %vm8307
      %v8309 = vsel %vm8308, %v8300, %v8305
      %v8310 = vrsqrt.pop %v8194
      %v8311 = vmul.f32 %v8310, %v8194
      %v8312 = vmul.f32 %v8311, %v8310
      %v8313 = vmul.f32 0.5, %v8312
      %v8314 = vsub.f32 1.5, %v8313
      %v8315 = vmul.f32 %v8310, %v8314
      %vm8316 = vweird.f32 %v8194
      %vm8317 = vweird.f32 %v8310
      %vm8318 = vmor %vm8316, %vm8317
      %v8319 = vsel %vm8318, %v8310, %v8315
      %v8320 = vrsqrt.pop %v8197
      %v8321 = vmul.f32 %v8320, %v8197
      %v8322 = vmul.f32 %v8321, %v8320
      %v8323 = vmul.f32 0.5, %v8322
      %v8324 = vsub.f32 1.5, %v8323
      %v8325 = vmul.f32 %v8320, %v8324
      %vm8326 = vweird.f32 %v8197
      %vm8327 = vweird.f32 %v8320
      %vm8328 = vmor %vm8326, %vm8327
      %v8329 = vsel %vm8328, %v8320, %v8325
      %v8330 = vrsqrt.pop %v8200
      %v8331 = vmul.f32 %v8330, %v8200
      %v8332 = vmul.f32 %v8331, %v8330
      %v8333 = vmul.f32 0.5, %v8332
      %v8334 = vsub.f32 1.5, %v8333
      %v8335 = vmul.f32 %v8330, %v8334
      %vm8336 = vweird.f32 %v8200
      %vm8337 = vweird.f32 %v8330
      %vm8338 = vmor %vm8336, %vm8337
      %v8339 = vsel %vm8338, %v8330, %v8335
      %v8340 = vrsqrt.pop %v8203
      %v8341 = vmul.f32 %v8340, %v8203
      %v8342 = vmul.f32 %v8341, %v8340
      %v8343 = vmul.f32 0.5, %v8342
      %v8344 = vsub.f32 1.5, %v8343
      %v8345 = vmul.f32 %v8340, %v8344
      %vm8346 = vweird.f32 %v8203
      %vm8347 = vweird.f32 %v8340
      %vm8348 = vmor %vm8346, %vm8347
      %v8349 = vsel %vm8348, %v8340, %v8345
      %v8350 = vrsqrt.pop %v8206
      %v8351 = vmul.f32 %v8350, %v8206
      %v8352 = vmul.f32 %v8351, %v8350
      %v8353 = vmul.f32 0.5, %v8352
      %v8354 = vsub.f32 1.5, %v8353
      %v8355 = vmul.f32 %v8350, %v8354
      %vm8356 = vweird.f32 %v8206
      %vm8357 = vweird.f32 %v8350
      %vm8358 = vmor %vm8356, %vm8357
      %v8359 = vsel %vm8358, %v8350, %v8355
      %v8360 = vrsqrt.pop %v8209
      %v8361 = vmul.f32 %v8360, %v8209
      %v8362 = vmul.f32 %v8361, %v8360
      %v8363 = vmul.f32 0.5, %v8362
      %v8364 = vsub.f32 1.5, %v8363
      %v8365 = vmul.f32 %v8360, %v8364
      %vm8366 = vweird.f32 %v8209
      %vm8367 = vweird.f32 %v8360
      %vm8368 = vmor %vm8366, %vm8367
      %v8369 = vsel %vm8368, %v8360, %v8365
      %v8370 = vrsqrt.pop %v8212
      %v8371 = vmul.f32 %v8370, %v8212
      %v8372 = vmul.f32 %v8371, %v8370
      %v8373 = vmul.f32 0.5, %v8372
      %v8374 = vsub.f32 1.5, %v8373
      %v8375 = vmul.f32 %v8370, %v8374
      %vm8376 = vweird.f32 %v8212
      %vm8377 = vweird.f32 %v8370
      %vm8378 = vmor %vm8376, %vm8377
      %v8379 = vsel %vm8378, %v8370, %v8375
      %v8380 = vrsqrt.pop %v8215
      %v8381 = vmul.f32 %v8380, %v8215
      %v8382 = vmul.f32 %v8381, %v8380
      %v8383 = vmul.f32 0.5, %v8382
      %v8384 = vsub.f32 1.5, %v8383
      %v8385 = vmul.f32 %v8380, %v8384
      %vm8386 = vweird.f32 %v8215
      %vm8387 = vweird.f32 %v8380
      %vm8388 = vmor %vm8386, %vm8387
      %v8389 = vsel %vm8388, %v8380, %v8385
      %v8390 = vrsqrt.pop %v8218
      %v8391 = vmul.f32 %v8390, %v8218
      %v8392 = vmul.f32 %v8391, %v8390
      %v8393 = vmul.f32 0.5, %v8392
      %v8394 = vsub.f32 1.5, %v8393
      %v8395 = vmul.f32 %v8390, %v8394
      %vm8396 = vweird.f32 %v8218
      %vm8397 = vweird.f32 %v8390
      %vm8398 = vmor %vm8396, %vm8397
      %v8399 = vsel %vm8398, %v8390, %v8395
      %v8400 = vrsqrt.pop %v8221
      %v8401 = vmul.f32 %v8400, %v8221
      %v8402 = vmul.f32 %v8401, %v8400
      %v8403 = vmul.f32 0.5, %v8402
      %v8404 = vsub.f32 1.5, %v8403
      %v8405 = vmul.f32 %v8400, %v8404
      %vm8406 = vweird.f32 %v8221
      %vm8407 = vweird.f32 %v8400
      %vm8408 = vmor %vm8406, %vm8407
      %v8409 = vsel %vm8408, %v8400, %v8405
      %v8410 = vrsqrt.pop %v8224
      %v8411 = vmul.f32 %v8410, %v8224
      %v8412 = vmul.f32 %v8411, %v8410
      %v8413 = vmul.f32 0.5, %v8412
      %v8414 = vsub.f32 1.5, %v8413
      %v8415 = vmul.f32 %v8410, %v8414
      %vm8416 = vweird.f32 %v8224
      %vm8417 = vweird.f32 %v8410
      %vm8418 = vmor %vm8416, %vm8417
      %v8419 = vsel %vm8418, %v8410, %v8415
      %v8420 = vrsqrt.pop %v8227
      %v8421 = vmul.f32 %v8420, %v8227
      %v8422 = vmul.f32 %v8421, %v8420
      %v8423 = vmul.f32 0.5, %v8422
      %v8424 = vsub.f32 1.5, %v8423
      %v8425 = vmul.f32 %v8420, %v8424
      %vm8426 = vweird.f32 %v8227
      %vm8427 = vweird.f32 %v8420
      %vm8428 = vmor %vm8426, %vm8427
      %v8429 = vsel %vm8428, %v8420, %v8425
      %v8430 = vrsqrt.pop %v8230
      %v8431 = vmul.f32 %v8430, %v8230
      %v8432 = vmul.f32 %v8431, %v8430
      %v8433 = vmul.f32 0.5, %v8432
      %v8434 = vsub.f32 1.5, %v8433
      %v8435 = vmul.f32 %v8430, %v8434
      %vm8436 = vweird.f32 %v8230
      %vm8437 = vweird.f32 %v8430
      %vm8438 = vmor %vm8436, %vm8437
      %v8439 = vsel %vm8438, %v8430, %v8435
      %v8440 = vrsqrt.pop %v8233
      %v8441 = vmul.f32 %v8440, %v8233
      %v8442 = vmul.f32 %v8441, %v8440
      %v8443 = vmul.f32 0.5, %v8442
      %v8444 = vsub.f32 1.5, %v8443
      %v8445 = vmul.f32 %v8440, %v8444
      %vm8446 = vweird.f32 %v8233
      %vm8447 = vweird.f32 %v8440
      %vm8448 = vmor %vm8446, %vm8447
      %v8449 = vsel %vm8448, %v8440, %v8445
      %v8450 = vrsqrt.pop %v8236
      %v8451 = vmul.f32 %v8450, %v8236
      %v8452 = vmul.f32 %v8451, %v8450
      %v8453 = vmul.f32 0.5, %v8452
      %v8454 = vsub.f32 1.5, %v8453
      %v8455 = vmul.f32 %v8450, %v8454
      %vm8456 = vweird.f32 %v8236
      %vm8457 = vweird.f32 %v8450
      %vm8458 = vmor %vm8456, %vm8457
      %v8459 = vsel %vm8458, %v8450, %v8455
      %v8460 = vrsqrt.pop %v8239
      %v8461 = vmul.f32 %v8460, %v8239
      %v8462 = vmul.f32 %v8461, %v8460
      %v8463 = vmul.f32 0.5, %v8462
      %v8464 = vsub.f32 1.5, %v8463
      %v8465 = vmul.f32 %v8460, %v8464
      %vm8466 = vweird.f32 %v8239
      %vm8467 = vweird.f32 %v8460
      %vm8468 = vmor %vm8466, %vm8467
      %v8469 = vsel %vm8468, %v8460, %v8465
      %v8470 = vrsqrt.pop %v8242
      %v8471 = vmul.f32 %v8470, %v8242
      %v8472 = vmul.f32 %v8471, %v8470
      %v8473 = vmul.f32 0.5, %v8472
      %v8474 = vsub.f32 1.5, %v8473
      %v8475 = vmul.f32 %v8470, %v8474
      %vm8476 = vweird.f32 %v8242
      %vm8477 = vweird.f32 %v8470
      %vm8478 = vmor %vm8476, %vm8477
      %v8479 = vsel %vm8478, %v8470, %v8475
      %v8480 = vrsqrt.pop %v8245
      %v8481 = vmul.f32 %v8480, %v8245
      %v8482 = vmul.f32 %v8481, %v8480
      %v8483 = vmul.f32 0.5, %v8482
      %v8484 = vsub.f32 1.5, %v8483
      %v8485 = vmul.f32 %v8480, %v8484
      %vm8486 = vweird.f32 %v8245
      %vm8487 = vweird.f32 %v8480
      %vm8488 = vmor %vm8486, %vm8487
      %v8489 = vsel %vm8488, %v8480, %v8485
      %v8490 = vrsqrt.pop %v8248
      %v8491 = vmul.f32 %v8490, %v8248
      %v8492 = vmul.f32 %v8491, %v8490
      %v8493 = vmul.f32 0.5, %v8492
      %v8494 = vsub.f32 1.5, %v8493
      %v8495 = vmul.f32 %v8490, %v8494
      %vm8496 = vweird.f32 %v8248
      %vm8497 = vweird.f32 %v8490
      %vm8498 = vmor %vm8496, %vm8497
      %v8499 = vsel %vm8498, %v8490, %v8495
      %v8500 = vrsqrt.pop %v8251
      %v8501 = vmul.f32 %v8500, %v8251
      %v8502 = vmul.f32 %v8501, %v8500
      %v8503 = vmul.f32 0.5, %v8502
      %v8504 = vsub.f32 1.5, %v8503
      %v8505 = vmul.f32 %v8500, %v8504
      %vm8506 = vweird.f32 %v8251
      %vm8507 = vweird.f32 %v8500
      %vm8508 = vmor %vm8506, %vm8507
      %v8509 = vsel %vm8508, %v8500, %v8505
      %v8510 = vrsqrt.pop %v8254
      %v8511 = vmul.f32 %v8510, %v8254
      %v8512 = vmul.f32 %v8511, %v8510
      %v8513 = vmul.f32 0.5, %v8512
      %v8514 = vsub.f32 1.5, %v8513
      %v8515 = vmul.f32 %v8510, %v8514
      %vm8516 = vweird.f32 %v8254
      %vm8517 = vweird.f32 %v8510
      %vm8518 = vmor %vm8516, %vm8517
      %v8519 = vsel %vm8518, %v8510, %v8515
      %v8520 = vrsqrt.pop %v8257
      %v8521 = vmul.f32 %v8520, %v8257
      %v8522 = vmul.f32 %v8521, %v8520
      %v8523 = vmul.f32 0.5, %v8522
      %v8524 = vsub.f32 1.5, %v8523
      %v8525 = vmul.f32 %v8520, %v8524
      %vm8526 = vweird.f32 %v8257
      %vm8527 = vweird.f32 %v8520
      %vm8528 = vmor %vm8526, %vm8527
      %v8529 = vsel %vm8528, %v8520, %v8525
      %v8530 = vrsqrt.pop %v8260
      %v8531 = vmul.f32 %v8530, %v8260
      %v8532 = vmul.f32 %v8531, %v8530
      %v8533 = vmul.f32 0.5, %v8532
      %v8534 = vsub.f32 1.5, %v8533
      %v8535 = vmul.f32 %v8530, %v8534
      %vm8536 = vweird.f32 %v8260
      %vm8537 = vweird.f32 %v8530
      %vm8538 = vmor %vm8536, %vm8537
      %v8539 = vsel %vm8538, %v8530, %v8535
      %v8540 = vrsqrt.pop %v8263
      %v8541 = vmul.f32 %v8540, %v8263
      %v8542 = vmul.f32 %v8541, %v8540
      %v8543 = vmul.f32 0.5, %v8542
      %v8544 = vsub.f32 1.5, %v8543
      %v8545 = vmul.f32 %v8540, %v8544
      %vm8546 = vweird.f32 %v8263
      %vm8547 = vweird.f32 %v8540
      %vm8548 = vmor %vm8546, %vm8547
      %v8549 = vsel %vm8548, %v8540, %v8545
      %v8550 = vrsqrt.pop %v8266
      %v8551 = vmul.f32 %v8550, %v8266
      %v8552 = vmul.f32 %v8551, %v8550
      %v8553 = vmul.f32 0.5, %v8552
      %v8554 = vsub.f32 1.5, %v8553
      %v8555 = vmul.f32 %v8550, %v8554
      %vm8556 = vweird.f32 %v8266
      %vm8557 = vweird.f32 %v8550
      %vm8558 = vmor %vm8556, %vm8557
      %v8559 = vsel %vm8558, %v8550, %v8555
      %v8560 = vrsqrt.pop %v8269
      %v8561 = vmul.f32 %v8560, %v8269
      %v8562 = vmul.f32 %v8561, %v8560
      %v8563 = vmul.f32 0.5, %v8562
      %v8564 = vsub.f32 1.5, %v8563
      %v8565 = vmul.f32 %v8560, %v8564
      %vm8566 = vweird.f32 %v8269
      %vm8567 = vweird.f32 %v8560
      %vm8568 = vmor %vm8566, %vm8567
      %v8569 = vsel %vm8568, %v8560, %v8565
      %v8570 = vrsqrt.pop %v8272
      %v8571 = vmul.f32 %v8570, %v8272
      %v8572 = vmul.f32 %v8571, %v8570
      %v8573 = vmul.f32 0.5, %v8572
      %v8574 = vsub.f32 1.5, %v8573
      %v8575 = vmul.f32 %v8570, %v8574
      %vm8576 = vweird.f32 %v8272
      %vm8577 = vweird.f32 %v8570
      %vm8578 = vmor %vm8576, %vm8577
      %v8579 = vsel %vm8578, %v8570, %v8575
      %v8580 = vrsqrt.pop %v8275
      %v8581 = vmul.f32 %v8580, %v8275
      %v8582 = vmul.f32 %v8581, %v8580
      %v8583 = vmul.f32 0.5, %v8582
      %v8584 = vsub.f32 1.5, %v8583
      %v8585 = vmul.f32 %v8580, %v8584
      %vm8586 = vweird.f32 %v8275
      %vm8587 = vweird.f32 %v8580
      %vm8588 = vmor %vm8586, %vm8587
      %v8589 = vsel %vm8588, %v8580, %v8585
      %v8590 = vrsqrt.pop %v8278
      %v8591 = vmul.f32 %v8590, %v8278
      %v8592 = vmul.f32 %v8591, %v8590
      %v8593 = vmul.f32 0.5, %v8592
      %v8594 = vsub.f32 1.5, %v8593
      %v8595 = vmul.f32 %v8590, %v8594
      %vm8596 = vweird.f32 %v8278
      %vm8597 = vweird.f32 %v8590
      %vm8598 = vmor %vm8596, %vm8597
      %v8599 = vsel %vm8598, %v8590, %v8595
      %v8601 = vsel %vm1577, %v8289, 0
      %v8604 = vsel %vm1577, %v8299, 0
      %v8607 = vsel %vm1577, %v8309, 0
      %v8610 = vsel %vm1577, %v8319, 0
      %v8613 = vsel %vm1577, %v8329, 0
      %v8616 = vsel %vm1577, %v8339, 0
      %v8619 = vsel %vm1577, %v8349, 0
      %v8622 = vsel %vm1577, %v8359, 0
      %v8625 = vsel %vm1577, %v8369, 0
      %v8628 = vsel %vm1577, %v8379, 0
      %v8631 = vsel %vm1577, %v8389, 0
      %v8634 = vsel %vm1577, %v8399, 0
      %v8637 = vsel %vm1577, %v8409, 0
      %v8640 = vsel %vm1577, %v8419, 0
      %v8643 = vsel %vm1577, %v8429, 0
      %v8646 = vsel %vm1577, %v8439, 0
      %v8649 = vsel %vm1577, %v8449, 0
      %v8652 = vsel %vm1577, %v8459, 0
      %v8655 = vsel %vm1577, %v8469, 0
      %v8658 = vsel %vm1577, %v8479, 0
      %v8661 = vsel %vm1577, %v8489, 0
      %v8664 = vsel %vm1577, %v8499, 0
      %v8667 = vsel %vm1577, %v8509, 0
      %v8670 = vsel %vm1577, %v8519, 0
      %v8673 = vsel %vm1577, %v8529, 0
      %v8676 = vsel %vm1577, %v8539, 0
      %v8679 = vsel %vm1577, %v8549, 0
      %v8682 = vsel %vm1577, %v8559, 0
      %v8685 = vsel %vm1577, %v8569, 0
      %v8688 = vsel %vm1577, %v8579, 0
      %v8691 = vsel %vm1577, %v8589, 0
      %v8694 = vsel %vm1577, %v8599, 0
      %8696 = vmatpush.msra.mxu0 0.0
      %8697 = vmatpush.msra.mxu0 0.0
      %8698 = vmatpush.msra.mxu0 0.0
      %8699 = vmatpush.msra.mxu0 0.0
      %8700 = vmatpush.msra.mxu0 0.0
      %8701 = vmatpush.msra.mxu0 0.0
      %8702 = vmatpush.msra.mxu0 0.0
      %8703 = vmatpush.msra.mxu0 0.0
      %8704 = vmatpush.msra.mxu0 0.0
      %8705 = vmatpush.msra.mxu0 0.0
      %8706 = vmatpush.msra.mxu0 0.0
      %8707 = vmatpush.msra.mxu0 0.0
      %8708 = vmatpush.msra.mxu0 0.0
      %8709 = vmatpush.msra.mxu0 0.0
      %8710 = vmatpush.msra.mxu0 %v7020
      %8711 = vmatpush.msra.mxu0 %v7016
      %8712 = vmatmul.f32.gmra.mxu0 %v8601
      %v8713 = vpop.f32.mrf.mxu0
      %v8714 = vadd.f32 0.0, %v8713
      %8715 = vmatmul.f32.gmra.mxu0 %v8604
      %v8716 = vpop.f32.mrf.mxu0
      %v8717 = vadd.f32 0.0, %v8716
      %8718 = vmatmul.f32.gmra.mxu0 %v8607
      %v8719 = vpop.f32.mrf.mxu0
      %v8720 = vadd.f32 0.0, %v8719
      %8721 = vmatmul.f32.gmra.mxu0 %v8610
      %v8722 = vpop.f32.mrf.mxu0
      %v8723 = vadd.f32 0.0, %v8722
      %8724 = vmatmul.f32.gmra.mxu0 %v8613
      %v8725 = vpop.f32.mrf.mxu0
      %v8726 = vadd.f32 0.0, %v8725
      %8727 = vmatmul.f32.gmra.mxu0 %v8616
      %v8728 = vpop.f32.mrf.mxu0
      %v8729 = vadd.f32 0.0, %v8728
      %8730 = vmatmul.f32.gmra.mxu0 %v8619
      %v8731 = vpop.f32.mrf.mxu0
      %v8732 = vadd.f32 0.0, %v8731
      %8733 = vmatmul.f32.gmra.mxu0 %v8622
      %v8734 = vpop.f32.mrf.mxu0
      %v8735 = vadd.f32 0.0, %v8734
      %8736 = vmatmul.f32.gmra.mxu0 %v8625
      %v8737 = vpop.f32.mrf.mxu0
      %v8738 = vadd.f32 0.0, %v8737
      %8739 = vmatmul.f32.gmra.mxu0 %v8628
      %v8740 = vpop.f32.mrf.mxu0
      %v8741 = vadd.f32 0.0, %v8740
      %8742 = vmatmul.f32.gmra.mxu0 %v8631
      %v8743 = vpop.f32.mrf.mxu0
      %v8744 = vadd.f32 0.0, %v8743
      %8745 = vmatmul.f32.gmra.mxu0 %v8634
      %v8746 = vpop.f32.mrf.mxu0
      %v8747 = vadd.f32 0.0, %v8746
      %8748 = vmatmul.f32.gmra.mxu0 %v8637
      %v8749 = vpop.f32.mrf.mxu0
      %v8750 = vadd.f32 0.0, %v8749
      %8751 = vmatmul.f32.gmra.mxu0 %v8640
      %v8752 = vpop.f32.mrf.mxu0
      %v8753 = vadd.f32 0.0, %v8752
      %8754 = vmatmul.f32.gmra.mxu0 %v8643
      %v8755 = vpop.f32.mrf.mxu0
      %v8756 = vadd.f32 0.0, %v8755
      %8757 = vmatmul.f32.gmra.mxu0 %v8646
      %v8758 = vpop.f32.mrf.mxu0
      %v8759 = vadd.f32 0.0, %v8758
      %8760 = vmatmul.f32.gmra.mxu0 %v8649
      %v8761 = vpop.f32.mrf.mxu0
      %v8762 = vadd.f32 0.0, %v8761
      %8763 = vmatmul.f32.gmra.mxu0 %v8652
      %v8764 = vpop.f32.mrf.mxu0
      %v8765 = vadd.f32 0.0, %v8764
      %8766 = vmatmul.f32.gmra.mxu0 %v8655
      %v8767 = vpop.f32.mrf.mxu0
      %v8768 = vadd.f32 0.0, %v8767
      %8769 = vmatmul.f32.gmra.mxu0 %v8658
      %v8770 = vpop.f32.mrf.mxu0
      %v8771 = vadd.f32 0.0, %v8770
      %8772 = vmatmul.f32.gmra.mxu0 %v8661
      %v8773 = vpop.f32.mrf.mxu0
      %v8774 = vadd.f32 0.0, %v8773
      %8775 = vmatmul.f32.gmra.mxu0 %v8664
      %v8776 = vpop.f32.mrf.mxu0
      %v8777 = vadd.f32 0.0, %v8776
      %8778 = vmatmul.f32.gmra.mxu0 %v8667
      %v8779 = vpop.f32.mrf.mxu0
      %v8780 = vadd.f32 0.0, %v8779
      %8781 = vmatmul.f32.gmra.mxu0 %v8670
      %v8782 = vpop.f32.mrf.mxu0
      %v8783 = vadd.f32 0.0, %v8782
      %8784 = vmatmul.f32.gmra.mxu0 %v8673
      %v8785 = vpop.f32.mrf.mxu0
      %v8786 = vadd.f32 0.0, %v8785
      %8787 = vmatmul.f32.gmra.mxu0 %v8676
      %v8788 = vpop.f32.mrf.mxu0
      %v8789 = vadd.f32 0.0, %v8788
      %8790 = vmatmul.f32.gmra.mxu0 %v8679
      %v8791 = vpop.f32.mrf.mxu0
      %v8792 = vadd.f32 0.0, %v8791
      %8793 = vmatmul.f32.gmra.mxu0 %v8682
      %v8794 = vpop.f32.mrf.mxu0
      %v8795 = vadd.f32 0.0, %v8794
      %8796 = vmatmul.f32.gmra.mxu0 %v8685
      %v8797 = vpop.f32.mrf.mxu0
      %v8798 = vadd.f32 0.0, %v8797
      %8799 = vmatmul.f32.gmra.mxu0 %v8688
      %v8800 = vpop.f32.mrf.mxu0
      %v8801 = vadd.f32 0.0, %v8800
      %8802 = vmatmul.f32.gmra.mxu0 %v8691
      %v8803 = vpop.f32.mrf.mxu0
      %v8804 = vadd.f32 0.0, %v8803
      %8805 = vmatmul.f32.gmra.mxu0 %v8694
      %v8806 = vpop.f32.mrf.mxu0
      %v8807 = vadd.f32 0.0, %v8806
      %8808 = vdwg.mxu0
      %8809 = vmatpush.msra.mxu0 0.0
      %8810 = vmatpush.msra.mxu0 0.0
      %8811 = vmatpush.msra.mxu0 0.0
      %8812 = vmatpush.msra.mxu0 0.0
      %8813 = vmatpush.msra.mxu0 0.0
      %8814 = vmatpush.msra.mxu0 0.0
      %8815 = vmatpush.msra.mxu0 0.0
      %8816 = vmatpush.msra.mxu0 0.0
      %8817 = vmatpush.msra.mxu0 0.0
      %8818 = vmatpush.msra.mxu0 0.0
      %8819 = vmatpush.msra.mxu0 0.0
      %8820 = vmatpush.msra.mxu0 0.0
      %8821 = vmatpush.msra.mxu0 0.0
      %8822 = vmatpush.msra.mxu0 0.0
      %8823 = vmatpush.msra.mxu0 %v7021
      %8824 = vmatpush.msra.mxu0 %v7017
      %8825 = vmatmul.f32.gmra.mxu0 %v8601
      %v8826 = vpop.f32.mrf.mxu0
      %v8827 = vadd.f32 0.0, %v8826
      %8828 = vmatmul.f32.gmra.mxu0 %v8604
      %v8829 = vpop.f32.mrf.mxu0
      %v8830 = vadd.f32 0.0, %v8829
      %8831 = vmatmul.f32.gmra.mxu0 %v8607
      %v8832 = vpop.f32.mrf.mxu0
      %v8833 = vadd.f32 0.0, %v8832
      %8834 = vmatmul.f32.gmra.mxu0 %v8610
      %v8835 = vpop.f32.mrf.mxu0
      %v8836 = vadd.f32 0.0, %v8835
      %8837 = vmatmul.f32.gmra.mxu0 %v8613
      %v8838 = vpop.f32.mrf.mxu0
      %v8839 = vadd.f32 0.0, %v8838
      %8840 = vmatmul.f32.gmra.mxu0 %v8616
      %v8841 = vpop.f32.mrf.mxu0
      %v8842 = vadd.f32 0.0, %v8841
      %8843 = vmatmul.f32.gmra.mxu0 %v8619
      %v8844 = vpop.f32.mrf.mxu0
      %v8845 = vadd.f32 0.0, %v8844
      %8846 = vmatmul.f32.gmra.mxu0 %v8622
      %v8847 = vpop.f32.mrf.mxu0
      %v8848 = vadd.f32 0.0, %v8847
      %8849 = vmatmul.f32.gmra.mxu0 %v8625
      %v8850 = vpop.f32.mrf.mxu0
      %v8851 = vadd.f32 0.0, %v8850
      %8852 = vmatmul.f32.gmra.mxu0 %v8628
      %v8853 = vpop.f32.mrf.mxu0
      %v8854 = vadd.f32 0.0, %v8853
      %8855 = vmatmul.f32.gmra.mxu0 %v8631
      %v8856 = vpop.f32.mrf.mxu0
      %v8857 = vadd.f32 0.0, %v8856
      %8858 = vmatmul.f32.gmra.mxu0 %v8634
      %v8859 = vpop.f32.mrf.mxu0
      %v8860 = vadd.f32 0.0, %v8859
      %8861 = vmatmul.f32.gmra.mxu0 %v8637
      %v8862 = vpop.f32.mrf.mxu0
      %v8863 = vadd.f32 0.0, %v8862
      %8864 = vmatmul.f32.gmra.mxu0 %v8640
      %v8865 = vpop.f32.mrf.mxu0
      %v8866 = vadd.f32 0.0, %v8865
      %8867 = vmatmul.f32.gmra.mxu0 %v8643
      %v8868 = vpop.f32.mrf.mxu0
      %v8869 = vadd.f32 0.0, %v8868
      %8870 = vmatmul.f32.gmra.mxu0 %v8646
      %v8871 = vpop.f32.mrf.mxu0
      %v8872 = vadd.f32 0.0, %v8871
      %8873 = vmatmul.f32.gmra.mxu0 %v8649
      %v8874 = vpop.f32.mrf.mxu0
      %v8875 = vadd.f32 0.0, %v8874
      %8876 = vmatmul.f32.gmra.mxu0 %v8652
      %v8877 = vpop.f32.mrf.mxu0
      %v8878 = vadd.f32 0.0, %v8877
      %8879 = vmatmul.f32.gmra.mxu0 %v8655
      %v8880 = vpop.f32.mrf.mxu0
      %v8881 = vadd.f32 0.0, %v8880
      %8882 = vmatmul.f32.gmra.mxu0 %v8658
      %v8883 = vpop.f32.mrf.mxu0
      %v8884 = vadd.f32 0.0, %v8883
      %8885 = vmatmul.f32.gmra.mxu0 %v8661
      %v8886 = vpop.f32.mrf.mxu0
      %v8887 = vadd.f32 0.0, %v8886
      %8888 = vmatmul.f32.gmra.mxu0 %v8664
      %v8889 = vpop.f32.mrf.mxu0
      %v8890 = vadd.f32 0.0, %v8889
      %8891 = vmatmul.f32.gmra.mxu0 %v8667
      %v8892 = vpop.f32.mrf.mxu0
      %v8893 = vadd.f32 0.0, %v8892
      %8894 = vmatmul.f32.gmra.mxu0 %v8670
      %v8895 = vpop.f32.mrf.mxu0
      %v8896 = vadd.f32 0.0, %v8895
      %8897 = vmatmul.f32.gmra.mxu0 %v8673
      %v8898 = vpop.f32.mrf.mxu0
      %v8899 = vadd.f32 0.0, %v8898
      %8900 = vmatmul.f32.gmra.mxu0 %v8676
      %v8901 = vpop.f32.mrf.mxu0
      %v8902 = vadd.f32 0.0, %v8901
      %8903 = vmatmul.f32.gmra.mxu0 %v8679
      %v8904 = vpop.f32.mrf.mxu0
      %v8905 = vadd.f32 0.0, %v8904
      %8906 = vmatmul.f32.gmra.mxu0 %v8682
      %v8907 = vpop.f32.mrf.mxu0
      %v8908 = vadd.f32 0.0, %v8907
      %8909 = vmatmul.f32.gmra.mxu0 %v8685
      %v8910 = vpop.f32.mrf.mxu0
      %v8911 = vadd.f32 0.0, %v8910
      %8912 = vmatmul.f32.gmra.mxu0 %v8688
      %v8913 = vpop.f32.mrf.mxu0
      %v8914 = vadd.f32 0.0, %v8913
      %8915 = vmatmul.f32.gmra.mxu0 %v8691
      %v8916 = vpop.f32.mrf.mxu0
      %v8917 = vadd.f32 0.0, %v8916
      %8918 = vmatmul.f32.gmra.mxu0 %v8694
      %v8919 = vpop.f32.mrf.mxu0
      %v8920 = vadd.f32 0.0, %v8919
      %8921 = vdwg.mxu0
      %8922 = vmatpush.msra.mxu0 0.0
      %8923 = vmatpush.msra.mxu0 0.0
      %8924 = vmatpush.msra.mxu0 0.0
      %8925 = vmatpush.msra.mxu0 0.0
      %8926 = vmatpush.msra.mxu0 0.0
      %8927 = vmatpush.msra.mxu0 0.0
      %8928 = vmatpush.msra.mxu0 0.0
      %8929 = vmatpush.msra.mxu0 0.0
      %8930 = vmatpush.msra.mxu0 0.0
      %8931 = vmatpush.msra.mxu0 0.0
      %8932 = vmatpush.msra.mxu0 0.0
      %8933 = vmatpush.msra.mxu0 0.0
      %8934 = vmatpush.msra.mxu0 0.0
      %8935 = vmatpush.msra.mxu0 0.0
      %8936 = vmatpush.msra.mxu0 %v7022
      %8937 = vmatpush.msra.mxu0 %v7018
      %8938 = vmatmul.f32.gmra.mxu0 %v8601
      %v8939 = vpop.f32.mrf.mxu0
      %v8940 = vadd.f32 0.0, %v8939
      %8941 = vmatmul.f32.gmra.mxu0 %v8604
      %v8942 = vpop.f32.mrf.mxu0
      %v8943 = vadd.f32 0.0, %v8942
      %8944 = vmatmul.f32.gmra.mxu0 %v8607
      %v8945 = vpop.f32.mrf.mxu0
      %v8946 = vadd.f32 0.0, %v8945
      %8947 = vmatmul.f32.gmra.mxu0 %v8610
      %v8948 = vpop.f32.mrf.mxu0
      %v8949 = vadd.f32 0.0, %v8948
      %8950 = vmatmul.f32.gmra.mxu0 %v8613
      %v8951 = vpop.f32.mrf.mxu0
      %v8952 = vadd.f32 0.0, %v8951
      %8953 = vmatmul.f32.gmra.mxu0 %v8616
      %v8954 = vpop.f32.mrf.mxu0
      %v8955 = vadd.f32 0.0, %v8954
      %8956 = vmatmul.f32.gmra.mxu0 %v8619
      %v8957 = vpop.f32.mrf.mxu0
      %v8958 = vadd.f32 0.0, %v8957
      %8959 = vmatmul.f32.gmra.mxu0 %v8622
      %v8960 = vpop.f32.mrf.mxu0
      %v8961 = vadd.f32 0.0, %v8960
      %8962 = vmatmul.f32.gmra.mxu0 %v8625
      %v8963 = vpop.f32.mrf.mxu0
      %v8964 = vadd.f32 0.0, %v8963
      %8965 = vmatmul.f32.gmra.mxu0 %v8628
      %v8966 = vpop.f32.mrf.mxu0
      %v8967 = vadd.f32 0.0, %v8966
      %8968 = vmatmul.f32.gmra.mxu0 %v8631
      %v8969 = vpop.f32.mrf.mxu0
      %v8970 = vadd.f32 0.0, %v8969
      %8971 = vmatmul.f32.gmra.mxu0 %v8634
      %v8972 = vpop.f32.mrf.mxu0
      %v8973 = vadd.f32 0.0, %v8972
      %8974 = vmatmul.f32.gmra.mxu0 %v8637
      %v8975 = vpop.f32.mrf.mxu0
      %v8976 = vadd.f32 0.0, %v8975
      %8977 = vmatmul.f32.gmra.mxu0 %v8640
      %v8978 = vpop.f32.mrf.mxu0
      %v8979 = vadd.f32 0.0, %v8978
      %8980 = vmatmul.f32.gmra.mxu0 %v8643
      %v8981 = vpop.f32.mrf.mxu0
      %v8982 = vadd.f32 0.0, %v8981
      %8983 = vmatmul.f32.gmra.mxu0 %v8646
      %v8984 = vpop.f32.mrf.mxu0
      %v8985 = vadd.f32 0.0, %v8984
      %8986 = vmatmul.f32.gmra.mxu0 %v8649
      %v8987 = vpop.f32.mrf.mxu0
      %v8988 = vadd.f32 0.0, %v8987
      %8989 = vmatmul.f32.gmra.mxu0 %v8652
      %v8990 = vpop.f32.mrf.mxu0
      %v8991 = vadd.f32 0.0, %v8990
      %8992 = vmatmul.f32.gmra.mxu0 %v8655
      %v8993 = vpop.f32.mrf.mxu0
      %v8994 = vadd.f32 0.0, %v8993
      %8995 = vmatmul.f32.gmra.mxu0 %v8658
      %v8996 = vpop.f32.mrf.mxu0
      %v8997 = vadd.f32 0.0, %v8996
      %8998 = vmatmul.f32.gmra.mxu0 %v8661
      %v8999 = vpop.f32.mrf.mxu0
      %v9000 = vadd.f32 0.0, %v8999
      %9001 = vmatmul.f32.gmra.mxu0 %v8664
      %v9002 = vpop.f32.mrf.mxu0
      %v9003 = vadd.f32 0.0, %v9002
      %9004 = vmatmul.f32.gmra.mxu0 %v8667
      %v9005 = vpop.f32.mrf.mxu0
      %v9006 = vadd.f32 0.0, %v9005
      %9007 = vmatmul.f32.gmra.mxu0 %v8670
      %v9008 = vpop.f32.mrf.mxu0
      %v9009 = vadd.f32 0.0, %v9008
      %9010 = vmatmul.f32.gmra.mxu0 %v8673
      %v9011 = vpop.f32.mrf.mxu0
      %v9012 = vadd.f32 0.0, %v9011
      %9013 = vmatmul.f32.gmra.mxu0 %v8676
      %v9014 = vpop.f32.mrf.mxu0
      %v9015 = vadd.f32 0.0, %v9014
      %9016 = vmatmul.f32.gmra.mxu0 %v8679
      %v9017 = vpop.f32.mrf.mxu0
      %v9018 = vadd.f32 0.0, %v9017
      %9019 = vmatmul.f32.gmra.mxu0 %v8682
      %v9020 = vpop.f32.mrf.mxu0
      %v9021 = vadd.f32 0.0, %v9020
      %9022 = vmatmul.f32.gmra.mxu0 %v8685
      %v9023 = vpop.f32.mrf.mxu0
      %v9024 = vadd.f32 0.0, %v9023
      %9025 = vmatmul.f32.gmra.mxu0 %v8688
      %v9026 = vpop.f32.mrf.mxu0
      %v9027 = vadd.f32 0.0, %v9026
      %9028 = vmatmul.f32.gmra.mxu0 %v8691
      %v9029 = vpop.f32.mrf.mxu0
      %v9030 = vadd.f32 0.0, %v9029
      %9031 = vmatmul.f32.gmra.mxu0 %v8694
      %v9032 = vpop.f32.mrf.mxu0
      %v9033 = vadd.f32 0.0, %v9032
      %9034 = vdwg.mxu0
      %9035 = vmatpush.msra.mxu0 0.0
      %9036 = vmatpush.msra.mxu0 0.0
      %9037 = vmatpush.msra.mxu0 0.0
      %9038 = vmatpush.msra.mxu0 0.0
      %9039 = vmatpush.msra.mxu0 0.0
      %9040 = vmatpush.msra.mxu0 0.0
      %9041 = vmatpush.msra.mxu0 0.0
      %9042 = vmatpush.msra.mxu0 0.0
      %9043 = vmatpush.msra.mxu0 0.0
      %9044 = vmatpush.msra.mxu0 0.0
      %9045 = vmatpush.msra.mxu0 0.0
      %9046 = vmatpush.msra.mxu0 0.0
      %9047 = vmatpush.msra.mxu0 0.0
      %9048 = vmatpush.msra.mxu0 0.0
      %9049 = vmatpush.msra.mxu0 %v7023
      %9050 = vmatpush.msra.mxu0 %v7019
      %9051 = vmatmul.f32.gmra.mxu0 %v8601
      %v9052 = vpop.f32.mrf.mxu0
      %v9053 = vadd.f32 0.0, %v9052
      %9054 = vmatmul.f32.gmra.mxu0 %v8604
      %v9055 = vpop.f32.mrf.mxu0
      %v9056 = vadd.f32 0.0, %v9055
      %9057 = vmatmul.f32.gmra.mxu0 %v8607
      %v9058 = vpop.f32.mrf.mxu0
      %v9059 = vadd.f32 0.0, %v9058
      %9060 = vmatmul.f32.gmra.mxu0 %v8610
      %v9061 = vpop.f32.mrf.mxu0
      %v9062 = vadd.f32 0.0, %v9061
      %9063 = vmatmul.f32.gmra.mxu0 %v8613
      %v9064 = vpop.f32.mrf.mxu0
      %v9065 = vadd.f32 0.0, %v9064
      %9066 = vmatmul.f32.gmra.mxu0 %v8616
      %v9067 = vpop.f32.mrf.mxu0
      %v9068 = vadd.f32 0.0, %v9067
      %9069 = vmatmul.f32.gmra.mxu0 %v8619
      %v9070 = vpop.f32.mrf.mxu0
      %v9071 = vadd.f32 0.0, %v9070
      %9072 = vmatmul.f32.gmra.mxu0 %v8622
      %v9073 = vpop.f32.mrf.mxu0
      %v9074 = vadd.f32 0.0, %v9073
      %9075 = vmatmul.f32.gmra.mxu0 %v8625
      %v9076 = vpop.f32.mrf.mxu0
      %v9077 = vadd.f32 0.0, %v9076
      %9078 = vmatmul.f32.gmra.mxu0 %v8628
      %v9079 = vpop.f32.mrf.mxu0
      %v9080 = vadd.f32 0.0, %v9079
      %9081 = vmatmul.f32.gmra.mxu0 %v8631
      %v9082 = vpop.f32.mrf.mxu0
      %v9083 = vadd.f32 0.0, %v9082
      %9084 = vmatmul.f32.gmra.mxu0 %v8634
      %v9085 = vpop.f32.mrf.mxu0
      %v9086 = vadd.f32 0.0, %v9085
      %9087 = vmatmul.f32.gmra.mxu0 %v8637
      %v9088 = vpop.f32.mrf.mxu0
      %v9089 = vadd.f32 0.0, %v9088
      %9090 = vmatmul.f32.gmra.mxu0 %v8640
      %v9091 = vpop.f32.mrf.mxu0
      %v9092 = vadd.f32 0.0, %v9091
      %9093 = vmatmul.f32.gmra.mxu0 %v8643
      %v9094 = vpop.f32.mrf.mxu0
      %v9095 = vadd.f32 0.0, %v9094
      %9096 = vmatmul.f32.gmra.mxu0 %v8646
      %v9097 = vpop.f32.mrf.mxu0
      %v9098 = vadd.f32 0.0, %v9097
      %9099 = vmatmul.f32.gmra.mxu0 %v8649
      %v9100 = vpop.f32.mrf.mxu0
      %v9101 = vadd.f32 0.0, %v9100
      %9102 = vmatmul.f32.gmra.mxu0 %v8652
      %v9103 = vpop.f32.mrf.mxu0
      %v9104 = vadd.f32 0.0, %v9103
      %9105 = vmatmul.f32.gmra.mxu0 %v8655
      %v9106 = vpop.f32.mrf.mxu0
      %v9107 = vadd.f32 0.0, %v9106
      %9108 = vmatmul.f32.gmra.mxu0 %v8658
      %v9109 = vpop.f32.mrf.mxu0
      %v9110 = vadd.f32 0.0, %v9109
      %9111 = vmatmul.f32.gmra.mxu0 %v8661
      %v9112 = vpop.f32.mrf.mxu0
      %v9113 = vadd.f32 0.0, %v9112
      %9114 = vmatmul.f32.gmra.mxu0 %v8664
      %v9115 = vpop.f32.mrf.mxu0
      %v9116 = vadd.f32 0.0, %v9115
      %9117 = vmatmul.f32.gmra.mxu0 %v8667
      %v9118 = vpop.f32.mrf.mxu0
      %v9119 = vadd.f32 0.0, %v9118
      %9120 = vmatmul.f32.gmra.mxu0 %v8670
      %v9121 = vpop.f32.mrf.mxu0
      %v9122 = vadd.f32 0.0, %v9121
      %9123 = vmatmul.f32.gmra.mxu0 %v8673
      %v9124 = vpop.f32.mrf.mxu0
      %v9125 = vadd.f32 0.0, %v9124
      %9126 = vmatmul.f32.gmra.mxu0 %v8676
      %v9127 = vpop.f32.mrf.mxu0
      %v9128 = vadd.f32 0.0, %v9127
      %9129 = vmatmul.f32.gmra.mxu0 %v8679
      %v9130 = vpop.f32.mrf.mxu0
      %v9131 = vadd.f32 0.0, %v9130
      %9132 = vmatmul.f32.gmra.mxu0 %v8682
      %v9133 = vpop.f32.mrf.mxu0
      %v9134 = vadd.f32 0.0, %v9133
      %9135 = vmatmul.f32.gmra.mxu0 %v8685
      %v9136 = vpop.f32.mrf.mxu0
      %v9137 = vadd.f32 0.0, %v9136
      %9138 = vmatmul.f32.gmra.mxu0 %v8688
      %v9139 = vpop.f32.mrf.mxu0
      %v9140 = vadd.f32 0.0, %v9139
      %9141 = vmatmul.f32.gmra.mxu0 %v8691
      %v9142 = vpop.f32.mrf.mxu0
      %v9143 = vadd.f32 0.0, %v9142
      %9144 = vmatmul.f32.gmra.mxu0 %v8694
      %v9145 = vpop.f32.mrf.mxu0
      %v9146 = vadd.f32 0.0, %v9145
      %9147 = vdwg.mxu0
      %v9148 = vmul.f32 %v7572, %v8714
      %v9149 = vmul.f32 %v7573, %v8827
      %v9150 = vmul.f32 %v7574, %v8940
      %v9151 = vmul.f32 %v7575, %v9053
      %v9152 = vmul.f32 %v7576, %v8717
      %v9153 = vmul.f32 %v7577, %v8830
      %v9154 = vmul.f32 %v7578, %v8943
      %v9155 = vmul.f32 %v7579, %v9056
      %v9156 = vmul.f32 %v7580, %v8720
      %v9157 = vmul.f32 %v7581, %v8833
      %v9158 = vmul.f32 %v7582, %v8946
      %v9159 = vmul.f32 %v7583, %v9059
      %v9160 = vmul.f32 %v7584, %v8723
      %v9161 = vmul.f32 %v7585, %v8836
      %v9162 = vmul.f32 %v7586, %v8949
      %v9163 = vmul.f32 %v7587, %v9062
      %v9164 = vmul.f32 %v7588, %v8726
      %v9165 = vmul.f32 %v7589, %v8839
      %v9166 = vmul.f32 %v7590, %v8952
      %v9167 = vmul.f32 %v7591, %v9065
      %v9168 = vmul.f32 %v7592, %v8729
      %v9169 = vmul.f32 %v7593, %v8842
      %v9170 = vmul.f32 %v7594, %v8955
      %v9171 = vmul.f32 %v7595, %v9068
      %v9172 = vmul.f32 %v7596, %v8732
      %v9173 = vmul.f32 %v7597, %v8845
      %v9174 = vmul.f32 %v7598, %v8958
      %v9175 = vmul.f32 %v7599, %v9071
      %v9176 = vmul.f32 %v7600, %v8735
      %v9177 = vmul.f32 %v7601, %v8848
      %v9178 = vmul.f32 %v7602, %v8961
      %v9179 = vmul.f32 %v7603, %v9074
      %v9180 = vmul.f32 %v7604, %v8738
      %v9181 = vmul.f32 %v7605, %v8851
      %v9182 = vmul.f32 %v7606, %v8964
      %v9183 = vmul.f32 %v7607, %v9077
      %v9184 = vmul.f32 %v7608, %v8741
      %v9185 = vmul.f32 %v7609, %v8854
      %v9186 = vmul.f32 %v7610, %v8967
      %v9187 = vmul.f32 %v7611, %v9080
      %v9188 = vmul.f32 %v7612, %v8744
      %v9189 = vmul.f32 %v7613, %v8857
      %v9190 = vmul.f32 %v7614, %v8970
      %v9191 = vmul.f32 %v7615, %v9083
      %v9192 = vmul.f32 %v7616, %v8747
      %v9193 = vmul.f32 %v7617, %v8860
      %v9194 = vmul.f32 %v7618, %v8973
      %v9195 = vmul.f32 %v7619, %v9086
      %v9196 = vmul.f32 %v7620, %v8750
      %v9197 = vmul.f32 %v7621, %v8863
      %v9198 = vmul.f32 %v7622, %v8976
      %v9199 = vmul.f32 %v7623, %v9089
      %v9200 = vmul.f32 %v7624, %v8753
      %v9201 = vmul.f32 %v7625, %v8866
      %v9202 = vmul.f32 %v7626, %v8979
      %v9203 = vmul.f32 %v7627, %v9092
      %v9204 = vmul.f32 %v7628, %v8756
      %v9205 = vmul.f32 %v7629, %v8869
      %v9206 = vmul.f32 %v7630, %v8982
      %v9207 = vmul.f32 %v7631, %v9095
      %v9208 = vmul.f32 %v7632, %v8759
      %v9209 = vmul.f32 %v7633, %v8872
      %v9210 = vmul.f32 %v7634, %v8985
      %v9211 = vmul.f32 %v7635, %v9098
      %v9212 = vmul.f32 %v7636, %v8762
      %v9213 = vmul.f32 %v7637, %v8875
      %v9214 = vmul.f32 %v7638, %v8988
      %v9215 = vmul.f32 %v7639, %v9101
      %v9216 = vmul.f32 %v7640, %v8765
      %v9217 = vmul.f32 %v7641, %v8878
      %v9218 = vmul.f32 %v7642, %v8991
      %v9219 = vmul.f32 %v7643, %v9104
      %v9220 = vmul.f32 %v7644, %v8768
      %v9221 = vmul.f32 %v7645, %v8881
      %v9222 = vmul.f32 %v7646, %v8994
      %v9223 = vmul.f32 %v7647, %v9107
      %v9224 = vmul.f32 %v7648, %v8771
      %v9225 = vmul.f32 %v7649, %v8884
      %v9226 = vmul.f32 %v7650, %v8997
      %v9227 = vmul.f32 %v7651, %v9110
      %v9228 = vmul.f32 %v7652, %v8774
      %v9229 = vmul.f32 %v7653, %v8887
      %v9230 = vmul.f32 %v7654, %v9000
      %v9231 = vmul.f32 %v7655, %v9113
      %v9232 = vmul.f32 %v7656, %v8777
      %v9233 = vmul.f32 %v7657, %v8890
      %v9234 = vmul.f32 %v7658, %v9003
      %v9235 = vmul.f32 %v7659, %v9116
      %v9236 = vmul.f32 %v7660, %v8780
      %v9237 = vmul.f32 %v7661, %v8893
      %v9238 = vmul.f32 %v7662, %v9006
      %v9239 = vmul.f32 %v7663, %v9119
      %v9240 = vmul.f32 %v7664, %v8783
      %v9241 = vmul.f32 %v7665, %v8896
      %v9242 = vmul.f32 %v7666, %v9009
      %v9243 = vmul.f32 %v7667, %v9122
      %v9244 = vmul.f32 %v7668, %v8786
      %v9245 = vmul.f32 %v7669, %v8899
      %v9246 = vmul.f32 %v7670, %v9012
      %v9247 = vmul.f32 %v7671, %v9125
      %v9248 = vmul.f32 %v7672, %v8789
      %v9249 = vmul.f32 %v7673, %v8902
      %v9250 = vmul.f32 %v7674, %v9015
      %v9251 = vmul.f32 %v7675, %v9128
      %v9252 = vmul.f32 %v7676, %v8792
      %v9253 = vmul.f32 %v7677, %v8905
      %v9254 = vmul.f32 %v7678, %v9018
      %v9255 = vmul.f32 %v7679, %v9131
      %v9256 = vmul.f32 %v7680, %v8795
      %v9257 = vmul.f32 %v7681, %v8908
      %v9258 = vmul.f32 %v7682, %v9021
      %v9259 = vmul.f32 %v7683, %v9134
      %v9260 = vmul.f32 %v7684, %v8798
      %v9261 = vmul.f32 %v7685, %v8911
      %v9262 = vmul.f32 %v7686, %v9024
      %v9263 = vmul.f32 %v7687, %v9137
      %v9264 = vmul.f32 %v7688, %v8801
      %v9265 = vmul.f32 %v7689, %v8914
      %v9266 = vmul.f32 %v7690, %v9027
      %v9267 = vmul.f32 %v7691, %v9140
      %v9268 = vmul.f32 %v7692, %v8804
      %v9269 = vmul.f32 %v7693, %v8917
      %v9270 = vmul.f32 %v7694, %v9030
      %v9271 = vmul.f32 %v7695, %v9143
      %v9272 = vmul.f32 %v7696, %v8807
      %v9273 = vmul.f32 %v7697, %v8920
      %v9274 = vmul.f32 %v7698, %v9033
      %v9275 = vmul.f32 %v7699, %v9146
      %v9276 = vld [vmem:[%s11] sm:$0xf]
      %v9278 = vperm.slane %v9276, 0
      %v9279 = vperm.slane %v9276, 1
      %v9280 = vperm.slane %v9276, 2
      %v9281 = vperm.slane %v9276, 3
      %v9286 = vmul.f32 %v9148, %v9278
      %v9287 = vmul.f32 %v9149, %v9279
      %v9288 = vmul.f32 %v9150, %v9280
      %v9289 = vmul.f32 %v9151, %v9281
      %v9290 = vmul.f32 %v9152, %v9278
      %v9291 = vmul.f32 %v9153, %v9279
      %v9292 = vmul.f32 %v9154, %v9280
      %v9293 = vmul.f32 %v9155, %v9281
      %v9294 = vmul.f32 %v9156, %v9278
      %v9295 = vmul.f32 %v9157, %v9279
      %v9296 = vmul.f32 %v9158, %v9280
      %v9297 = vmul.f32 %v9159, %v9281
      %v9298 = vmul.f32 %v9160, %v9278
      %v9299 = vmul.f32 %v9161, %v9279
      %v9300 = vmul.f32 %v9162, %v9280
      %v9301 = vmul.f32 %v9163, %v9281
      %v9302 = vmul.f32 %v9164, %v9278
      %v9303 = vmul.f32 %v9165, %v9279
      %v9304 = vmul.f32 %v9166, %v9280
      %v9305 = vmul.f32 %v9167, %v9281
      %v9306 = vmul.f32 %v9168, %v9278
      %v9307 = vmul.f32 %v9169, %v9279
      %v9308 = vmul.f32 %v9170, %v9280
      %v9309 = vmul.f32 %v9171, %v9281
      %v9310 = vmul.f32 %v9172, %v9278
      %v9311 = vmul.f32 %v9173, %v9279
      %v9312 = vmul.f32 %v9174, %v9280
      %v9313 = vmul.f32 %v9175, %v9281
      %v9314 = vmul.f32 %v9176, %v9278
      %v9315 = vmul.f32 %v9177, %v9279
      %v9316 = vmul.f32 %v9178, %v9280
      %v9317 = vmul.f32 %v9179, %v9281
      %v9318 = vmul.f32 %v9180, %v9278
      %v9319 = vmul.f32 %v9181, %v9279
      %v9320 = vmul.f32 %v9182, %v9280
      %v9321 = vmul.f32 %v9183, %v9281
      %v9322 = vmul.f32 %v9184, %v9278
      %v9323 = vmul.f32 %v9185, %v9279
      %v9324 = vmul.f32 %v9186, %v9280
      %v9325 = vmul.f32 %v9187, %v9281
      %v9326 = vmul.f32 %v9188, %v9278
      %v9327 = vmul.f32 %v9189, %v9279
      %v9328 = vmul.f32 %v9190, %v9280
      %v9329 = vmul.f32 %v9191, %v9281
      %v9330 = vmul.f32 %v9192, %v9278
      %v9331 = vmul.f32 %v9193, %v9279
      %v9332 = vmul.f32 %v9194, %v9280
      %v9333 = vmul.f32 %v9195, %v9281
      %v9334 = vmul.f32 %v9196, %v9278
      %v9335 = vmul.f32 %v9197, %v9279
      %v9336 = vmul.f32 %v9198, %v9280
      %v9337 = vmul.f32 %v9199, %v9281
      %v9338 = vmul.f32 %v9200, %v9278
      %v9339 = vmul.f32 %v9201, %v9279
      %v9340 = vmul.f32 %v9202, %v9280
      %v9341 = vmul.f32 %v9203, %v9281
      %v9342 = vmul.f32 %v9204, %v9278
      %v9343 = vmul.f32 %v9205, %v9279
      %v9344 = vmul.f32 %v9206, %v9280
      %v9345 = vmul.f32 %v9207, %v9281
      %v9346 = vmul.f32 %v9208, %v9278
      %v9347 = vmul.f32 %v9209, %v9279
      %v9348 = vmul.f32 %v9210, %v9280
      %v9349 = vmul.f32 %v9211, %v9281
      %v9350 = vmul.f32 %v9212, %v9278
      %v9351 = vmul.f32 %v9213, %v9279
      %v9352 = vmul.f32 %v9214, %v9280
      %v9353 = vmul.f32 %v9215, %v9281
      %v9354 = vmul.f32 %v9216, %v9278
      %v9355 = vmul.f32 %v9217, %v9279
      %v9356 = vmul.f32 %v9218, %v9280
      %v9357 = vmul.f32 %v9219, %v9281
      %v9358 = vmul.f32 %v9220, %v9278
      %v9359 = vmul.f32 %v9221, %v9279
      %v9360 = vmul.f32 %v9222, %v9280
      %v9361 = vmul.f32 %v9223, %v9281
      %v9362 = vmul.f32 %v9224, %v9278
      %v9363 = vmul.f32 %v9225, %v9279
      %v9364 = vmul.f32 %v9226, %v9280
      %v9365 = vmul.f32 %v9227, %v9281
      %v9366 = vmul.f32 %v9228, %v9278
      %v9367 = vmul.f32 %v9229, %v9279
      %v9368 = vmul.f32 %v9230, %v9280
      %v9369 = vmul.f32 %v9231, %v9281
      %v9370 = vmul.f32 %v9232, %v9278
      %v9371 = vmul.f32 %v9233, %v9279
      %v9372 = vmul.f32 %v9234, %v9280
      %v9373 = vmul.f32 %v9235, %v9281
      %v9374 = vmul.f32 %v9236, %v9278
      %v9375 = vmul.f32 %v9237, %v9279
      %v9376 = vmul.f32 %v9238, %v9280
      %v9377 = vmul.f32 %v9239, %v9281
      %v9378 = vmul.f32 %v9240, %v9278
      %v9379 = vmul.f32 %v9241, %v9279
      %v9380 = vmul.f32 %v9242, %v9280
      %v9381 = vmul.f32 %v9243, %v9281
      %v9382 = vmul.f32 %v9244, %v9278
      %v9383 = vmul.f32 %v9245, %v9279
      %v9384 = vmul.f32 %v9246, %v9280
      %v9385 = vmul.f32 %v9247, %v9281
      %v9386 = vmul.f32 %v9248, %v9278
      %v9387 = vmul.f32 %v9249, %v9279
      %v9388 = vmul.f32 %v9250, %v9280
      %v9389 = vmul.f32 %v9251, %v9281
      %v9390 = vmul.f32 %v9252, %v9278
      %v9391 = vmul.f32 %v9253, %v9279
      %v9392 = vmul.f32 %v9254, %v9280
      %v9393 = vmul.f32 %v9255, %v9281
      %v9394 = vmul.f32 %v9256, %v9278
      %v9395 = vmul.f32 %v9257, %v9279
      %v9396 = vmul.f32 %v9258, %v9280
      %v9397 = vmul.f32 %v9259, %v9281
      %v9398 = vmul.f32 %v9260, %v9278
      %v9399 = vmul.f32 %v9261, %v9279
      %v9400 = vmul.f32 %v9262, %v9280
      %v9401 = vmul.f32 %v9263, %v9281
      %v9402 = vmul.f32 %v9264, %v9278
      %v9403 = vmul.f32 %v9265, %v9279
      %v9404 = vmul.f32 %v9266, %v9280
      %v9405 = vmul.f32 %v9267, %v9281
      %v9406 = vmul.f32 %v9268, %v9278
      %v9407 = vmul.f32 %v9269, %v9279
      %v9408 = vmul.f32 %v9270, %v9280
      %v9409 = vmul.f32 %v9271, %v9281
      %v9410 = vmul.f32 %v9272, %v9278
      %v9411 = vmul.f32 %v9273, %v9279
      %v9412 = vmul.f32 %v9274, %v9280
      %v9413 = vmul.f32 %v9275, %v9281
      %v9414 = vld [vmem:[%s12] sm:$0xf]
      %v9416 = vperm.slane %v9414, 0
      %v9417 = vperm.slane %v9414, 1
      %v9418 = vperm.slane %v9414, 2
      %v9419 = vperm.slane %v9414, 3
      %v9424 = vadd.f32 %v9286, %v9416
      %v9425 = vadd.f32 %v9287, %v9417
      %v9426 = vadd.f32 %v9288, %v9418
      %v9427 = vadd.f32 %v9289, %v9419
      %v9428 = vadd.f32 %v9290, %v9416
      %v9429 = vadd.f32 %v9291, %v9417
      %v9430 = vadd.f32 %v9292, %v9418
      %v9431 = vadd.f32 %v9293, %v9419
      %v9432 = vadd.f32 %v9294, %v9416
      %v9433 = vadd.f32 %v9295, %v9417
      %v9434 = vadd.f32 %v9296, %v9418
      %v9435 = vadd.f32 %v9297, %v9419
      %v9436 = vadd.f32 %v9298, %v9416
      %v9437 = vadd.f32 %v9299, %v9417
      %v9438 = vadd.f32 %v9300, %v9418
      %v9439 = vadd.f32 %v9301, %v9419
      %v9440 = vadd.f32 %v9302, %v9416
      %v9441 = vadd.f32 %v9303, %v9417
      %v9442 = vadd.f32 %v9304, %v9418
      %v9443 = vadd.f32 %v9305, %v9419
      %v9444 = vadd.f32 %v9306, %v9416
      %v9445 = vadd.f32 %v9307, %v9417
      %v9446 = vadd.f32 %v9308, %v9418
      %v9447 = vadd.f32 %v9309, %v9419
      %v9448 = vadd.f32 %v9310, %v9416
      %v9449 = vadd.f32 %v9311, %v9417
      %v9450 = vadd.f32 %v9312, %v9418
      %v9451 = vadd.f32 %v9313, %v9419
      %v9452 = vadd.f32 %v9314, %v9416
      %v9453 = vadd.f32 %v9315, %v9417
      %v9454 = vadd.f32 %v9316, %v9418
      %v9455 = vadd.f32 %v9317, %v9419
      %v9456 = vadd.f32 %v9318, %v9416
      %v9457 = vadd.f32 %v9319, %v9417
      %v9458 = vadd.f32 %v9320, %v9418
      %v9459 = vadd.f32 %v9321, %v9419
      %v9460 = vadd.f32 %v9322, %v9416
      %v9461 = vadd.f32 %v9323, %v9417
      %v9462 = vadd.f32 %v9324, %v9418
      %v9463 = vadd.f32 %v9325, %v9419
      %v9464 = vadd.f32 %v9326, %v9416
      %v9465 = vadd.f32 %v9327, %v9417
      %v9466 = vadd.f32 %v9328, %v9418
      %v9467 = vadd.f32 %v9329, %v9419
      %v9468 = vadd.f32 %v9330, %v9416
      %v9469 = vadd.f32 %v9331, %v9417
      %v9470 = vadd.f32 %v9332, %v9418
      %v9471 = vadd.f32 %v9333, %v9419
      %v9472 = vadd.f32 %v9334, %v9416
      %v9473 = vadd.f32 %v9335, %v9417
      %v9474 = vadd.f32 %v9336, %v9418
      %v9475 = vadd.f32 %v9337, %v9419
      %v9476 = vadd.f32 %v9338, %v9416
      %v9477 = vadd.f32 %v9339, %v9417
      %v9478 = vadd.f32 %v9340, %v9418
      %v9479 = vadd.f32 %v9341, %v9419
      %v9480 = vadd.f32 %v9342, %v9416
      %v9481 = vadd.f32 %v9343, %v9417
      %v9482 = vadd.f32 %v9344, %v9418
      %v9483 = vadd.f32 %v9345, %v9419
      %v9484 = vadd.f32 %v9346, %v9416
      %v9485 = vadd.f32 %v9347, %v9417
      %v9486 = vadd.f32 %v9348, %v9418
      %v9487 = vadd.f32 %v9349, %v9419
      %v9488 = vadd.f32 %v9350, %v9416
      %v9489 = vadd.f32 %v9351, %v9417
      %v9490 = vadd.f32 %v9352, %v9418
      %v9491 = vadd.f32 %v9353, %v9419
      %v9492 = vadd.f32 %v9354, %v9416
      %v9493 = vadd.f32 %v9355, %v9417
      %v9494 = vadd.f32 %v9356, %v9418
      %v9495 = vadd.f32 %v9357, %v9419
      %v9496 = vadd.f32 %v9358, %v9416
      %v9497 = vadd.f32 %v9359, %v9417
      %v9498 = vadd.f32 %v9360, %v9418
      %v9499 = vadd.f32 %v9361, %v9419
      %v9500 = vadd.f32 %v9362, %v9416
      %v9501 = vadd.f32 %v9363, %v9417
      %v9502 = vadd.f32 %v9364, %v9418
      %v9503 = vadd.f32 %v9365, %v9419
      %v9504 = vadd.f32 %v9366, %v9416
      %v9505 = vadd.f32 %v9367, %v9417
      %v9506 = vadd.f32 %v9368, %v9418
      %v9507 = vadd.f32 %v9369, %v9419
      %v9508 = vadd.f32 %v9370, %v9416
      %v9509 = vadd.f32 %v9371, %v9417
      %v9510 = vadd.f32 %v9372, %v9418
      %v9511 = vadd.f32 %v9373, %v9419
      %v9512 = vadd.f32 %v9374, %v9416
      %v9513 = vadd.f32 %v9375, %v9417
      %v9514 = vadd.f32 %v9376, %v9418
      %v9515 = vadd.f32 %v9377, %v9419
      %v9516 = vadd.f32 %v9378, %v9416
      %v9517 = vadd.f32 %v9379, %v9417
      %v9518 = vadd.f32 %v9380, %v9418
      %v9519 = vadd.f32 %v9381, %v9419
      %v9520 = vadd.f32 %v9382, %v9416
      %v9521 = vadd.f32 %v9383, %v9417
      %v9522 = vadd.f32 %v9384, %v9418
      %v9523 = vadd.f32 %v9385, %v9419
      %v9524 = vadd.f32 %v9386, %v9416
      %v9525 = vadd.f32 %v9387, %v9417
      %v9526 = vadd.f32 %v9388, %v9418
      %v9527 = vadd.f32 %v9389, %v9419
      %v9528 = vadd.f32 %v9390, %v9416
      %v9529 = vadd.f32 %v9391, %v9417
      %v9530 = vadd.f32 %v9392, %v9418
      %v9531 = vadd.f32 %v9393, %v9419
      %v9532 = vadd.f32 %v9394, %v9416
      %v9533 = vadd.f32 %v9395, %v9417
      %v9534 = vadd.f32 %v9396, %v9418
      %v9535 = vadd.f32 %v9397, %v9419
      %v9536 = vadd.f32 %v9398, %v9416
      %v9537 = vadd.f32 %v9399, %v9417
      %v9538 = vadd.f32 %v9400, %v9418
      %v9539 = vadd.f32 %v9401, %v9419
      %v9540 = vadd.f32 %v9402, %v9416
      %v9541 = vadd.f32 %v9403, %v9417
      %v9542 = vadd.f32 %v9404, %v9418
      %v9543 = vadd.f32 %v9405, %v9419
      %v9544 = vadd.f32 %v9406, %v9416
      %v9545 = vadd.f32 %v9407, %v9417
      %v9546 = vadd.f32 %v9408, %v9418
      %v9547 = vadd.f32 %v9409, %v9419
      %v9548 = vadd.f32 %v9410, %v9416
      %v9549 = vadd.f32 %v9411, %v9417
      %v9550 = vadd.f32 %v9412, %v9418
      %v9551 = vadd.f32 %v9413, %v9419
      %v9552 = vmax.f32 %v9424, 0.0
      %v9553 = vmax.f32 %v9425, 0.0
      %v9554 = vmax.f32 %v9426, 0.0
      %v9555 = vmax.f32 %v9427, 0.0
      %v9556 = vmax.f32 %v9428, 0.0
      %v9557 = vmax.f32 %v9429, 0.0
      %v9558 = vmax.f32 %v9430, 0.0
      %v9559 = vmax.f32 %v9431, 0.0
      %v9560 = vmax.f32 %v9432, 0.0
      %v9561 = vmax.f32 %v9433, 0.0
      %v9562 = vmax.f32 %v9434, 0.0
      %v9563 = vmax.f32 %v9435, 0.0
      %v9564 = vmax.f32 %v9436, 0.0
      %v9565 = vmax.f32 %v9437, 0.0
      %v9566 = vmax.f32 %v9438, 0.0
      %v9567 = vmax.f32 %v9439, 0.0
      %v9568 = vmax.f32 %v9440, 0.0
      %v9569 = vmax.f32 %v9441, 0.0
      %v9570 = vmax.f32 %v9442, 0.0
      %v9571 = vmax.f32 %v9443, 0.0
      %v9572 = vmax.f32 %v9444, 0.0
      %v9573 = vmax.f32 %v9445, 0.0
      %v9574 = vmax.f32 %v9446, 0.0
      %v9575 = vmax.f32 %v9447, 0.0
      %v9576 = vmax.f32 %v9448, 0.0
      %v9577 = vmax.f32 %v9449, 0.0
      %v9578 = vmax.f32 %v9450, 0.0
      %v9579 = vmax.f32 %v9451, 0.0
      %v9580 = vmax.f32 %v9452, 0.0
      %v9581 = vmax.f32 %v9453, 0.0
      %v9582 = vmax.f32 %v9454, 0.0
      %v9583 = vmax.f32 %v9455, 0.0
      %v9584 = vmax.f32 %v9456, 0.0
      %v9585 = vmax.f32 %v9457, 0.0
      %v9586 = vmax.f32 %v9458, 0.0
      %v9587 = vmax.f32 %v9459, 0.0
      %v9588 = vmax.f32 %v9460, 0.0
      %v9589 = vmax.f32 %v9461, 0.0
      %v9590 = vmax.f32 %v9462, 0.0
      %v9591 = vmax.f32 %v9463, 0.0
      %v9592 = vmax.f32 %v9464, 0.0
      %v9593 = vmax.f32 %v9465, 0.0
      %v9594 = vmax.f32 %v9466, 0.0
      %v9595 = vmax.f32 %v9467, 0.0
      %v9596 = vmax.f32 %v9468, 0.0
      %v9597 = vmax.f32 %v9469, 0.0
      %v9598 = vmax.f32 %v9470, 0.0
      %v9599 = vmax.f32 %v9471, 0.0
      %v9600 = vmax.f32 %v9472, 0.0
      %v9601 = vmax.f32 %v9473, 0.0
      %v9602 = vmax.f32 %v9474, 0.0
      %v9603 = vmax.f32 %v9475, 0.0
      %v9604 = vmax.f32 %v9476, 0.0
      %v9605 = vmax.f32 %v9477, 0.0
      %v9606 = vmax.f32 %v9478, 0.0
      %v9607 = vmax.f32 %v9479, 0.0
      %v9608 = vmax.f32 %v9480, 0.0
      %v9609 = vmax.f32 %v9481, 0.0
      %v9610 = vmax.f32 %v9482, 0.0
      %v9611 = vmax.f32 %v9483, 0.0
      %v9612 = vmax.f32 %v9484, 0.0
      %v9613 = vmax.f32 %v9485, 0.0
      %v9614 = vmax.f32 %v9486, 0.0
      %v9615 = vmax.f32 %v9487, 0.0
      %v9616 = vmax.f32 %v9488, 0.0
      %v9617 = vmax.f32 %v9489, 0.0
      %v9618 = vmax.f32 %v9490, 0.0
      %v9619 = vmax.f32 %v9491, 0.0
      %v9620 = vmax.f32 %v9492, 0.0
      %v9621 = vmax.f32 %v9493, 0.0
      %v9622 = vmax.f32 %v9494, 0.0
      %v9623 = vmax.f32 %v9495, 0.0
      %v9624 = vmax.f32 %v9496, 0.0
      %v9625 = vmax.f32 %v9497, 0.0
      %v9626 = vmax.f32 %v9498, 0.0
      %v9627 = vmax.f32 %v9499, 0.0
      %v9628 = vmax.f32 %v9500, 0.0
      %v9629 = vmax.f32 %v9501, 0.0
      %v9630 = vmax.f32 %v9502, 0.0
      %v9631 = vmax.f32 %v9503, 0.0
      %v9632 = vmax.f32 %v9504, 0.0
      %v9633 = vmax.f32 %v9505, 0.0
      %v9634 = vmax.f32 %v9506, 0.0
      %v9635 = vmax.f32 %v9507, 0.0
      %v9636 = vmax.f32 %v9508, 0.0
      %v9637 = vmax.f32 %v9509, 0.0
      %v9638 = vmax.f32 %v9510, 0.0
      %v9639 = vmax.f32 %v9511, 0.0
      %v9640 = vmax.f32 %v9512, 0.0
      %v9641 = vmax.f32 %v9513, 0.0
      %v9642 = vmax.f32 %v9514, 0.0
      %v9643 = vmax.f32 %v9515, 0.0
      %v9644 = vmax.f32 %v9516, 0.0
      %v9645 = vmax.f32 %v9517, 0.0
      %v9646 = vmax.f32 %v9518, 0.0
      %v9647 = vmax.f32 %v9519, 0.0
      %v9648 = vmax.f32 %v9520, 0.0
      %v9649 = vmax.f32 %v9521, 0.0
      %v9650 = vmax.f32 %v9522, 0.0
      %v9651 = vmax.f32 %v9523, 0.0
      %v9652 = vmax.f32 %v9524, 0.0
      %v9653 = vmax.f32 %v9525, 0.0
      %v9654 = vmax.f32 %v9526, 0.0
      %v9655 = vmax.f32 %v9527, 0.0
      %v9656 = vmax.f32 %v9528, 0.0
      %v9657 = vmax.f32 %v9529, 0.0
      %v9658 = vmax.f32 %v9530, 0.0
      %v9659 = vmax.f32 %v9531, 0.0
      %v9660 = vmax.f32 %v9532, 0.0
      %v9661 = vmax.f32 %v9533, 0.0
      %v9662 = vmax.f32 %v9534, 0.0
      %v9663 = vmax.f32 %v9535, 0.0
      %v9664 = vmax.f32 %v9536, 0.0
      %v9665 = vmax.f32 %v9537, 0.0
      %v9666 = vmax.f32 %v9538, 0.0
      %v9667 = vmax.f32 %v9539, 0.0
      %v9668 = vmax.f32 %v9540, 0.0
      %v9669 = vmax.f32 %v9541, 0.0
      %v9670 = vmax.f32 %v9542, 0.0
      %v9671 = vmax.f32 %v9543, 0.0
      %v9672 = vmax.f32 %v9544, 0.0
      %v9673 = vmax.f32 %v9545, 0.0
      %v9674 = vmax.f32 %v9546, 0.0
      %v9675 = vmax.f32 %v9547, 0.0
      %v9676 = vmax.f32 %v9548, 0.0
      %v9677 = vmax.f32 %v9549, 0.0
      %v9678 = vmax.f32 %v9550, 0.0
      %v9679 = vmax.f32 %v9551, 0.0
      %9680 = vst [vmem:[%s444] sm:$0xff] %v9552
      %9681 = vst [vmem:[%s444 + $0x8] sm:$0xff] %v9553
      %9682 = vst [vmem:[%s444 + $0x10] sm:$0xff] %v9554
      %9683 = vst [vmem:[%s444 + $0x18] sm:$0xff] %v9555
      %9684 = vst [vmem:[%s444 + $0x20] sm:$0xff] %v9556
      %9685 = vst [vmem:[%s444 + $0x28] sm:$0xff] %v9557
      %9686 = vst [vmem:[%s444 + $0x30] sm:$0xff] %v9558
      %9687 = vst [vmem:[%s444 + $0x38] sm:$0xff] %v9559
      %9688 = vst [vmem:[%s444 + $0x40] sm:$0xff] %v9560
      %9689 = vst [vmem:[%s444 + $0x48] sm:$0xff] %v9561
      %9690 = vst [vmem:[%s444 + $0x50] sm:$0xff] %v9562
      %9691 = vst [vmem:[%s444 + $0x58] sm:$0xff] %v9563
      %9692 = vst [vmem:[%s444 + $0x60] sm:$0xff] %v9564
      %9693 = vst [vmem:[%s444 + $0x68] sm:$0xff] %v9565
      %9694 = vst [vmem:[%s444 + $0x70] sm:$0xff] %v9566
      %9695 = vst [vmem:[%s444 + $0x78] sm:$0xff] %v9567
      %9696 = vst [vmem:[%s444 + $0x80] sm:$0xff] %v9568
      %9697 = vst [vmem:[%s444 + $0x88] sm:$0xff] %v9569
      %9698 = vst [vmem:[%s444 + $0x90] sm:$0xff] %v9570
      %9699 = vst [vmem:[%s444 + $0x98] sm:$0xff] %v9571
      %9700 = vst [vmem:[%s444 + $0xa0] sm:$0xff] %v9572
      %9701 = vst [vmem:[%s444 + $0xa8] sm:$0xff] %v9573
      %9702 = vst [vmem:[%s444 + $0xb0] sm:$0xff] %v9574
      %9703 = vst [vmem:[%s444 + $0xb8] sm:$0xff] %v9575
      %9704 = vst [vmem:[%s444 + $0xc0] sm:$0xff] %v9576
      %9705 = vst [vmem:[%s444 + $0xc8] sm:$0xff] %v9577
      %9706 = vst [vmem:[%s444 + $0xd0] sm:$0xff] %v9578
      %9707 = vst [vmem:[%s444 + $0xd8] sm:$0xff] %v9579
      %9708 = vst [vmem:[%s444 + $0xe0] sm:$0xff] %v9580
      %9709 = vst [vmem:[%s444 + $0xe8] sm:$0xff] %v9581
      %9710 = vst [vmem:[%s444 + $0xf0] sm:$0xff] %v9582
      %9711 = vst [vmem:[%s444 + $0xf8] sm:$0xff] %v9583
      %9712 = vst [vmem:[%s444 + $0x100] sm:$0xff] %v9584
      %9713 = vst [vmem:[%s444 + $0x108] sm:$0xff] %v9585
      %9714 = vst [vmem:[%s444 + $0x110] sm:$0xff] %v9586
      %9715 = vst [vmem:[%s444 + $0x118] sm:$0xff] %v9587
      %9716 = vst [vmem:[%s444 + $0x120] sm:$0xff] %v9588
      %9717 = vst [vmem:[%s444 + $0x128] sm:$0xff] %v9589
      %9718 = vst [vmem:[%s444 + $0x130] sm:$0xff] %v9590
      %9719 = vst [vmem:[%s444 + $0x138] sm:$0xff] %v9591
      %9720 = vst [vmem:[%s444 + $0x140] sm:$0xff] %v9592
      %9721 = vst [vmem:[%s444 + $0x148] sm:$0xff] %v9593
      %9722 = vst [vmem:[%s444 + $0x150] sm:$0xff] %v9594
      %9723 = vst [vmem:[%s444 + $0x158] sm:$0xff] %v9595
      %9724 = vst [vmem:[%s444 + $0x160] sm:$0xff] %v9596
      %9725 = vst [vmem:[%s444 + $0x168] sm:$0xff] %v9597
      %9726 = vst [vmem:[%s444 + $0x170] sm:$0xff] %v9598
      %9727 = vst [vmem:[%s444 + $0x178] sm:$0xff] %v9599
      %9728 = vst [vmem:[%s444 + $0x180] sm:$0xff] %v9600
      %9729 = vst [vmem:[%s444 + $0x188] sm:$0xff] %v9601
      %9730 = vst [vmem:[%s444 + $0x190] sm:$0xff] %v9602
      %9731 = vst [vmem:[%s444 + $0x198] sm:$0xff] %v9603
      %9732 = vst [vmem:[%s444 + $0x1a0] sm:$0xff] %v9604
      %9733 = vst [vmem:[%s444 + $0x1a8] sm:$0xff] %v9605
      %9734 = vst [vmem:[%s444 + $0x1b0] sm:$0xff] %v9606
      %9735 = vst [vmem:[%s444 + $0x1b8] sm:$0xff] %v9607
      %9736 = vst [vmem:[%s444 + $0x1c0] sm:$0xff] %v9608
      %9737 = vst [vmem:[%s444 + $0x1c8] sm:$0xff] %v9609
      %9738 = vst [vmem:[%s444 + $0x1d0] sm:$0xff] %v9610
      %9739 = vst [vmem:[%s444 + $0x1d8] sm:$0xff] %v9611
      %9740 = vst [vmem:[%s444 + $0x1e0] sm:$0xff] %v9612
      %9741 = vst [vmem:[%s444 + $0x1e8] sm:$0xff] %v9613
      %9742 = vst [vmem:[%s444 + $0x1f0] sm:$0xff] %v9614
      %9743 = vst [vmem:[%s444 + $0x1f8] sm:$0xff] %v9615
      %9744 = vst [vmem:[%s444 + $0x200] sm:$0xff] %v9616
      %9745 = vst [vmem:[%s444 + $0x208] sm:$0xff] %v9617
      %9746 = vst [vmem:[%s444 + $0x210] sm:$0xff] %v9618
      %9747 = vst [vmem:[%s444 + $0x218] sm:$0xff] %v9619
      %9748 = vst [vmem:[%s444 + $0x220] sm:$0xff] %v9620
      %9749 = vst [vmem:[%s444 + $0x228] sm:$0xff] %v9621
      %9750 = vst [vmem:[%s444 + $0x230] sm:$0xff] %v9622
      %9751 = vst [vmem:[%s444 + $0x238] sm:$0xff] %v9623
      %9752 = vst [vmem:[%s444 + $0x240] sm:$0xff] %v9624
      %9753 = vst [vmem:[%s444 + $0x248] sm:$0xff] %v9625
      %9754 = vst [vmem:[%s444 + $0x250] sm:$0xff] %v9626
      %9755 = vst [vmem:[%s444 + $0x258] sm:$0xff] %v9627
      %9756 = vst [vmem:[%s444 + $0x260] sm:$0xff] %v9628
      %9757 = vst [vmem:[%s444 + $0x268] sm:$0xff] %v9629
      %9758 = vst [vmem:[%s444 + $0x270] sm:$0xff] %v9630
      %9759 = vst [vmem:[%s444 + $0x278] sm:$0xff] %v9631
      %9760 = vst [vmem:[%s444 + $0x280] sm:$0xff] %v9632
      %9761 = vst [vmem:[%s444 + $0x288] sm:$0xff] %v9633
      %9762 = vst [vmem:[%s444 + $0x290] sm:$0xff] %v9634
      %9763 = vst [vmem:[%s444 + $0x298] sm:$0xff] %v9635
      %9764 = vst [vmem:[%s444 + $0x2a0] sm:$0xff] %v9636
      %9765 = vst [vmem:[%s444 + $0x2a8] sm:$0xff] %v9637
      %9766 = vst [vmem:[%s444 + $0x2b0] sm:$0xff] %v9638
      %9767 = vst [vmem:[%s444 + $0x2b8] sm:$0xff] %v9639
      %9768 = vst [vmem:[%s444 + $0x2c0] sm:$0xff] %v9640
      %9769 = vst [vmem:[%s444 + $0x2c8] sm:$0xff] %v9641
      %9770 = vst [vmem:[%s444 + $0x2d0] sm:$0xff] %v9642
      %9771 = vst [vmem:[%s444 + $0x2d8] sm:$0xff] %v9643
      %9772 = vst [vmem:[%s444 + $0x2e0] sm:$0xff] %v9644
      %9773 = vst [vmem:[%s444 + $0x2e8] sm:$0xff] %v9645
      %9774 = vst [vmem:[%s444 + $0x2f0] sm:$0xff] %v9646
      %9775 = vst [vmem:[%s444 + $0x2f8] sm:$0xff] %v9647
      %9776 = vst [vmem:[%s444 + $0x300] sm:$0xff] %v9648
      %9777 = vst [vmem:[%s444 + $0x308] sm:$0xff] %v9649
      %9778 = vst [vmem:[%s444 + $0x310] sm:$0xff] %v9650
      %9779 = vst [vmem:[%s444 + $0x318] sm:$0xff] %v9651
      %9780 = vst [vmem:[%s444 + $0x320] sm:$0xff] %v9652
      %9781 = vst [vmem:[%s444 + $0x328] sm:$0xff] %v9653
      %9782 = vst [vmem:[%s444 + $0x330] sm:$0xff] %v9654
      %9783 = vst [vmem:[%s444 + $0x338] sm:$0xff] %v9655
      %9784 = vst [vmem:[%s444 + $0x340] sm:$0xff] %v9656
      %9785 = vst [vmem:[%s444 + $0x348] sm:$0xff] %v9657
      %9786 = vst [vmem:[%s444 + $0x350] sm:$0xff] %v9658
      %9787 = vst [vmem:[%s444 + $0x358] sm:$0xff] %v9659
      %9788 = vst [vmem:[%s444 + $0x360] sm:$0xff] %v9660
      %9789 = vst [vmem:[%s444 + $0x368] sm:$0xff] %v9661
      %9790 = vst [vmem:[%s444 + $0x370] sm:$0xff] %v9662
      %9791 = vst [vmem:[%s444 + $0x378] sm:$0xff] %v9663
      %9792 = vst [vmem:[%s444 + $0x380] sm:$0xff] %v9664
      %9793 = vst [vmem:[%s444 + $0x388] sm:$0xff] %v9665
      %9794 = vst [vmem:[%s444 + $0x390] sm:$0xff] %v9666
      %9795 = vst [vmem:[%s444 + $0x398] sm:$0xff] %v9667
      %9796 = vst [vmem:[%s444 + $0x3a0] sm:$0xff] %v9668
      %9797 = vst [vmem:[%s444 + $0x3a8] sm:$0xff] %v9669
      %9798 = vst [vmem:[%s444 + $0x3b0] sm:$0xff] %v9670
      %9799 = vst [vmem:[%s444 + $0x3b8] sm:$0xff] %v9671
      %9800 = vst [vmem:[%s444 + $0x3c0] sm:$0xff] %v9672
      %9801 = vst [vmem:[%s444 + $0x3c8] sm:$0xff] %v9673
      %9802 = vst [vmem:[%s444 + $0x3d0] sm:$0xff] %v9674
      %9803 = vst [vmem:[%s444 + $0x3d8] sm:$0xff] %v9675
      %9804 = vst [vmem:[%s444 + $0x3e0] sm:$0xff] %v9676
      %9805 = vst [vmem:[%s444 + $0x3e8] sm:$0xff] %v9677
      %9806 = vst [vmem:[%s444 + $0x3f0] sm:$0xff] %v9678
      %9807 = vst [vmem:[%s444 + $0x3f8] sm:$0xff] %v9679
      %s9808 = smul.u32 32, %s24
      %p9809 = scmp.lt.s32.totalorder %s9808, 63
      %s9810 = scalar_select %p9809, %s9808, 63
      %s9811 = smul.addr %s9810, 4
      %s9812 = smul.addr %s9811, 8
      %s9813 = scalar_lea.vmem %s13, %s9812
      // Predicated region
      $region73: #{skeleton_gnn_encoder.1} parent=71 // pred_check
        %p9814 = pneg %p320
      $region74: #{skeleton_gnn_encoder.1} parent=71 // pred_check_branch
        %9816 = sbr.rel (%p9814) target = $region76
      $region75: #{skeleton_gnn_encoder.1} parent=71 // pred_region
        %s9817 = smul.u32 32, %s24
      $region76: #{skeleton_gnn_encoder.1} parent=71 // pred_fallthru
        _
    $region72: #{skeleton_gnn_encoder.1} parent=5 // pred_fallthru
      _
    %p9818 = scmp.le.s32.totalorder 2, %s19
    // Predicated region
    $region77: #{skeleton_gnn_encoder.1} parent=5 // pred_check
      %p9819 = pneg %p9818
    $region78: #{skeleton_gnn_encoder.1} parent=5 // pred_check_branch
      %9821 = sbr.rel (%p9819) target = $region80
    $region79: #{skeleton_gnn_encoder.1} parent=5 // pred_region
      %s9822 = ssub.s32 %s19, 2
      // Predicated region
      $region81: #{skeleton_gnn_encoder.1} parent=79 // pred_check
        %p9823 = pneg %p326
      $region82: #{skeleton_gnn_encoder.1} parent=79 // pred_check_branch
        %9825 = sbr.rel (%p9823) target = $region84
      $region83: #{skeleton_gnn_encoder.1} parent=79 // pred_region
        %s9826 = smul.u32 32, %s25
        %p9827 = scmp.lt.s32.totalorder %s9826, 63
        %s9828 = scalar_select %p9827, %s9826, 63
        %s9829 = smul.addr %s9828, 4
        %s9830 = smul.addr %s9829, 8
        %s9831 = scalar_lea.vmem %s13, %s9830
      $region84: #{skeleton_gnn_encoder.1} parent=79 // pred_fallthru
        _
    $region80: #{skeleton_gnn_encoder.1} parent=5 // pred_fallthru
      _
  $region6: #{skeleton_gnn_encoder.1} parent=0 // loop_footer
    %s23 = sadd.s32 1, %s19
  $region7: #{skeleton_gnn_encoder.1} parent=0 // loop_footer_branch
    %18 = sbr.rel target = $region3
  $region8: #{skeleton_gnn_encoder.1} parent=0 // loop_exit
    _

</llo_original>
